<compile_context>
chip_gen: v5e
topology: v5e:2x2
jax: 0.10.0
libtpu: 0.0.40
codegen_flags: <defaults>
</compile_context>

<pallas_src>
import functools

import jax
import jax.numpy as jnp
import numpy as np
from jax import lax
from jax.experimental import pallas as pl
from jax.experimental.pallas import tpu as pltpu

EPS = 1e-5
LANE = 128


def _round_up(x, m):
    return (x + m - 1) // m * m


def _zero_border(pad_ref):
    """Zero the 1-pixel spatial border of a (P, Hp, Wp, C) padded scratch.

    Only border strips are written (the interior is rewritten every step by
    the caller *after* this).  The W-side strips are written 8 sublanes wide
    (overlapping interior columns that get overwritten next) so no 1-sublane
    masked stores are needed."""
    P, Hp, Wp, C = pad_ref.shape
    dt = pad_ref.dtype
    z_row = jnp.zeros((P, 1, Wp, C), dt)
    pad_ref[:, pl.ds(0, 1), :, :] = z_row
    pad_ref[:, pl.ds(Hp - 1, 1), :, :] = z_row
    z_col = jnp.zeros((P, Hp, 8, C), dt)
    pad_ref[:, :, pl.ds(0, 8), :] = z_col
    pad_ref[:, :, pl.ds(Wp - 8, 8), :] = z_col


def _fill_col(pad_ref, col_ref, b_tile, Ho, Wo, C, stride):
    """im2col: copy the nine (stride-aware) tap windows of the padded phase
    scratch into one (b_tile*Ho*Wo, 9*C) matrix (lane-aligned column slots)."""
    m = b_tile * Ho * Wo
    t = 0
    for kh in range(3):
        pa, qh = (kh - 1) % stride, (kh - 1) // stride
        for kw in range(3):
            pb, qw = (kw - 1) % stride, (kw - 1) // stride
            ph = pa * stride + pb
            patch = pad_ref[pl.ds(ph * b_tile, b_tile),
                            pl.ds(qh + 1, Ho),
                            pl.ds(qw + 1, Wo), :]
            col_ref[:, pl.ds(t * C, C)] = patch.reshape(m, C).astype(col_ref.dtype)
            t += 1


def basic_block_kernel(*refs, stride, b_tile, n_phase, equal_in_out,
                       apply_bn1, Ho, Wo, Ci_p, Co_p):
    it = iter(refs)
    x_phase = [next(it) for _ in range(n_phase)]
    s1_ref = b1_ref = None
    if apply_bn1:
        s1_ref, b1_ref = next(it), next(it)
    w1_ref = next(it)
    s2_ref, b2_ref = next(it), next(it)
    w2_ref = next(it)
    ws_ref = None if equal_in_out else next(it)
    o_ref = next(it)
    pad1_ref, pad2_ref, col1_ref, col2_ref = next(it), next(it), next(it), next(it)

    m = b_tile * Ho * Wo

    # Zero only the 1-pixel padding border; done every step (see header note
    # about "parallel" batch axis + per-core scratch on multi-TC chips).
    _zero_border(pad1_ref)
    _zero_border(pad2_ref)

    # ---- bn1 + relu1 (or identity: module discards it on that path) --------
    s1 = s1_ref[...] if apply_bn1 else None      # hoisted out of phase loop
    b1 = b1_ref[...] if apply_bn1 else None
    x0_raw = None                                # raw phase-0 x (identity residual)
    for ph in range(n_phase):
        xp = x_phase[ph][...]                    # (b, Ho, Wo, Ci_p) f32
        if ph == 0:
            x0_raw = xp
        base = jnp.maximum(xp * s1 + b1, 0.0) if apply_bn1 else xp
        pad1_ref[pl.ds(ph * b_tile, b_tile),
                 pl.ds(1, Ho), pl.ds(1, Wo), :] = base.astype(pad1_ref.dtype)

    # ---- conv1: 3x3, stride s, pad 1 — single im2col matmul (bf16 -> f32) --
    _fill_col(pad1_ref, col1_ref, b_tile, Ho, Wo, Ci_p, stride)
    y1 = jnp.dot(col1_ref[...], w1_ref[...],
                 preferred_element_type=jnp.float32)        # (m, Co_p)

    # ---- bn2 + relu2 --------------------------------------------------------
    a2 = jnp.maximum(y1 * s2_ref[...] + b2_ref[...], 0.0)

    # ---- conv2: 3x3, stride 1, pad 1 — same im2col scheme -------------------
    pad2_ref[:, pl.ds(1, Ho), pl.ds(1, Wo), :] = (
        a2.reshape(b_tile, Ho, Wo, Co_p).astype(pad2_ref.dtype))
    _fill_col(pad2_ref, col2_ref, b_tile, Ho, Wo, Co_p, 1)
    y2 = jnp.dot(col2_ref[...], w2_ref[...],
                 preferred_element_type=jnp.float32)        # (m, Co_p)

    # ---- shortcut / residual add -------------------------------------------
    if equal_in_out:
        residual = x0_raw.reshape(m, Co_p)                  # identity: raw x
    else:
        # 1x1 stride-s conv on the same base the module feeds conv1 with
        # (phase (0,0) interior of the scratch).
        sc_in = pad1_ref[pl.ds(0, b_tile), pl.ds(1, Ho), pl.ds(1, Wo), :]
        residual = jnp.dot(sc_in.reshape(m, Ci_p), ws_ref[...],
                           preferred_element_type=jnp.float32)

    o_ref[...] = (y2 + residual).astype(o_ref.dtype)        # flat (m, Co_p), lane-dense


def _pad_last(a, target):
    pad = target - a.shape[-1]
    if pad == 0:
        return a
    return jnp.pad(a, [(0, 0)] * (a.ndim - 1) + [(0, pad)])


def basic_block_forward(params, x_nchw, *, stride, activate_before_residual=False,
                        drop_rate=0.0, batch_tile=None):
    # TODO(synk): training-mode dropout (drop_rate > 0) not implemented.
    assert drop_rate == 0.0
    x = jnp.transpose(x_nchw, (0, 2, 3, 1)).astype(jnp.float32)   # NCHW -> NHWC
    N, H, W, Cin = x.shape
    Cout = params["conv2_w"].shape[-1]
    equal_in_out = (Cin == Cout)
    if equal_in_out:
        assert stride == 1, "identity residual requires stride 1"
    assert H % stride == 0 and W % stride == 0
    Ho, Wo = H // stride, W // stride
    assert Wo % 8 == 0, "W // stride must be a multiple of 8 for clean tiling"

    Ci_p = _round_up(Cin, LANE)          # lane-dense channel padding
    Co_p = _round_up(Cout, LANE)
    apply_bn1 = equal_in_out or activate_before_residual

    # batch tiling: fold images into the matmul M dim, but keep >=2 grid steps
    # when possible so a v7x megacore can split the "parallel" axis.
    if batch_tile is None:
        cap = min(8, max(1, N // 2))
        batch_tile = max(d for d in range(1, cap + 1) if N % d == 0)
    assert N % batch_tile == 0
    grid = (N // batch_tile,)

    # ---- wrapper-side layout plumbing (cheap XLA ops) -----------------------
    x_p = _pad_last(x, Ci_p)
    # stride phases: phase (a, b) = x[:, a::s, b::s, :]
    phases = [x_p[:, a::stride, b::stride, :]
              for a in range(stride) for b in range(stride)]

    inv1 = params["bn1_gamma"] / jnp.sqrt(params["bn1_var"] + EPS)
    s1 = _pad_last(inv1, Ci_p).reshape(1, 1, 1, Ci_p)
    b1 = _pad_last(params["bn1_beta"] - params["bn1_mean"] * inv1,
                   Ci_p).reshape(1, 1, 1, Ci_p)
    inv2 = params["bn2_gamma"] / jnp.sqrt(params["bn2_var"] + EPS)
    s2 = _pad_last(inv2, Co_p).reshape(1, Co_p)
    b2 = _pad_last(params["bn2_beta"] - params["bn2_mean"] * inv2,
                   Co_p).reshape(1, Co_p)

    def pad_hwio(w, ci, co):
        return jnp.pad(w, ((0, 0), (0, 0),
                           (0, ci - w.shape[2]), (0, co - w.shape[3])))

    w1 = pad_hwio(params["conv1_w"], Ci_p, Co_p).reshape(9 * Ci_p, Co_p).astype(jnp.bfloat16)
    w2 = pad_hwio(params["conv2_w"], Co_p, Co_p).reshape(9 * Co_p, Co_p).astype(jnp.bfloat16)

    n_phase = stride * stride
    args, in_specs = [], []
    for p in phases:
        args.append(p)
        in_specs.append(pl.BlockSpec((batch_tile, Ho, Wo, Ci_p),
                                     lambda i: (i, 0, 0, 0)))
    if apply_bn1:
        args += [s1, b1]
        in_specs += [pl.BlockSpec((1, 1, 1, Ci_p), lambda i: (0, 0, 0, 0))] * 2
    args.append(w1)
    in_specs.append(pl.BlockSpec((9 * Ci_p, Co_p), lambda i: (0, 0)))
    args += [s2, b2]
    in_specs += [pl.BlockSpec((1, Co_p), lambda i: (0, 0))] * 2
    args.append(w2)
    in_specs.append(pl.BlockSpec((9 * Co_p, Co_p), lambda i: (0, 0)))
    if not equal_in_out:
        ws = jnp.pad(params["sc_w"][0, 0],
                     ((0, Ci_p - Cin), (0, Co_p - Cout))).astype(jnp.bfloat16)
        args.append(ws)
        in_specs.append(pl.BlockSpec((Ci_p, Co_p), lambda i: (0, 0)))

    kernel = functools.partial(
        basic_block_kernel, stride=stride, b_tile=batch_tile, n_phase=n_phase,
        equal_in_out=equal_in_out, apply_bn1=apply_bn1,
        Ho=Ho, Wo=Wo, Ci_p=Ci_p, Co_p=Co_p)

    out_flat = pl.pallas_call(
        kernel,
        out_shape=jax.ShapeDtypeStruct((N * Ho * Wo, Co_p), jnp.float32),
        grid=grid,
        in_specs=in_specs,
        out_specs=pl.BlockSpec((batch_tile * Ho * Wo, Co_p), lambda i: (i, 0)),
        scratch_shapes=[
            pltpu.VMEM((n_phase * batch_tile, Ho + 2, Wo + 2, Ci_p), jnp.bfloat16),
            pltpu.VMEM((batch_tile, Ho + 2, Wo + 2, Co_p), jnp.bfloat16),
            pltpu.VMEM((batch_tile * Ho * Wo, 9 * Ci_p), jnp.bfloat16),
            pltpu.VMEM((batch_tile * Ho * Wo, 9 * Co_p), jnp.bfloat16),
        ],
        compiler_params=pltpu.CompilerParams(
            dimension_semantics=("parallel",),
            # explicit VMEM budget; at real WideResNet widths also
            # single-buffer the constant weight operands / tile Cout.
            vmem_limit_bytes=32 * 1024 * 1024),
    )(*args)

    out = out_flat.reshape(N, Ho, Wo, Co_p)[..., :Cout]     # strip channel pad
    return jnp.transpose(out, (0, 3, 1, 2))                 # NHWC -> NCHW


# ----------------------------- parameter init --------------------------------
def init_basic_block(key, in_planes, out_planes):
    ks = jax.random.split(key, 11)
    p = {
        "bn1_gamma": 1.0 + 0.1 * jax.random.normal(ks[0], (in_planes,), jnp.float32),
        "bn1_beta": 0.1 * jax.random.normal(ks[1], (in_planes,), jnp.float32),
        "bn1_mean": 0.1 * jax.random.normal(ks[2], (in_planes,), jnp.float32),
        "bn1_var": 1.0 + 0.5 * jax.random.uniform(ks[3], (in_planes,), jnp.float32),
        "conv1_w": jax.random.normal(ks[4], (3, 3, in_planes, out_planes), jnp.float32)
                   * np.sqrt(2.0 / (9 * out_planes)),
        "bn2_gamma": 1.0 + 0.1 * jax.random.normal(ks[5], (out_planes,), jnp.float32),
        "bn2_beta": 0.1 * jax.random.normal(ks[6], (out_planes,), jnp.float32),
        "bn2_mean": 0.1 * jax.random.normal(ks[7], (out_planes,), jnp.float32),
        "bn2_var": 1.0 + 0.5 * jax.random.uniform(ks[8], (out_planes,), jnp.float32),
        "conv2_w": jax.random.normal(ks[9], (3, 3, out_planes, out_planes), jnp.float32)
                   * np.sqrt(2.0 / (9 * out_planes)),
    }
    if in_planes != out_planes:
        p["sc_w"] = jax.random.normal(ks[10], (1, 1, in_planes, out_planes), jnp.float32) \
                    * np.sqrt(2.0 / out_planes)
    return p


# --------------------------- pure-JAX reference -------------------------------
def reference_forward(params, x_nchw, *, stride, activate_before_residual=False):
    x = jnp.transpose(x_nchw, (0, 2, 3, 1)).astype(jnp.float32)
    Cin = x.shape[-1]
    Cout = params["conv2_w"].shape[-1]
    equal = (Cin == Cout)
    dn = ("NHWC", "HWIO", "NHWC")

    def bn(v, pfx, C):
        g, b = params[pfx + "_gamma"].reshape(1, 1, 1, C), params[pfx + "_beta"].reshape(1, 1, 1, C)
        m, var = params[pfx + "_mean"].reshape(1, 1, 1, C), params[pfx + "_var"].reshape(1, 1, 1, C)
        return (v - m) / jnp.sqrt(var + EPS) * g + b

    act = jax.nn.relu(bn(x, "bn1", Cin))
    conv1_in = act if equal else (act if activate_before_residual else x)
    y = lax.conv_general_dilated(conv1_in, params["conv1_w"], (stride, stride),
                                 ((1, 1), (1, 1)), dimension_numbers=dn,
                                 precision=lax.Precision.HIGHEST)
    y = jax.nn.relu(bn(y, "bn2", Cout))
    y = lax.conv_general_dilated(y, params["conv2_w"], (1, 1), ((1, 1), (1, 1)),
                                 dimension_numbers=dn, precision=lax.Precision.HIGHEST)
    if equal:
        res = x
    else:
        sin = act if activate_before_residual else x
        res = lax.conv_general_dilated(sin, params["sc_w"], (stride, stride),
                                       ((0, 0), (0, 0)), dimension_numbers=dn,
                                       precision=lax.Precision.HIGHEST)
    return jnp.transpose(res + y, (0, 3, 1, 2))


if __name__ == "__main__":
    root = jax.random.PRNGKey(0)
    kx, kp = jax.random.split(root)
    x = jax.random.normal(kx, (2, 4, 16, 16), jnp.float32)   # NCHW, like the PyTorch module

    configs = [
        # (in_planes, out_planes, stride, activate_before_residual)
        (4, 4, 1, False),   # equalInOut: identity residual
        (4, 8, 2, True),    # channel change + stride 2 + activate_before_residual
        (4, 8, 1, False),   # channel change, original-x path (module quirk)
    ]
    for i, (cin, cout, stride, abr) in enumerate(configs):
        params = init_basic_block(jax.random.fold_in(kp, i), cin, cout)
        out = basic_block_forward(params, x, stride=stride, activate_before_residual=abr)
        out = jax.block_until_ready(out)
        ref = reference_forward(params, x, stride=stride, activate_before_residual=abr)
        assert out.shape == ref.shape, (out.shape, ref.shape)
        # bf16 MXU inputs vs HIGHEST-precision f32 reference -> bf16 tolerance.
        assert np.allclose(np.asarray(out), np.asarray(ref), atol=4e-2, rtol=4e-2), \
            f"mismatch in config {(cin, cout, stride, abr)}"

    print("KERNEL_OK")
</pallas_src>

<mosaic_0001>
module attributes {stable_mosaic.version = 11 : i64} {
  func.func @basic_block_kernel(%arg0: i32, %arg1: memref<1x16x16x128xf32, #tpu.memory_space<vmem>>, %arg2: memref<1x1x1x128xf32, #tpu.memory_space<vmem>>, %arg3: memref<1x1x1x128xf32, #tpu.memory_space<vmem>>, %arg4: memref<1152x128xbf16, #tpu.memory_space<vmem>>, %arg5: memref<1x128xf32, #tpu.memory_space<vmem>>, %arg6: memref<1x128xf32, #tpu.memory_space<vmem>>, %arg7: memref<1152x128xbf16, #tpu.memory_space<vmem>>, %arg8: memref<256x128xf32, #tpu.memory_space<vmem>>, %arg9: memref<1x18x18x128xbf16, #tpu.memory_space<vmem>>, %arg10: memref<1x18x18x128xbf16, #tpu.memory_space<vmem>>, %arg11: memref<256x1152xbf16, #tpu.memory_space<vmem>>, %arg12: memref<256x1152xbf16, #tpu.memory_space<vmem>>) attributes {dimension_semantics = [#tpu.dimension_semantics<parallel>], iteration_bounds = array<i64: 2>, scalar_prefetch = 0 : i64, scratch_operands = 4 : i64, tpu.core_type = #tpu.core_type<tc>, window_params = [{transform_indices = @transform_0, window_bounds = array<i64: 1, 16, 16, 128>}, {pipeline_mode = #tpu.pipeline_mode<synchronous>, transform_indices = @transform_1, window_bounds = array<i64: 1, 1, 1, 128>}, {pipeline_mode = #tpu.pipeline_mode<synchronous>, transform_indices = @transform_2, window_bounds = array<i64: 1, 1, 1, 128>}, {pipeline_mode = #tpu.pipeline_mode<synchronous>, transform_indices = @transform_3, window_bounds = array<i64: 1152, 128>}, {pipeline_mode = #tpu.pipeline_mode<synchronous>, transform_indices = @transform_4, window_bounds = array<i64: 1, 128>}, {pipeline_mode = #tpu.pipeline_mode<synchronous>, transform_indices = @transform_5, window_bounds = array<i64: 1, 128>}, {pipeline_mode = #tpu.pipeline_mode<synchronous>, transform_indices = @transform_6, window_bounds = array<i64: 1152, 128>}, {transform_indices = @transform_7, window_bounds = array<i64: 256, 128>}]} {
    %cst = arith.constant 0.000000e+00 : bf16
    %0 = vector.broadcast %cst : bf16 to vector<1x1x18x128xbf16>
    %c0 = arith.constant 0 : index
    %c0_0 = arith.constant 0 : index
    %c0_1 = arith.constant 0 : index
    %c0_2 = arith.constant 0 : index
    %1 = vector.load %arg9[%c0, %c0_0, %c0_1, %c0_2] : memref<1x18x18x128xbf16, #tpu.memory_space<vmem>>, vector<1x1x18x128xbf16>
    tpu.vector_store %arg9[%c0, %c0_0, %c0_1, %c0_2], %0 {strides = array<i32>} : memref<1x18x18x128xbf16, #tpu.memory_space<vmem>>, vector<1x1x18x128xbf16>,
    %c0_3 = arith.constant 0 : index
    %c17 = arith.constant 17 : index
    %c0_4 = arith.constant 0 : index
    %c0_5 = arith.constant 0 : index
    %2 = vector.load %arg9[%c0_3, %c17, %c0_4, %c0_5] : memref<1x18x18x128xbf16, #tpu.memory_space<vmem>>, vector<1x1x18x128xbf16>
    tpu.vector_store %arg9[%c0_3, %c17, %c0_4, %c0_5], %0 {strides = array<i32>} : memref<1x18x18x128xbf16, #tpu.memory_space<vmem>>, vector<1x1x18x128xbf16>,
    %cst_6 = arith.constant 0.000000e+00 : bf16
    %3 = vector.broadcast %cst_6 : bf16 to vector<1x18x8x128xbf16>
    %c0_7 = arith.constant 0 : index
    %c0_8 = arith.constant 0 : index
    %c0_9 = arith.constant 0 : index
    %c0_10 = arith.constant 0 : index
    %4 = vector.load %arg9[%c0_7, %c0_8, %c0_9, %c0_10] : memref<1x18x18x128xbf16, #tpu.memory_space<vmem>>, vector<1x18x8x128xbf16>
    tpu.vector_store %arg9[%c0_7, %c0_8, %c0_9, %c0_10], %3 {strides = array<i32>} : memref<1x18x18x128xbf16, #tpu.memory_space<vmem>>, vector<1x18x8x128xbf16>,
    %c0_11 = arith.constant 0 : index
    %c0_12 = arith.constant 0 : index
    %c10 = arith.constant 10 : index
    %c0_13 = arith.constant 0 : index
    %5 = vector.load %arg9[%c0_11, %c0_12, %c10, %c0_13] : memref<1x18x18x128xbf16, #tpu.memory_space<vmem>>, vector<1x18x8x128xbf16>
    tpu.vector_store %arg9[%c0_11, %c0_12, %c10, %c0_13], %3 {strides = array<i32>} : memref<1x18x18x128xbf16, #tpu.memory_space<vmem>>, vector<1x18x8x128xbf16>,
    %cst_14 = arith.constant 0.000000e+00 : bf16
    %6 = vector.broadcast %cst_14 : bf16 to vector<1x1x18x128xbf16>
    %c0_15 = arith.constant 0 : index
    %c0_16 = arith.constant 0 : index
    %c0_17 = arith.constant 0 : index
    %c0_18 = arith.constant 0 : index
    %7 = vector.load %arg10[%c0_15, %c0_16, %c0_17, %c0_18] : memref<1x18x18x128xbf16, #tpu.memory_space<vmem>>, vector<1x1x18x128xbf16>
    tpu.vector_store %arg10[%c0_15, %c0_16, %c0_17, %c0_18], %6 {strides = array<i32>} : memref<1x18x18x128xbf16, #tpu.memory_space<vmem>>, vector<1x1x18x128xbf16>,
    %c0_19 = arith.constant 0 : index
    %c17_20 = arith.constant 17 : index
    %c0_21 = arith.constant 0 : index
    %c0_22 = arith.constant 0 : index
    %8 = vector.load %arg10[%c0_19, %c17_20, %c0_21, %c0_22] : memref<1x18x18x128xbf16, #tpu.memory_space<vmem>>, vector<1x1x18x128xbf16>
    tpu.vector_store %arg10[%c0_19, %c17_20, %c0_21, %c0_22], %6 {strides = array<i32>} : memref<1x18x18x128xbf16, #tpu.memory_space<vmem>>, vector<1x1x18x128xbf16>,
    %cst_23 = arith.constant 0.000000e+00 : bf16
    %9 = vector.broadcast %cst_23 : bf16 to vector<1x18x8x128xbf16>
    %c0_24 = arith.constant 0 : index
    %c0_25 = arith.constant 0 : index
    %c0_26 = arith.constant 0 : index
    %c0_27 = arith.constant 0 : index
    %10 = vector.load %arg10[%c0_24, %c0_25, %c0_26, %c0_27] : memref<1x18x18x128xbf16, #tpu.memory_space<vmem>>, vector<1x18x8x128xbf16>
    tpu.vector_store %arg10[%c0_24, %c0_25, %c0_26, %c0_27], %9 {strides = array<i32>} : memref<1x18x18x128xbf16, #tpu.memory_space<vmem>>, vector<1x18x8x128xbf16>,
    %c0_28 = arith.constant 0 : index
    %c0_29 = arith.constant 0 : index
    %c10_30 = arith.constant 10 : index
    %c0_31 = arith.constant 0 : index
    %11 = vector.load %arg10[%c0_28, %c0_29, %c10_30, %c0_31] : memref<1x18x18x128xbf16, #tpu.memory_space<vmem>>, vector<1x18x8x128xbf16>
    tpu.vector_store %arg10[%c0_28, %c0_29, %c10_30, %c0_31], %9 {strides = array<i32>} : memref<1x18x18x128xbf16, #tpu.memory_space<vmem>>, vector<1x18x8x128xbf16>,
    %c0_32 = arith.constant 0 : index
    %c0_33 = arith.constant 0 : index
    %c0_34 = arith.constant 0 : index
    %c0_35 = arith.constant 0 : index
    %12 = vector.load %arg2[%c0_32, %c0_33, %c0_34, %c0_35] : memref<1x1x1x128xf32, #tpu.memory_space<vmem>>, vector<1x1x1x128xf32>
    %c0_36 = arith.constant 0 : index
    %c0_37 = arith.constant 0 : index
    %c0_38 = arith.constant 0 : index
    %c0_39 = arith.constant 0 : index
    %13 = vector.load %arg3[%c0_36, %c0_37, %c0_38, %c0_39] : memref<1x1x1x128xf32, #tpu.memory_space<vmem>>, vector<1x1x1x128xf32>
    %c0_40 = arith.constant 0 : index
    %c0_41 = arith.constant 0 : index
    %c0_42 = arith.constant 0 : index
    %c0_43 = arith.constant 0 : index
    %14 = vector.load %arg1[%c0_40, %c0_41, %c0_42, %c0_43] : memref<1x16x16x128xf32, #tpu.memory_space<vmem>>, vector<1x16x16x128xf32>
    %15 = vector.broadcast %12 : vector<1x1x1x128xf32> to vector<1x16x16x128xf32>
    %16 = arith.mulf %14, %15 : vector<1x16x16x128xf32>
    %17 = vector.broadcast %13 : vector<1x1x1x128xf32> to vector<1x16x16x128xf32>
    %18 = arith.addf %16, %17 : vector<1x16x16x128xf32>
    %cst_44 = arith.constant 0.000000e+00 : f32
    %19 = vector.broadcast %cst_44 : f32 to vector<1x16x16x128xf32>
    %20 = arith.maximumf %18, %19 : vector<1x16x16x128xf32>
    %21 = arith.truncf %20 : vector<1x16x16x128xf32> to vector<1x16x16x128xbf16>
    %c0_45 = arith.constant 0 : index
    %c1 = arith.constant 1 : index
    %c1_46 = arith.constant 1 : index
    %c0_47 = arith.constant 0 : index
    %22 = vector.load %arg9[%c0_45, %c1, %c1_46, %c0_47] : memref<1x18x18x128xbf16, #tpu.memory_space<vmem>>, vector<1x16x16x128xbf16>
    tpu.vector_store %arg9[%c0_45, %c1, %c1_46, %c0_47], %21 {strides = array<i32>} : memref<1x18x18x128xbf16, #tpu.memory_space<vmem>>, vector<1x16x16x128xbf16>,
    %c0_48 = arith.constant 0 : index
    %c0_49 = arith.constant 0 : index
    %c0_50 = arith.constant 0 : index
    %c0_51 = arith.constant 0 : index
    %23 = vector.load %arg9[%c0_48, %c0_49, %c0_50, %c0_51] : memref<1x18x18x128xbf16, #tpu.memory_space<vmem>>, vector<1x16x16x128xbf16>
    %24 = vector.shape_cast %23 : vector<1x16x16x128xbf16> to vector<256x128xbf16>
    %c0_52 = arith.constant 0 : index
    %c0_53 = arith.constant 0 : index
    %25 = vector.load %arg11[%c0_52, %c0_53] : memref<256x1152xbf16, #tpu.memory_space<vmem>>, vector<256x128xbf16>
    tpu.vector_store %arg11[%c0_52, %c0_53], %24 {strides = array<i32>} : memref<256x1152xbf16, #tpu.memory_space<vmem>>, vector<256x128xbf16>,
    %c0_54 = arith.constant 0 : index
    %c0_55 = arith.constant 0 : index
    %c1_56 = arith.constant 1 : index
    %c0_57 = arith.constant 0 : index
    %26 = vector.load %arg9[%c0_54, %c0_55, %c1_56, %c0_57] : memref<1x18x18x128xbf16, #tpu.memory_space<vmem>>, vector<1x16x16x128xbf16>
    %27 = vector.shape_cast %26 : vector<1x16x16x128xbf16> to vector<256x128xbf16>
    %c0_58 = arith.constant 0 : index
    %c128 = arith.constant 128 : index
    %28 = vector.load %arg11[%c0_58, %c128] : memref<256x1152xbf16, #tpu.memory_space<vmem>>, vector<256x128xbf16>
    tpu.vector_store %arg11[%c0_58, %c128], %27 {strides = array<i32>} : memref<256x1152xbf16, #tpu.memory_space<vmem>>, vector<256x128xbf16>,
    %c0_59 = arith.constant 0 : index
    %c0_60 = arith.constant 0 : index
    %c2 = arith.constant 2 : index
    %c0_61 = arith.constant 0 : index
    %29 = vector.load %arg9[%c0_59, %c0_60, %c2, %c0_61] : memref<1x18x18x128xbf16, #tpu.memory_space<vmem>>, vector<1x16x16x128xbf16>
    %30 = vector.shape_cast %29 : vector<1x16x16x128xbf16> to vector<256x128xbf16>
    %c0_62 = arith.constant 0 : index
    %c256 = arith.constant 256 : index
    %31 = vector.load %arg11[%c0_62, %c256] : memref<256x1152xbf16, #tpu.memory_space<vmem>>, vector<256x128xbf16>
    tpu.vector_store %arg11[%c0_62, %c256], %30 {strides = array<i32>} : memref<256x1152xbf16, #tpu.memory_space<vmem>>, vector<256x128xbf16>,
    %c0_63 = arith.constant 0 : index
    %c1_64 = arith.constant 1 : index
    %c0_65 = arith.constant 0 : index
    %c0_66 = arith.constant 0 : index
    %32 = vector.load %arg9[%c0_63, %c1_64, %c0_65, %c0_66] : memref<1x18x18x128xbf16, #tpu.memory_space<vmem>>, vector<1x16x16x128xbf16>
    %33 = vector.shape_cast %32 : vector<1x16x16x128xbf16> to vector<256x128xbf16>
    %c0_67 = arith.constant 0 : index
    %c384 = arith.constant 384 : index
    %34 = vector.load %arg11[%c0_67, %c384] : memref<256x1152xbf16, #tpu.memory_space<vmem>>, vector<256x128xbf16>
    tpu.vector_store %arg11[%c0_67, %c384], %33 {strides = array<i32>} : memref<256x1152xbf16, #tpu.memory_space<vmem>>, vector<256x128xbf16>,
    %c0_68 = arith.constant 0 : index
    %c1_69 = arith.constant 1 : index
    %c1_70 = arith.constant 1 : index
    %c0_71 = arith.constant 0 : index
    %35 = vector.load %arg9[%c0_68, %c1_69, %c1_70, %c0_71] : memref<1x18x18x128xbf16, #tpu.memory_space<vmem>>, vector<1x16x16x128xbf16>
    %36 = vector.shape_cast %35 : vector<1x16x16x128xbf16> to vector<256x128xbf16>
    %c0_72 = arith.constant 0 : index
    %c512 = arith.constant 512 : index
    %37 = vector.load %arg11[%c0_72, %c512] : memref<256x1152xbf16, #tpu.memory_space<vmem>>, vector<256x128xbf16>
    tpu.vector_store %arg11[%c0_72, %c512], %36 {strides = array<i32>} : memref<256x1152xbf16, #tpu.memory_space<vmem>>, vector<256x128xbf16>,
    %c0_73 = arith.constant 0 : index
    %c1_74 = arith.constant 1 : index
    %c2_75 = arith.constant 2 : index
    %c0_76 = arith.constant 0 : index
    %38 = vector.load %arg9[%c0_73, %c1_74, %c2_75, %c0_76] : memref<1x18x18x128xbf16, #tpu.memory_space<vmem>>, vector<1x16x16x128xbf16>
    %39 = vector.shape_cast %38 : vector<1x16x16x128xbf16> to vector<256x128xbf16>
    %c0_77 = arith.constant 0 : index
    %c640 = arith.constant 640 : index
    %40 = vector.load %arg11[%c0_77, %c640] : memref<256x1152xbf16, #tpu.memory_space<vmem>>, vector<256x128xbf16>
    tpu.vector_store %arg11[%c0_77, %c640], %39 {strides = array<i32>} : memref<256x1152xbf16, #tpu.memory_space<vmem>>, vector<256x128xbf16>,
    %c0_78 = arith.constant 0 : index
    %c2_79 = arith.constant 2 : index
    %c0_80 = arith.constant 0 : index
    %c0_81 = arith.constant 0 : index
    %41 = vector.load %arg9[%c0_78, %c2_79, %c0_80, %c0_81] : memref<1x18x18x128xbf16, #tpu.memory_space<vmem>>, vector<1x16x16x128xbf16>
    %42 = vector.shape_cast %41 : vector<1x16x16x128xbf16> to vector<256x128xbf16>
    %c0_82 = arith.constant 0 : index
    %c768 = arith.constant 768 : index
    %43 = vector.load %arg11[%c0_82, %c768] : memref<256x1152xbf16, #tpu.memory_space<vmem>>, vector<256x128xbf16>
    tpu.vector_store %arg11[%c0_82, %c768], %42 {strides = array<i32>} : memref<256x1152xbf16, #tpu.memory_space<vmem>>, vector<256x128xbf16>,
    %c0_83 = arith.constant 0 : index
    %c2_84 = arith.constant 2 : index
    %c1_85 = arith.constant 1 : index
    %c0_86 = arith.constant 0 : index
    %44 = vector.load %arg9[%c0_83, %c2_84, %c1_85, %c0_86] : memref<1x18x18x128xbf16, #tpu.memory_space<vmem>>, vector<1x16x16x128xbf16>
    %45 = vector.shape_cast %44 : vector<1x16x16x128xbf16> to vector<256x128xbf16>
    %c0_87 = arith.constant 0 : index
    %c896 = arith.constant 896 : index
    %46 = vector.load %arg11[%c0_87, %c896] : memref<256x1152xbf16, #tpu.memory_space<vmem>>, vector<256x128xbf16>
    tpu.vector_store %arg11[%c0_87, %c896], %45 {strides = array<i32>} : memref<256x1152xbf16, #tpu.memory_space<vmem>>, vector<256x128xbf16>,
    %c0_88 = arith.constant 0 : index
    %c2_89 = arith.constant 2 : index
    %c2_90 = arith.constant 2 : index
    %c0_91 = arith.constant 0 : index
    %47 = vector.load %arg9[%c0_88, %c2_89, %c2_90, %c0_91] : memref<1x18x18x128xbf16, #tpu.memory_space<vmem>>, vector<1x16x16x128xbf16>
    %48 = vector.shape_cast %47 : vector<1x16x16x128xbf16> to vector<256x128xbf16>
    %c0_92 = arith.constant 0 : index
    %c1024 = arith.constant 1024 : index
    %49 = vector.load %arg11[%c0_92, %c1024] : memref<256x1152xbf16, #tpu.memory_space<vmem>>, vector<256x128xbf16>
    tpu.vector_store %arg11[%c0_92, %c1024], %48 {strides = array<i32>} : memref<256x1152xbf16, #tpu.memory_space<vmem>>, vector<256x128xbf16>,
    %c0_93 = arith.constant 0 : index
    %c0_94 = arith.constant 0 : index
    %50 = vector.load %arg11[%c0_93, %c0_94] : memref<256x1152xbf16, #tpu.memory_space<vmem>>, vector<256x1152xbf16>
    %c0_95 = arith.constant 0 : index
    %c0_96 = arith.constant 0 : index
    %51 = vector.load %arg4[%c0_95, %c0_96] : memref<1152x128xbf16, #tpu.memory_space<vmem>>, vector<1152x128xbf16>
    %cst_97 = arith.constant dense<0.000000e+00> : vector<256x128xf32>
    %52 = tpu.matmul %50, %51, %cst_97 {dimension_numbers = #tpu.dot_dimension_numbers<[1], [0], [0], [1], [0, 0, 1, 1], [], []>} : vector<256x1152xbf16>, vector<1152x128xbf16>, vector<256x128xf32> -> vector<256x128xf32>
    %c0_98 = arith.constant 0 : index
    %c0_99 = arith.constant 0 : index
    %53 = vector.load %arg5[%c0_98, %c0_99] : memref<1x128xf32, #tpu.memory_space<vmem>>, vector<1x128xf32>
    %54 = vector.broadcast %53 : vector<1x128xf32> to vector<256x128xf32>
    %55 = arith.mulf %52, %54 : vector<256x128xf32>
    %c0_100 = arith.constant 0 : index
    %c0_101 = arith.constant 0 : index
    %56 = vector.load %arg6[%c0_100, %c0_101] : memref<1x128xf32, #tpu.memory_space<vmem>>, vector<1x128xf32>
    %57 = vector.broadcast %56 : vector<1x128xf32> to vector<256x128xf32>
    %58 = arith.addf %55, %57 : vector<256x128xf32>
    %cst_102 = arith.constant 0.000000e+00 : f32
    %59 = vector.broadcast %cst_102 : f32 to vector<256x128xf32>
    %60 = arith.maximumf %58, %59 : vector<256x128xf32>
    %61 = vector.shape_cast %60 : vector<256x128xf32> to vector<1x16x16x128xf32>
    %62 = arith.truncf %61 : vector<1x16x16x128xf32> to vector<1x16x16x128xbf16>
    %c0_103 = arith.constant 0 : index
    %c1_104 = arith.constant 1 : index
    %c1_105 = arith.constant 1 : index
    %c0_106 = arith.constant 0 : index
    %63 = vector.load %arg10[%c0_103, %c1_104, %c1_105, %c0_106] : memref<1x18x18x128xbf16, #tpu.memory_space<vmem>>, vector<1x16x16x128xbf16>
    tpu.vector_store %arg10[%c0_103, %c1_104, %c1_105, %c0_106], %62 {strides = array<i32>} : memref<1x18x18x128xbf16, #tpu.memory_space<vmem>>, vector<1x16x16x128xbf16>,
    %c0_107 = arith.constant 0 : index
    %c0_108 = arith.constant 0 : index
    %c0_109 = arith.constant 0 : index
    %c0_110 = arith.constant 0 : index
    %64 = vector.load %arg10[%c0_107, %c0_108, %c0_109, %c0_110] : memref<1x18x18x128xbf16, #tpu.memory_space<vmem>>, vector<1x16x16x128xbf16>
    %65 = vector.shape_cast %64 : vector<1x16x16x128xbf16> to vector<256x128xbf16>
    %c0_111 = arith.constant 0 : index
    %c0_112 = arith.constant 0 : index
    %66 = vector.load %arg12[%c0_111, %c0_112] : memref<256x1152xbf16, #tpu.memory_space<vmem>>, vector<256x128xbf16>
    tpu.vector_store %arg12[%c0_111, %c0_112], %65 {strides = array<i32>} : memref<256x1152xbf16, #tpu.memory_space<vmem>>, vector<256x128xbf16>,
    %c0_113 = arith.constant 0 : index
    %c0_114 = arith.constant 0 : index
    %c1_115 = arith.constant 1 : index
    %c0_116 = arith.constant 0 : index
    %67 = vector.load %arg10[%c0_113, %c0_114, %c1_115, %c0_116] : memref<1x18x18x128xbf16, #tpu.memory_space<vmem>>, vector<1x16x16x128xbf16>
    %68 = vector.shape_cast %67 : vector<1x16x16x128xbf16> to vector<256x128xbf16>
    %c0_117 = arith.constant 0 : index
    %c128_118 = arith.constant 128 : index
    %69 = vector.load %arg12[%c0_117, %c128_118] : memref<256x1152xbf16, #tpu.memory_space<vmem>>, vector<256x128xbf16>
    tpu.vector_store %arg12[%c0_117, %c128_118], %68 {strides = array<i32>} : memref<256x1152xbf16, #tpu.memory_space<vmem>>, vector<256x128xbf16>,
    %c0_119 = arith.constant 0 : index
    %c0_120 = arith.constant 0 : index
    %c2_121 = arith.constant 2 : index
    %c0_122 = arith.constant 0 : index
    %70 = vector.load %arg10[%c0_119, %c0_120, %c2_121, %c0_122] : memref<1x18x18x128xbf16, #tpu.memory_space<vmem>>, vector<1x16x16x128xbf16>
    %71 = vector.shape_cast %70 : vector<1x16x16x128xbf16> to vector<256x128xbf16>
    %c0_123 = arith.constant 0 : index
    %c256_124 = arith.constant 256 : index
    %72 = vector.load %arg12[%c0_123, %c256_124] : memref<256x1152xbf16, #tpu.memory_space<vmem>>, vector<256x128xbf16>
    tpu.vector_store %arg12[%c0_123, %c256_124], %71 {strides = array<i32>} : memref<256x1152xbf16, #tpu.memory_space<vmem>>, vector<256x128xbf16>,
    %c0_125 = arith.constant 0 : index
    %c1_126 = arith.constant 1 : index
    %c0_127 = arith.constant 0 : index
    %c0_128 = arith.constant 0 : index
    %73 = vector.load %arg10[%c0_125, %c1_126, %c0_127, %c0_128] : memref<1x18x18x128xbf16, #tpu.memory_space<vmem>>, vector<1x16x16x128xbf16>
    %74 = vector.shape_cast %73 : vector<1x16x16x128xbf16> to vector<256x128xbf16>
    %c0_129 = arith.constant 0 : index
    %c384_130 = arith.constant 384 : index
    %75 = vector.load %arg12[%c0_129, %c384_130] : memref<256x1152xbf16, #tpu.memory_space<vmem>>, vector<256x128xbf16>
    tpu.vector_store %arg12[%c0_129, %c384_130], %74 {strides = array<i32>} : memref<256x1152xbf16, #tpu.memory_space<vmem>>, vector<256x128xbf16>,
    %c0_131 = arith.constant 0 : index
    %c1_132 = arith.constant 1 : index
    %c1_133 = arith.constant 1 : index
    %c0_134 = arith.constant 0 : index
    %76 = vector.load %arg10[%c0_131, %c1_132, %c1_133, %c0_134] : memref<1x18x18x128xbf16, #tpu.memory_space<vmem>>, vector<1x16x16x128xbf16>
    %77 = vector.shape_cast %76 : vector<1x16x16x128xbf16> to vector<256x128xbf16>
    %c0_135 = arith.constant 0 : index
    %c512_136 = arith.constant 512 : index
    %78 = vector.load %arg12[%c0_135, %c512_136] : memref<256x1152xbf16, #tpu.memory_space<vmem>>, vector<256x128xbf16>
    tpu.vector_store %arg12[%c0_135, %c512_136], %77 {strides = array<i32>} : memref<256x1152xbf16, #tpu.memory_space<vmem>>, vector<256x128xbf16>,
    %c0_137 = arith.constant 0 : index
    %c1_138 = arith.constant 1 : index
    %c2_139 = arith.constant 2 : index
    %c0_140 = arith.constant 0 : index
    %79 = vector.load %arg10[%c0_137, %c1_138, %c2_139, %c0_140] : memref<1x18x18x128xbf16, #tpu.memory_space<vmem>>, vector<1x16x16x128xbf16>
    %80 = vector.shape_cast %79 : vector<1x16x16x128xbf16> to vector<256x128xbf16>
    %c0_141 = arith.constant 0 : index
    %c640_142 = arith.constant 640 : index
    %81 = vector.load %arg12[%c0_141, %c640_142] : memref<256x1152xbf16, #tpu.memory_space<vmem>>, vector<256x128xbf16>
    tpu.vector_store %arg12[%c0_141, %c640_142], %80 {strides = array<i32>} : memref<256x1152xbf16, #tpu.memory_space<vmem>>, vector<256x128xbf16>,
    %c0_143 = arith.constant 0 : index
    %c2_144 = arith.constant 2 : index
    %c0_145 = arith.constant 0 : index
    %c0_146 = arith.constant 0 : index
    %82 = vector.load %arg10[%c0_143, %c2_144, %c0_145, %c0_146] : memref<1x18x18x128xbf16, #tpu.memory_space<vmem>>, vector<1x16x16x128xbf16>
    %83 = vector.shape_cast %82 : vector<1x16x16x128xbf16> to vector<256x128xbf16>
    %c0_147 = arith.constant 0 : index
    %c768_148 = arith.constant 768 : index
    %84 = vector.load %arg12[%c0_147, %c768_148] : memref<256x1152xbf16, #tpu.memory_space<vmem>>, vector<256x128xbf16>
    tpu.vector_store %arg12[%c0_147, %c768_148], %83 {strides = array<i32>} : memref<256x1152xbf16, #tpu.memory_space<vmem>>, vector<256x128xbf16>,
    %c0_149 = arith.constant 0 : index
    %c2_150 = arith.constant 2 : index
    %c1_151 = arith.constant 1 : index
    %c0_152 = arith.constant 0 : index
    %85 = vector.load %arg10[%c0_149, %c2_150, %c1_151, %c0_152] : memref<1x18x18x128xbf16, #tpu.memory_space<vmem>>, vector<1x16x16x128xbf16>
    %86 = vector.shape_cast %85 : vector<1x16x16x128xbf16> to vector<256x128xbf16>
    %c0_153 = arith.constant 0 : index
    %c896_154 = arith.constant 896 : index
    %87 = vector.load %arg12[%c0_153, %c896_154] : memref<256x1152xbf16, #tpu.memory_space<vmem>>, vector<256x128xbf16>
    tpu.vector_store %arg12[%c0_153, %c896_154], %86 {strides = array<i32>} : memref<256x1152xbf16, #tpu.memory_space<vmem>>, vector<256x128xbf16>,
    %c0_155 = arith.constant 0 : index
    %c2_156 = arith.constant 2 : index
    %c2_157 = arith.constant 2 : index
    %c0_158 = arith.constant 0 : index
    %88 = vector.load %arg10[%c0_155, %c2_156, %c2_157, %c0_158] : memref<1x18x18x128xbf16, #tpu.memory_space<vmem>>, vector<1x16x16x128xbf16>
    %89 = vector.shape_cast %88 : vector<1x16x16x128xbf16> to vector<256x128xbf16>
    %c0_159 = arith.constant 0 : index
    %c1024_160 = arith.constant 1024 : index
    %90 = vector.load %arg12[%c0_159, %c1024_160] : memref<256x1152xbf16, #tpu.memory_space<vmem>>, vector<256x128xbf16>
    tpu.vector_store %arg12[%c0_159, %c1024_160], %89 {strides = array<i32>} : memref<256x1152xbf16, #tpu.memory_space<vmem>>, vector<256x128xbf16>,
    %c0_161 = arith.constant 0 : index
    %c0_162 = arith.constant 0 : index
    %91 = vector.load %arg12[%c0_161, %c0_162] : memref<256x1152xbf16, #tpu.memory_space<vmem>>, vector<256x1152xbf16>
    %c0_163 = arith.constant 0 : index
    %c0_164 = arith.constant 0 : index
    %92 = vector.load %arg7[%c0_163, %c0_164] : memref<1152x128xbf16, #tpu.memory_space<vmem>>, vector<1152x128xbf16>
    %cst_165 = arith.constant dense<0.000000e+00> : vector<256x128xf32>
    %93 = tpu.matmul %91, %92, %cst_165 {dimension_numbers = #tpu.dot_dimension_numbers<[1], [0], [0], [1], [0, 0, 1, 1], [], []>} : vector<256x1152xbf16>, vector<1152x128xbf16>, vector<256x128xf32> -> vector<256x128xf32>
    %94 = vector.shape_cast %14 : vector<1x16x16x128xf32> to vector<256x128xf32>
    %95 = arith.addf %93, %94 : vector<256x128xf32>
    %c0_166 = arith.constant 0 : index
    %c0_167 = arith.constant 0 : index
    %96 = vector.load %arg8[%c0_166, %c0_167] : memref<256x128xf32, #tpu.memory_space<vmem>>, vector<256x128xf32>
    tpu.vector_store %arg8[%c0_166, %c0_167], %95 {strides = array<i32>} : memref<256x128xf32, #tpu.memory_space<vmem>>, vector<256x128xf32>,
    return
  }
  func.func @transform_0(%arg0: i32) -> (i32, i32, i32, i32) {
    %c0_i32 = arith.constant 0 : i32
    %c0_i32_0 = arith.constant 0 : i32
    %c0_i32_1 = arith.constant 0 : i32
    %c0_i32_2 = arith.constant 0 : i32
    return %arg0, %c0_i32, %c0_i32_0, %c0_i32_1 : i32, i32, i32, i32
  }
  func.func @transform_1(%arg0: i32) -> (i32, i32, i32, i32) {
    %c0_i32 = arith.constant 0 : i32
    %c0_i32_0 = arith.constant 0 : i32
    %c0_i32_1 = arith.constant 0 : i32
    %c0_i32_2 = arith.constant 0 : i32
    %c0_i32_3 = arith.constant 0 : i32
    return %c0_i32, %c0_i32_0, %c0_i32_1, %c0_i32_2 : i32, i32, i32, i32
  }
  func.func @transform_2(%arg0: i32) -> (i32, i32, i32, i32) {
    %c0_i32 = arith.constant 0 : i32
    %c0_i32_0 = arith.constant 0 : i32
    %c0_i32_1 = arith.constant 0 : i32
    %c0_i32_2 = arith.constant 0 : i32
    %c0_i32_3 = arith.constant 0 : i32
    return %c0_i32, %c0_i32_0, %c0_i32_1, %c0_i32_2 : i32, i32, i32, i32
  }
  func.func @transform_3(%arg0: i32) -> (i32, i32) {
    %c0_i32 = arith.constant 0 : i32
    %c0_i32_0 = arith.constant 0 : i32
    %c0_i32_1 = arith.constant 0 : i32
    return %c0_i32, %c0_i32_0 : i32, i32
  }
  func.func @transform_4(%arg0: i32) -> (i32, i32) {
    %c0_i32 = arith.constant 0 : i32
    %c0_i32_0 = arith.constant 0 : i32
    %c0_i32_1 = arith.constant 0 : i32
    return %c0_i32, %c0_i32_0 : i32, i32
  }
  func.func @transform_5(%arg0: i32) -> (i32, i32) {
    %c0_i32 = arith.constant 0 : i32
    %c0_i32_0 = arith.constant 0 : i32
    %c0_i32_1 = arith.constant 0 : i32
    return %c0_i32, %c0_i32_0 : i32, i32
  }
  func.func @transform_6(%arg0: i32) -> (i32, i32) {
    %c0_i32 = arith.constant 0 : i32
    %c0_i32_0 = arith.constant 0 : i32
    %c0_i32_1 = arith.constant 0 : i32
    return %c0_i32, %c0_i32_0 : i32, i32
  }
  func.func @transform_7(%arg0: i32) -> (i32, i32) {
    %c0_i32 = arith.constant 0 : i32
    %c0_i32_0 = arith.constant 0 : i32
    return %arg0, %c0_i32 : i32, i32
  }
}

</mosaic_0001>

<llo_original>
// kernel: tpu_custom_call.1
$region0: #{tpu_custom_call.1}
  #allocation0 [shape = 'u32[]', space=smem, size = 0x4, offset = 0x4, fixed_abs, tag = 'smem constant byte address 0x4 - core index']
  #allocation1 [shape = 'u32[72,128]{1,0:T(1,128)}', space=vmem, size = 0x9000, scoped, tag = 'internal scratch']
  #allocation2 [shape = 'bf16[1,18,18,128]{3,2,1,0:T(8,128)(2,1)}', space=vmem, size = 0x1b000, scoped, tag = 'scratch operand']
  #allocation3 [shape = 'bf16[1,18,18,128]{3,2,1,0:T(8,128)(2,1)}', space=vmem, size = 0x1b000, scoped, tag = 'scratch operand']
  #allocation4 [shape = 'bf16[256,1152]{1,0:T(8,128)(2,1)}', space=vmem, size = 0x90000, scoped, tag = 'scratch operand']
  #allocation5 [shape = 'bf16[256,1152]{1,0:T(8,128)(2,1)}', space=vmem, size = 0x90000, scoped, tag = 'scratch operand']
  %s0 = inlined_call_operand.hbm [shape: f32[2,16,16,128], index: 0, kind: input, shape index: {}]
  %s1 = inlined_call_operand.hbm [shape: f32[1,1,1,128], index: 1, kind: input, shape index: {}]
  %s2 = inlined_call_operand.vmem [shape: f32[1,1,1,128], index: 2, kind: input, shape index: {}]
  %s3 = inlined_call_operand.hbm [shape: bf16[1152,128], index: 3, kind: input, shape index: {}]
  %s4 = inlined_call_operand.vmem [shape: f32[1,128], index: 4, kind: input, shape index: {}]
  %s5 = inlined_call_operand.vmem [shape: f32[1,128], index: 5, kind: input, shape index: {}]
  %s6 = inlined_call_operand.hbm [shape: bf16[1152,128], index: 6, kind: input, shape index: {}]
  %s7 = inlined_call_operand.hbm [shape: f32[512,128], index: 7, kind: output, shape index: {}]
  %s8 = sld [smem:[#allocation0]]
  $region77: #{tpu_custom_call.1} parent=0
    _
  %s10 = ssub.s32 1, %s8
  %s11 = scalar_select 0, %s10, %s8
  $region1: #{tpu_custom_call.1} parent=0
    #allocation6 [shape = 'u8[262144]{0}', space=vmem, size = 0x40000, scoped, tag = 'input window, operand 0']
    #allocation7 [shape = 's32[2]{0}', space=sflag, size = 0x8, scoped, tag = 'scoped memory for tpu_custom_call.1']
    #allocation8 [shape = 's32[2]{0}', space=sflag, size = 0x8, scoped, tag = 'scoped memory for tpu_custom_call.1']
    #allocation9 [shape = 'u8[512]{0}', space=vmem, size = 0x400, scoped, tag = 'input window, operand 1, single buffered']
    #allocation10 [shape = 's32[1]{0}', space=sflag, size = 0x4, scoped, tag = 'scoped memory for tpu_custom_call.1']
    #allocation11 [shape = 'u8[294912]{0}', space=vmem, size = 0x48000, scoped, tag = 'input window, operand 3, single buffered']
    #allocation12 [shape = 'u8[294912]{0}', space=vmem, size = 0x48000, scoped, tag = 'input window, operand 6, single buffered']
    #allocation13 [shape = 's32[1]{0}', space=sflag, size = 0x4, scoped, tag = 'scoped memory for tpu_custom_call.1']
    #allocation14 [shape = 'u8[262144]{0}', space=vmem, size = 0x40000, scoped, tag = 'output window, operand 0']
    %12 = vsyncpa [#allocation7], 0
    %s13 = scalar_lea.sflag [#allocation7], 1
    %14 = vsyncpa %s13, 0
    %15 = vsyncpa [#allocation10], 0
    %16 = vsyncpa [#allocation13], 0
    %17 = vsyncpa [#allocation8], 0
    %s18 = scalar_lea.sflag [#allocation8], 1
    %19 = vsyncpa %s18, 0
    loop: start=0, step=1, limit=4
    $region2: #{tpu_custom_call.1} parent=1 // loop_pre_header
      _
    $region3: #{tpu_custom_call.1} parent=1 // loop_header
      %s21 = sphi 0, %s25
      %p22 = scmp.ge.s32.totalorder %s21, 4
      %s31 = sphi 0, %s33
      %s34 = sphi 0, %s31
      %s35 = sphi 0, %s34
      %s51 = sphi 0, %s35
      %s55 = sphi 0, %s55
      %s57 = sphi 0, %s55
      %s58 = sphi 0, %s57
      %s72 = sphi 0, %s58
      %s76 = sphi 0, %s76
      %s78 = sphi 0, %s76
      %s79 = sphi 0, %s78
      %s93 = sphi 0, %s79
      %s97 = sphi 0, %s97
      %s99 = sphi 0, %s97
      %s100 = sphi 0, %s99
      %s114 = sphi 0, %s100
      %s118 = sphi 0, %s118
      %s120 = sphi 0, %s118
      %s121 = sphi 0, %s120
      %s135 = sphi 0, %s121
      %s139 = sphi 0, %s139
      %s141 = sphi 0, %s139
      %s142 = sphi 0, %s141
      %s156 = sphi 0, %s142
      %s160 = sphi 0, %s160
      %s162 = sphi 0, %s160
      %s163 = sphi 0, %s162
      %s177 = sphi 0, %s163
      %s183 = sphi 0, %s185
      %s186 = sphi 0, %s183
      %s187 = sphi 0, %s186
      %s203 = sphi 0, %s187
    $region4: #{tpu_custom_call.1} parent=1 // loop_header_branch
      %24 = sbr.rel (%p22) target = $region8
    $region5: #{tpu_custom_call.1} parent=1 // loop_body
      %s26 = ssub.s32 %s21, 1
      %s27 = ssub.s32 %s21, 2
      %s28 = sadd.s32 %s21, 1
      %s29 = ssub.s32 %s21, %s28
      %p30 = scmp.eq.s32.totalorder %s29, 0
      %s32 = sadd.s32 %s31, 1
      %s33 = scalar_select %p30, %s31, %s32
      %p36 = pneg %p30
      %p37 = scmp.eq.s32.totalorder %s21, 1
      %p38 = por %p36, %p37
      %p39 = scmp.ne.s32.totalorder %s31, %s34
      %p40 = scmp.eq.s32.totalorder %s21, 0
      %p41 = por %p39, %p40
      %p42 = scmp.ne.s32.totalorder %s31, %s34
      %p43 = scmp.eq.s32.totalorder %s26, 1
      %p44 = por %p42, %p43
      %p45 = scmp.ne.s32.totalorder %s34, %s35
      %p46 = scmp.eq.s32.totalorder %s26, 0
      %p47 = por %p45, %p46
      %p48 = scmp.ne.s32.totalorder %s34, %s35
      %p49 = scmp.eq.s32.totalorder %s27, 1
      %p50 = por %p48, %p49
      %p52 = scmp.ne.s32.totalorder %s35, %s51
      %p53 = scmp.eq.s32.totalorder %s27, 0
      %p54 = por %p52, %p53
      %s56 = sadd.s32 %s55, 1
      %p59 = scmp.eq.s32.totalorder %s21, 1
      %p60 = scmp.ne.s32.totalorder %s55, %s57
      %p61 = scmp.eq.s32.totalorder %s21, 0
      %p62 = por %p60, %p61
      %p63 = scmp.ne.s32.totalorder %s55, %s57
      %p64 = scmp.eq.s32.totalorder %s26, 1
      %p65 = por %p63, %p64
      %p66 = scmp.ne.s32.totalorder %s57, %s58
      %p67 = scmp.eq.s32.totalorder %s26, 0
      %p68 = por %p66, %p67
      %p69 = scmp.ne.s32.totalorder %s57, %s58
      %p70 = scmp.eq.s32.totalorder %s27, 1
      %p71 = por %p69, %p70
      %p73 = scmp.ne.s32.totalorder %s58, %s72
      %p74 = scmp.eq.s32.totalorder %s27, 0
      %p75 = por %p73, %p74
      %s77 = sadd.s32 %s76, 1
      %p80 = scmp.eq.s32.totalorder %s21, 1
      %p81 = scmp.ne.s32.totalorder %s76, %s78
      %p82 = scmp.eq.s32.totalorder %s21, 0
      %p83 = por %p81, %p82
      %p84 = scmp.ne.s32.totalorder %s76, %s78
      %p85 = scmp.eq.s32.totalorder %s26, 1
      %p86 = por %p84, %p85
      %p87 = scmp.ne.s32.totalorder %s78, %s79
      %p88 = scmp.eq.s32.totalorder %s26, 0
      %p89 = por %p87, %p88
      %p90 = scmp.ne.s32.totalorder %s78, %s79
      %p91 = scmp.eq.s32.totalorder %s27, 1
      %p92 = por %p90, %p91
      %p94 = scmp.ne.s32.totalorder %s79, %s93
      %p95 = scmp.eq.s32.totalorder %s27, 0
      %p96 = por %p94, %p95
      %s98 = sadd.s32 %s97, 1
      %p101 = scmp.eq.s32.totalorder %s21, 1
      %p102 = scmp.ne.s32.totalorder %s97, %s99
      %p103 = scmp.eq.s32.totalorder %s21, 0
      %p104 = por %p102, %p103
      %p105 = scmp.ne.s32.totalorder %s97, %s99
      %p106 = scmp.eq.s32.totalorder %s26, 1
      %p107 = por %p105, %p106
      %p108 = scmp.ne.s32.totalorder %s99, %s100
      %p109 = scmp.eq.s32.totalorder %s26, 0
      %p110 = por %p108, %p109
      %p111 = scmp.ne.s32.totalorder %s99, %s100
      %p112 = scmp.eq.s32.totalorder %s27, 1
      %p113 = por %p111, %p112
      %p115 = scmp.ne.s32.totalorder %s100, %s114
      %p116 = scmp.eq.s32.totalorder %s27, 0
      %p117 = por %p115, %p116
      %s119 = sadd.s32 %s118, 1
      %p122 = scmp.eq.s32.totalorder %s21, 1
      %p123 = scmp.ne.s32.totalorder %s118, %s120
      %p124 = scmp.eq.s32.totalorder %s21, 0
      %p125 = por %p123, %p124
      %p126 = scmp.ne.s32.totalorder %s118, %s120
      %p127 = scmp.eq.s32.totalorder %s26, 1
      %p128 = por %p126, %p127
      %p129 = scmp.ne.s32.totalorder %s120, %s121
      %p130 = scmp.eq.s32.totalorder %s26, 0
      %p131 = por %p129, %p130
      %p132 = scmp.ne.s32.totalorder %s120, %s121
      %p133 = scmp.eq.s32.totalorder %s27, 1
      %p134 = por %p132, %p133
      %p136 = scmp.ne.s32.totalorder %s121, %s135
      %p137 = scmp.eq.s32.totalorder %s27, 0
      %p138 = por %p136, %p137
      %s140 = sadd.s32 %s139, 1
      %p143 = scmp.eq.s32.totalorder %s21, 1
      %p144 = scmp.ne.s32.totalorder %s139, %s141
      %p145 = scmp.eq.s32.totalorder %s21, 0
      %p146 = por %p144, %p145
      %p147 = scmp.ne.s32.totalorder %s139, %s141
      %p148 = scmp.eq.s32.totalorder %s26, 1
      %p149 = por %p147, %p148
      %p150 = scmp.ne.s32.totalorder %s141, %s142
      %p151 = scmp.eq.s32.totalorder %s26, 0
      %p152 = por %p150, %p151
      %p153 = scmp.ne.s32.totalorder %s141, %s142
      %p154 = scmp.eq.s32.totalorder %s27, 1
      %p155 = por %p153, %p154
      %p157 = scmp.ne.s32.totalorder %s142, %s156
      %p158 = scmp.eq.s32.totalorder %s27, 0
      %p159 = por %p157, %p158
      %s161 = sadd.s32 %s160, 1
      %p164 = scmp.eq.s32.totalorder %s21, 1
      %p165 = scmp.ne.s32.totalorder %s160, %s162
      %p166 = scmp.eq.s32.totalorder %s21, 0
      %p167 = por %p165, %p166
      %p168 = scmp.ne.s32.totalorder %s160, %s162
      %p169 = scmp.eq.s32.totalorder %s26, 1
      %p170 = por %p168, %p169
      %p171 = scmp.ne.s32.totalorder %s162, %s163
      %p172 = scmp.eq.s32.totalorder %s26, 0
      %p173 = por %p171, %p172
      %p174 = scmp.ne.s32.totalorder %s162, %s163
      %p175 = scmp.eq.s32.totalorder %s27, 1
      %p176 = por %p174, %p175
      %p178 = scmp.ne.s32.totalorder %s163, %s177
      %p179 = scmp.eq.s32.totalorder %s27, 0
      %p180 = por %p178, %p179
      %s181 = ssub.s32 %s21, %s28
      %p182 = scmp.eq.s32.totalorder %s181, 0
      %s184 = sadd.s32 %s183, 1
      %s185 = scalar_select %p182, %s183, %s184
      %p188 = pneg %p182
      %p189 = scmp.eq.s32.totalorder %s21, 1
      %p190 = por %p188, %p189
      %p191 = scmp.ne.s32.totalorder %s183, %s186
      %p192 = scmp.eq.s32.totalorder %s21, 0
      %p193 = por %p191, %p192
      %p194 = scmp.ne.s32.totalorder %s183, %s186
      %p195 = scmp.eq.s32.totalorder %s26, 1
      %p196 = por %p194, %p195
      %p197 = scmp.ne.s32.totalorder %s186, %s187
      %p198 = scmp.eq.s32.totalorder %s26, 0
      %p199 = por %p197, %p198
      %p200 = scmp.ne.s32.totalorder %s186, %s187
      %p201 = scmp.eq.s32.totalorder %s27, 1
      %p202 = por %p200, %p201
      %p204 = scmp.ne.s32.totalorder %s187, %s203
      %p205 = scmp.eq.s32.totalorder %s27, 0
      %p206 = por %p204, %p205
      %p207 = scmp.le.s32.totalorder 1, %s21
      %p208 = scmp.lt.s32.totalorder %s21, 3
      %p209 = pnand %p207, %p208
      %p210 = pneg %p209
      // Predicated region
      $region9: #{tpu_custom_call.1} parent=5 // pred_check
        _
      $region10: #{tpu_custom_call.1} parent=5 // pred_check_branch
        %212 = sbr.rel (%p209) target = $region12
      $region11: #{tpu_custom_call.1} parent=5 // pred_region
        %s213 = ssub.s32 %s21, 1
        // Predicated region
        $region13: #{tpu_custom_call.1} parent=11 // pred_check
          %p214 = pneg %p68
        $region14: #{tpu_custom_call.1} parent=11 // pred_check_branch
          %216 = sbr.rel (%p214) target = $region16
        $region15: #{tpu_custom_call.1} parent=11 // pred_region
          %218 = vsyncadd [#allocation10], 0
          %s220 = sshll.u32 %s1, 4
          %s221 = int_to_ptr.hbm [resolvable:$true] %s220
          %s222 = sshll.u32 [#allocation9], 4
          %s223 = int_to_ptr.vmem [resolvable:$true] %s222
          %225 = dma.hbm_to_vmem [thread:$0]  %s221, 16, %s223, [#allocation10]
        $region16: #{tpu_custom_call.1} parent=11 // pred_fallthru
          _
        // Predicated region
        $region17: #{tpu_custom_call.1} parent=11 // pred_check
          %p226 = pneg %p89
        $region18: #{tpu_custom_call.1} parent=11 // pred_check_branch
          %228 = sbr.rel (%p226) target = $region20
        $region19: #{tpu_custom_call.1} parent=11 // pred_region
          _
        $region20: #{tpu_custom_call.1} parent=11 // pred_fallthru
          _
        // Predicated region
        $region21: #{tpu_custom_call.1} parent=11 // pred_check
          %p229 = pneg %p110
        $region22: #{tpu_custom_call.1} parent=11 // pred_check_branch
          %231 = sbr.rel (%p229) target = $region24
        $region23: #{tpu_custom_call.1} parent=11 // pred_region
          %233 = vsyncadd [#allocation10], 0
          %s234 = sshll.u32 %s3, 4
          %s235 = int_to_ptr.hbm [resolvable:$true] %s234
          %s236 = sshll.u32 [#allocation11], 4
          %s237 = int_to_ptr.vmem [resolvable:$true] %s236
          %242 = dma.hbm_to_vmem [thread:$0]  %s235, 9216, %s237, [#allocation10], 64, 64, 4
        $region24: #{tpu_custom_call.1} parent=11 // pred_fallthru
          _
        // Predicated region
        $region25: #{tpu_custom_call.1} parent=11 // pred_check
          %p243 = pneg %p131
        $region26: #{tpu_custom_call.1} parent=11 // pred_check_branch
          %245 = sbr.rel (%p243) target = $region28
        $region27: #{tpu_custom_call.1} parent=11 // pred_region
          _
        $region28: #{tpu_custom_call.1} parent=11 // pred_fallthru
          _
        // Predicated region
        $region29: #{tpu_custom_call.1} parent=11 // pred_check
          %p246 = pneg %p152
        $region30: #{tpu_custom_call.1} parent=11 // pred_check_branch
          %248 = sbr.rel (%p246) target = $region32
        $region31: #{tpu_custom_call.1} parent=11 // pred_region
          _
        $region32: #{tpu_custom_call.1} parent=11 // pred_fallthru
          _
        // Predicated region
        $region33: #{tpu_custom_call.1} parent=11 // pred_check
          %p249 = pneg %p173
        $region34: #{tpu_custom_call.1} parent=11 // pred_check_branch
          %251 = sbr.rel (%p249) target = $region36
        $region35: #{tpu_custom_call.1} parent=11 // pred_region
          %253 = vsyncadd [#allocation13], 0
          %s254 = sshll.u32 %s6, 4
          %s255 = int_to_ptr.hbm [resolvable:$true] %s254
          %s256 = sshll.u32 [#allocation12], 4
          %s257 = int_to_ptr.vmem [resolvable:$true] %s256
          %262 = dma.hbm_to_vmem [thread:$0]  %s255, 9216, %s257, [#allocation13], 64, 64, 4
        $region36: #{tpu_custom_call.1} parent=11 // pred_fallthru
          _
      $region12: #{tpu_custom_call.1} parent=5 // pred_fallthru
        _
      %p263 = scmp.lt.s32.totalorder %s21, 2
      // Predicated region
      $region37: #{tpu_custom_call.1} parent=5 // pred_check
        %p264 = pneg %p263
      $region38: #{tpu_custom_call.1} parent=5 // pred_check_branch
        %266 = sbr.rel (%p264) target = $region40
      $region39: #{tpu_custom_call.1} parent=5 // pred_region
        // Predicated region
        $region41: #{tpu_custom_call.1} parent=39 // pred_check
          %p267 = pneg %p41
        $region42: #{tpu_custom_call.1} parent=39 // pred_check_branch
          %269 = sbr.rel (%p267) target = $region44
        $region43: #{tpu_custom_call.1} parent=39 // pred_region
          %s270 = sand.u32 %s31, 1
          %s271 = scalar_lea.sflag [#allocation7], %s270
          %s272 = sand.u32 %s31, 1
          %s273 = smul.addr %s272, 256
          %s274 = scalar_lea.vmem [#allocation6], %s273
          %276 = vsyncadd %s271, 0
          %s277 = smul.addr %s21, 32
          %s278 = smul.addr %s277, 8
          %s279 = scalar_lea.hbm %s0, %s278
          %s280 = sshll.u32 %s279, 4
          %s281 = int_to_ptr.hbm [resolvable:$true] %s280
          %s282 = sshll.u32 %s274, 4
          %s283 = int_to_ptr.vmem [resolvable:$true] %s282
          %288 = dma.hbm_to_vmem [thread:$0]  %s281, 4096, %s283, %s271, 128, 128, 8
        $region44: #{tpu_custom_call.1} parent=39 // pred_fallthru
          _
      $region40: #{tpu_custom_call.1} parent=5 // pred_fallthru
        _
      %p289 = scmp.le.s32.totalorder 1, %s21
      %p290 = scmp.lt.s32.totalorder %s21, 3
      %p291 = pnand %p289, %p290
      %p292 = pneg %p291
      // Predicated region
      $region45: #{tpu_custom_call.1} parent=5 // pred_check
        _
      $region46: #{tpu_custom_call.1} parent=5 // pred_check_branch
        %294 = sbr.rel (%p291) target = $region48
      $region47: #{tpu_custom_call.1} parent=5 // pred_region
        %s295 = ssub.s32 %s21, 1
        %s296 = sand.u32 %s34, 1
        %s297 = scalar_lea.sflag [#allocation7], %s296
        %s298 = sand.u32 %s34, 1
        %s299 = smul.addr %s298, 256
        %s300 = scalar_lea.vmem [#allocation6], %s299
        // Predicated region
        $region49: #{tpu_custom_call.1} parent=47 // pred_check
          %p301 = pneg %p47
        $region50: #{tpu_custom_call.1} parent=47 // pred_check_branch
          %303 = sbr.rel (%p301) target = $region52
        $region51: #{tpu_custom_call.1} parent=47 // pred_region
          %305 = dma.done %s297, 4096
        $region52: #{tpu_custom_call.1} parent=47 // pred_fallthru
          _
        // Predicated region
        $region53: #{tpu_custom_call.1} parent=47 // pred_check
          %p306 = pneg %p68
        $region54: #{tpu_custom_call.1} parent=47 // pred_check_branch
          %308 = sbr.rel (%p306) target = $region56
        $region55: #{tpu_custom_call.1} parent=47 // pred_region
          %310 = dma.done [#allocation10], 16
        $region56: #{tpu_custom_call.1} parent=47 // pred_fallthru
          _
        // Predicated region
        $region57: #{tpu_custom_call.1} parent=47 // pred_check
          %p311 = pneg %p110
        $region58: #{tpu_custom_call.1} parent=47 // pred_check_branch
          %313 = sbr.rel (%p311) target = $region60
        $region59: #{tpu_custom_call.1} parent=47 // pred_region
          %315 = dma.done [#allocation10], 9216
        $region60: #{tpu_custom_call.1} parent=47 // pred_fallthru
          _
        // Predicated region
        $region61: #{tpu_custom_call.1} parent=47 // pred_check
          %p316 = pneg %p173
        $region62: #{tpu_custom_call.1} parent=47 // pred_check_branch
          %318 = sbr.rel (%p316) target = $region64
        $region63: #{tpu_custom_call.1} parent=47 // pred_region
          %320 = dma.done [#allocation13], 9216
        $region64: #{tpu_custom_call.1} parent=47 // pred_fallthru
          _
        %s321 = sand.u32 %s34, 1
        %s322 = scalar_lea.sflag [#allocation7], %s321
        %s323 = sand.u32 %s34, 1
        %s324 = smul.addr %s323, 256
        %s325 = scalar_lea.vmem [#allocation6], %s324
        %p326 = pneg %p47
        %p327 = pneg %p44
        %p328 = pneg %p68
        %p329 = pneg %p65
        %p330 = pneg %p89
        %p331 = pneg %p86
        %p332 = pneg %p110
        %p333 = pneg %p107
        %p334 = pneg %p131
        %p335 = pneg %p128
        %p336 = pneg %p152
        %p337 = pneg %p149
        %p338 = pneg %p173
        %p339 = pneg %p170
        %p340 = pneg %p199
        %p341 = pneg %p196
        %s342 = sand.u32 %s186, 1
        %s343 = scalar_lea.sflag [#allocation8], %s342
        %s344 = sand.u32 %s186, 1
        %s345 = smul.addr %s344, 256
        %s346 = scalar_lea.vmem [#allocation14], %s345
        %s347 = smul.u32 32, %s26
        %349 = vst [vmem:[#allocation2] sm:$0xf] 0
        %350 = vst [vmem:[#allocation2 + $0x4] sm:$0xf] 0
        %351 = vst [vmem:[#allocation2 + $0x8] sm:$0x1] 0
        %s352 = scalar_lea.vmem [#allocation2], 204
        %353 = vst [vmem:[%s352] sm:$0xf] 0
        %354 = vst [vmem:[%s352 + $0x4] sm:$0xf] 0
        %355 = vst [vmem:[%s352 + $0x8] sm:$0x1] 0
        %356 = vst [vmem:[#allocation2] sm:$0xf] 0
        %357 = vst [vmem:[#allocation2 + $0xc] sm:$0xf] 0
        %358 = vst [vmem:[#allocation2 + $0x18] sm:$0xf] 0
        %359 = vst [vmem:[#allocation2 + $0x24] sm:$0xf] 0
        %360 = vst [vmem:[#allocation2 + $0x30] sm:$0xf] 0
        %361 = vst [vmem:[#allocation2 + $0x3c] sm:$0xf] 0
        %362 = vst [vmem:[#allocation2 + $0x48] sm:$0xf] 0
        %363 = vst [vmem:[#allocation2 + $0x54] sm:$0xf] 0
        %364 = vst [vmem:[#allocation2 + $0x60] sm:$0xf] 0
        %365 = vst [vmem:[#allocation2 + $0x6c] sm:$0xf] 0
        %366 = vst [vmem:[#allocation2 + $0x78] sm:$0xf] 0
        %367 = vst [vmem:[#allocation2 + $0x84] sm:$0xf] 0
        %368 = vst [vmem:[#allocation2 + $0x90] sm:$0xf] 0
        %369 = vst [vmem:[#allocation2 + $0x9c] sm:$0xf] 0
        %370 = vst [vmem:[#allocation2 + $0xa8] sm:$0xf] 0
        %371 = vst [vmem:[#allocation2 + $0xb4] sm:$0xf] 0
        %372 = vst [vmem:[#allocation2 + $0xc0] sm:$0xf] 0
        %373 = vst [vmem:[#allocation2 + $0xcc] sm:$0xf] 0
        %374 = vst [vmem:[#allocation2 + $0x4] sm:$0xe] 0
        %375 = vst [vmem:[#allocation2 + $0x8] sm:$0x1] 0
        %376 = vst [vmem:[#allocation2 + $0x10] sm:$0xe] 0
        %377 = vst [vmem:[#allocation2 + $0x14] sm:$0x1] 0
        %378 = vst [vmem:[#allocation2 + $0x1c] sm:$0xe] 0
        %379 = vst [vmem:[#allocation2 + $0x20] sm:$0x1] 0
        %380 = vst [vmem:[#allocation2 + $0x28] sm:$0xe] 0
        %381 = vst [vmem:[#allocation2 + $0x2c] sm:$0x1] 0
        %382 = vst [vmem:[#allocation2 + $0x34] sm:$0xe] 0
        %383 = vst [vmem:[#allocation2 + $0x38] sm:$0x1] 0
        %384 = vst [vmem:[#allocation2 + $0x40] sm:$0xe] 0
        %385 = vst [vmem:[#allocation2 + $0x44] sm:$0x1] 0
        %386 = vst [vmem:[#allocation2 + $0x4c] sm:$0xe] 0
        %387 = vst [vmem:[#allocation2 + $0x50] sm:$0x1] 0
        %388 = vst [vmem:[#allocation2 + $0x58] sm:$0xe] 0
        %389 = vst [vmem:[#allocation2 + $0x5c] sm:$0x1] 0
        %390 = vst [vmem:[#allocation2 + $0x64] sm:$0xe] 0
        %391 = vst [vmem:[#allocation2 + $0x68] sm:$0x1] 0
        %392 = vst [vmem:[#allocation2 + $0x70] sm:$0xe] 0
        %393 = vst [vmem:[#allocation2 + $0x74] sm:$0x1] 0
        %394 = vst [vmem:[#allocation2 + $0x7c] sm:$0xe] 0
        %395 = vst [vmem:[#allocation2 + $0x80] sm:$0x1] 0
        %396 = vst [vmem:[#allocation2 + $0x88] sm:$0xe] 0
        %397 = vst [vmem:[#allocation2 + $0x8c] sm:$0x1] 0
        %398 = vst [vmem:[#allocation2 + $0x94] sm:$0xe] 0
        %399 = vst [vmem:[#allocation2 + $0x98] sm:$0x1] 0
        %400 = vst [vmem:[#allocation2 + $0xa0] sm:$0xe] 0
        %401 = vst [vmem:[#allocation2 + $0xa4] sm:$0x1] 0
        %402 = vst [vmem:[#allocation2 + $0xac] sm:$0xe] 0
        %403 = vst [vmem:[#allocation2 + $0xb0] sm:$0x1] 0
        %404 = vst [vmem:[#allocation2 + $0xb8] sm:$0xe] 0
        %405 = vst [vmem:[#allocation2 + $0xbc] sm:$0x1] 0
        %406 = vst [vmem:[#allocation2 + $0xc4] sm:$0xe] 0
        %407 = vst [vmem:[#allocation2 + $0xc8] sm:$0x1] 0
        %408 = vst [vmem:[#allocation2 + $0xd0] sm:$0xe] 0
        %409 = vst [vmem:[#allocation2 + $0xd4] sm:$0x1] 0
        %410 = vst [vmem:[#allocation3] sm:$0xf] 0
        %411 = vst [vmem:[#allocation3 + $0x4] sm:$0xf] 0
        %412 = vst [vmem:[#allocation3 + $0x8] sm:$0x1] 0
        %s413 = scalar_lea.vmem [#allocation3], 204
        %414 = vst [vmem:[%s413] sm:$0xf] 0
        %415 = vst [vmem:[%s413 + $0x4] sm:$0xf] 0
        %416 = vst [vmem:[%s413 + $0x8] sm:$0x1] 0
        %417 = vst [vmem:[#allocation3] sm:$0xf] 0
        %418 = vst [vmem:[#allocation3 + $0xc] sm:$0xf] 0
        %419 = vst [vmem:[#allocation3 + $0x18] sm:$0xf] 0
        %420 = vst [vmem:[#allocation3 + $0x24] sm:$0xf] 0
        %421 = vst [vmem:[#allocation3 + $0x30] sm:$0xf] 0
        %422 = vst [vmem:[#allocation3 + $0x3c] sm:$0xf] 0
        %423 = vst [vmem:[#allocation3 + $0x48] sm:$0xf] 0
        %424 = vst [vmem:[#allocation3 + $0x54] sm:$0xf] 0
        %425 = vst [vmem:[#allocation3 + $0x60] sm:$0xf] 0
        %426 = vst [vmem:[#allocation3 + $0x6c] sm:$0xf] 0
        %427 = vst [vmem:[#allocation3 + $0x78] sm:$0xf] 0
        %428 = vst [vmem:[#allocation3 + $0x84] sm:$0xf] 0
        %429 = vst [vmem:[#allocation3 + $0x90] sm:$0xf] 0
        %430 = vst [vmem:[#allocation3 + $0x9c] sm:$0xf] 0
        %431 = vst [vmem:[#allocation3 + $0xa8] sm:$0xf] 0
        %432 = vst [vmem:[#allocation3 + $0xb4] sm:$0xf] 0
        %433 = vst [vmem:[#allocation3 + $0xc0] sm:$0xf] 0
        %434 = vst [vmem:[#allocation3 + $0xcc] sm:$0xf] 0
        %435 = vst [vmem:[#allocation3 + $0x4] sm:$0xe] 0
        %436 = vst [vmem:[#allocation3 + $0x8] sm:$0x1] 0
        %437 = vst [vmem:[#allocation3 + $0x10] sm:$0xe] 0
        %438 = vst [vmem:[#allocation3 + $0x14] sm:$0x1] 0
        %439 = vst [vmem:[#allocation3 + $0x1c] sm:$0xe] 0
        %440 = vst [vmem:[#allocation3 + $0x20] sm:$0x1] 0
        %441 = vst [vmem:[#allocation3 + $0x28] sm:$0xe] 0
        %442 = vst [vmem:[#allocation3 + $0x2c] sm:$0x1] 0
        %443 = vst [vmem:[#allocation3 + $0x34] sm:$0xe] 0
        %444 = vst [vmem:[#allocation3 + $0x38] sm:$0x1] 0
        %445 = vst [vmem:[#allocation3 + $0x40] sm:$0xe] 0
        %446 = vst [vmem:[#allocation3 + $0x44] sm:$0x1] 0
        %447 = vst [vmem:[#allocation3 + $0x4c] sm:$0xe] 0
        %448 = vst [vmem:[#allocation3 + $0x50] sm:$0x1] 0
        %449 = vst [vmem:[#allocation3 + $0x58] sm:$0xe] 0
        %450 = vst [vmem:[#allocation3 + $0x5c] sm:$0x1] 0
        %451 = vst [vmem:[#allocation3 + $0x64] sm:$0xe] 0
        %452 = vst [vmem:[#allocation3 + $0x68] sm:$0x1] 0
        %453 = vst [vmem:[#allocation3 + $0x70] sm:$0xe] 0
        %454 = vst [vmem:[#allocation3 + $0x74] sm:$0x1] 0
        %455 = vst [vmem:[#allocation3 + $0x7c] sm:$0xe] 0
        %456 = vst [vmem:[#allocation3 + $0x80] sm:$0x1] 0
        %457 = vst [vmem:[#allocation3 + $0x88] sm:$0xe] 0
        %458 = vst [vmem:[#allocation3 + $0x8c] sm:$0x1] 0
        %459 = vst [vmem:[#allocation3 + $0x94] sm:$0xe] 0
        %460 = vst [vmem:[#allocation3 + $0x98] sm:$0x1] 0
        %461 = vst [vmem:[#allocation3 + $0xa0] sm:$0xe] 0
        %462 = vst [vmem:[#allocation3 + $0xa4] sm:$0x1] 0
        %463 = vst [vmem:[#allocation3 + $0xac] sm:$0xe] 0
        %464 = vst [vmem:[#allocation3 + $0xb0] sm:$0x1] 0
        %465 = vst [vmem:[#allocation3 + $0xb8] sm:$0xe] 0
        %466 = vst [vmem:[#allocation3 + $0xbc] sm:$0x1] 0
        %467 = vst [vmem:[#allocation3 + $0xc4] sm:$0xe] 0
        %468 = vst [vmem:[#allocation3 + $0xc8] sm:$0x1] 0
        %469 = vst [vmem:[#allocation3 + $0xd0] sm:$0xe] 0
        %470 = vst [vmem:[#allocation3 + $0xd4] sm:$0x1] 0
        %v471 = vld [vmem:[#allocation9] sm:$0x1]
        %v472 = vld [vmem:[%s2] sm:$0x1]
        %v473 = vld [vmem:[%s300] sm:$0xff]
        %v474 = vld [vmem:[%s300 + $0x8] sm:$0xff]
        %v475 = vld [vmem:[%s300 + $0x10] sm:$0xff]
        %v476 = vld [vmem:[%s300 + $0x18] sm:$0xff]
        %v477 = vld [vmem:[%s300 + $0x20] sm:$0xff]
        %v478 = vld [vmem:[%s300 + $0x28] sm:$0xff]
        %v479 = vld [vmem:[%s300 + $0x30] sm:$0xff]
        %v480 = vld [vmem:[%s300 + $0x38] sm:$0xff]
        %v481 = vld [vmem:[%s300 + $0x40] sm:$0xff]
        %v482 = vld [vmem:[%s300 + $0x48] sm:$0xff]
        %v483 = vld [vmem:[%s300 + $0x50] sm:$0xff]
        %v484 = vld [vmem:[%s300 + $0x58] sm:$0xff]
        %v485 = vld [vmem:[%s300 + $0x60] sm:$0xff]
        %v486 = vld [vmem:[%s300 + $0x68] sm:$0xff]
        %v487 = vld [vmem:[%s300 + $0x70] sm:$0xff]
        %v488 = vld [vmem:[%s300 + $0x78] sm:$0xff]
        %v489 = vld [vmem:[%s300 + $0x80] sm:$0xff]
        %v490 = vld [vmem:[%s300 + $0x88] sm:$0xff]
        %v491 = vld [vmem:[%s300 + $0x90] sm:$0xff]
        %v492 = vld [vmem:[%s300 + $0x98] sm:$0xff]
        %v493 = vld [vmem:[%s300 + $0xa0] sm:$0xff]
        %v494 = vld [vmem:[%s300 + $0xa8] sm:$0xff]
        %v495 = vld [vmem:[%s300 + $0xb0] sm:$0xff]
        %v496 = vld [vmem:[%s300 + $0xb8] sm:$0xff]
        %v497 = vld [vmem:[%s300 + $0xc0] sm:$0xff]
        %v498 = vld [vmem:[%s300 + $0xc8] sm:$0xff]
        %v499 = vld [vmem:[%s300 + $0xd0] sm:$0xff]
        %v500 = vld [vmem:[%s300 + $0xd8] sm:$0xff]
        %v501 = vld [vmem:[%s300 + $0xe0] sm:$0xff]
        %v502 = vld [vmem:[%s300 + $0xe8] sm:$0xff]
        %v503 = vld [vmem:[%s300 + $0xf0] sm:$0xff]
        %v504 = vld [vmem:[%s300 + $0xf8] sm:$0xff]
        %v506 = vperm.slane %v471, 0
        %v508 = vmul.f32 %v473, %v506
        %v509 = vmul.f32 %v474, %v506
        %v510 = vmul.f32 %v475, %v506
        %v511 = vmul.f32 %v476, %v506
        %v512 = vmul.f32 %v477, %v506
        %v513 = vmul.f32 %v478, %v506
        %v514 = vmul.f32 %v479, %v506
        %v515 = vmul.f32 %v480, %v506
        %v516 = vmul.f32 %v481, %v506
        %v517 = vmul.f32 %v482, %v506
        %v518 = vmul.f32 %v483, %v506
        %v519 = vmul.f32 %v484, %v506
        %v520 = vmul.f32 %v485, %v506
        %v521 = vmul.f32 %v486, %v506
        %v522 = vmul.f32 %v487, %v506
        %v523 = vmul.f32 %v488, %v506
        %v524 = vmul.f32 %v489, %v506
        %v525 = vmul.f32 %v490, %v506
        %v526 = vmul.f32 %v491, %v506
        %v527 = vmul.f32 %v492, %v506
        %v528 = vmul.f32 %v493, %v506
        %v529 = vmul.f32 %v494, %v506
        %v530 = vmul.f32 %v495, %v506
        %v531 = vmul.f32 %v496, %v506
        %v532 = vmul.f32 %v497, %v506
        %v533 = vmul.f32 %v498, %v506
        %v534 = vmul.f32 %v499, %v506
        %v535 = vmul.f32 %v500, %v506
        %v536 = vmul.f32 %v501, %v506
        %v537 = vmul.f32 %v502, %v506
        %v538 = vmul.f32 %v503, %v506
        %v539 = vmul.f32 %v504, %v506
        %v541 = vperm.slane %v472, 0
        %v543 = vadd.f32 %v508, %v541
        %v544 = vadd.f32 %v509, %v541
        %v545 = vadd.f32 %v510, %v541
        %v546 = vadd.f32 %v511, %v541
        %v547 = vadd.f32 %v512, %v541
        %v548 = vadd.f32 %v513, %v541
        %v549 = vadd.f32 %v514, %v541
        %v550 = vadd.f32 %v515, %v541
        %v551 = vadd.f32 %v516, %v541
        %v552 = vadd.f32 %v517, %v541
        %v553 = vadd.f32 %v518, %v541
        %v554 = vadd.f32 %v519, %v541
        %v555 = vadd.f32 %v520, %v541
        %v556 = vadd.f32 %v521, %v541
        %v557 = vadd.f32 %v522, %v541
        %v558 = vadd.f32 %v523, %v541
        %v559 = vadd.f32 %v524, %v541
        %v560 = vadd.f32 %v525, %v541
        %v561 = vadd.f32 %v526, %v541
        %v562 = vadd.f32 %v527, %v541
        %v563 = vadd.f32 %v528, %v541
        %v564 = vadd.f32 %v529, %v541
        %v565 = vadd.f32 %v530, %v541
        %v566 = vadd.f32 %v531, %v541
        %v567 = vadd.f32 %v532, %v541
        %v568 = vadd.f32 %v533, %v541
        %v569 = vadd.f32 %v534, %v541
        %v570 = vadd.f32 %v535, %v541
        %v571 = vadd.f32 %v536, %v541
        %v572 = vadd.f32 %v537, %v541
        %v573 = vadd.f32 %v538, %v541
        %v574 = vadd.f32 %v539, %v541
        %v575 = vmax.f32 %v543, 0.0
        %v576 = vmax.f32 %v544, 0.0
        %v577 = vmax.f32 %v545, 0.0
        %v578 = vmax.f32 %v546, 0.0
        %v579 = vmax.f32 %v547, 0.0
        %v580 = vmax.f32 %v548, 0.0
        %v581 = vmax.f32 %v549, 0.0
        %v582 = vmax.f32 %v550, 0.0
        %v583 = vmax.f32 %v551, 0.0
        %v584 = vmax.f32 %v552, 0.0
        %v585 = vmax.f32 %v553, 0.0
        %v586 = vmax.f32 %v554, 0.0
        %v587 = vmax.f32 %v555, 0.0
        %v588 = vmax.f32 %v556, 0.0
        %v589 = vmax.f32 %v557, 0.0
        %v590 = vmax.f32 %v558, 0.0
        %v591 = vmax.f32 %v559, 0.0
        %v592 = vmax.f32 %v560, 0.0
        %v593 = vmax.f32 %v561, 0.0
        %v594 = vmax.f32 %v562, 0.0
        %v595 = vmax.f32 %v563, 0.0
        %v596 = vmax.f32 %v564, 0.0
        %v597 = vmax.f32 %v565, 0.0
        %v598 = vmax.f32 %v566, 0.0
        %v599 = vmax.f32 %v567, 0.0
        %v600 = vmax.f32 %v568, 0.0
        %v601 = vmax.f32 %v569, 0.0
        %v602 = vmax.f32 %v570, 0.0
        %v603 = vmax.f32 %v571, 0.0
        %v604 = vmax.f32 %v572, 0.0
        %v605 = vmax.f32 %v573, 0.0
        %v606 = vmax.f32 %v574, 0.0
        %v607 = vpack.c.bf16 %v575, %v575
        %v608 = vpack.c.bf16 %v576, %v576
        %v609 = vpack.c.bf16 %v577, %v577
        %v610 = vpack.c.bf16 %v578, %v578
        %v611 = vpack.c.bf16 %v579, %v579
        %v612 = vpack.c.bf16 %v580, %v580
        %v613 = vpack.c.bf16 %v581, %v581
        %v614 = vpack.c.bf16 %v582, %v582
        %v615 = vpack.c.bf16 %v583, %v583
        %v616 = vpack.c.bf16 %v584, %v584
        %v617 = vpack.c.bf16 %v585, %v585
        %v618 = vpack.c.bf16 %v586, %v586
        %v619 = vpack.c.bf16 %v587, %v587
        %v620 = vpack.c.bf16 %v588, %v588
        %v621 = vpack.c.bf16 %v589, %v589
        %v622 = vpack.c.bf16 %v590, %v590
        %v623 = vpack.c.bf16 %v591, %v591
        %v624 = vpack.c.bf16 %v592, %v592
        %v625 = vpack.c.bf16 %v593, %v593
        %v626 = vpack.c.bf16 %v594, %v594
        %v627 = vpack.c.bf16 %v595, %v595
        %v628 = vpack.c.bf16 %v596, %v596
        %v629 = vpack.c.bf16 %v597, %v597
        %v630 = vpack.c.bf16 %v598, %v598
        %v631 = vpack.c.bf16 %v599, %v599
        %v632 = vpack.c.bf16 %v600, %v600
        %v633 = vpack.c.bf16 %v601, %v601
        %v634 = vpack.c.bf16 %v602, %v602
        %v635 = vpack.c.bf16 %v603, %v603
        %v636 = vpack.c.bf16 %v604, %v604
        %v637 = vpack.c.bf16 %v605, %v605
        %v638 = vpack.c.bf16 %v606, %v606
        %vm639 = vsmask.f32 256
        %vm640 = vsmask.f32 4368
        %vm641 = vmor %vm639, %vm640
        %v643 = vshrl.u32 %v607, 16
        %v645 = vrot.slane %v643, 7
        %v646 = vshll.u32 %v607, 16
        %v648 = vor.u32 %v645, %v646
        %v649 = vrot.slane %v645, 4
        %v651 = vshrl.u32 %v608, 16
        %v653 = vrot.slane %v651, 7
        %v654 = vshll.u32 %v608, 16
        %v656 = vor.u32 %v653, %v654
        %v657 = vsel %vm641, %v649, %v656
        %v658 = vrot.slane %v653, 4
        %v660 = vshrl.u32 %v609, 16
        %v662 = vrot.slane %v660, 7
        %v663 = vshll.u32 %v609, 16
        %v665 = vor.u32 %v662, %v663
        %v666 = vrot.slane %v662, 4
        %v668 = vshrl.u32 %v610, 16
        %v670 = vrot.slane %v668, 7
        %v671 = vshll.u32 %v610, 16
        %v673 = vor.u32 %v670, %v671
        %v674 = vsel %vm641, %v666, %v673
        %v675 = vrot.slane %v670, 4
        %v677 = vshrl.u32 %v611, 16
        %v679 = vrot.slane %v677, 7
        %v680 = vshll.u32 %v611, 16
        %v682 = vor.u32 %v679, %v680
        %v683 = vrot.slane %v679, 4
        %v685 = vshrl.u32 %v612, 16
        %v687 = vrot.slane %v685, 7
        %v688 = vshll.u32 %v612, 16
        %v690 = vor.u32 %v687, %v688
        %v691 = vsel %vm641, %v683, %v690
        %v692 = vrot.slane %v687, 4
        %v694 = vshrl.u32 %v613, 16
        %v696 = vrot.slane %v694, 7
        %v697 = vshll.u32 %v613, 16
        %v699 = vor.u32 %v696, %v697
        %v700 = vrot.slane %v696, 4
        %v702 = vshrl.u32 %v614, 16
        %v704 = vrot.slane %v702, 7
        %v705 = vshll.u32 %v614, 16
        %v707 = vor.u32 %v704, %v705
        %v708 = vsel %vm641, %v700, %v707
        %v709 = vrot.slane %v704, 4
        %v711 = vshrl.u32 %v615, 16
        %v713 = vrot.slane %v711, 7
        %v714 = vshll.u32 %v615, 16
        %v716 = vor.u32 %v713, %v714
        %v717 = vrot.slane %v713, 4
        %v719 = vshrl.u32 %v616, 16
        %v721 = vrot.slane %v719, 7
        %v722 = vshll.u32 %v616, 16
        %v724 = vor.u32 %v721, %v722
        %v725 = vsel %vm641, %v717, %v724
        %v726 = vrot.slane %v721, 4
        %v728 = vshrl.u32 %v617, 16
        %v730 = vrot.slane %v728, 7
        %v731 = vshll.u32 %v617, 16
        %v733 = vor.u32 %v730, %v731
        %v734 = vrot.slane %v730, 4
        %v736 = vshrl.u32 %v618, 16
        %v738 = vrot.slane %v736, 7
        %v739 = vshll.u32 %v618, 16
        %v741 = vor.u32 %v738, %v739
        %v742 = vsel %vm641, %v734, %v741
        %v743 = vrot.slane %v738, 4
        %v745 = vshrl.u32 %v619, 16
        %v747 = vrot.slane %v745, 7
        %v748 = vshll.u32 %v619, 16
        %v750 = vor.u32 %v747, %v748
        %v751 = vrot.slane %v747, 4
        %v753 = vshrl.u32 %v620, 16
        %v755 = vrot.slane %v753, 7
        %v756 = vshll.u32 %v620, 16
        %v758 = vor.u32 %v755, %v756
        %v759 = vsel %vm641, %v751, %v758
        %v760 = vrot.slane %v755, 4
        %v762 = vshrl.u32 %v621, 16
        %v764 = vrot.slane %v762, 7
        %v765 = vshll.u32 %v621, 16
        %v767 = vor.u32 %v764, %v765
        %v768 = vrot.slane %v764, 4
        %v770 = vshrl.u32 %v622, 16
        %v772 = vrot.slane %v770, 7
        %v773 = vshll.u32 %v622, 16
        %v775 = vor.u32 %v772, %v773
        %v776 = vsel %vm641, %v768, %v775
        %v777 = vrot.slane %v772, 4
        %v779 = vshrl.u32 %v623, 16
        %v781 = vrot.slane %v779, 7
        %v782 = vshll.u32 %v623, 16
        %v784 = vor.u32 %v781, %v782
        %v785 = vrot.slane %v781, 4
        %v787 = vshrl.u32 %v624, 16
        %v789 = vrot.slane %v787, 7
        %v790 = vshll.u32 %v624, 16
        %v792 = vor.u32 %v789, %v790
        %v793 = vsel %vm641, %v785, %v792
        %v794 = vrot.slane %v789, 4
        %v796 = vshrl.u32 %v625, 16
        %v798 = vrot.slane %v796, 7
        %v799 = vshll.u32 %v625, 16
        %v801 = vor.u32 %v798, %v799
        %v802 = vrot.slane %v798, 4
        %v804 = vshrl.u32 %v626, 16
        %v806 = vrot.slane %v804, 7
        %v807 = vshll.u32 %v626, 16
        %v809 = vor.u32 %v806, %v807
        %v810 = vsel %vm641, %v802, %v809
        %v811 = vrot.slane %v806, 4
        %v813 = vshrl.u32 %v627, 16
        %v815 = vrot.slane %v813, 7
        %v816 = vshll.u32 %v627, 16
        %v818 = vor.u32 %v815, %v816
        %v819 = vrot.slane %v815, 4
        %v821 = vshrl.u32 %v628, 16
        %v823 = vrot.slane %v821, 7
        %v824 = vshll.u32 %v628, 16
        %v826 = vor.u32 %v823, %v824
        %v827 = vsel %vm641, %v819, %v826
        %v828 = vrot.slane %v823, 4
        %v830 = vshrl.u32 %v629, 16
        %v832 = vrot.slane %v830, 7
        %v833 = vshll.u32 %v629, 16
        %v835 = vor.u32 %v832, %v833
        %v836 = vrot.slane %v832, 4
        %v838 = vshrl.u32 %v630, 16
        %v840 = vrot.slane %v838, 7
        %v841 = vshll.u32 %v630, 16
        %v843 = vor.u32 %v840, %v841
        %v844 = vsel %vm641, %v836, %v843
        %v845 = vrot.slane %v840, 4
        %v847 = vshrl.u32 %v631, 16
        %v849 = vrot.slane %v847, 7
        %v850 = vshll.u32 %v631, 16
        %v852 = vor.u32 %v849, %v850
        %v853 = vrot.slane %v849, 4
        %v855 = vshrl.u32 %v632, 16
        %v857 = vrot.slane %v855, 7
        %v858 = vshll.u32 %v632, 16
        %v860 = vor.u32 %v857, %v858
        %v861 = vsel %vm641, %v853, %v860
        %v862 = vrot.slane %v857, 4
        %v864 = vshrl.u32 %v633, 16
        %v866 = vrot.slane %v864, 7
        %v867 = vshll.u32 %v633, 16
        %v869 = vor.u32 %v866, %v867
        %v870 = vrot.slane %v866, 4
        %v872 = vshrl.u32 %v634, 16
        %v874 = vrot.slane %v872, 7
        %v875 = vshll.u32 %v634, 16
        %v877 = vor.u32 %v874, %v875
        %v878 = vsel %vm641, %v870, %v877
        %v879 = vrot.slane %v874, 4
        %v881 = vshrl.u32 %v635, 16
        %v883 = vrot.slane %v881, 7
        %v884 = vshll.u32 %v635, 16
        %v886 = vor.u32 %v883, %v884
        %v887 = vrot.slane %v883, 4
        %v889 = vshrl.u32 %v636, 16
        %v891 = vrot.slane %v889, 7
        %v892 = vshll.u32 %v636, 16
        %v894 = vor.u32 %v891, %v892
        %v895 = vsel %vm641, %v887, %v894
        %v896 = vrot.slane %v891, 4
        %v898 = vshrl.u32 %v637, 16
        %v900 = vrot.slane %v898, 7
        %v901 = vshll.u32 %v637, 16
        %v903 = vor.u32 %v900, %v901
        %v904 = vrot.slane %v900, 4
        %v906 = vshrl.u32 %v638, 16
        %v908 = vrot.slane %v906, 7
        %v909 = vshll.u32 %v638, 16
        %v911 = vor.u32 %v908, %v909
        %v912 = vsel %vm641, %v904, %v911
        %v913 = vrot.slane %v908, 4
        %s962 = scalar_lea.vmem [#allocation2], 12
        %vm963 = vcmask 1043456
        %vm964 = vsmask.f32 7938
        %vm965 = vmand %vm963, %vm964
        %v966 = vld [vmem:[%s962] sm:$0xf]
        %v967 = vsel %vm965, %v648, %v966
        %968 = vst [vmem:[%s962] sm:$0xf] %v967
        %969 = vst [vmem:[%s962 + $0x4] sm:$0xf] %v657
        %vm970 = vcmask 1040384
        %vm971 = vmand %vm970, %vm639
        %v972 = vld [vmem:[%s962 + $0x8] sm:$0x1]
        %v973 = vsel %vm971, %v658, %v972
        %974 = vst [vmem:[%s962 + $0x8] sm:$0x1] %v973
        %v975 = vld [vmem:[%s962 + $0xc] sm:$0xf]
        %v976 = vsel %vm965, %v665, %v975
        %977 = vst [vmem:[%s962 + $0xc] sm:$0xf] %v976
        %978 = vst [vmem:[%s962 + $0x10] sm:$0xf] %v674
        %v979 = vld [vmem:[%s962 + $0x14] sm:$0x1]
        %v980 = vsel %vm971, %v675, %v979
        %981 = vst [vmem:[%s962 + $0x14] sm:$0x1] %v980
        %v982 = vld [vmem:[%s962 + $0x18] sm:$0xf]
        %v983 = vsel %vm965, %v682, %v982
        %984 = vst [vmem:[%s962 + $0x18] sm:$0xf] %v983
        %985 = vst [vmem:[%s962 + $0x1c] sm:$0xf] %v691
        %v986 = vld [vmem:[%s962 + $0x20] sm:$0x1]
        %v987 = vsel %vm971, %v692, %v986
        %988 = vst [vmem:[%s962 + $0x20] sm:$0x1] %v987
        %v989 = vld [vmem:[%s962 + $0x24] sm:$0xf]
        %v990 = vsel %vm965, %v699, %v989
        %991 = vst [vmem:[%s962 + $0x24] sm:$0xf] %v990
        %992 = vst [vmem:[%s962 + $0x28] sm:$0xf] %v708
        %v993 = vld [vmem:[%s962 + $0x2c] sm:$0x1]
        %v994 = vsel %vm971, %v709, %v993
        %995 = vst [vmem:[%s962 + $0x2c] sm:$0x1] %v994
        %v996 = vld [vmem:[%s962 + $0x30] sm:$0xf]
        %v997 = vsel %vm965, %v716, %v996
        %998 = vst [vmem:[%s962 + $0x30] sm:$0xf] %v997
        %999 = vst [vmem:[%s962 + $0x34] sm:$0xf] %v725
        %v1000 = vld [vmem:[%s962 + $0x38] sm:$0x1]
        %v1001 = vsel %vm971, %v726, %v1000
        %1002 = vst [vmem:[%s962 + $0x38] sm:$0x1] %v1001
        %v1003 = vld [vmem:[%s962 + $0x3c] sm:$0xf]
        %v1004 = vsel %vm965, %v733, %v1003
        %1005 = vst [vmem:[%s962 + $0x3c] sm:$0xf] %v1004
        %1006 = vst [vmem:[%s962 + $0x40] sm:$0xf] %v742
        %v1007 = vld [vmem:[%s962 + $0x44] sm:$0x1]
        %v1008 = vsel %vm971, %v743, %v1007
        %1009 = vst [vmem:[%s962 + $0x44] sm:$0x1] %v1008
        %v1010 = vld [vmem:[%s962 + $0x48] sm:$0xf]
        %v1011 = vsel %vm965, %v750, %v1010
        %1012 = vst [vmem:[%s962 + $0x48] sm:$0xf] %v1011
        %1013 = vst [vmem:[%s962 + $0x4c] sm:$0xf] %v759
        %v1014 = vld [vmem:[%s962 + $0x50] sm:$0x1]
        %v1015 = vsel %vm971, %v760, %v1014
        %1016 = vst [vmem:[%s962 + $0x50] sm:$0x1] %v1015
        %v1017 = vld [vmem:[%s962 + $0x54] sm:$0xf]
        %v1018 = vsel %vm965, %v767, %v1017
        %1019 = vst [vmem:[%s962 + $0x54] sm:$0xf] %v1018
        %1020 = vst [vmem:[%s962 + $0x58] sm:$0xf] %v776
        %v1021 = vld [vmem:[%s962 + $0x5c] sm:$0x1]
        %v1022 = vsel %vm971, %v777, %v1021
        %1023 = vst [vmem:[%s962 + $0x5c] sm:$0x1] %v1022
        %v1024 = vld [vmem:[%s962 + $0x60] sm:$0xf]
        %v1025 = vsel %vm965, %v784, %v1024
        %1026 = vst [vmem:[%s962 + $0x60] sm:$0xf] %v1025
        %1027 = vst [vmem:[%s962 + $0x64] sm:$0xf] %v793
        %v1028 = vld [vmem:[%s962 + $0x68] sm:$0x1]
        %v1029 = vsel %vm971, %v794, %v1028
        %1030 = vst [vmem:[%s962 + $0x68] sm:$0x1] %v1029
        %v1031 = vld [vmem:[%s962 + $0x6c] sm:$0xf]
        %v1032 = vsel %vm965, %v801, %v1031
        %1033 = vst [vmem:[%s962 + $0x6c] sm:$0xf] %v1032
        %1034 = vst [vmem:[%s962 + $0x70] sm:$0xf] %v810
        %v1035 = vld [vmem:[%s962 + $0x74] sm:$0x1]
        %v1036 = vsel %vm971, %v811, %v1035
        %1037 = vst [vmem:[%s962 + $0x74] sm:$0x1] %v1036
        %v1038 = vld [vmem:[%s962 + $0x78] sm:$0xf]
        %v1039 = vsel %vm965, %v818, %v1038
        %1040 = vst [vmem:[%s962 + $0x78] sm:$0xf] %v1039
        %1041 = vst [vmem:[%s962 + $0x7c] sm:$0xf] %v827
        %v1042 = vld [vmem:[%s962 + $0x80] sm:$0x1]
        %v1043 = vsel %vm971, %v828, %v1042
        %1044 = vst [vmem:[%s962 + $0x80] sm:$0x1] %v1043
        %v1045 = vld [vmem:[%s962 + $0x84] sm:$0xf]
        %v1046 = vsel %vm965, %v835, %v1045
        %1047 = vst [vmem:[%s962 + $0x84] sm:$0xf] %v1046
        %1048 = vst [vmem:[%s962 + $0x88] sm:$0xf] %v844
        %v1049 = vld [vmem:[%s962 + $0x8c] sm:$0x1]
        %v1050 = vsel %vm971, %v845, %v1049
        %1051 = vst [vmem:[%s962 + $0x8c] sm:$0x1] %v1050
        %v1052 = vld [vmem:[%s962 + $0x90] sm:$0xf]
        %v1053 = vsel %vm965, %v852, %v1052
        %1054 = vst [vmem:[%s962 + $0x90] sm:$0xf] %v1053
        %1055 = vst [vmem:[%s962 + $0x94] sm:$0xf] %v861
        %v1056 = vld [vmem:[%s962 + $0x98] sm:$0x1]
        %v1057 = vsel %vm971, %v862, %v1056
        %1058 = vst [vmem:[%s962 + $0x98] sm:$0x1] %v1057
        %v1059 = vld [vmem:[%s962 + $0x9c] sm:$0xf]
        %v1060 = vsel %vm965, %v869, %v1059
        %1061 = vst [vmem:[%s962 + $0x9c] sm:$0xf] %v1060
        %1062 = vst [vmem:[%s962 + $0xa0] sm:$0xf] %v878
        %v1063 = vld [vmem:[%s962 + $0xa4] sm:$0x1]
        %v1064 = vsel %vm971, %v879, %v1063
        %1065 = vst [vmem:[%s962 + $0xa4] sm:$0x1] %v1064
        %v1066 = vld [vmem:[%s962 + $0xa8] sm:$0xf]
        %v1067 = vsel %vm965, %v886, %v1066
        %1068 = vst [vmem:[%s962 + $0xa8] sm:$0xf] %v1067
        %1069 = vst [vmem:[%s962 + $0xac] sm:$0xf] %v895
        %v1070 = vld [vmem:[%s962 + $0xb0] sm:$0x1]
        %v1071 = vsel %vm971, %v896, %v1070
        %1072 = vst [vmem:[%s962 + $0xb0] sm:$0x1] %v1071
        %v1073 = vld [vmem:[%s962 + $0xb4] sm:$0xf]
        %v1074 = vsel %vm965, %v903, %v1073
        %1075 = vst [vmem:[%s962 + $0xb4] sm:$0xf] %v1074
        %1076 = vst [vmem:[%s962 + $0xb8] sm:$0xf] %v912
        %v1077 = vld [vmem:[%s962 + $0xbc] sm:$0x1]
        %v1078 = vsel %vm971, %v913, %v1077
        %1079 = vst [vmem:[%s962 + $0xbc] sm:$0x1] %v1078
        %v1080 = vld [vmem:[#allocation2] sm:$0xf]
        %v1081 = vld [vmem:[#allocation2 + $0x4] sm:$0xf]
        %v1082 = vld [vmem:[#allocation2 + $0xc] sm:$0xf]
        %v1083 = vld [vmem:[#allocation2 + $0x10] sm:$0xf]
        %v1084 = vld [vmem:[#allocation2 + $0x18] sm:$0xf]
        %v1085 = vld [vmem:[#allocation2 + $0x1c] sm:$0xf]
        %v1086 = vld [vmem:[#allocation2 + $0x24] sm:$0xf]
        %v1087 = vld [vmem:[#allocation2 + $0x28] sm:$0xf]
        %v1088 = vld [vmem:[#allocation2 + $0x30] sm:$0xf]
        %v1089 = vld [vmem:[#allocation2 + $0x34] sm:$0xf]
        %v1090 = vld [vmem:[#allocation2 + $0x3c] sm:$0xf]
        %v1091 = vld [vmem:[#allocation2 + $0x40] sm:$0xf]
        %v1092 = vld [vmem:[#allocation2 + $0x48] sm:$0xf]
        %v1093 = vld [vmem:[#allocation2 + $0x4c] sm:$0xf]
        %v1094 = vld [vmem:[#allocation2 + $0x54] sm:$0xf]
        %v1095 = vld [vmem:[#allocation2 + $0x58] sm:$0xf]
        %v1096 = vld [vmem:[#allocation2 + $0x60] sm:$0xf]
        %v1097 = vld [vmem:[#allocation2 + $0x64] sm:$0xf]
        %v1098 = vld [vmem:[#allocation2 + $0x6c] sm:$0xf]
        %v1099 = vld [vmem:[#allocation2 + $0x70] sm:$0xf]
        %v1100 = vld [vmem:[#allocation2 + $0x78] sm:$0xf]
        %v1101 = vld [vmem:[#allocation2 + $0x7c] sm:$0xf]
        %v1102 = vld [vmem:[#allocation2 + $0x84] sm:$0xf]
        %v1103 = vld [vmem:[#allocation2 + $0x88] sm:$0xf]
        %v1104 = vld [vmem:[#allocation2 + $0x90] sm:$0xf]
        %v1105 = vld [vmem:[#allocation2 + $0x94] sm:$0xf]
        %v1106 = vld [vmem:[#allocation2 + $0x9c] sm:$0xf]
        %v1107 = vld [vmem:[#allocation2 + $0xa0] sm:$0xf]
        %v1108 = vld [vmem:[#allocation2 + $0xa8] sm:$0xf]
        %v1109 = vld [vmem:[#allocation2 + $0xac] sm:$0xf]
        %v1110 = vld [vmem:[#allocation2 + $0xb4] sm:$0xf]
        %v1111 = vld [vmem:[#allocation2 + $0xb8] sm:$0xf]
        %1112 = vst [vmem:[#allocation4] sm:$0xf] %v1080
        %1113 = vst [vmem:[#allocation4 + $0x24] sm:$0xf] %v1081
        %1114 = vst [vmem:[#allocation4 + $0x48] sm:$0xf] %v1082
        %1115 = vst [vmem:[#allocation4 + $0x6c] sm:$0xf] %v1083
        %1116 = vst [vmem:[#allocation4 + $0x90] sm:$0xf] %v1084
        %1117 = vst [vmem:[#allocation4 + $0xb4] sm:$0xf] %v1085
        %1118 = vst [vmem:[#allocation4 + $0xd8] sm:$0xf] %v1086
        %1119 = vst [vmem:[#allocation4 + $0xfc] sm:$0xf] %v1087
        %1120 = vst [vmem:[#allocation4 + $0x120] sm:$0xf] %v1088
        %1121 = vst [vmem:[#allocation4 + $0x144] sm:$0xf] %v1089
        %1122 = vst [vmem:[#allocation4 + $0x168] sm:$0xf] %v1090
        %1123 = vst [vmem:[#allocation4 + $0x18c] sm:$0xf] %v1091
        %1124 = vst [vmem:[#allocation4 + $0x1b0] sm:$0xf] %v1092
        %1125 = vst [vmem:[#allocation4 + $0x1d4] sm:$0xf] %v1093
        %1126 = vst [vmem:[#allocation4 + $0x1f8] sm:$0xf] %v1094
        %1127 = vst [vmem:[#allocation4 + $0x21c] sm:$0xf] %v1095
        %1128 = vst [vmem:[#allocation4 + $0x240] sm:$0xf] %v1096
        %1129 = vst [vmem:[#allocation4 + $0x264] sm:$0xf] %v1097
        %1130 = vst [vmem:[#allocation4 + $0x288] sm:$0xf] %v1098
        %1131 = vst [vmem:[#allocation4 + $0x2ac] sm:$0xf] %v1099
        %1132 = vst [vmem:[#allocation4 + $0x2d0] sm:$0xf] %v1100
        %1133 = vst [vmem:[#allocation4 + $0x2f4] sm:$0xf] %v1101
        %1134 = vst [vmem:[#allocation4 + $0x318] sm:$0xf] %v1102
        %1135 = vst [vmem:[#allocation4 + $0x33c] sm:$0xf] %v1103
        %1136 = vst [vmem:[#allocation4 + $0x360] sm:$0xf] %v1104
        %1137 = vst [vmem:[#allocation4 + $0x384] sm:$0xf] %v1105
        %1138 = vst [vmem:[#allocation4 + $0x3a8] sm:$0xf] %v1106
        %1139 = vst [vmem:[#allocation4 + $0x3cc] sm:$0xf] %v1107
        %1140 = vst [vmem:[#allocation4 + $0x3f0] sm:$0xf] %v1108
        %1141 = vst [vmem:[#allocation4 + $0x414] sm:$0xf] %v1109
        %1142 = vst [vmem:[#allocation4 + $0x438] sm:$0xf] %v1110
        %1143 = vst [vmem:[#allocation4 + $0x45c] sm:$0xf] %v1111
        %v1144 = vld [vmem:[#allocation2] sm:$0xf]
        %v1145 = vld [vmem:[#allocation2 + $0x4] sm:$0xf]
        %v1146 = vld [vmem:[#allocation2 + $0x8] sm:$0x1]
        %v1147 = vld [vmem:[#allocation2 + $0xc] sm:$0xf]
        %v1148 = vld [vmem:[#allocation2 + $0x10] sm:$0xf]
        %v1149 = vld [vmem:[#allocation2 + $0x14] sm:$0x1]
        %v1150 = vld [vmem:[#allocation2 + $0x18] sm:$0xf]
        %v1151 = vld [vmem:[#allocation2 + $0x1c] sm:$0xf]
        %v1152 = vld [vmem:[#allocation2 + $0x20] sm:$0x1]
        %v1153 = vld [vmem:[#allocation2 + $0x24] sm:$0xf]
        %v1154 = vld [vmem:[#allocation2 + $0x28] sm:$0xf]
        %v1155 = vld [vmem:[#allocation2 + $0x2c] sm:$0x1]
        %v1156 = vld [vmem:[#allocation2 + $0x30] sm:$0xf]
        %v1157 = vld [vmem:[#allocation2 + $0x34] sm:$0xf]
        %v1158 = vld [vmem:[#allocation2 + $0x38] sm:$0x1]
        %v1159 = vld [vmem:[#allocation2 + $0x3c] sm:$0xf]
        %v1160 = vld [vmem:[#allocation2 + $0x40] sm:$0xf]
        %v1161 = vld [vmem:[#allocation2 + $0x44] sm:$0x1]
        %v1162 = vld [vmem:[#allocation2 + $0x48] sm:$0xf]
        %v1163 = vld [vmem:[#allocation2 + $0x4c] sm:$0xf]
        %v1164 = vld [vmem:[#allocation2 + $0x50] sm:$0x1]
        %v1165 = vld [vmem:[#allocation2 + $0x54] sm:$0xf]
        %v1166 = vld [vmem:[#allocation2 + $0x58] sm:$0xf]
        %v1167 = vld [vmem:[#allocation2 + $0x5c] sm:$0x1]
        %v1168 = vld [vmem:[#allocation2 + $0x60] sm:$0xf]
        %v1169 = vld [vmem:[#allocation2 + $0x64] sm:$0xf]
        %v1170 = vld [vmem:[#allocation2 + $0x68] sm:$0x1]
        %v1171 = vld [vmem:[#allocation2 + $0x6c] sm:$0xf]
        %v1172 = vld [vmem:[#allocation2 + $0x70] sm:$0xf]
        %v1173 = vld [vmem:[#allocation2 + $0x74] sm:$0x1]
        %v1174 = vld [vmem:[#allocation2 + $0x78] sm:$0xf]
        %v1175 = vld [vmem:[#allocation2 + $0x7c] sm:$0xf]
        %v1176 = vld [vmem:[#allocation2 + $0x80] sm:$0x1]
        %v1177 = vld [vmem:[#allocation2 + $0x84] sm:$0xf]
        %v1178 = vld [vmem:[#allocation2 + $0x88] sm:$0xf]
        %v1179 = vld [vmem:[#allocation2 + $0x8c] sm:$0x1]
        %v1180 = vld [vmem:[#allocation2 + $0x90] sm:$0xf]
        %v1181 = vld [vmem:[#allocation2 + $0x94] sm:$0xf]
        %v1182 = vld [vmem:[#allocation2 + $0x98] sm:$0x1]
        %v1183 = vld [vmem:[#allocation2 + $0x9c] sm:$0xf]
        %v1184 = vld [vmem:[#allocation2 + $0xa0] sm:$0xf]
        %v1185 = vld [vmem:[#allocation2 + $0xa4] sm:$0x1]
        %v1186 = vld [vmem:[#allocation2 + $0xa8] sm:$0xf]
        %v1187 = vld [vmem:[#allocation2 + $0xac] sm:$0xf]
        %v1188 = vld [vmem:[#allocation2 + $0xb0] sm:$0x1]
        %v1189 = vld [vmem:[#allocation2 + $0xb4] sm:$0xf]
        %v1190 = vld [vmem:[#allocation2 + $0xb8] sm:$0xf]
        %v1191 = vld [vmem:[#allocation2 + $0xbc] sm:$0x1]
        %vm1192 = vsmask.f32 3328
        %vm1193 = vsmask.f32 7440
        %vm1194 = vmor %vm1192, %vm1193
        %v1196 = vshrl.u32 %v1144, 16
        %v1198 = vrot.slane %v1196, 4
        %v1199 = vshll.u32 %v1144, 16
        %v1201 = vrot.slane %v1199, 5
        %v1202 = vor.u32 %v1198, %v1201
        %v1203 = vrot.slane %v1202, 4
        %v1205 = vshll.u32 %v1145, 16
        %v1207 = vrot.slane %v1205, 5
        %v1208 = vsel %vm1194, %v1203, %v1207
        %v1209 = vshrl.u32 %v1145, 16
        %v1211 = vrot.slane %v1209, 4
        %v1212 = vor.u32 %v1211, %v1207
        %v1213 = vrot.slane %v1212, 4
        %v1215 = vshll.u32 %v1146, 16
        %v1217 = vrot.slane %v1215, 5
        %v1218 = vsel %vm1194, %v1213, %v1217
        %v1220 = vshrl.u32 %v1147, 16
        %v1222 = vrot.slane %v1220, 4
        %v1223 = vshll.u32 %v1147, 16
        %v1225 = vrot.slane %v1223, 5
        %v1226 = vor.u32 %v1222, %v1225
        %v1227 = vrot.slane %v1226, 4
        %v1229 = vshll.u32 %v1148, 16
        %v1231 = vrot.slane %v1229, 5
        %v1232 = vsel %vm1194, %v1227, %v1231
        %v1233 = vshrl.u32 %v1148, 16
        %v1235 = vrot.slane %v1233, 4
        %v1236 = vor.u32 %v1235, %v1231
        %v1237 = vrot.slane %v1236, 4
        %v1239 = vshll.u32 %v1149, 16
        %v1241 = vrot.slane %v1239, 5
        %v1242 = vsel %vm1194, %v1237, %v1241
        %v1244 = vshrl.u32 %v1150, 16
        %v1246 = vrot.slane %v1244, 4
        %v1247 = vshll.u32 %v1150, 16
        %v1249 = vrot.slane %v1247, 5
        %v1250 = vor.u32 %v1246, %v1249
        %v1251 = vrot.slane %v1250, 4
        %v1253 = vshll.u32 %v1151, 16
        %v1255 = vrot.slane %v1253, 5
        %v1256 = vsel %vm1194, %v1251, %v1255
        %v1257 = vshrl.u32 %v1151, 16
        %v1259 = vrot.slane %v1257, 4
        %v1260 = vor.u32 %v1259, %v1255
        %v1261 = vrot.slane %v1260, 4
        %v1263 = vshll.u32 %v1152, 16
        %v1265 = vrot.slane %v1263, 5
        %v1266 = vsel %vm1194, %v1261, %v1265
        %v1268 = vshrl.u32 %v1153, 16
        %v1270 = vrot.slane %v1268, 4
        %v1271 = vshll.u32 %v1153, 16
        %v1273 = vrot.slane %v1271, 5
        %v1274 = vor.u32 %v1270, %v1273
        %v1275 = vrot.slane %v1274, 4
        %v1277 = vshll.u32 %v1154, 16
        %v1279 = vrot.slane %v1277, 5
        %v1280 = vsel %vm1194, %v1275, %v1279
        %v1281 = vshrl.u32 %v1154, 16
        %v1283 = vrot.slane %v1281, 4
        %v1284 = vor.u32 %v1283, %v1279
        %v1285 = vrot.slane %v1284, 4
        %v1287 = vshll.u32 %v1155, 16
        %v1289 = vrot.slane %v1287, 5
        %v1290 = vsel %vm1194, %v1285, %v1289
        %v1292 = vshrl.u32 %v1156, 16
        %v1294 = vrot.slane %v1292, 4
        %v1295 = vshll.u32 %v1156, 16
        %v1297 = vrot.slane %v1295, 5
        %v1298 = vor.u32 %v1294, %v1297
        %v1299 = vrot.slane %v1298, 4
        %v1301 = vshll.u32 %v1157, 16
        %v1303 = vrot.slane %v1301, 5
        %v1304 = vsel %vm1194, %v1299, %v1303
        %v1305 = vshrl.u32 %v1157, 16
        %v1307 = vrot.slane %v1305, 4
        %v1308 = vor.u32 %v1307, %v1303
        %v1309 = vrot.slane %v1308, 4
        %v1311 = vshll.u32 %v1158, 16
        %v1313 = vrot.slane %v1311, 5
        %v1314 = vsel %vm1194, %v1309, %v1313
        %v1316 = vshrl.u32 %v1159, 16
        %v1318 = vrot.slane %v1316, 4
        %v1319 = vshll.u32 %v1159, 16
        %v1321 = vrot.slane %v1319, 5
        %v1322 = vor.u32 %v1318, %v1321
        %v1323 = vrot.slane %v1322, 4
        %v1325 = vshll.u32 %v1160, 16
        %v1327 = vrot.slane %v1325, 5
        %v1328 = vsel %vm1194, %v1323, %v1327
        %v1329 = vshrl.u32 %v1160, 16
        %v1331 = vrot.slane %v1329, 4
        %v1332 = vor.u32 %v1331, %v1327
        %v1333 = vrot.slane %v1332, 4
        %v1335 = vshll.u32 %v1161, 16
        %v1337 = vrot.slane %v1335, 5
        %v1338 = vsel %vm1194, %v1333, %v1337
        %v1340 = vshrl.u32 %v1162, 16
        %v1342 = vrot.slane %v1340, 4
        %v1343 = vshll.u32 %v1162, 16
        %v1345 = vrot.slane %v1343, 5
        %v1346 = vor.u32 %v1342, %v1345
        %v1347 = vrot.slane %v1346, 4
        %v1349 = vshll.u32 %v1163, 16
        %v1351 = vrot.slane %v1349, 5
        %v1352 = vsel %vm1194, %v1347, %v1351
        %v1353 = vshrl.u32 %v1163, 16
        %v1355 = vrot.slane %v1353, 4
        %v1356 = vor.u32 %v1355, %v1351
        %v1357 = vrot.slane %v1356, 4
        %v1359 = vshll.u32 %v1164, 16
        %v1361 = vrot.slane %v1359, 5
        %v1362 = vsel %vm1194, %v1357, %v1361
        %v1364 = vshrl.u32 %v1165, 16
        %v1366 = vrot.slane %v1364, 4
        %v1367 = vshll.u32 %v1165, 16
        %v1369 = vrot.slane %v1367, 5
        %v1370 = vor.u32 %v1366, %v1369
        %v1371 = vrot.slane %v1370, 4
        %v1373 = vshll.u32 %v1166, 16
        %v1375 = vrot.slane %v1373, 5
        %v1376 = vsel %vm1194, %v1371, %v1375
        %v1377 = vshrl.u32 %v1166, 16
        %v1379 = vrot.slane %v1377, 4
        %v1380 = vor.u32 %v1379, %v1375
        %v1381 = vrot.slane %v1380, 4
        %v1383 = vshll.u32 %v1167, 16
        %v1385 = vrot.slane %v1383, 5
        %v1386 = vsel %vm1194, %v1381, %v1385
        %v1388 = vshrl.u32 %v1168, 16
        %v1390 = vrot.slane %v1388, 4
        %v1391 = vshll.u32 %v1168, 16
        %v1393 = vrot.slane %v1391, 5
        %v1394 = vor.u32 %v1390, %v1393
        %v1395 = vrot.slane %v1394, 4
        %v1397 = vshll.u32 %v1169, 16
        %v1399 = vrot.slane %v1397, 5
        %v1400 = vsel %vm1194, %v1395, %v1399
        %v1401 = vshrl.u32 %v1169, 16
        %v1403 = vrot.slane %v1401, 4
        %v1404 = vor.u32 %v1403, %v1399
        %v1405 = vrot.slane %v1404, 4
        %v1407 = vshll.u32 %v1170, 16
        %v1409 = vrot.slane %v1407, 5
        %v1410 = vsel %vm1194, %v1405, %v1409
        %v1412 = vshrl.u32 %v1171, 16
        %v1414 = vrot.slane %v1412, 4
        %v1415 = vshll.u32 %v1171, 16
        %v1417 = vrot.slane %v1415, 5
        %v1418 = vor.u32 %v1414, %v1417
        %v1419 = vrot.slane %v1418, 4
        %v1421 = vshll.u32 %v1172, 16
        %v1423 = vrot.slane %v1421, 5
        %v1424 = vsel %vm1194, %v1419, %v1423
        %v1425 = vshrl.u32 %v1172, 16
        %v1427 = vrot.slane %v1425, 4
        %v1428 = vor.u32 %v1427, %v1423
        %v1429 = vrot.slane %v1428, 4
        %v1431 = vshll.u32 %v1173, 16
        %v1433 = vrot.slane %v1431, 5
        %v1434 = vsel %vm1194, %v1429, %v1433
        %v1436 = vshrl.u32 %v1174, 16
        %v1438 = vrot.slane %v1436, 4
        %v1439 = vshll.u32 %v1174, 16
        %v1441 = vrot.slane %v1439, 5
        %v1442 = vor.u32 %v1438, %v1441
        %v1443 = vrot.slane %v1442, 4
        %v1445 = vshll.u32 %v1175, 16
        %v1447 = vrot.slane %v1445, 5
        %v1448 = vsel %vm1194, %v1443, %v1447
        %v1449 = vshrl.u32 %v1175, 16
        %v1451 = vrot.slane %v1449, 4
        %v1452 = vor.u32 %v1451, %v1447
        %v1453 = vrot.slane %v1452, 4
        %v1455 = vshll.u32 %v1176, 16
        %v1457 = vrot.slane %v1455, 5
        %v1458 = vsel %vm1194, %v1453, %v1457
        %v1460 = vshrl.u32 %v1177, 16
        %v1462 = vrot.slane %v1460, 4
        %v1463 = vshll.u32 %v1177, 16
        %v1465 = vrot.slane %v1463, 5
        %v1466 = vor.u32 %v1462, %v1465
        %v1467 = vrot.slane %v1466, 4
        %v1469 = vshll.u32 %v1178, 16
        %v1471 = vrot.slane %v1469, 5
        %v1472 = vsel %vm1194, %v1467, %v1471
        %v1473 = vshrl.u32 %v1178, 16
        %v1475 = vrot.slane %v1473, 4
        %v1476 = vor.u32 %v1475, %v1471
        %v1477 = vrot.slane %v1476, 4
        %v1479 = vshll.u32 %v1179, 16
        %v1481 = vrot.slane %v1479, 5
        %v1482 = vsel %vm1194, %v1477, %v1481
        %v1484 = vshrl.u32 %v1180, 16
        %v1486 = vrot.slane %v1484, 4
        %v1487 = vshll.u32 %v1180, 16
        %v1489 = vrot.slane %v1487, 5
        %v1490 = vor.u32 %v1486, %v1489
        %v1491 = vrot.slane %v1490, 4
        %v1493 = vshll.u32 %v1181, 16
        %v1495 = vrot.slane %v1493, 5
        %v1496 = vsel %vm1194, %v1491, %v1495
        %v1497 = vshrl.u32 %v1181, 16
        %v1499 = vrot.slane %v1497, 4
        %v1500 = vor.u32 %v1499, %v1495
        %v1501 = vrot.slane %v1500, 4
        %v1503 = vshll.u32 %v1182, 16
        %v1505 = vrot.slane %v1503, 5
        %v1506 = vsel %vm1194, %v1501, %v1505
        %v1508 = vshrl.u32 %v1183, 16
        %v1510 = vrot.slane %v1508, 4
        %v1511 = vshll.u32 %v1183, 16
        %v1513 = vrot.slane %v1511, 5
        %v1514 = vor.u32 %v1510, %v1513
        %v1515 = vrot.slane %v1514, 4
        %v1517 = vshll.u32 %v1184, 16
        %v1519 = vrot.slane %v1517, 5
        %v1520 = vsel %vm1194, %v1515, %v1519
        %v1521 = vshrl.u32 %v1184, 16
        %v1523 = vrot.slane %v1521, 4
        %v1524 = vor.u32 %v1523, %v1519
        %v1525 = vrot.slane %v1524, 4
        %v1527 = vshll.u32 %v1185, 16
        %v1529 = vrot.slane %v1527, 5
        %v1530 = vsel %vm1194, %v1525, %v1529
        %v1532 = vshrl.u32 %v1186, 16
        %v1534 = vrot.slane %v1532, 4
        %v1535 = vshll.u32 %v1186, 16
        %v1537 = vrot.slane %v1535, 5
        %v1538 = vor.u32 %v1534, %v1537
        %v1539 = vrot.slane %v1538, 4
        %v1541 = vshll.u32 %v1187, 16
        %v1543 = vrot.slane %v1541, 5
        %v1544 = vsel %vm1194, %v1539, %v1543
        %v1545 = vshrl.u32 %v1187, 16
        %v1547 = vrot.slane %v1545, 4
        %v1548 = vor.u32 %v1547, %v1543
        %v1549 = vrot.slane %v1548, 4
        %v1551 = vshll.u32 %v1188, 16
        %v1553 = vrot.slane %v1551, 5
        %v1554 = vsel %vm1194, %v1549, %v1553
        %v1556 = vshrl.u32 %v1189, 16
        %v1558 = vrot.slane %v1556, 4
        %v1559 = vshll.u32 %v1189, 16
        %v1561 = vrot.slane %v1559, 5
        %v1562 = vor.u32 %v1558, %v1561
        %v1563 = vrot.slane %v1562, 4
        %v1565 = vshll.u32 %v1190, 16
        %v1567 = vrot.slane %v1565, 5
        %v1568 = vsel %vm1194, %v1563, %v1567
        %v1569 = vshrl.u32 %v1190, 16
        %v1571 = vrot.slane %v1569, 4
        %v1572 = vor.u32 %v1571, %v1567
        %v1573 = vrot.slane %v1572, 4
        %v1575 = vshll.u32 %v1191, 16
        %v1577 = vrot.slane %v1575, 5
        %v1578 = vsel %vm1194, %v1573, %v1577
        %1611 = vst [vmem:[#allocation4 + $0x4] sm:$0xf] %v1208
        %1612 = vst [vmem:[#allocation4 + $0x28] sm:$0xf] %v1218
        %1613 = vst [vmem:[#allocation4 + $0x4c] sm:$0xf] %v1232
        %1614 = vst [vmem:[#allocation4 + $0x70] sm:$0xf] %v1242
        %1615 = vst [vmem:[#allocation4 + $0x94] sm:$0xf] %v1256
        %1616 = vst [vmem:[#allocation4 + $0xb8] sm:$0xf] %v1266
        %1617 = vst [vmem:[#allocation4 + $0xdc] sm:$0xf] %v1280
        %1618 = vst [vmem:[#allocation4 + $0x100] sm:$0xf] %v1290
        %1619 = vst [vmem:[#allocation4 + $0x124] sm:$0xf] %v1304
        %1620 = vst [vmem:[#allocation4 + $0x148] sm:$0xf] %v1314
        %1621 = vst [vmem:[#allocation4 + $0x16c] sm:$0xf] %v1328
        %1622 = vst [vmem:[#allocation4 + $0x190] sm:$0xf] %v1338
        %1623 = vst [vmem:[#allocation4 + $0x1b4] sm:$0xf] %v1352
        %1624 = vst [vmem:[#allocation4 + $0x1d8] sm:$0xf] %v1362
        %1625 = vst [vmem:[#allocation4 + $0x1fc] sm:$0xf] %v1376
        %1626 = vst [vmem:[#allocation4 + $0x220] sm:$0xf] %v1386
        %1627 = vst [vmem:[#allocation4 + $0x244] sm:$0xf] %v1400
        %1628 = vst [vmem:[#allocation4 + $0x268] sm:$0xf] %v1410
        %1629 = vst [vmem:[#allocation4 + $0x28c] sm:$0xf] %v1424
        %1630 = vst [vmem:[#allocation4 + $0x2b0] sm:$0xf] %v1434
        %1631 = vst [vmem:[#allocation4 + $0x2d4] sm:$0xf] %v1448
        %1632 = vst [vmem:[#allocation4 + $0x2f8] sm:$0xf] %v1458
        %1633 = vst [vmem:[#allocation4 + $0x31c] sm:$0xf] %v1472
        %1634 = vst [vmem:[#allocation4 + $0x340] sm:$0xf] %v1482
        %1635 = vst [vmem:[#allocation4 + $0x364] sm:$0xf] %v1496
        %1636 = vst [vmem:[#allocation4 + $0x388] sm:$0xf] %v1506
        %1637 = vst [vmem:[#allocation4 + $0x3ac] sm:$0xf] %v1520
        %1638 = vst [vmem:[#allocation4 + $0x3d0] sm:$0xf] %v1530
        %1639 = vst [vmem:[#allocation4 + $0x3f4] sm:$0xf] %v1544
        %1640 = vst [vmem:[#allocation4 + $0x418] sm:$0xf] %v1554
        %1641 = vst [vmem:[#allocation4 + $0x43c] sm:$0xf] %v1568
        %1642 = vst [vmem:[#allocation4 + $0x460] sm:$0xf] %v1578
        %v1643 = vld [vmem:[#allocation2] sm:$0xe]
        %v1644 = vld [vmem:[#allocation2 + $0x4] sm:$0xf]
        %v1645 = vld [vmem:[#allocation2 + $0x8] sm:$0x1]
        %v1646 = vld [vmem:[#allocation2 + $0xc] sm:$0xe]
        %v1647 = vld [vmem:[#allocation2 + $0x10] sm:$0xf]
        %v1648 = vld [vmem:[#allocation2 + $0x14] sm:$0x1]
        %v1649 = vld [vmem:[#allocation2 + $0x18] sm:$0xe]
        %v1650 = vld [vmem:[#allocation2 + $0x1c] sm:$0xf]
        %v1651 = vld [vmem:[#allocation2 + $0x20] sm:$0x1]
        %v1652 = vld [vmem:[#allocation2 + $0x24] sm:$0xe]
        %v1653 = vld [vmem:[#allocation2 + $0x28] sm:$0xf]
        %v1654 = vld [vmem:[#allocation2 + $0x2c] sm:$0x1]
        %v1655 = vld [vmem:[#allocation2 + $0x30] sm:$0xe]
        %v1656 = vld [vmem:[#allocation2 + $0x34] sm:$0xf]
        %v1657 = vld [vmem:[#allocation2 + $0x38] sm:$0x1]
        %v1658 = vld [vmem:[#allocation2 + $0x3c] sm:$0xe]
        %v1659 = vld [vmem:[#allocation2 + $0x40] sm:$0xf]
        %v1660 = vld [vmem:[#allocation2 + $0x44] sm:$0x1]
        %v1661 = vld [vmem:[#allocation2 + $0x48] sm:$0xe]
        %v1662 = vld [vmem:[#allocation2 + $0x4c] sm:$0xf]
        %v1663 = vld [vmem:[#allocation2 + $0x50] sm:$0x1]
        %v1664 = vld [vmem:[#allocation2 + $0x54] sm:$0xe]
        %v1665 = vld [vmem:[#allocation2 + $0x58] sm:$0xf]
        %v1666 = vld [vmem:[#allocation2 + $0x5c] sm:$0x1]
        %v1667 = vld [vmem:[#allocation2 + $0x60] sm:$0xe]
        %v1668 = vld [vmem:[#allocation2 + $0x64] sm:$0xf]
        %v1669 = vld [vmem:[#allocation2 + $0x68] sm:$0x1]
        %v1670 = vld [vmem:[#allocation2 + $0x6c] sm:$0xe]
        %v1671 = vld [vmem:[#allocation2 + $0x70] sm:$0xf]
        %v1672 = vld [vmem:[#allocation2 + $0x74] sm:$0x1]
        %v1673 = vld [vmem:[#allocation2 + $0x78] sm:$0xe]
        %v1674 = vld [vmem:[#allocation2 + $0x7c] sm:$0xf]
        %v1675 = vld [vmem:[#allocation2 + $0x80] sm:$0x1]
        %v1676 = vld [vmem:[#allocation2 + $0x84] sm:$0xe]
        %v1677 = vld [vmem:[#allocation2 + $0x88] sm:$0xf]
        %v1678 = vld [vmem:[#allocation2 + $0x8c] sm:$0x1]
        %v1679 = vld [vmem:[#allocation2 + $0x90] sm:$0xe]
        %v1680 = vld [vmem:[#allocation2 + $0x94] sm:$0xf]
        %v1681 = vld [vmem:[#allocation2 + $0x98] sm:$0x1]
        %v1682 = vld [vmem:[#allocation2 + $0x9c] sm:$0xe]
        %v1683 = vld [vmem:[#allocation2 + $0xa0] sm:$0xf]
        %v1684 = vld [vmem:[#allocation2 + $0xa4] sm:$0x1]
        %v1685 = vld [vmem:[#allocation2 + $0xa8] sm:$0xe]
        %v1686 = vld [vmem:[#allocation2 + $0xac] sm:$0xf]
        %v1687 = vld [vmem:[#allocation2 + $0xb0] sm:$0x1]
        %v1688 = vld [vmem:[#allocation2 + $0xb4] sm:$0xe]
        %v1689 = vld [vmem:[#allocation2 + $0xb8] sm:$0xf]
        %v1690 = vld [vmem:[#allocation2 + $0xbc] sm:$0x1]
        %vm1739 = vcmask 1042432
        %vm1740 = vcmask 1046532
        %vm1741 = vmor %vm1739, %vm1740
        %v1742 = vrot.slane %v1643, 5
        %v1743 = vrot.slane %v1742, 4
        %v1744 = vrot.slane %v1644, 5
        %v1745 = vsel %vm1741, %v1743, %v1744
        %v1746 = vrot.slane %v1744, 4
        %v1747 = vrot.slane %v1645, 5
        %v1748 = vsel %vm1741, %v1746, %v1747
        %v1749 = vrot.slane %v1646, 5
        %v1750 = vrot.slane %v1749, 4
        %v1751 = vrot.slane %v1647, 5
        %v1752 = vsel %vm1741, %v1750, %v1751
        %v1753 = vrot.slane %v1751, 4
        %v1754 = vrot.slane %v1648, 5
        %v1755 = vsel %vm1741, %v1753, %v1754
        %v1756 = vrot.slane %v1649, 5
        %v1757 = vrot.slane %v1756, 4
        %v1758 = vrot.slane %v1650, 5
        %v1759 = vsel %vm1741, %v1757, %v1758
        %v1760 = vrot.slane %v1758, 4
        %v1761 = vrot.slane %v1651, 5
        %v1762 = vsel %vm1741, %v1760, %v1761
        %v1763 = vrot.slane %v1652, 5
        %v1764 = vrot.slane %v1763, 4
        %v1765 = vrot.slane %v1653, 5
        %v1766 = vsel %vm1741, %v1764, %v1765
        %v1767 = vrot.slane %v1765, 4
        %v1768 = vrot.slane %v1654, 5
        %v1769 = vsel %vm1741, %v1767, %v1768
        %v1770 = vrot.slane %v1655, 5
        %v1771 = vrot.slane %v1770, 4
        %v1772 = vrot.slane %v1656, 5
        %v1773 = vsel %vm1741, %v1771, %v1772
        %v1774 = vrot.slane %v1772, 4
        %v1775 = vrot.slane %v1657, 5
        %v1776 = vsel %vm1741, %v1774, %v1775
        %v1777 = vrot.slane %v1658, 5
        %v1778 = vrot.slane %v1777, 4
        %v1779 = vrot.slane %v1659, 5
        %v1780 = vsel %vm1741, %v1778, %v1779
        %v1781 = vrot.slane %v1779, 4
        %v1782 = vrot.slane %v1660, 5
        %v1783 = vsel %vm1741, %v1781, %v1782
        %v1784 = vrot.slane %v1661, 5
        %v1785 = vrot.slane %v1784, 4
        %v1786 = vrot.slane %v1662, 5
        %v1787 = vsel %vm1741, %v1785, %v1786
        %v1788 = vrot.slane %v1786, 4
        %v1789 = vrot.slane %v1663, 5
        %v1790 = vsel %vm1741, %v1788, %v1789
        %v1791 = vrot.slane %v1664, 5
        %v1792 = vrot.slane %v1791, 4
        %v1793 = vrot.slane %v1665, 5
        %v1794 = vsel %vm1741, %v1792, %v1793
        %v1795 = vrot.slane %v1793, 4
        %v1796 = vrot.slane %v1666, 5
        %v1797 = vsel %vm1741, %v1795, %v1796
        %v1798 = vrot.slane %v1667, 5
        %v1799 = vrot.slane %v1798, 4
        %v1800 = vrot.slane %v1668, 5
        %v1801 = vsel %vm1741, %v1799, %v1800
        %v1802 = vrot.slane %v1800, 4
        %v1803 = vrot.slane %v1669, 5
        %v1804 = vsel %vm1741, %v1802, %v1803
        %v1805 = vrot.slane %v1670, 5
        %v1806 = vrot.slane %v1805, 4
        %v1807 = vrot.slane %v1671, 5
        %v1808 = vsel %vm1741, %v1806, %v1807
        %v1809 = vrot.slane %v1807, 4
        %v1810 = vrot.slane %v1672, 5
        %v1811 = vsel %vm1741, %v1809, %v1810
        %v1812 = vrot.slane %v1673, 5
        %v1813 = vrot.slane %v1812, 4
        %v1814 = vrot.slane %v1674, 5
        %v1815 = vsel %vm1741, %v1813, %v1814
        %v1816 = vrot.slane %v1814, 4
        %v1817 = vrot.slane %v1675, 5
        %v1818 = vsel %vm1741, %v1816, %v1817
        %v1819 = vrot.slane %v1676, 5
        %v1820 = vrot.slane %v1819, 4
        %v1821 = vrot.slane %v1677, 5
        %v1822 = vsel %vm1741, %v1820, %v1821
        %v1823 = vrot.slane %v1821, 4
        %v1824 = vrot.slane %v1678, 5
        %v1825 = vsel %vm1741, %v1823, %v1824
        %v1826 = vrot.slane %v1679, 5
        %v1827 = vrot.slane %v1826, 4
        %v1828 = vrot.slane %v1680, 5
        %v1829 = vsel %vm1741, %v1827, %v1828
        %v1830 = vrot.slane %v1828, 4
        %v1831 = vrot.slane %v1681, 5
        %v1832 = vsel %vm1741, %v1830, %v1831
        %v1833 = vrot.slane %v1682, 5
        %v1834 = vrot.slane %v1833, 4
        %v1835 = vrot.slane %v1683, 5
        %v1836 = vsel %vm1741, %v1834, %v1835
        %v1837 = vrot.slane %v1835, 4
        %v1838 = vrot.slane %v1684, 5
        %v1839 = vsel %vm1741, %v1837, %v1838
        %v1840 = vrot.slane %v1685, 5
        %v1841 = vrot.slane %v1840, 4
        %v1842 = vrot.slane %v1686, 5
        %v1843 = vsel %vm1741, %v1841, %v1842
        %v1844 = vrot.slane %v1842, 4
        %v1845 = vrot.slane %v1687, 5
        %v1846 = vsel %vm1741, %v1844, %v1845
        %v1847 = vrot.slane %v1688, 5
        %v1848 = vrot.slane %v1847, 4
        %v1849 = vrot.slane %v1689, 5
        %v1850 = vsel %vm1741, %v1848, %v1849
        %v1851 = vrot.slane %v1849, 4
        %v1852 = vrot.slane %v1690, 5
        %v1853 = vsel %vm1741, %v1851, %v1852
        %1886 = vst [vmem:[#allocation4 + $0x8] sm:$0xf] %v1745
        %1887 = vst [vmem:[#allocation4 + $0x2c] sm:$0xf] %v1748
        %1888 = vst [vmem:[#allocation4 + $0x50] sm:$0xf] %v1752
        %1889 = vst [vmem:[#allocation4 + $0x74] sm:$0xf] %v1755
        %1890 = vst [vmem:[#allocation4 + $0x98] sm:$0xf] %v1759
        %1891 = vst [vmem:[#allocation4 + $0xbc] sm:$0xf] %v1762
        %1892 = vst [vmem:[#allocation4 + $0xe0] sm:$0xf] %v1766
        %1893 = vst [vmem:[#allocation4 + $0x104] sm:$0xf] %v1769
        %1894 = vst [vmem:[#allocation4 + $0x128] sm:$0xf] %v1773
        %1895 = vst [vmem:[#allocation4 + $0x14c] sm:$0xf] %v1776
        %1896 = vst [vmem:[#allocation4 + $0x170] sm:$0xf] %v1780
        %1897 = vst [vmem:[#allocation4 + $0x194] sm:$0xf] %v1783
        %1898 = vst [vmem:[#allocation4 + $0x1b8] sm:$0xf] %v1787
        %1899 = vst [vmem:[#allocation4 + $0x1dc] sm:$0xf] %v1790
        %1900 = vst [vmem:[#allocation4 + $0x200] sm:$0xf] %v1794
        %1901 = vst [vmem:[#allocation4 + $0x224] sm:$0xf] %v1797
        %1902 = vst [vmem:[#allocation4 + $0x248] sm:$0xf] %v1801
        %1903 = vst [vmem:[#allocation4 + $0x26c] sm:$0xf] %v1804
        %1904 = vst [vmem:[#allocation4 + $0x290] sm:$0xf] %v1808
        %1905 = vst [vmem:[#allocation4 + $0x2b4] sm:$0xf] %v1811
        %1906 = vst [vmem:[#allocation4 + $0x2d8] sm:$0xf] %v1815
        %1907 = vst [vmem:[#allocation4 + $0x2fc] sm:$0xf] %v1818
        %1908 = vst [vmem:[#allocation4 + $0x320] sm:$0xf] %v1822
        %1909 = vst [vmem:[#allocation4 + $0x344] sm:$0xf] %v1825
        %1910 = vst [vmem:[#allocation4 + $0x368] sm:$0xf] %v1829
        %1911 = vst [vmem:[#allocation4 + $0x38c] sm:$0xf] %v1832
        %1912 = vst [vmem:[#allocation4 + $0x3b0] sm:$0xf] %v1836
        %1913 = vst [vmem:[#allocation4 + $0x3d4] sm:$0xf] %v1839
        %1914 = vst [vmem:[#allocation4 + $0x3f8] sm:$0xf] %v1843
        %1915 = vst [vmem:[#allocation4 + $0x41c] sm:$0xf] %v1846
        %1916 = vst [vmem:[#allocation4 + $0x440] sm:$0xf] %v1850
        %1917 = vst [vmem:[#allocation4 + $0x464] sm:$0xf] %v1853
        %v1918 = vld [vmem:[%s962] sm:$0xf]
        %v1919 = vld [vmem:[%s962 + $0x4] sm:$0xf]
        %v1920 = vld [vmem:[%s962 + $0xc] sm:$0xf]
        %v1921 = vld [vmem:[%s962 + $0x10] sm:$0xf]
        %v1922 = vld [vmem:[%s962 + $0x18] sm:$0xf]
        %v1923 = vld [vmem:[%s962 + $0x1c] sm:$0xf]
        %v1924 = vld [vmem:[%s962 + $0x24] sm:$0xf]
        %v1925 = vld [vmem:[%s962 + $0x28] sm:$0xf]
        %v1926 = vld [vmem:[%s962 + $0x30] sm:$0xf]
        %v1927 = vld [vmem:[%s962 + $0x34] sm:$0xf]
        %v1928 = vld [vmem:[%s962 + $0x3c] sm:$0xf]
        %v1929 = vld [vmem:[%s962 + $0x40] sm:$0xf]
        %v1930 = vld [vmem:[%s962 + $0x48] sm:$0xf]
        %v1931 = vld [vmem:[%s962 + $0x4c] sm:$0xf]
        %v1932 = vld [vmem:[%s962 + $0x54] sm:$0xf]
        %v1933 = vld [vmem:[%s962 + $0x58] sm:$0xf]
        %v1934 = vld [vmem:[%s962 + $0x60] sm:$0xf]
        %v1935 = vld [vmem:[%s962 + $0x64] sm:$0xf]
        %v1936 = vld [vmem:[%s962 + $0x6c] sm:$0xf]
        %v1937 = vld [vmem:[%s962 + $0x70] sm:$0xf]
        %v1938 = vld [vmem:[%s962 + $0x78] sm:$0xf]
        %v1939 = vld [vmem:[%s962 + $0x7c] sm:$0xf]
        %v1940 = vld [vmem:[%s962 + $0x84] sm:$0xf]
        %v1941 = vld [vmem:[%s962 + $0x88] sm:$0xf]
        %v1942 = vld [vmem:[%s962 + $0x90] sm:$0xf]
        %v1943 = vld [vmem:[%s962 + $0x94] sm:$0xf]
        %v1944 = vld [vmem:[%s962 + $0x9c] sm:$0xf]
        %v1945 = vld [vmem:[%s962 + $0xa0] sm:$0xf]
        %v1946 = vld [vmem:[%s962 + $0xa8] sm:$0xf]
        %v1947 = vld [vmem:[%s962 + $0xac] sm:$0xf]
        %v1948 = vld [vmem:[%s962 + $0xb4] sm:$0xf]
        %v1949 = vld [vmem:[%s962 + $0xb8] sm:$0xf]
        %1950 = vst [vmem:[#allocation4 + $0xc] sm:$0xf] %v1918
        %1951 = vst [vmem:[#allocation4 + $0x30] sm:$0xf] %v1919
        %1952 = vst [vmem:[#allocation4 + $0x54] sm:$0xf] %v1920
        %1953 = vst [vmem:[#allocation4 + $0x78] sm:$0xf] %v1921
        %1954 = vst [vmem:[#allocation4 + $0x9c] sm:$0xf] %v1922
        %1955 = vst [vmem:[#allocation4 + $0xc0] sm:$0xf] %v1923
        %1956 = vst [vmem:[#allocation4 + $0xe4] sm:$0xf] %v1924
        %1957 = vst [vmem:[#allocation4 + $0x108] sm:$0xf] %v1925
        %1958 = vst [vmem:[#allocation4 + $0x12c] sm:$0xf] %v1926
        %1959 = vst [vmem:[#allocation4 + $0x150] sm:$0xf] %v1927
        %1960 = vst [vmem:[#allocation4 + $0x174] sm:$0xf] %v1928
        %1961 = vst [vmem:[#allocation4 + $0x198] sm:$0xf] %v1929
        %1962 = vst [vmem:[#allocation4 + $0x1bc] sm:$0xf] %v1930
        %1963 = vst [vmem:[#allocation4 + $0x1e0] sm:$0xf] %v1931
        %1964 = vst [vmem:[#allocation4 + $0x204] sm:$0xf] %v1932
        %1965 = vst [vmem:[#allocation4 + $0x228] sm:$0xf] %v1933
        %1966 = vst [vmem:[#allocation4 + $0x24c] sm:$0xf] %v1934
        %1967 = vst [vmem:[#allocation4 + $0x270] sm:$0xf] %v1935
        %1968 = vst [vmem:[#allocation4 + $0x294] sm:$0xf] %v1936
        %1969 = vst [vmem:[#allocation4 + $0x2b8] sm:$0xf] %v1937
        %1970 = vst [vmem:[#allocation4 + $0x2dc] sm:$0xf] %v1938
        %1971 = vst [vmem:[#allocation4 + $0x300] sm:$0xf] %v1939
        %1972 = vst [vmem:[#allocation4 + $0x324] sm:$0xf] %v1940
        %1973 = vst [vmem:[#allocation4 + $0x348] sm:$0xf] %v1941
        %1974 = vst [vmem:[#allocation4 + $0x36c] sm:$0xf] %v1942
        %1975 = vst [vmem:[#allocation4 + $0x390] sm:$0xf] %v1943
        %1976 = vst [vmem:[#allocation4 + $0x3b4] sm:$0xf] %v1944
        %1977 = vst [vmem:[#allocation4 + $0x3d8] sm:$0xf] %v1945
        %1978 = vst [vmem:[#allocation4 + $0x3fc] sm:$0xf] %v1946
        %1979 = vst [vmem:[#allocation4 + $0x420] sm:$0xf] %v1947
        %1980 = vst [vmem:[#allocation4 + $0x444] sm:$0xf] %v1948
        %1981 = vst [vmem:[#allocation4 + $0x468] sm:$0xf] %v1949
        %v1982 = vld [vmem:[%s962] sm:$0xf]
        %v1983 = vld [vmem:[%s962 + $0x4] sm:$0xf]
        %v1984 = vld [vmem:[%s962 + $0x8] sm:$0x1]
        %v1985 = vld [vmem:[%s962 + $0xc] sm:$0xf]
        %v1986 = vld [vmem:[%s962 + $0x10] sm:$0xf]
        %v1987 = vld [vmem:[%s962 + $0x14] sm:$0x1]
        %v1988 = vld [vmem:[%s962 + $0x18] sm:$0xf]
        %v1989 = vld [vmem:[%s962 + $0x1c] sm:$0xf]
        %v1990 = vld [vmem:[%s962 + $0x20] sm:$0x1]
        %v1991 = vld [vmem:[%s962 + $0x24] sm:$0xf]
        %v1992 = vld [vmem:[%s962 + $0x28] sm:$0xf]
        %v1993 = vld [vmem:[%s962 + $0x2c] sm:$0x1]
        %v1994 = vld [vmem:[%s962 + $0x30] sm:$0xf]
        %v1995 = vld [vmem:[%s962 + $0x34] sm:$0xf]
        %v1996 = vld [vmem:[%s962 + $0x38] sm:$0x1]
        %v1997 = vld [vmem:[%s962 + $0x3c] sm:$0xf]
        %v1998 = vld [vmem:[%s962 + $0x40] sm:$0xf]
        %v1999 = vld [vmem:[%s962 + $0x44] sm:$0x1]
        %v2000 = vld [vmem:[%s962 + $0x48] sm:$0xf]
        %v2001 = vld [vmem:[%s962 + $0x4c] sm:$0xf]
        %v2002 = vld [vmem:[%s962 + $0x50] sm:$0x1]
        %v2003 = vld [vmem:[%s962 + $0x54] sm:$0xf]
        %v2004 = vld [vmem:[%s962 + $0x58] sm:$0xf]
        %v2005 = vld [vmem:[%s962 + $0x5c] sm:$0x1]
        %v2006 = vld [vmem:[%s962 + $0x60] sm:$0xf]
        %v2007 = vld [vmem:[%s962 + $0x64] sm:$0xf]
        %v2008 = vld [vmem:[%s962 + $0x68] sm:$0x1]
        %v2009 = vld [vmem:[%s962 + $0x6c] sm:$0xf]
        %v2010 = vld [vmem:[%s962 + $0x70] sm:$0xf]
        %v2011 = vld [vmem:[%s962 + $0x74] sm:$0x1]
        %v2012 = vld [vmem:[%s962 + $0x78] sm:$0xf]
        %v2013 = vld [vmem:[%s962 + $0x7c] sm:$0xf]
        %v2014 = vld [vmem:[%s962 + $0x80] sm:$0x1]
        %v2015 = vld [vmem:[%s962 + $0x84] sm:$0xf]
        %v2016 = vld [vmem:[%s962 + $0x88] sm:$0xf]
        %v2017 = vld [vmem:[%s962 + $0x8c] sm:$0x1]
        %v2018 = vld [vmem:[%s962 + $0x90] sm:$0xf]
        %v2019 = vld [vmem:[%s962 + $0x94] sm:$0xf]
        %v2020 = vld [vmem:[%s962 + $0x98] sm:$0x1]
        %v2021 = vld [vmem:[%s962 + $0x9c] sm:$0xf]
        %v2022 = vld [vmem:[%s962 + $0xa0] sm:$0xf]
        %v2023 = vld [vmem:[%s962 + $0xa4] sm:$0x1]
        %v2024 = vld [vmem:[%s962 + $0xa8] sm:$0xf]
        %v2025 = vld [vmem:[%s962 + $0xac] sm:$0xf]
        %v2026 = vld [vmem:[%s962 + $0xb0] sm:$0x1]
        %v2027 = vld [vmem:[%s962 + $0xb4] sm:$0xf]
        %v2028 = vld [vmem:[%s962 + $0xb8] sm:$0xf]
        %v2029 = vld [vmem:[%s962 + $0xbc] sm:$0x1]
        %v2031 = vshrl.u32 %v1982, 16
        %v2033 = vrot.slane %v2031, 4
        %v2034 = vshll.u32 %v1982, 16
        %v2036 = vrot.slane %v2034, 5
        %v2037 = vor.u32 %v2033, %v2036
        %v2038 = vrot.slane %v2037, 4
        %v2040 = vshll.u32 %v1983, 16
        %v2042 = vrot.slane %v2040, 5
        %v2043 = vsel %vm1194, %v2038, %v2042
        %v2044 = vshrl.u32 %v1983, 16
        %v2046 = vrot.slane %v2044, 4
        %v2047 = vor.u32 %v2046, %v2042
        %v2048 = vrot.slane %v2047, 4
        %v2050 = vshll.u32 %v1984, 16
        %v2052 = vrot.slane %v2050, 5
        %v2053 = vsel %vm1194, %v2048, %v2052
        %v2055 = vshrl.u32 %v1985, 16
        %v2057 = vrot.slane %v2055, 4
        %v2058 = vshll.u32 %v1985, 16
        %v2060 = vrot.slane %v2058, 5
        %v2061 = vor.u32 %v2057, %v2060
        %v2062 = vrot.slane %v2061, 4
        %v2064 = vshll.u32 %v1986, 16
        %v2066 = vrot.slane %v2064, 5
        %v2067 = vsel %vm1194, %v2062, %v2066
        %v2068 = vshrl.u32 %v1986, 16
        %v2070 = vrot.slane %v2068, 4
        %v2071 = vor.u32 %v2070, %v2066
        %v2072 = vrot.slane %v2071, 4
        %v2074 = vshll.u32 %v1987, 16
        %v2076 = vrot.slane %v2074, 5
        %v2077 = vsel %vm1194, %v2072, %v2076
        %v2079 = vshrl.u32 %v1988, 16
        %v2081 = vrot.slane %v2079, 4
        %v2082 = vshll.u32 %v1988, 16
        %v2084 = vrot.slane %v2082, 5
        %v2085 = vor.u32 %v2081, %v2084
        %v2086 = vrot.slane %v2085, 4
        %v2088 = vshll.u32 %v1989, 16
        %v2090 = vrot.slane %v2088, 5
        %v2091 = vsel %vm1194, %v2086, %v2090
        %v2092 = vshrl.u32 %v1989, 16
        %v2094 = vrot.slane %v2092, 4
        %v2095 = vor.u32 %v2094, %v2090
        %v2096 = vrot.slane %v2095, 4
        %v2098 = vshll.u32 %v1990, 16
        %v2100 = vrot.slane %v2098, 5
        %v2101 = vsel %vm1194, %v2096, %v2100
        %v2103 = vshrl.u32 %v1991, 16
        %v2105 = vrot.slane %v2103, 4
        %v2106 = vshll.u32 %v1991, 16
        %v2108 = vrot.slane %v2106, 5
        %v2109 = vor.u32 %v2105, %v2108
        %v2110 = vrot.slane %v2109, 4
        %v2112 = vshll.u32 %v1992, 16
        %v2114 = vrot.slane %v2112, 5
        %v2115 = vsel %vm1194, %v2110, %v2114
        %v2116 = vshrl.u32 %v1992, 16
        %v2118 = vrot.slane %v2116, 4
        %v2119 = vor.u32 %v2118, %v2114
        %v2120 = vrot.slane %v2119, 4
        %v2122 = vshll.u32 %v1993, 16
        %v2124 = vrot.slane %v2122, 5
        %v2125 = vsel %vm1194, %v2120, %v2124
        %v2127 = vshrl.u32 %v1994, 16
        %v2129 = vrot.slane %v2127, 4
        %v2130 = vshll.u32 %v1994, 16
        %v2132 = vrot.slane %v2130, 5
        %v2133 = vor.u32 %v2129, %v2132
        %v2134 = vrot.slane %v2133, 4
        %v2136 = vshll.u32 %v1995, 16
        %v2138 = vrot.slane %v2136, 5
        %v2139 = vsel %vm1194, %v2134, %v2138
        %v2140 = vshrl.u32 %v1995, 16
        %v2142 = vrot.slane %v2140, 4
        %v2143 = vor.u32 %v2142, %v2138
        %v2144 = vrot.slane %v2143, 4
        %v2146 = vshll.u32 %v1996, 16
        %v2148 = vrot.slane %v2146, 5
        %v2149 = vsel %vm1194, %v2144, %v2148
        %v2151 = vshrl.u32 %v1997, 16
        %v2153 = vrot.slane %v2151, 4
        %v2154 = vshll.u32 %v1997, 16
        %v2156 = vrot.slane %v2154, 5
        %v2157 = vor.u32 %v2153, %v2156
        %v2158 = vrot.slane %v2157, 4
        %v2160 = vshll.u32 %v1998, 16
        %v2162 = vrot.slane %v2160, 5
        %v2163 = vsel %vm1194, %v2158, %v2162
        %v2164 = vshrl.u32 %v1998, 16
        %v2166 = vrot.slane %v2164, 4
        %v2167 = vor.u32 %v2166, %v2162
        %v2168 = vrot.slane %v2167, 4
        %v2170 = vshll.u32 %v1999, 16
        %v2172 = vrot.slane %v2170, 5
        %v2173 = vsel %vm1194, %v2168, %v2172
        %v2175 = vshrl.u32 %v2000, 16
        %v2177 = vrot.slane %v2175, 4
        %v2178 = vshll.u32 %v2000, 16
        %v2180 = vrot.slane %v2178, 5
        %v2181 = vor.u32 %v2177, %v2180
        %v2182 = vrot.slane %v2181, 4
        %v2184 = vshll.u32 %v2001, 16
        %v2186 = vrot.slane %v2184, 5
        %v2187 = vsel %vm1194, %v2182, %v2186
        %v2188 = vshrl.u32 %v2001, 16
        %v2190 = vrot.slane %v2188, 4
        %v2191 = vor.u32 %v2190, %v2186
        %v2192 = vrot.slane %v2191, 4
        %v2194 = vshll.u32 %v2002, 16
        %v2196 = vrot.slane %v2194, 5
        %v2197 = vsel %vm1194, %v2192, %v2196
        %v2199 = vshrl.u32 %v2003, 16
        %v2201 = vrot.slane %v2199, 4
        %v2202 = vshll.u32 %v2003, 16
        %v2204 = vrot.slane %v2202, 5
        %v2205 = vor.u32 %v2201, %v2204
        %v2206 = vrot.slane %v2205, 4
        %v2208 = vshll.u32 %v2004, 16
        %v2210 = vrot.slane %v2208, 5
        %v2211 = vsel %vm1194, %v2206, %v2210
        %v2212 = vshrl.u32 %v2004, 16
        %v2214 = vrot.slane %v2212, 4
        %v2215 = vor.u32 %v2214, %v2210
        %v2216 = vrot.slane %v2215, 4
        %v2218 = vshll.u32 %v2005, 16
        %v2220 = vrot.slane %v2218, 5
        %v2221 = vsel %vm1194, %v2216, %v2220
        %v2223 = vshrl.u32 %v2006, 16
        %v2225 = vrot.slane %v2223, 4
        %v2226 = vshll.u32 %v2006, 16
        %v2228 = vrot.slane %v2226, 5
        %v2229 = vor.u32 %v2225, %v2228
        %v2230 = vrot.slane %v2229, 4
        %v2232 = vshll.u32 %v2007, 16
        %v2234 = vrot.slane %v2232, 5
        %v2235 = vsel %vm1194, %v2230, %v2234
        %v2236 = vshrl.u32 %v2007, 16
        %v2238 = vrot.slane %v2236, 4
        %v2239 = vor.u32 %v2238, %v2234
        %v2240 = vrot.slane %v2239, 4
        %v2242 = vshll.u32 %v2008, 16
        %v2244 = vrot.slane %v2242, 5
        %v2245 = vsel %vm1194, %v2240, %v2244
        %v2247 = vshrl.u32 %v2009, 16
        %v2249 = vrot.slane %v2247, 4
        %v2250 = vshll.u32 %v2009, 16
        %v2252 = vrot.slane %v2250, 5
        %v2253 = vor.u32 %v2249, %v2252
        %v2254 = vrot.slane %v2253, 4
        %v2256 = vshll.u32 %v2010, 16
        %v2258 = vrot.slane %v2256, 5
        %v2259 = vsel %vm1194, %v2254, %v2258
        %v2260 = vshrl.u32 %v2010, 16
        %v2262 = vrot.slane %v2260, 4
        %v2263 = vor.u32 %v2262, %v2258
        %v2264 = vrot.slane %v2263, 4
        %v2266 = vshll.u32 %v2011, 16
        %v2268 = vrot.slane %v2266, 5
        %v2269 = vsel %vm1194, %v2264, %v2268
        %v2271 = vshrl.u32 %v2012, 16
        %v2273 = vrot.slane %v2271, 4
        %v2274 = vshll.u32 %v2012, 16
        %v2276 = vrot.slane %v2274, 5
        %v2277 = vor.u32 %v2273, %v2276
        %v2278 = vrot.slane %v2277, 4
        %v2280 = vshll.u32 %v2013, 16
        %v2282 = vrot.slane %v2280, 5
        %v2283 = vsel %vm1194, %v2278, %v2282
        %v2284 = vshrl.u32 %v2013, 16
        %v2286 = vrot.slane %v2284, 4
        %v2287 = vor.u32 %v2286, %v2282
        %v2288 = vrot.slane %v2287, 4
        %v2290 = vshll.u32 %v2014, 16
        %v2292 = vrot.slane %v2290, 5
        %v2293 = vsel %vm1194, %v2288, %v2292
        %v2295 = vshrl.u32 %v2015, 16
        %v2297 = vrot.slane %v2295, 4
        %v2298 = vshll.u32 %v2015, 16
        %v2300 = vrot.slane %v2298, 5
        %v2301 = vor.u32 %v2297, %v2300
        %v2302 = vrot.slane %v2301, 4
        %v2304 = vshll.u32 %v2016, 16
        %v2306 = vrot.slane %v2304, 5
        %v2307 = vsel %vm1194, %v2302, %v2306
        %v2308 = vshrl.u32 %v2016, 16
        %v2310 = vrot.slane %v2308, 4
        %v2311 = vor.u32 %v2310, %v2306
        %v2312 = vrot.slane %v2311, 4
        %v2314 = vshll.u32 %v2017, 16
        %v2316 = vrot.slane %v2314, 5
        %v2317 = vsel %vm1194, %v2312, %v2316
        %v2319 = vshrl.u32 %v2018, 16
        %v2321 = vrot.slane %v2319, 4
        %v2322 = vshll.u32 %v2018, 16
        %v2324 = vrot.slane %v2322, 5
        %v2325 = vor.u32 %v2321, %v2324
        %v2326 = vrot.slane %v2325, 4
        %v2328 = vshll.u32 %v2019, 16
        %v2330 = vrot.slane %v2328, 5
        %v2331 = vsel %vm1194, %v2326, %v2330
        %v2332 = vshrl.u32 %v2019, 16
        %v2334 = vrot.slane %v2332, 4
        %v2335 = vor.u32 %v2334, %v2330
        %v2336 = vrot.slane %v2335, 4
        %v2338 = vshll.u32 %v2020, 16
        %v2340 = vrot.slane %v2338, 5
        %v2341 = vsel %vm1194, %v2336, %v2340
        %v2343 = vshrl.u32 %v2021, 16
        %v2345 = vrot.slane %v2343, 4
        %v2346 = vshll.u32 %v2021, 16
        %v2348 = vrot.slane %v2346, 5
        %v2349 = vor.u32 %v2345, %v2348
        %v2350 = vrot.slane %v2349, 4
        %v2352 = vshll.u32 %v2022, 16
        %v2354 = vrot.slane %v2352, 5
        %v2355 = vsel %vm1194, %v2350, %v2354
        %v2356 = vshrl.u32 %v2022, 16
        %v2358 = vrot.slane %v2356, 4
        %v2359 = vor.u32 %v2358, %v2354
        %v2360 = vrot.slane %v2359, 4
        %v2362 = vshll.u32 %v2023, 16
        %v2364 = vrot.slane %v2362, 5
        %v2365 = vsel %vm1194, %v2360, %v2364
        %v2367 = vshrl.u32 %v2024, 16
        %v2369 = vrot.slane %v2367, 4
        %v2370 = vshll.u32 %v2024, 16
        %v2372 = vrot.slane %v2370, 5
        %v2373 = vor.u32 %v2369, %v2372
        %v2374 = vrot.slane %v2373, 4
        %v2376 = vshll.u32 %v2025, 16
        %v2378 = vrot.slane %v2376, 5
        %v2379 = vsel %vm1194, %v2374, %v2378
        %v2380 = vshrl.u32 %v2025, 16
        %v2382 = vrot.slane %v2380, 4
        %v2383 = vor.u32 %v2382, %v2378
        %v2384 = vrot.slane %v2383, 4
        %v2386 = vshll.u32 %v2026, 16
        %v2388 = vrot.slane %v2386, 5
        %v2389 = vsel %vm1194, %v2384, %v2388
        %v2391 = vshrl.u32 %v2027, 16
        %v2393 = vrot.slane %v2391, 4
        %v2394 = vshll.u32 %v2027, 16
        %v2396 = vrot.slane %v2394, 5
        %v2397 = vor.u32 %v2393, %v2396
        %v2398 = vrot.slane %v2397, 4
        %v2400 = vshll.u32 %v2028, 16
        %v2402 = vrot.slane %v2400, 5
        %v2403 = vsel %vm1194, %v2398, %v2402
        %v2404 = vshrl.u32 %v2028, 16
        %v2406 = vrot.slane %v2404, 4
        %v2407 = vor.u32 %v2406, %v2402
        %v2408 = vrot.slane %v2407, 4
        %v2410 = vshll.u32 %v2029, 16
        %v2412 = vrot.slane %v2410, 5
        %v2413 = vsel %vm1194, %v2408, %v2412
        %2446 = vst [vmem:[#allocation4 + $0x10] sm:$0xf] %v2043
        %2447 = vst [vmem:[#allocation4 + $0x34] sm:$0xf] %v2053
        %2448 = vst [vmem:[#allocation4 + $0x58] sm:$0xf] %v2067
        %2449 = vst [vmem:[#allocation4 + $0x7c] sm:$0xf] %v2077
        %2450 = vst [vmem:[#allocation4 + $0xa0] sm:$0xf] %v2091
        %2451 = vst [vmem:[#allocation4 + $0xc4] sm:$0xf] %v2101
        %2452 = vst [vmem:[#allocation4 + $0xe8] sm:$0xf] %v2115
        %2453 = vst [vmem:[#allocation4 + $0x10c] sm:$0xf] %v2125
        %2454 = vst [vmem:[#allocation4 + $0x130] sm:$0xf] %v2139
        %2455 = vst [vmem:[#allocation4 + $0x154] sm:$0xf] %v2149
        %2456 = vst [vmem:[#allocation4 + $0x178] sm:$0xf] %v2163
        %2457 = vst [vmem:[#allocation4 + $0x19c] sm:$0xf] %v2173
        %2458 = vst [vmem:[#allocation4 + $0x1c0] sm:$0xf] %v2187
        %2459 = vst [vmem:[#allocation4 + $0x1e4] sm:$0xf] %v2197
        %2460 = vst [vmem:[#allocation4 + $0x208] sm:$0xf] %v2211
        %2461 = vst [vmem:[#allocation4 + $0x22c] sm:$0xf] %v2221
        %2462 = vst [vmem:[#allocation4 + $0x250] sm:$0xf] %v2235
        %2463 = vst [vmem:[#allocation4 + $0x274] sm:$0xf] %v2245
        %2464 = vst [vmem:[#allocation4 + $0x298] sm:$0xf] %v2259
        %2465 = vst [vmem:[#allocation4 + $0x2bc] sm:$0xf] %v2269
        %2466 = vst [vmem:[#allocation4 + $0x2e0] sm:$0xf] %v2283
        %2467 = vst [vmem:[#allocation4 + $0x304] sm:$0xf] %v2293
        %2468 = vst [vmem:[#allocation4 + $0x328] sm:$0xf] %v2307
        %2469 = vst [vmem:[#allocation4 + $0x34c] sm:$0xf] %v2317
        %2470 = vst [vmem:[#allocation4 + $0x370] sm:$0xf] %v2331
        %2471 = vst [vmem:[#allocation4 + $0x394] sm:$0xf] %v2341
        %2472 = vst [vmem:[#allocation4 + $0x3b8] sm:$0xf] %v2355
        %2473 = vst [vmem:[#allocation4 + $0x3dc] sm:$0xf] %v2365
        %2474 = vst [vmem:[#allocation4 + $0x400] sm:$0xf] %v2379
        %2475 = vst [vmem:[#allocation4 + $0x424] sm:$0xf] %v2389
        %2476 = vst [vmem:[#allocation4 + $0x448] sm:$0xf] %v2403
        %2477 = vst [vmem:[#allocation4 + $0x46c] sm:$0xf] %v2413
        %v2478 = vld [vmem:[%s962] sm:$0xe]
        %v2479 = vld [vmem:[%s962 + $0x4] sm:$0xf]
        %v2480 = vld [vmem:[%s962 + $0x8] sm:$0x1]
        %v2481 = vld [vmem:[%s962 + $0xc] sm:$0xe]
        %v2482 = vld [vmem:[%s962 + $0x10] sm:$0xf]
        %v2483 = vld [vmem:[%s962 + $0x14] sm:$0x1]
        %v2484 = vld [vmem:[%s962 + $0x18] sm:$0xe]
        %v2485 = vld [vmem:[%s962 + $0x1c] sm:$0xf]
        %v2486 = vld [vmem:[%s962 + $0x20] sm:$0x1]
        %v2487 = vld [vmem:[%s962 + $0x24] sm:$0xe]
        %v2488 = vld [vmem:[%s962 + $0x28] sm:$0xf]
        %v2489 = vld [vmem:[%s962 + $0x2c] sm:$0x1]
        %v2490 = vld [vmem:[%s962 + $0x30] sm:$0xe]
        %v2491 = vld [vmem:[%s962 + $0x34] sm:$0xf]
        %v2492 = vld [vmem:[%s962 + $0x38] sm:$0x1]
        %v2493 = vld [vmem:[%s962 + $0x3c] sm:$0xe]
        %v2494 = vld [vmem:[%s962 + $0x40] sm:$0xf]
        %v2495 = vld [vmem:[%s962 + $0x44] sm:$0x1]
        %v2496 = vld [vmem:[%s962 + $0x48] sm:$0xe]
        %v2497 = vld [vmem:[%s962 + $0x4c] sm:$0xf]
        %v2498 = vld [vmem:[%s962 + $0x50] sm:$0x1]
        %v2499 = vld [vmem:[%s962 + $0x54] sm:$0xe]
        %v2500 = vld [vmem:[%s962 + $0x58] sm:$0xf]
        %v2501 = vld [vmem:[%s962 + $0x5c] sm:$0x1]
        %v2502 = vld [vmem:[%s962 + $0x60] sm:$0xe]
        %v2503 = vld [vmem:[%s962 + $0x64] sm:$0xf]
        %v2504 = vld [vmem:[%s962 + $0x68] sm:$0x1]
        %v2505 = vld [vmem:[%s962 + $0x6c] sm:$0xe]
        %v2506 = vld [vmem:[%s962 + $0x70] sm:$0xf]
        %v2507 = vld [vmem:[%s962 + $0x74] sm:$0x1]
        %v2508 = vld [vmem:[%s962 + $0x78] sm:$0xe]
        %v2509 = vld [vmem:[%s962 + $0x7c] sm:$0xf]
        %v2510 = vld [vmem:[%s962 + $0x80] sm:$0x1]
        %v2511 = vld [vmem:[%s962 + $0x84] sm:$0xe]
        %v2512 = vld [vmem:[%s962 + $0x88] sm:$0xf]
        %v2513 = vld [vmem:[%s962 + $0x8c] sm:$0x1]
        %v2514 = vld [vmem:[%s962 + $0x90] sm:$0xe]
        %v2515 = vld [vmem:[%s962 + $0x94] sm:$0xf]
        %v2516 = vld [vmem:[%s962 + $0x98] sm:$0x1]
        %v2517 = vld [vmem:[%s962 + $0x9c] sm:$0xe]
        %v2518 = vld [vmem:[%s962 + $0xa0] sm:$0xf]
        %v2519 = vld [vmem:[%s962 + $0xa4] sm:$0x1]
        %v2520 = vld [vmem:[%s962 + $0xa8] sm:$0xe]
        %v2521 = vld [vmem:[%s962 + $0xac] sm:$0xf]
        %v2522 = vld [vmem:[%s962 + $0xb0] sm:$0x1]
        %v2523 = vld [vmem:[%s962 + $0xb4] sm:$0xe]
        %v2524 = vld [vmem:[%s962 + $0xb8] sm:$0xf]
        %v2525 = vld [vmem:[%s962 + $0xbc] sm:$0x1]
        %v2574 = vrot.slane %v2478, 5
        %v2575 = vrot.slane %v2574, 4
        %v2576 = vrot.slane %v2479, 5
        %v2577 = vsel %vm1741, %v2575, %v2576
        %v2578 = vrot.slane %v2576, 4
        %v2579 = vrot.slane %v2480, 5
        %v2580 = vsel %vm1741, %v2578, %v2579
        %v2581 = vrot.slane %v2481, 5
        %v2582 = vrot.slane %v2581, 4
        %v2583 = vrot.slane %v2482, 5
        %v2584 = vsel %vm1741, %v2582, %v2583
        %v2585 = vrot.slane %v2583, 4
        %v2586 = vrot.slane %v2483, 5
        %v2587 = vsel %vm1741, %v2585, %v2586
        %v2588 = vrot.slane %v2484, 5
        %v2589 = vrot.slane %v2588, 4
        %v2590 = vrot.slane %v2485, 5
        %v2591 = vsel %vm1741, %v2589, %v2590
        %v2592 = vrot.slane %v2590, 4
        %v2593 = vrot.slane %v2486, 5
        %v2594 = vsel %vm1741, %v2592, %v2593
        %v2595 = vrot.slane %v2487, 5
        %v2596 = vrot.slane %v2595, 4
        %v2597 = vrot.slane %v2488, 5
        %v2598 = vsel %vm1741, %v2596, %v2597
        %v2599 = vrot.slane %v2597, 4
        %v2600 = vrot.slane %v2489, 5
        %v2601 = vsel %vm1741, %v2599, %v2600
        %v2602 = vrot.slane %v2490, 5
        %v2603 = vrot.slane %v2602, 4
        %v2604 = vrot.slane %v2491, 5
        %v2605 = vsel %vm1741, %v2603, %v2604
        %v2606 = vrot.slane %v2604, 4
        %v2607 = vrot.slane %v2492, 5
        %v2608 = vsel %vm1741, %v2606, %v2607
        %v2609 = vrot.slane %v2493, 5
        %v2610 = vrot.slane %v2609, 4
        %v2611 = vrot.slane %v2494, 5
        %v2612 = vsel %vm1741, %v2610, %v2611
        %v2613 = vrot.slane %v2611, 4
        %v2614 = vrot.slane %v2495, 5
        %v2615 = vsel %vm1741, %v2613, %v2614
        %v2616 = vrot.slane %v2496, 5
        %v2617 = vrot.slane %v2616, 4
        %v2618 = vrot.slane %v2497, 5
        %v2619 = vsel %vm1741, %v2617, %v2618
        %v2620 = vrot.slane %v2618, 4
        %v2621 = vrot.slane %v2498, 5
        %v2622 = vsel %vm1741, %v2620, %v2621
        %v2623 = vrot.slane %v2499, 5
        %v2624 = vrot.slane %v2623, 4
        %v2625 = vrot.slane %v2500, 5
        %v2626 = vsel %vm1741, %v2624, %v2625
        %v2627 = vrot.slane %v2625, 4
        %v2628 = vrot.slane %v2501, 5
        %v2629 = vsel %vm1741, %v2627, %v2628
        %v2630 = vrot.slane %v2502, 5
        %v2631 = vrot.slane %v2630, 4
        %v2632 = vrot.slane %v2503, 5
        %v2633 = vsel %vm1741, %v2631, %v2632
        %v2634 = vrot.slane %v2632, 4
        %v2635 = vrot.slane %v2504, 5
        %v2636 = vsel %vm1741, %v2634, %v2635
        %v2637 = vrot.slane %v2505, 5
        %v2638 = vrot.slane %v2637, 4
        %v2639 = vrot.slane %v2506, 5
        %v2640 = vsel %vm1741, %v2638, %v2639
        %v2641 = vrot.slane %v2639, 4
        %v2642 = vrot.slane %v2507, 5
        %v2643 = vsel %vm1741, %v2641, %v2642
        %v2644 = vrot.slane %v2508, 5
        %v2645 = vrot.slane %v2644, 4
        %v2646 = vrot.slane %v2509, 5
        %v2647 = vsel %vm1741, %v2645, %v2646
        %v2648 = vrot.slane %v2646, 4
        %v2649 = vrot.slane %v2510, 5
        %v2650 = vsel %vm1741, %v2648, %v2649
        %v2651 = vrot.slane %v2511, 5
        %v2652 = vrot.slane %v2651, 4
        %v2653 = vrot.slane %v2512, 5
        %v2654 = vsel %vm1741, %v2652, %v2653
        %v2655 = vrot.slane %v2653, 4
        %v2656 = vrot.slane %v2513, 5
        %v2657 = vsel %vm1741, %v2655, %v2656
        %v2658 = vrot.slane %v2514, 5
        %v2659 = vrot.slane %v2658, 4
        %v2660 = vrot.slane %v2515, 5
        %v2661 = vsel %vm1741, %v2659, %v2660
        %v2662 = vrot.slane %v2660, 4
        %v2663 = vrot.slane %v2516, 5
        %v2664 = vsel %vm1741, %v2662, %v2663
        %v2665 = vrot.slane %v2517, 5
        %v2666 = vrot.slane %v2665, 4
        %v2667 = vrot.slane %v2518, 5
        %v2668 = vsel %vm1741, %v2666, %v2667
        %v2669 = vrot.slane %v2667, 4
        %v2670 = vrot.slane %v2519, 5
        %v2671 = vsel %vm1741, %v2669, %v2670
        %v2672 = vrot.slane %v2520, 5
        %v2673 = vrot.slane %v2672, 4
        %v2674 = vrot.slane %v2521, 5
        %v2675 = vsel %vm1741, %v2673, %v2674
        %v2676 = vrot.slane %v2674, 4
        %v2677 = vrot.slane %v2522, 5
        %v2678 = vsel %vm1741, %v2676, %v2677
        %v2679 = vrot.slane %v2523, 5
        %v2680 = vrot.slane %v2679, 4
        %v2681 = vrot.slane %v2524, 5
        %v2682 = vsel %vm1741, %v2680, %v2681
        %v2683 = vrot.slane %v2681, 4
        %v2684 = vrot.slane %v2525, 5
        %v2685 = vsel %vm1741, %v2683, %v2684
        %2718 = vst [vmem:[#allocation4 + $0x14] sm:$0xf] %v2577
        %2719 = vst [vmem:[#allocation4 + $0x38] sm:$0xf] %v2580
        %2720 = vst [vmem:[#allocation4 + $0x5c] sm:$0xf] %v2584
        %2721 = vst [vmem:[#allocation4 + $0x80] sm:$0xf] %v2587
        %2722 = vst [vmem:[#allocation4 + $0xa4] sm:$0xf] %v2591
        %2723 = vst [vmem:[#allocation4 + $0xc8] sm:$0xf] %v2594
        %2724 = vst [vmem:[#allocation4 + $0xec] sm:$0xf] %v2598
        %2725 = vst [vmem:[#allocation4 + $0x110] sm:$0xf] %v2601
        %2726 = vst [vmem:[#allocation4 + $0x134] sm:$0xf] %v2605
        %2727 = vst [vmem:[#allocation4 + $0x158] sm:$0xf] %v2608
        %2728 = vst [vmem:[#allocation4 + $0x17c] sm:$0xf] %v2612
        %2729 = vst [vmem:[#allocation4 + $0x1a0] sm:$0xf] %v2615
        %2730 = vst [vmem:[#allocation4 + $0x1c4] sm:$0xf] %v2619
        %2731 = vst [vmem:[#allocation4 + $0x1e8] sm:$0xf] %v2622
        %2732 = vst [vmem:[#allocation4 + $0x20c] sm:$0xf] %v2626
        %2733 = vst [vmem:[#allocation4 + $0x230] sm:$0xf] %v2629
        %2734 = vst [vmem:[#allocation4 + $0x254] sm:$0xf] %v2633
        %2735 = vst [vmem:[#allocation4 + $0x278] sm:$0xf] %v2636
        %2736 = vst [vmem:[#allocation4 + $0x29c] sm:$0xf] %v2640
        %2737 = vst [vmem:[#allocation4 + $0x2c0] sm:$0xf] %v2643
        %2738 = vst [vmem:[#allocation4 + $0x2e4] sm:$0xf] %v2647
        %2739 = vst [vmem:[#allocation4 + $0x308] sm:$0xf] %v2650
        %2740 = vst [vmem:[#allocation4 + $0x32c] sm:$0xf] %v2654
        %2741 = vst [vmem:[#allocation4 + $0x350] sm:$0xf] %v2657
        %2742 = vst [vmem:[#allocation4 + $0x374] sm:$0xf] %v2661
        %2743 = vst [vmem:[#allocation4 + $0x398] sm:$0xf] %v2664
        %2744 = vst [vmem:[#allocation4 + $0x3bc] sm:$0xf] %v2668
        %2745 = vst [vmem:[#allocation4 + $0x3e0] sm:$0xf] %v2671
        %2746 = vst [vmem:[#allocation4 + $0x404] sm:$0xf] %v2675
        %2747 = vst [vmem:[#allocation4 + $0x428] sm:$0xf] %v2678
        %2748 = vst [vmem:[#allocation4 + $0x44c] sm:$0xf] %v2682
        %2749 = vst [vmem:[#allocation4 + $0x470] sm:$0xf] %v2685
        %s2750 = scalar_lea.vmem [#allocation2], 24
        %v2751 = vld [vmem:[%s2750] sm:$0xf]
        %v2752 = vld [vmem:[%s2750 + $0x4] sm:$0xf]
        %v2753 = vld [vmem:[%s2750 + $0xc] sm:$0xf]
        %v2754 = vld [vmem:[%s2750 + $0x10] sm:$0xf]
        %v2755 = vld [vmem:[%s2750 + $0x18] sm:$0xf]
        %v2756 = vld [vmem:[%s2750 + $0x1c] sm:$0xf]
        %v2757 = vld [vmem:[%s2750 + $0x24] sm:$0xf]
        %v2758 = vld [vmem:[%s2750 + $0x28] sm:$0xf]
        %v2759 = vld [vmem:[%s2750 + $0x30] sm:$0xf]
        %v2760 = vld [vmem:[%s2750 + $0x34] sm:$0xf]
        %v2761 = vld [vmem:[%s2750 + $0x3c] sm:$0xf]
        %v2762 = vld [vmem:[%s2750 + $0x40] sm:$0xf]
        %v2763 = vld [vmem:[%s2750 + $0x48] sm:$0xf]
        %v2764 = vld [vmem:[%s2750 + $0x4c] sm:$0xf]
        %v2765 = vld [vmem:[%s2750 + $0x54] sm:$0xf]
        %v2766 = vld [vmem:[%s2750 + $0x58] sm:$0xf]
        %v2767 = vld [vmem:[%s2750 + $0x60] sm:$0xf]
        %v2768 = vld [vmem:[%s2750 + $0x64] sm:$0xf]
        %v2769 = vld [vmem:[%s2750 + $0x6c] sm:$0xf]
        %v2770 = vld [vmem:[%s2750 + $0x70] sm:$0xf]
        %v2771 = vld [vmem:[%s2750 + $0x78] sm:$0xf]
        %v2772 = vld [vmem:[%s2750 + $0x7c] sm:$0xf]
        %v2773 = vld [vmem:[%s2750 + $0x84] sm:$0xf]
        %v2774 = vld [vmem:[%s2750 + $0x88] sm:$0xf]
        %v2775 = vld [vmem:[%s2750 + $0x90] sm:$0xf]
        %v2776 = vld [vmem:[%s2750 + $0x94] sm:$0xf]
        %v2777 = vld [vmem:[%s2750 + $0x9c] sm:$0xf]
        %v2778 = vld [vmem:[%s2750 + $0xa0] sm:$0xf]
        %v2779 = vld [vmem:[%s2750 + $0xa8] sm:$0xf]
        %v2780 = vld [vmem:[%s2750 + $0xac] sm:$0xf]
        %v2781 = vld [vmem:[%s2750 + $0xb4] sm:$0xf]
        %v2782 = vld [vmem:[%s2750 + $0xb8] sm:$0xf]
        %2783 = vst [vmem:[#allocation4 + $0x18] sm:$0xf] %v2751
        %2784 = vst [vmem:[#allocation4 + $0x3c] sm:$0xf] %v2752
        %2785 = vst [vmem:[#allocation4 + $0x60] sm:$0xf] %v2753
        %2786 = vst [vmem:[#allocation4 + $0x84] sm:$0xf] %v2754
        %2787 = vst [vmem:[#allocation4 + $0xa8] sm:$0xf] %v2755
        %2788 = vst [vmem:[#allocation4 + $0xcc] sm:$0xf] %v2756
        %2789 = vst [vmem:[#allocation4 + $0xf0] sm:$0xf] %v2757
        %2790 = vst [vmem:[#allocation4 + $0x114] sm:$0xf] %v2758
        %2791 = vst [vmem:[#allocation4 + $0x138] sm:$0xf] %v2759
        %2792 = vst [vmem:[#allocation4 + $0x15c] sm:$0xf] %v2760
        %2793 = vst [vmem:[#allocation4 + $0x180] sm:$0xf] %v2761
        %2794 = vst [vmem:[#allocation4 + $0x1a4] sm:$0xf] %v2762
        %2795 = vst [vmem:[#allocation4 + $0x1c8] sm:$0xf] %v2763
        %2796 = vst [vmem:[#allocation4 + $0x1ec] sm:$0xf] %v2764
        %2797 = vst [vmem:[#allocation4 + $0x210] sm:$0xf] %v2765
        %2798 = vst [vmem:[#allocation4 + $0x234] sm:$0xf] %v2766
        %2799 = vst [vmem:[#allocation4 + $0x258] sm:$0xf] %v2767
        %2800 = vst [vmem:[#allocation4 + $0x27c] sm:$0xf] %v2768
        %2801 = vst [vmem:[#allocation4 + $0x2a0] sm:$0xf] %v2769
        %2802 = vst [vmem:[#allocation4 + $0x2c4] sm:$0xf] %v2770
        %2803 = vst [vmem:[#allocation4 + $0x2e8] sm:$0xf] %v2771
        %2804 = vst [vmem:[#allocation4 + $0x30c] sm:$0xf] %v2772
        %2805 = vst [vmem:[#allocation4 + $0x330] sm:$0xf] %v2773
        %2806 = vst [vmem:[#allocation4 + $0x354] sm:$0xf] %v2774
        %2807 = vst [vmem:[#allocation4 + $0x378] sm:$0xf] %v2775
        %2808 = vst [vmem:[#allocation4 + $0x39c] sm:$0xf] %v2776
        %2809 = vst [vmem:[#allocation4 + $0x3c0] sm:$0xf] %v2777
        %2810 = vst [vmem:[#allocation4 + $0x3e4] sm:$0xf] %v2778
        %2811 = vst [vmem:[#allocation4 + $0x408] sm:$0xf] %v2779
        %2812 = vst [vmem:[#allocation4 + $0x42c] sm:$0xf] %v2780
        %2813 = vst [vmem:[#allocation4 + $0x450] sm:$0xf] %v2781
        %2814 = vst [vmem:[#allocation4 + $0x474] sm:$0xf] %v2782
        %v2815 = vld [vmem:[%s2750] sm:$0xf]
        %v2816 = vld [vmem:[%s2750 + $0x4] sm:$0xf]
        %v2817 = vld [vmem:[%s2750 + $0x8] sm:$0x1]
        %v2818 = vld [vmem:[%s2750 + $0xc] sm:$0xf]
        %v2819 = vld [vmem:[%s2750 + $0x10] sm:$0xf]
        %v2820 = vld [vmem:[%s2750 + $0x14] sm:$0x1]
        %v2821 = vld [vmem:[%s2750 + $0x18] sm:$0xf]
        %v2822 = vld [vmem:[%s2750 + $0x1c] sm:$0xf]
        %v2823 = vld [vmem:[%s2750 + $0x20] sm:$0x1]
        %v2824 = vld [vmem:[%s2750 + $0x24] sm:$0xf]
        %v2825 = vld [vmem:[%s2750 + $0x28] sm:$0xf]
        %v2826 = vld [vmem:[%s2750 + $0x2c] sm:$0x1]
        %v2827 = vld [vmem:[%s2750 + $0x30] sm:$0xf]
        %v2828 = vld [vmem:[%s2750 + $0x34] sm:$0xf]
        %v2829 = vld [vmem:[%s2750 + $0x38] sm:$0x1]
        %v2830 = vld [vmem:[%s2750 + $0x3c] sm:$0xf]
        %v2831 = vld [vmem:[%s2750 + $0x40] sm:$0xf]
        %v2832 = vld [vmem:[%s2750 + $0x44] sm:$0x1]
        %v2833 = vld [vmem:[%s2750 + $0x48] sm:$0xf]
        %v2834 = vld [vmem:[%s2750 + $0x4c] sm:$0xf]
        %v2835 = vld [vmem:[%s2750 + $0x50] sm:$0x1]
        %v2836 = vld [vmem:[%s2750 + $0x54] sm:$0xf]
        %v2837 = vld [vmem:[%s2750 + $0x58] sm:$0xf]
        %v2838 = vld [vmem:[%s2750 + $0x5c] sm:$0x1]
        %v2839 = vld [vmem:[%s2750 + $0x60] sm:$0xf]
        %v2840 = vld [vmem:[%s2750 + $0x64] sm:$0xf]
        %v2841 = vld [vmem:[%s2750 + $0x68] sm:$0x1]
        %v2842 = vld [vmem:[%s2750 + $0x6c] sm:$0xf]
        %v2843 = vld [vmem:[%s2750 + $0x70] sm:$0xf]
        %v2844 = vld [vmem:[%s2750 + $0x74] sm:$0x1]
        %v2845 = vld [vmem:[%s2750 + $0x78] sm:$0xf]
        %v2846 = vld [vmem:[%s2750 + $0x7c] sm:$0xf]
        %v2847 = vld [vmem:[%s2750 + $0x80] sm:$0x1]
        %v2848 = vld [vmem:[%s2750 + $0x84] sm:$0xf]
        %v2849 = vld [vmem:[%s2750 + $0x88] sm:$0xf]
        %v2850 = vld [vmem:[%s2750 + $0x8c] sm:$0x1]
        %v2851 = vld [vmem:[%s2750 + $0x90] sm:$0xf]
        %v2852 = vld [vmem:[%s2750 + $0x94] sm:$0xf]
        %v2853 = vld [vmem:[%s2750 + $0x98] sm:$0x1]
        %v2854 = vld [vmem:[%s2750 + $0x9c] sm:$0xf]
        %v2855 = vld [vmem:[%s2750 + $0xa0] sm:$0xf]
        %v2856 = vld [vmem:[%s2750 + $0xa4] sm:$0x1]
        %v2857 = vld [vmem:[%s2750 + $0xa8] sm:$0xf]
        %v2858 = vld [vmem:[%s2750 + $0xac] sm:$0xf]
        %v2859 = vld [vmem:[%s2750 + $0xb0] sm:$0x1]
        %v2860 = vld [vmem:[%s2750 + $0xb4] sm:$0xf]
        %v2861 = vld [vmem:[%s2750 + $0xb8] sm:$0xf]
        %v2862 = vld [vmem:[%s2750 + $0xbc] sm:$0x1]
        %v2864 = vshrl.u32 %v2815, 16
        %v2866 = vrot.slane %v2864, 4
        %v2867 = vshll.u32 %v2815, 16
        %v2869 = vrot.slane %v2867, 5
        %v2870 = vor.u32 %v2866, %v2869
        %v2871 = vrot.slane %v2870, 4
        %v2873 = vshll.u32 %v2816, 16
        %v2875 = vrot.slane %v2873, 5
        %v2876 = vsel %vm1194, %v2871, %v2875
        %v2877 = vshrl.u32 %v2816, 16
        %v2879 = vrot.slane %v2877, 4
        %v2880 = vor.u32 %v2879, %v2875
        %v2881 = vrot.slane %v2880, 4
        %v2883 = vshll.u32 %v2817, 16
        %v2885 = vrot.slane %v2883, 5
        %v2886 = vsel %vm1194, %v2881, %v2885
        %v2888 = vshrl.u32 %v2818, 16
        %v2890 = vrot.slane %v2888, 4
        %v2891 = vshll.u32 %v2818, 16
        %v2893 = vrot.slane %v2891, 5
        %v2894 = vor.u32 %v2890, %v2893
        %v2895 = vrot.slane %v2894, 4
        %v2897 = vshll.u32 %v2819, 16
        %v2899 = vrot.slane %v2897, 5
        %v2900 = vsel %vm1194, %v2895, %v2899
        %v2901 = vshrl.u32 %v2819, 16
        %v2903 = vrot.slane %v2901, 4
        %v2904 = vor.u32 %v2903, %v2899
        %v2905 = vrot.slane %v2904, 4
        %v2907 = vshll.u32 %v2820, 16
        %v2909 = vrot.slane %v2907, 5
        %v2910 = vsel %vm1194, %v2905, %v2909
        %v2912 = vshrl.u32 %v2821, 16
        %v2914 = vrot.slane %v2912, 4
        %v2915 = vshll.u32 %v2821, 16
        %v2917 = vrot.slane %v2915, 5
        %v2918 = vor.u32 %v2914, %v2917
        %v2919 = vrot.slane %v2918, 4
        %v2921 = vshll.u32 %v2822, 16
        %v2923 = vrot.slane %v2921, 5
        %v2924 = vsel %vm1194, %v2919, %v2923
        %v2925 = vshrl.u32 %v2822, 16
        %v2927 = vrot.slane %v2925, 4
        %v2928 = vor.u32 %v2927, %v2923
        %v2929 = vrot.slane %v2928, 4
        %v2931 = vshll.u32 %v2823, 16
        %v2933 = vrot.slane %v2931, 5
        %v2934 = vsel %vm1194, %v2929, %v2933
        %v2936 = vshrl.u32 %v2824, 16
        %v2938 = vrot.slane %v2936, 4
        %v2939 = vshll.u32 %v2824, 16
        %v2941 = vrot.slane %v2939, 5
        %v2942 = vor.u32 %v2938, %v2941
        %v2943 = vrot.slane %v2942, 4
        %v2945 = vshll.u32 %v2825, 16
        %v2947 = vrot.slane %v2945, 5
        %v2948 = vsel %vm1194, %v2943, %v2947
        %v2949 = vshrl.u32 %v2825, 16
        %v2951 = vrot.slane %v2949, 4
        %v2952 = vor.u32 %v2951, %v2947
        %v2953 = vrot.slane %v2952, 4
        %v2955 = vshll.u32 %v2826, 16
        %v2957 = vrot.slane %v2955, 5
        %v2958 = vsel %vm1194, %v2953, %v2957
        %v2960 = vshrl.u32 %v2827, 16
        %v2962 = vrot.slane %v2960, 4
        %v2963 = vshll.u32 %v2827, 16
        %v2965 = vrot.slane %v2963, 5
        %v2966 = vor.u32 %v2962, %v2965
        %v2967 = vrot.slane %v2966, 4
        %v2969 = vshll.u32 %v2828, 16
        %v2971 = vrot.slane %v2969, 5
        %v2972 = vsel %vm1194, %v2967, %v2971
        %v2973 = vshrl.u32 %v2828, 16
        %v2975 = vrot.slane %v2973, 4
        %v2976 = vor.u32 %v2975, %v2971
        %v2977 = vrot.slane %v2976, 4
        %v2979 = vshll.u32 %v2829, 16
        %v2981 = vrot.slane %v2979, 5
        %v2982 = vsel %vm1194, %v2977, %v2981
        %v2984 = vshrl.u32 %v2830, 16
        %v2986 = vrot.slane %v2984, 4
        %v2987 = vshll.u32 %v2830, 16
        %v2989 = vrot.slane %v2987, 5
        %v2990 = vor.u32 %v2986, %v2989
        %v2991 = vrot.slane %v2990, 4
        %v2993 = vshll.u32 %v2831, 16
        %v2995 = vrot.slane %v2993, 5
        %v2996 = vsel %vm1194, %v2991, %v2995
        %v2997 = vshrl.u32 %v2831, 16
        %v2999 = vrot.slane %v2997, 4
        %v3000 = vor.u32 %v2999, %v2995
        %v3001 = vrot.slane %v3000, 4
        %v3003 = vshll.u32 %v2832, 16
        %v3005 = vrot.slane %v3003, 5
        %v3006 = vsel %vm1194, %v3001, %v3005
        %v3008 = vshrl.u32 %v2833, 16
        %v3010 = vrot.slane %v3008, 4
        %v3011 = vshll.u32 %v2833, 16
        %v3013 = vrot.slane %v3011, 5
        %v3014 = vor.u32 %v3010, %v3013
        %v3015 = vrot.slane %v3014, 4
        %v3017 = vshll.u32 %v2834, 16
        %v3019 = vrot.slane %v3017, 5
        %v3020 = vsel %vm1194, %v3015, %v3019
        %v3021 = vshrl.u32 %v2834, 16
        %v3023 = vrot.slane %v3021, 4
        %v3024 = vor.u32 %v3023, %v3019
        %v3025 = vrot.slane %v3024, 4
        %v3027 = vshll.u32 %v2835, 16
        %v3029 = vrot.slane %v3027, 5
        %v3030 = vsel %vm1194, %v3025, %v3029
        %v3032 = vshrl.u32 %v2836, 16
        %v3034 = vrot.slane %v3032, 4
        %v3035 = vshll.u32 %v2836, 16
        %v3037 = vrot.slane %v3035, 5
        %v3038 = vor.u32 %v3034, %v3037
        %v3039 = vrot.slane %v3038, 4
        %v3041 = vshll.u32 %v2837, 16
        %v3043 = vrot.slane %v3041, 5
        %v3044 = vsel %vm1194, %v3039, %v3043
        %v3045 = vshrl.u32 %v2837, 16
        %v3047 = vrot.slane %v3045, 4
        %v3048 = vor.u32 %v3047, %v3043
        %v3049 = vrot.slane %v3048, 4
        %v3051 = vshll.u32 %v2838, 16
        %v3053 = vrot.slane %v3051, 5
        %v3054 = vsel %vm1194, %v3049, %v3053
        %v3056 = vshrl.u32 %v2839, 16
        %v3058 = vrot.slane %v3056, 4
        %v3059 = vshll.u32 %v2839, 16
        %v3061 = vrot.slane %v3059, 5
        %v3062 = vor.u32 %v3058, %v3061
        %v3063 = vrot.slane %v3062, 4
        %v3065 = vshll.u32 %v2840, 16
        %v3067 = vrot.slane %v3065, 5
        %v3068 = vsel %vm1194, %v3063, %v3067
        %v3069 = vshrl.u32 %v2840, 16
        %v3071 = vrot.slane %v3069, 4
        %v3072 = vor.u32 %v3071, %v3067
        %v3073 = vrot.slane %v3072, 4
        %v3075 = vshll.u32 %v2841, 16
        %v3077 = vrot.slane %v3075, 5
        %v3078 = vsel %vm1194, %v3073, %v3077
        %v3080 = vshrl.u32 %v2842, 16
        %v3082 = vrot.slane %v3080, 4
        %v3083 = vshll.u32 %v2842, 16
        %v3085 = vrot.slane %v3083, 5
        %v3086 = vor.u32 %v3082, %v3085
        %v3087 = vrot.slane %v3086, 4
        %v3089 = vshll.u32 %v2843, 16
        %v3091 = vrot.slane %v3089, 5
        %v3092 = vsel %vm1194, %v3087, %v3091
        %v3093 = vshrl.u32 %v2843, 16
        %v3095 = vrot.slane %v3093, 4
        %v3096 = vor.u32 %v3095, %v3091
        %v3097 = vrot.slane %v3096, 4
        %v3099 = vshll.u32 %v2844, 16
        %v3101 = vrot.slane %v3099, 5
        %v3102 = vsel %vm1194, %v3097, %v3101
        %v3104 = vshrl.u32 %v2845, 16
        %v3106 = vrot.slane %v3104, 4
        %v3107 = vshll.u32 %v2845, 16
        %v3109 = vrot.slane %v3107, 5
        %v3110 = vor.u32 %v3106, %v3109
        %v3111 = vrot.slane %v3110, 4
        %v3113 = vshll.u32 %v2846, 16
        %v3115 = vrot.slane %v3113, 5
        %v3116 = vsel %vm1194, %v3111, %v3115
        %v3117 = vshrl.u32 %v2846, 16
        %v3119 = vrot.slane %v3117, 4
        %v3120 = vor.u32 %v3119, %v3115
        %v3121 = vrot.slane %v3120, 4
        %v3123 = vshll.u32 %v2847, 16
        %v3125 = vrot.slane %v3123, 5
        %v3126 = vsel %vm1194, %v3121, %v3125
        %v3128 = vshrl.u32 %v2848, 16
        %v3130 = vrot.slane %v3128, 4
        %v3131 = vshll.u32 %v2848, 16
        %v3133 = vrot.slane %v3131, 5
        %v3134 = vor.u32 %v3130, %v3133
        %v3135 = vrot.slane %v3134, 4
        %v3137 = vshll.u32 %v2849, 16
        %v3139 = vrot.slane %v3137, 5
        %v3140 = vsel %vm1194, %v3135, %v3139
        %v3141 = vshrl.u32 %v2849, 16
        %v3143 = vrot.slane %v3141, 4
        %v3144 = vor.u32 %v3143, %v3139
        %v3145 = vrot.slane %v3144, 4
        %v3147 = vshll.u32 %v2850, 16
        %v3149 = vrot.slane %v3147, 5
        %v3150 = vsel %vm1194, %v3145, %v3149
        %v3152 = vshrl.u32 %v2851, 16
        %v3154 = vrot.slane %v3152, 4
        %v3155 = vshll.u32 %v2851, 16
        %v3157 = vrot.slane %v3155, 5
        %v3158 = vor.u32 %v3154, %v3157
        %v3159 = vrot.slane %v3158, 4
        %v3161 = vshll.u32 %v2852, 16
        %v3163 = vrot.slane %v3161, 5
        %v3164 = vsel %vm1194, %v3159, %v3163
        %v3165 = vshrl.u32 %v2852, 16
        %v3167 = vrot.slane %v3165, 4
        %v3168 = vor.u32 %v3167, %v3163
        %v3169 = vrot.slane %v3168, 4
        %v3171 = vshll.u32 %v2853, 16
        %v3173 = vrot.slane %v3171, 5
        %v3174 = vsel %vm1194, %v3169, %v3173
        %v3176 = vshrl.u32 %v2854, 16
        %v3178 = vrot.slane %v3176, 4
        %v3179 = vshll.u32 %v2854, 16
        %v3181 = vrot.slane %v3179, 5
        %v3182 = vor.u32 %v3178, %v3181
        %v3183 = vrot.slane %v3182, 4
        %v3185 = vshll.u32 %v2855, 16
        %v3187 = vrot.slane %v3185, 5
        %v3188 = vsel %vm1194, %v3183, %v3187
        %v3189 = vshrl.u32 %v2855, 16
        %v3191 = vrot.slane %v3189, 4
        %v3192 = vor.u32 %v3191, %v3187
        %v3193 = vrot.slane %v3192, 4
        %v3195 = vshll.u32 %v2856, 16
        %v3197 = vrot.slane %v3195, 5
        %v3198 = vsel %vm1194, %v3193, %v3197
        %v3200 = vshrl.u32 %v2857, 16
        %v3202 = vrot.slane %v3200, 4
        %v3203 = vshll.u32 %v2857, 16
        %v3205 = vrot.slane %v3203, 5
        %v3206 = vor.u32 %v3202, %v3205
        %v3207 = vrot.slane %v3206, 4
        %v3209 = vshll.u32 %v2858, 16
        %v3211 = vrot.slane %v3209, 5
        %v3212 = vsel %vm1194, %v3207, %v3211
        %v3213 = vshrl.u32 %v2858, 16
        %v3215 = vrot.slane %v3213, 4
        %v3216 = vor.u32 %v3215, %v3211
        %v3217 = vrot.slane %v3216, 4
        %v3219 = vshll.u32 %v2859, 16
        %v3221 = vrot.slane %v3219, 5
        %v3222 = vsel %vm1194, %v3217, %v3221
        %v3224 = vshrl.u32 %v2860, 16
        %v3226 = vrot.slane %v3224, 4
        %v3227 = vshll.u32 %v2860, 16
        %v3229 = vrot.slane %v3227, 5
        %v3230 = vor.u32 %v3226, %v3229
        %v3231 = vrot.slane %v3230, 4
        %v3233 = vshll.u32 %v2861, 16
        %v3235 = vrot.slane %v3233, 5
        %v3236 = vsel %vm1194, %v3231, %v3235
        %v3237 = vshrl.u32 %v2861, 16
        %v3239 = vrot.slane %v3237, 4
        %v3240 = vor.u32 %v3239, %v3235
        %v3241 = vrot.slane %v3240, 4
        %v3243 = vshll.u32 %v2862, 16
        %v3245 = vrot.slane %v3243, 5
        %v3246 = vsel %vm1194, %v3241, %v3245
        %3279 = vst [vmem:[#allocation4 + $0x1c] sm:$0xf] %v2876
        %3280 = vst [vmem:[#allocation4 + $0x40] sm:$0xf] %v2886
        %3281 = vst [vmem:[#allocation4 + $0x64] sm:$0xf] %v2900
        %3282 = vst [vmem:[#allocation4 + $0x88] sm:$0xf] %v2910
        %3283 = vst [vmem:[#allocation4 + $0xac] sm:$0xf] %v2924
        %3284 = vst [vmem:[#allocation4 + $0xd0] sm:$0xf] %v2934
        %3285 = vst [vmem:[#allocation4 + $0xf4] sm:$0xf] %v2948
        %3286 = vst [vmem:[#allocation4 + $0x118] sm:$0xf] %v2958
        %3287 = vst [vmem:[#allocation4 + $0x13c] sm:$0xf] %v2972
        %3288 = vst [vmem:[#allocation4 + $0x160] sm:$0xf] %v2982
        %3289 = vst [vmem:[#allocation4 + $0x184] sm:$0xf] %v2996
        %3290 = vst [vmem:[#allocation4 + $0x1a8] sm:$0xf] %v3006
        %3291 = vst [vmem:[#allocation4 + $0x1cc] sm:$0xf] %v3020
        %3292 = vst [vmem:[#allocation4 + $0x1f0] sm:$0xf] %v3030
        %3293 = vst [vmem:[#allocation4 + $0x214] sm:$0xf] %v3044
        %3294 = vst [vmem:[#allocation4 + $0x238] sm:$0xf] %v3054
        %3295 = vst [vmem:[#allocation4 + $0x25c] sm:$0xf] %v3068
        %3296 = vst [vmem:[#allocation4 + $0x280] sm:$0xf] %v3078
        %3297 = vst [vmem:[#allocation4 + $0x2a4] sm:$0xf] %v3092
        %3298 = vst [vmem:[#allocation4 + $0x2c8] sm:$0xf] %v3102
        %3299 = vst [vmem:[#allocation4 + $0x2ec] sm:$0xf] %v3116
        %3300 = vst [vmem:[#allocation4 + $0x310] sm:$0xf] %v3126
        %3301 = vst [vmem:[#allocation4 + $0x334] sm:$0xf] %v3140
        %3302 = vst [vmem:[#allocation4 + $0x358] sm:$0xf] %v3150
        %3303 = vst [vmem:[#allocation4 + $0x37c] sm:$0xf] %v3164
        %3304 = vst [vmem:[#allocation4 + $0x3a0] sm:$0xf] %v3174
        %3305 = vst [vmem:[#allocation4 + $0x3c4] sm:$0xf] %v3188
        %3306 = vst [vmem:[#allocation4 + $0x3e8] sm:$0xf] %v3198
        %3307 = vst [vmem:[#allocation4 + $0x40c] sm:$0xf] %v3212
        %3308 = vst [vmem:[#allocation4 + $0x430] sm:$0xf] %v3222
        %3309 = vst [vmem:[#allocation4 + $0x454] sm:$0xf] %v3236
        %3310 = vst [vmem:[#allocation4 + $0x478] sm:$0xf] %v3246
        %v3311 = vld [vmem:[%s2750] sm:$0xe]
        %v3312 = vld [vmem:[%s2750 + $0x4] sm:$0xf]
        %v3313 = vld [vmem:[%s2750 + $0x8] sm:$0x1]
        %v3314 = vld [vmem:[%s2750 + $0xc] sm:$0xe]
        %v3315 = vld [vmem:[%s2750 + $0x10] sm:$0xf]
        %v3316 = vld [vmem:[%s2750 + $0x14] sm:$0x1]
        %v3317 = vld [vmem:[%s2750 + $0x18] sm:$0xe]
        %v3318 = vld [vmem:[%s2750 + $0x1c] sm:$0xf]
        %v3319 = vld [vmem:[%s2750 + $0x20] sm:$0x1]
        %v3320 = vld [vmem:[%s2750 + $0x24] sm:$0xe]
        %v3321 = vld [vmem:[%s2750 + $0x28] sm:$0xf]
        %v3322 = vld [vmem:[%s2750 + $0x2c] sm:$0x1]
        %v3323 = vld [vmem:[%s2750 + $0x30] sm:$0xe]
        %v3324 = vld [vmem:[%s2750 + $0x34] sm:$0xf]
        %v3325 = vld [vmem:[%s2750 + $0x38] sm:$0x1]
        %v3326 = vld [vmem:[%s2750 + $0x3c] sm:$0xe]
        %v3327 = vld [vmem:[%s2750 + $0x40] sm:$0xf]
        %v3328 = vld [vmem:[%s2750 + $0x44] sm:$0x1]
        %v3329 = vld [vmem:[%s2750 + $0x48] sm:$0xe]
        %v3330 = vld [vmem:[%s2750 + $0x4c] sm:$0xf]
        %v3331 = vld [vmem:[%s2750 + $0x50] sm:$0x1]
        %v3332 = vld [vmem:[%s2750 + $0x54] sm:$0xe]
        %v3333 = vld [vmem:[%s2750 + $0x58] sm:$0xf]
        %v3334 = vld [vmem:[%s2750 + $0x5c] sm:$0x1]
        %v3335 = vld [vmem:[%s2750 + $0x60] sm:$0xe]
        %v3336 = vld [vmem:[%s2750 + $0x64] sm:$0xf]
        %v3337 = vld [vmem:[%s2750 + $0x68] sm:$0x1]
        %v3338 = vld [vmem:[%s2750 + $0x6c] sm:$0xe]
        %v3339 = vld [vmem:[%s2750 + $0x70] sm:$0xf]
        %v3340 = vld [vmem:[%s2750 + $0x74] sm:$0x1]
        %v3341 = vld [vmem:[%s2750 + $0x78] sm:$0xe]
        %v3342 = vld [vmem:[%s2750 + $0x7c] sm:$0xf]
        %v3343 = vld [vmem:[%s2750 + $0x80] sm:$0x1]
        %v3344 = vld [vmem:[%s2750 + $0x84] sm:$0xe]
        %v3345 = vld [vmem:[%s2750 + $0x88] sm:$0xf]
        %v3346 = vld [vmem:[%s2750 + $0x8c] sm:$0x1]
        %v3347 = vld [vmem:[%s2750 + $0x90] sm:$0xe]
        %v3348 = vld [vmem:[%s2750 + $0x94] sm:$0xf]
        %v3349 = vld [vmem:[%s2750 + $0x98] sm:$0x1]
        %v3350 = vld [vmem:[%s2750 + $0x9c] sm:$0xe]
        %v3351 = vld [vmem:[%s2750 + $0xa0] sm:$0xf]
        %v3352 = vld [vmem:[%s2750 + $0xa4] sm:$0x1]
        %v3353 = vld [vmem:[%s2750 + $0xa8] sm:$0xe]
        %v3354 = vld [vmem:[%s2750 + $0xac] sm:$0xf]
        %v3355 = vld [vmem:[%s2750 + $0xb0] sm:$0x1]
        %v3356 = vld [vmem:[%s2750 + $0xb4] sm:$0xe]
        %v3357 = vld [vmem:[%s2750 + $0xb8] sm:$0xf]
        %v3358 = vld [vmem:[%s2750 + $0xbc] sm:$0x1]
        %v3407 = vrot.slane %v3311, 5
        %v3408 = vrot.slane %v3407, 4
        %v3409 = vrot.slane %v3312, 5
        %v3410 = vsel %vm1741, %v3408, %v3409
        %v3411 = vrot.slane %v3409, 4
        %v3412 = vrot.slane %v3313, 5
        %v3413 = vsel %vm1741, %v3411, %v3412
        %v3414 = vrot.slane %v3314, 5
        %v3415 = vrot.slane %v3414, 4
        %v3416 = vrot.slane %v3315, 5
        %v3417 = vsel %vm1741, %v3415, %v3416
        %v3418 = vrot.slane %v3416, 4
        %v3419 = vrot.slane %v3316, 5
        %v3420 = vsel %vm1741, %v3418, %v3419
        %v3421 = vrot.slane %v3317, 5
        %v3422 = vrot.slane %v3421, 4
        %v3423 = vrot.slane %v3318, 5
        %v3424 = vsel %vm1741, %v3422, %v3423
        %v3425 = vrot.slane %v3423, 4
        %v3426 = vrot.slane %v3319, 5
        %v3427 = vsel %vm1741, %v3425, %v3426
        %v3428 = vrot.slane %v3320, 5
        %v3429 = vrot.slane %v3428, 4
        %v3430 = vrot.slane %v3321, 5
        %v3431 = vsel %vm1741, %v3429, %v3430
        %v3432 = vrot.slane %v3430, 4
        %v3433 = vrot.slane %v3322, 5
        %v3434 = vsel %vm1741, %v3432, %v3433
        %v3435 = vrot.slane %v3323, 5
        %v3436 = vrot.slane %v3435, 4
        %v3437 = vrot.slane %v3324, 5
        %v3438 = vsel %vm1741, %v3436, %v3437
        %v3439 = vrot.slane %v3437, 4
        %v3440 = vrot.slane %v3325, 5
        %v3441 = vsel %vm1741, %v3439, %v3440
        %v3442 = vrot.slane %v3326, 5
        %v3443 = vrot.slane %v3442, 4
        %v3444 = vrot.slane %v3327, 5
        %v3445 = vsel %vm1741, %v3443, %v3444
        %v3446 = vrot.slane %v3444, 4
        %v3447 = vrot.slane %v3328, 5
        %v3448 = vsel %vm1741, %v3446, %v3447
        %v3449 = vrot.slane %v3329, 5
        %v3450 = vrot.slane %v3449, 4
        %v3451 = vrot.slane %v3330, 5
        %v3452 = vsel %vm1741, %v3450, %v3451
        %v3453 = vrot.slane %v3451, 4
        %v3454 = vrot.slane %v3331, 5
        %v3455 = vsel %vm1741, %v3453, %v3454
        %v3456 = vrot.slane %v3332, 5
        %v3457 = vrot.slane %v3456, 4
        %v3458 = vrot.slane %v3333, 5
        %v3459 = vsel %vm1741, %v3457, %v3458
        %v3460 = vrot.slane %v3458, 4
        %v3461 = vrot.slane %v3334, 5
        %v3462 = vsel %vm1741, %v3460, %v3461
        %v3463 = vrot.slane %v3335, 5
        %v3464 = vrot.slane %v3463, 4
        %v3465 = vrot.slane %v3336, 5
        %v3466 = vsel %vm1741, %v3464, %v3465
        %v3467 = vrot.slane %v3465, 4
        %v3468 = vrot.slane %v3337, 5
        %v3469 = vsel %vm1741, %v3467, %v3468
        %v3470 = vrot.slane %v3338, 5
        %v3471 = vrot.slane %v3470, 4
        %v3472 = vrot.slane %v3339, 5
        %v3473 = vsel %vm1741, %v3471, %v3472
        %v3474 = vrot.slane %v3472, 4
        %v3475 = vrot.slane %v3340, 5
        %v3476 = vsel %vm1741, %v3474, %v3475
        %v3477 = vrot.slane %v3341, 5
        %v3478 = vrot.slane %v3477, 4
        %v3479 = vrot.slane %v3342, 5
        %v3480 = vsel %vm1741, %v3478, %v3479
        %v3481 = vrot.slane %v3479, 4
        %v3482 = vrot.slane %v3343, 5
        %v3483 = vsel %vm1741, %v3481, %v3482
        %v3484 = vrot.slane %v3344, 5
        %v3485 = vrot.slane %v3484, 4
        %v3486 = vrot.slane %v3345, 5
        %v3487 = vsel %vm1741, %v3485, %v3486
        %v3488 = vrot.slane %v3486, 4
        %v3489 = vrot.slane %v3346, 5
        %v3490 = vsel %vm1741, %v3488, %v3489
        %v3491 = vrot.slane %v3347, 5
        %v3492 = vrot.slane %v3491, 4
        %v3493 = vrot.slane %v3348, 5
        %v3494 = vsel %vm1741, %v3492, %v3493
        %v3495 = vrot.slane %v3493, 4
        %v3496 = vrot.slane %v3349, 5
        %v3497 = vsel %vm1741, %v3495, %v3496
        %v3498 = vrot.slane %v3350, 5
        %v3499 = vrot.slane %v3498, 4
        %v3500 = vrot.slane %v3351, 5
        %v3501 = vsel %vm1741, %v3499, %v3500
        %v3502 = vrot.slane %v3500, 4
        %v3503 = vrot.slane %v3352, 5
        %v3504 = vsel %vm1741, %v3502, %v3503
        %v3505 = vrot.slane %v3353, 5
        %v3506 = vrot.slane %v3505, 4
        %v3507 = vrot.slane %v3354, 5
        %v3508 = vsel %vm1741, %v3506, %v3507
        %v3509 = vrot.slane %v3507, 4
        %v3510 = vrot.slane %v3355, 5
        %v3511 = vsel %vm1741, %v3509, %v3510
        %v3512 = vrot.slane %v3356, 5
        %v3513 = vrot.slane %v3512, 4
        %v3514 = vrot.slane %v3357, 5
        %v3515 = vsel %vm1741, %v3513, %v3514
        %v3516 = vrot.slane %v3514, 4
        %v3517 = vrot.slane %v3358, 5
        %v3518 = vsel %vm1741, %v3516, %v3517
        %3551 = vst [vmem:[#allocation4 + $0x20] sm:$0xf] %v3410
        %3552 = vst [vmem:[#allocation4 + $0x44] sm:$0xf] %v3413
        %3553 = vst [vmem:[#allocation4 + $0x68] sm:$0xf] %v3417
        %3554 = vst [vmem:[#allocation4 + $0x8c] sm:$0xf] %v3420
        %3555 = vst [vmem:[#allocation4 + $0xb0] sm:$0xf] %v3424
        %3556 = vst [vmem:[#allocation4 + $0xd4] sm:$0xf] %v3427
        %3557 = vst [vmem:[#allocation4 + $0xf8] sm:$0xf] %v3431
        %3558 = vst [vmem:[#allocation4 + $0x11c] sm:$0xf] %v3434
        %3559 = vst [vmem:[#allocation4 + $0x140] sm:$0xf] %v3438
        %3560 = vst [vmem:[#allocation4 + $0x164] sm:$0xf] %v3441
        %3561 = vst [vmem:[#allocation4 + $0x188] sm:$0xf] %v3445
        %3562 = vst [vmem:[#allocation4 + $0x1ac] sm:$0xf] %v3448
        %3563 = vst [vmem:[#allocation4 + $0x1d0] sm:$0xf] %v3452
        %3564 = vst [vmem:[#allocation4 + $0x1f4] sm:$0xf] %v3455
        %3565 = vst [vmem:[#allocation4 + $0x218] sm:$0xf] %v3459
        %3566 = vst [vmem:[#allocation4 + $0x23c] sm:$0xf] %v3462
        %3567 = vst [vmem:[#allocation4 + $0x260] sm:$0xf] %v3466
        %3568 = vst [vmem:[#allocation4 + $0x284] sm:$0xf] %v3469
        %3569 = vst [vmem:[#allocation4 + $0x2a8] sm:$0xf] %v3473
        %3570 = vst [vmem:[#allocation4 + $0x2cc] sm:$0xf] %v3476
        %3571 = vst [vmem:[#allocation4 + $0x2f0] sm:$0xf] %v3480
        %3572 = vst [vmem:[#allocation4 + $0x314] sm:$0xf] %v3483
        %3573 = vst [vmem:[#allocation4 + $0x338] sm:$0xf] %v3487
        %3574 = vst [vmem:[#allocation4 + $0x35c] sm:$0xf] %v3490
        %3575 = vst [vmem:[#allocation4 + $0x380] sm:$0xf] %v3494
        %3576 = vst [vmem:[#allocation4 + $0x3a4] sm:$0xf] %v3497
        %3577 = vst [vmem:[#allocation4 + $0x3c8] sm:$0xf] %v3501
        %3578 = vst [vmem:[#allocation4 + $0x3ec] sm:$0xf] %v3504
        %3579 = vst [vmem:[#allocation4 + $0x410] sm:$0xf] %v3508
        %3580 = vst [vmem:[#allocation4 + $0x434] sm:$0xf] %v3511
        %3581 = vst [vmem:[#allocation4 + $0x458] sm:$0xf] %v3515
        %3582 = vst [vmem:[#allocation4 + $0x47c] sm:$0xf] %v3518
        %v3583 = vld [vmem:[#allocation4] sm:$0xff]
        %v3584 = vld [vmem:[#allocation4 + $0x8] sm:$0xff]
        %v3585 = vld [vmem:[#allocation4 + $0x10] sm:$0xff]
        %v3586 = vld [vmem:[#allocation4 + $0x18] sm:$0xff]
        %v3587 = vld [vmem:[#allocation4 + $0x20] sm:$0xf]
        %v3588 = vld [vmem:[#allocation4 + $0x24] sm:$0xff]
        %v3589 = vld [vmem:[#allocation4 + $0x2c] sm:$0xff]
        %v3590 = vld [vmem:[#allocation4 + $0x34] sm:$0xff]
        %v3591 = vld [vmem:[#allocation4 + $0x3c] sm:$0xff]
        %v3592 = vld [vmem:[#allocation4 + $0x44] sm:$0xf]
        %v3593 = vld [vmem:[#allocation4 + $0x48] sm:$0xff]
        %v3594 = vld [vmem:[#allocation4 + $0x50] sm:$0xff]
        %v3595 = vld [vmem:[#allocation4 + $0x58] sm:$0xff]
        %v3596 = vld [vmem:[#allocation4 + $0x60] sm:$0xff]
        %v3597 = vld [vmem:[#allocation4 + $0x68] sm:$0xf]
        %v3598 = vld [vmem:[#allocation4 + $0x6c] sm:$0xff]
        %v3599 = vld [vmem:[#allocation4 + $0x74] sm:$0xff]
        %v3600 = vld [vmem:[#allocation4 + $0x7c] sm:$0xff]
        %v3601 = vld [vmem:[#allocation4 + $0x84] sm:$0xff]
        %v3602 = vld [vmem:[#allocation4 + $0x8c] sm:$0xf]
        %v3603 = vld [vmem:[#allocation4 + $0x90] sm:$0xff]
        %v3604 = vld [vmem:[#allocation4 + $0x98] sm:$0xff]
        %v3605 = vld [vmem:[#allocation4 + $0xa0] sm:$0xff]
        %v3606 = vld [vmem:[#allocation4 + $0xa8] sm:$0xff]
        %v3607 = vld [vmem:[#allocation4 + $0xb0] sm:$0xf]
        %v3608 = vld [vmem:[#allocation4 + $0xb4] sm:$0xff]
        %v3609 = vld [vmem:[#allocation4 + $0xbc] sm:$0xff]
        %v3610 = vld [vmem:[#allocation4 + $0xc4] sm:$0xff]
        %v3611 = vld [vmem:[#allocation4 + $0xcc] sm:$0xff]
        %v3612 = vld [vmem:[#allocation4 + $0xd4] sm:$0xf]
        %v3613 = vld [vmem:[#allocation4 + $0xd8] sm:$0xff]
        %v3614 = vld [vmem:[#allocation4 + $0xe0] sm:$0xff]
        %v3615 = vld [vmem:[#allocation4 + $0xe8] sm:$0xff]
        %v3616 = vld [vmem:[#allocation4 + $0xf0] sm:$0xff]
        %v3617 = vld [vmem:[#allocation4 + $0xf8] sm:$0xf]
        %v3618 = vld [vmem:[#allocation4 + $0xfc] sm:$0xff]
        %v3619 = vld [vmem:[#allocation4 + $0x104] sm:$0xff]
        %v3620 = vld [vmem:[#allocation4 + $0x10c] sm:$0xff]
        %v3621 = vld [vmem:[#allocation4 + $0x114] sm:$0xff]
        %v3622 = vld [vmem:[#allocation4 + $0x11c] sm:$0xf]
        %v3623 = vld [vmem:[#allocation4 + $0x120] sm:$0xff]
        %v3624 = vld [vmem:[#allocation4 + $0x128] sm:$0xff]
        %v3625 = vld [vmem:[#allocation4 + $0x130] sm:$0xff]
        %v3626 = vld [vmem:[#allocation4 + $0x138] sm:$0xff]
        %v3627 = vld [vmem:[#allocation4 + $0x140] sm:$0xf]
        %v3628 = vld [vmem:[#allocation4 + $0x144] sm:$0xff]
        %v3629 = vld [vmem:[#allocation4 + $0x14c] sm:$0xff]
        %v3630 = vld [vmem:[#allocation4 + $0x154] sm:$0xff]
        %v3631 = vld [vmem:[#allocation4 + $0x15c] sm:$0xff]
        %v3632 = vld [vmem:[#allocation4 + $0x164] sm:$0xf]
        %v3633 = vld [vmem:[#allocation4 + $0x168] sm:$0xff]
        %v3634 = vld [vmem:[#allocation4 + $0x170] sm:$0xff]
        %v3635 = vld [vmem:[#allocation4 + $0x178] sm:$0xff]
        %v3636 = vld [vmem:[#allocation4 + $0x180] sm:$0xff]
        %v3637 = vld [vmem:[#allocation4 + $0x188] sm:$0xf]
        %v3638 = vld [vmem:[#allocation4 + $0x18c] sm:$0xff]
        %v3639 = vld [vmem:[#allocation4 + $0x194] sm:$0xff]
        %v3640 = vld [vmem:[#allocation4 + $0x19c] sm:$0xff]
        %v3641 = vld [vmem:[#allocation4 + $0x1a4] sm:$0xff]
        %v3642 = vld [vmem:[#allocation4 + $0x1ac] sm:$0xf]
        %v3643 = vld [vmem:[#allocation4 + $0x1b0] sm:$0xff]
        %v3644 = vld [vmem:[#allocation4 + $0x1b8] sm:$0xff]
        %v3645 = vld [vmem:[#allocation4 + $0x1c0] sm:$0xff]
        %v3646 = vld [vmem:[#allocation4 + $0x1c8] sm:$0xff]
        %v3647 = vld [vmem:[#allocation4 + $0x1d0] sm:$0xf]
        %v3648 = vld [vmem:[#allocation4 + $0x1d4] sm:$0xff]
        %v3649 = vld [vmem:[#allocation4 + $0x1dc] sm:$0xff]
        %v3650 = vld [vmem:[#allocation4 + $0x1e4] sm:$0xff]
        %v3651 = vld [vmem:[#allocation4 + $0x1ec] sm:$0xff]
        %v3652 = vld [vmem:[#allocation4 + $0x1f4] sm:$0xf]
        %v3653 = vld [vmem:[#allocation4 + $0x1f8] sm:$0xff]
        %v3654 = vld [vmem:[#allocation4 + $0x200] sm:$0xff]
        %v3655 = vld [vmem:[#allocation4 + $0x208] sm:$0xff]
        %v3656 = vld [vmem:[#allocation4 + $0x210] sm:$0xff]
        %v3657 = vld [vmem:[#allocation4 + $0x218] sm:$0xf]
        %v3658 = vld [vmem:[#allocation4 + $0x21c] sm:$0xff]
        %v3659 = vld [vmem:[#allocation4 + $0x224] sm:$0xff]
        %v3660 = vld [vmem:[#allocation4 + $0x22c] sm:$0xff]
        %v3661 = vld [vmem:[#allocation4 + $0x234] sm:$0xff]
        %v3662 = vld [vmem:[#allocation4 + $0x23c] sm:$0xf]
        %v3663 = vld [vmem:[#allocation4 + $0x240] sm:$0xff]
        %v3664 = vld [vmem:[#allocation4 + $0x248] sm:$0xff]
        %v3665 = vld [vmem:[#allocation4 + $0x250] sm:$0xff]
        %v3666 = vld [vmem:[#allocation4 + $0x258] sm:$0xff]
        %v3667 = vld [vmem:[#allocation4 + $0x260] sm:$0xf]
        %v3668 = vld [vmem:[#allocation4 + $0x264] sm:$0xff]
        %v3669 = vld [vmem:[#allocation4 + $0x26c] sm:$0xff]
        %v3670 = vld [vmem:[#allocation4 + $0x274] sm:$0xff]
        %v3671 = vld [vmem:[#allocation4 + $0x27c] sm:$0xff]
        %v3672 = vld [vmem:[#allocation4 + $0x284] sm:$0xf]
        %v3673 = vld [vmem:[#allocation4 + $0x288] sm:$0xff]
        %v3674 = vld [vmem:[#allocation4 + $0x290] sm:$0xff]
        %v3675 = vld [vmem:[#allocation4 + $0x298] sm:$0xff]
        %v3676 = vld [vmem:[#allocation4 + $0x2a0] sm:$0xff]
        %v3677 = vld [vmem:[#allocation4 + $0x2a8] sm:$0xf]
        %v3678 = vld [vmem:[#allocation4 + $0x2ac] sm:$0xff]
        %v3679 = vld [vmem:[#allocation4 + $0x2b4] sm:$0xff]
        %v3680 = vld [vmem:[#allocation4 + $0x2bc] sm:$0xff]
        %v3681 = vld [vmem:[#allocation4 + $0x2c4] sm:$0xff]
        %v3682 = vld [vmem:[#allocation4 + $0x2cc] sm:$0xf]
        %v3683 = vld [vmem:[#allocation4 + $0x2d0] sm:$0xff]
        %v3684 = vld [vmem:[#allocation4 + $0x2d8] sm:$0xff]
        %v3685 = vld [vmem:[#allocation4 + $0x2e0] sm:$0xff]
        %v3686 = vld [vmem:[#allocation4 + $0x2e8] sm:$0xff]
        %v3687 = vld [vmem:[#allocation4 + $0x2f0] sm:$0xf]
        %v3688 = vld [vmem:[#allocation4 + $0x2f4] sm:$0xff]
        %v3689 = vld [vmem:[#allocation4 + $0x2fc] sm:$0xff]
        %v3690 = vld [vmem:[#allocation4 + $0x304] sm:$0xff]
        %v3691 = vld [vmem:[#allocation4 + $0x30c] sm:$0xff]
        %v3692 = vld [vmem:[#allocation4 + $0x314] sm:$0xf]
        %v3693 = vld [vmem:[#allocation4 + $0x318] sm:$0xff]
        %v3694 = vld [vmem:[#allocation4 + $0x320] sm:$0xff]
        %v3695 = vld [vmem:[#allocation4 + $0x328] sm:$0xff]
        %v3696 = vld [vmem:[#allocation4 + $0x330] sm:$0xff]
        %v3697 = vld [vmem:[#allocation4 + $0x338] sm:$0xf]
        %v3698 = vld [vmem:[#allocation4 + $0x33c] sm:$0xff]
        %v3699 = vld [vmem:[#allocation4 + $0x344] sm:$0xff]
        %v3700 = vld [vmem:[#allocation4 + $0x34c] sm:$0xff]
        %v3701 = vld [vmem:[#allocation4 + $0x354] sm:$0xff]
        %v3702 = vld [vmem:[#allocation4 + $0x35c] sm:$0xf]
        %v3703 = vld [vmem:[#allocation4 + $0x360] sm:$0xff]
        %v3704 = vld [vmem:[#allocation4 + $0x368] sm:$0xff]
        %v3705 = vld [vmem:[#allocation4 + $0x370] sm:$0xff]
        %v3706 = vld [vmem:[#allocation4 + $0x378] sm:$0xff]
        %v3707 = vld [vmem:[#allocation4 + $0x380] sm:$0xf]
        %v3708 = vld [vmem:[#allocation4 + $0x384] sm:$0xff]
        %v3709 = vld [vmem:[#allocation4 + $0x38c] sm:$0xff]
        %v3710 = vld [vmem:[#allocation4 + $0x394] sm:$0xff]
        %v3711 = vld [vmem:[#allocation4 + $0x39c] sm:$0xff]
        %v3712 = vld [vmem:[#allocation4 + $0x3a4] sm:$0xf]
        %v3713 = vld [vmem:[#allocation4 + $0x3a8] sm:$0xff]
        %v3714 = vld [vmem:[#allocation4 + $0x3b0] sm:$0xff]
        %v3715 = vld [vmem:[#allocation4 + $0x3b8] sm:$0xff]
        %v3716 = vld [vmem:[#allocation4 + $0x3c0] sm:$0xff]
        %v3717 = vld [vmem:[#allocation4 + $0x3c8] sm:$0xf]
        %v3718 = vld [vmem:[#allocation4 + $0x3cc] sm:$0xff]
        %v3719 = vld [vmem:[#allocation4 + $0x3d4] sm:$0xff]
        %v3720 = vld [vmem:[#allocation4 + $0x3dc] sm:$0xff]
        %v3721 = vld [vmem:[#allocation4 + $0x3e4] sm:$0xff]
        %v3722 = vld [vmem:[#allocation4 + $0x3ec] sm:$0xf]
        %v3723 = vld [vmem:[#allocation4 + $0x3f0] sm:$0xff]
        %v3724 = vld [vmem:[#allocation4 + $0x3f8] sm:$0xff]
        %v3725 = vld [vmem:[#allocation4 + $0x400] sm:$0xff]
        %v3726 = vld [vmem:[#allocation4 + $0x408] sm:$0xff]
        %v3727 = vld [vmem:[#allocation4 + $0x410] sm:$0xf]
        %v3728 = vld [vmem:[#allocation4 + $0x414] sm:$0xff]
        %v3729 = vld [vmem:[#allocation4 + $0x41c] sm:$0xff]
        %v3730 = vld [vmem:[#allocation4 + $0x424] sm:$0xff]
        %v3731 = vld [vmem:[#allocation4 + $0x42c] sm:$0xff]
        %v3732 = vld [vmem:[#allocation4 + $0x434] sm:$0xf]
        %v3733 = vld [vmem:[#allocation4 + $0x438] sm:$0xff]
        %v3734 = vld [vmem:[#allocation4 + $0x440] sm:$0xff]
        %v3735 = vld [vmem:[#allocation4 + $0x448] sm:$0xff]
        %v3736 = vld [vmem:[#allocation4 + $0x450] sm:$0xff]
        %v3737 = vld [vmem:[#allocation4 + $0x458] sm:$0xf]
        %v3738 = vld [vmem:[#allocation4 + $0x45c] sm:$0xff]
        %v3739 = vld [vmem:[#allocation4 + $0x464] sm:$0xff]
        %v3740 = vld [vmem:[#allocation4 + $0x46c] sm:$0xff]
        %v3741 = vld [vmem:[#allocation4 + $0x474] sm:$0xff]
        %v3742 = vld [vmem:[#allocation4 + $0x47c] sm:$0xf]
        %v3743 = vld [vmem:[#allocation11] sm:$0xf]
        %v3744 = vld [vmem:[#allocation11 + $0x4] sm:$0xf]
        %v3745 = vld [vmem:[#allocation11 + $0x8] sm:$0xf]
        %v3746 = vld [vmem:[#allocation11 + $0xc] sm:$0xf]
        %v3747 = vld [vmem:[#allocation11 + $0x10] sm:$0xf]
        %v3748 = vld [vmem:[#allocation11 + $0x14] sm:$0xf]
        %v3749 = vld [vmem:[#allocation11 + $0x18] sm:$0xf]
        %v3750 = vld [vmem:[#allocation11 + $0x1c] sm:$0xf]
        %v3751 = vld [vmem:[#allocation11 + $0x20] sm:$0xf]
        %v3752 = vld [vmem:[#allocation11 + $0x24] sm:$0xf]
        %v3753 = vld [vmem:[#allocation11 + $0x28] sm:$0xf]
        %v3754 = vld [vmem:[#allocation11 + $0x2c] sm:$0xf]
        %v3755 = vld [vmem:[#allocation11 + $0x30] sm:$0xf]
        %v3756 = vld [vmem:[#allocation11 + $0x34] sm:$0xf]
        %v3757 = vld [vmem:[#allocation11 + $0x38] sm:$0xf]
        %v3758 = vld [vmem:[#allocation11 + $0x3c] sm:$0xf]
        %v3759 = vld [vmem:[#allocation11 + $0x40] sm:$0xf]
        %v3760 = vld [vmem:[#allocation11 + $0x44] sm:$0xf]
        %v3761 = vld [vmem:[#allocation11 + $0x48] sm:$0xf]
        %v3762 = vld [vmem:[#allocation11 + $0x4c] sm:$0xf]
        %v3763 = vld [vmem:[#allocation11 + $0x50] sm:$0xf]
        %v3764 = vld [vmem:[#allocation11 + $0x54] sm:$0xf]
        %v3765 = vld [vmem:[#allocation11 + $0x58] sm:$0xf]
        %v3766 = vld [vmem:[#allocation11 + $0x5c] sm:$0xf]
        %v3767 = vld [vmem:[#allocation11 + $0x60] sm:$0xf]
        %v3768 = vld [vmem:[#allocation11 + $0x64] sm:$0xf]
        %v3769 = vld [vmem:[#allocation11 + $0x68] sm:$0xf]
        %v3770 = vld [vmem:[#allocation11 + $0x6c] sm:$0xf]
        %v3771 = vld [vmem:[#allocation11 + $0x70] sm:$0xf]
        %v3772 = vld [vmem:[#allocation11 + $0x74] sm:$0xf]
        %v3773 = vld [vmem:[#allocation11 + $0x78] sm:$0xf]
        %v3774 = vld [vmem:[#allocation11 + $0x7c] sm:$0xf]
        %v3775 = vld [vmem:[#allocation11 + $0x80] sm:$0xf]
        %v3776 = vld [vmem:[#allocation11 + $0x84] sm:$0xf]
        %v3777 = vld [vmem:[#allocation11 + $0x88] sm:$0xf]
        %v3778 = vld [vmem:[#allocation11 + $0x8c] sm:$0xf]
        %v3779 = vld [vmem:[#allocation11 + $0x90] sm:$0xf]
        %v3780 = vld [vmem:[#allocation11 + $0x94] sm:$0xf]
        %v3781 = vld [vmem:[#allocation11 + $0x98] sm:$0xf]
        %v3782 = vld [vmem:[#allocation11 + $0x9c] sm:$0xf]
        %v3783 = vld [vmem:[#allocation11 + $0xa0] sm:$0xf]
        %v3784 = vld [vmem:[#allocation11 + $0xa4] sm:$0xf]
        %v3785 = vld [vmem:[#allocation11 + $0xa8] sm:$0xf]
        %v3786 = vld [vmem:[#allocation11 + $0xac] sm:$0xf]
        %v3787 = vld [vmem:[#allocation11 + $0xb0] sm:$0xf]
        %v3788 = vld [vmem:[#allocation11 + $0xb4] sm:$0xf]
        %v3789 = vld [vmem:[#allocation11 + $0xb8] sm:$0xf]
        %v3790 = vld [vmem:[#allocation11 + $0xbc] sm:$0xf]
        %v3791 = vld [vmem:[#allocation11 + $0xc0] sm:$0xf]
        %v3792 = vld [vmem:[#allocation11 + $0xc4] sm:$0xf]
        %v3793 = vld [vmem:[#allocation11 + $0xc8] sm:$0xf]
        %v3794 = vld [vmem:[#allocation11 + $0xcc] sm:$0xf]
        %v3795 = vld [vmem:[#allocation11 + $0xd0] sm:$0xf]
        %v3796 = vld [vmem:[#allocation11 + $0xd4] sm:$0xf]
        %v3797 = vld [vmem:[#allocation11 + $0xd8] sm:$0xf]
        %v3798 = vld [vmem:[#allocation11 + $0xdc] sm:$0xf]
        %v3799 = vld [vmem:[#allocation11 + $0xe0] sm:$0xf]
        %v3800 = vld [vmem:[#allocation11 + $0xe4] sm:$0xf]
        %v3801 = vld [vmem:[#allocation11 + $0xe8] sm:$0xf]
        %v3802 = vld [vmem:[#allocation11 + $0xec] sm:$0xf]
        %v3803 = vld [vmem:[#allocation11 + $0xf0] sm:$0xf]
        %v3804 = vld [vmem:[#allocation11 + $0xf4] sm:$0xf]
        %v3805 = vld [vmem:[#allocation11 + $0xf8] sm:$0xf]
        %v3806 = vld [vmem:[#allocation11 + $0xfc] sm:$0xf]
        %v3807 = vld [vmem:[#allocation11 + $0x100] sm:$0xf]
        %v3808 = vld [vmem:[#allocation11 + $0x104] sm:$0xf]
        %v3809 = vld [vmem:[#allocation11 + $0x108] sm:$0xf]
        %v3810 = vld [vmem:[#allocation11 + $0x10c] sm:$0xf]
        %v3811 = vld [vmem:[#allocation11 + $0x110] sm:$0xf]
        %v3812 = vld [vmem:[#allocation11 + $0x114] sm:$0xf]
        %v3813 = vld [vmem:[#allocation11 + $0x118] sm:$0xf]
        %v3814 = vld [vmem:[#allocation11 + $0x11c] sm:$0xf]
        %v3815 = vld [vmem:[#allocation11 + $0x120] sm:$0xf]
        %v3816 = vld [vmem:[#allocation11 + $0x124] sm:$0xf]
        %v3817 = vld [vmem:[#allocation11 + $0x128] sm:$0xf]
        %v3818 = vld [vmem:[#allocation11 + $0x12c] sm:$0xf]
        %v3819 = vld [vmem:[#allocation11 + $0x130] sm:$0xf]
        %v3820 = vld [vmem:[#allocation11 + $0x134] sm:$0xf]
        %v3821 = vld [vmem:[#allocation11 + $0x138] sm:$0xf]
        %v3822 = vld [vmem:[#allocation11 + $0x13c] sm:$0xf]
        %v3823 = vld [vmem:[#allocation11 + $0x140] sm:$0xf]
        %v3824 = vld [vmem:[#allocation11 + $0x144] sm:$0xf]
        %v3825 = vld [vmem:[#allocation11 + $0x148] sm:$0xf]
        %v3826 = vld [vmem:[#allocation11 + $0x14c] sm:$0xf]
        %v3827 = vld [vmem:[#allocation11 + $0x150] sm:$0xf]
        %v3828 = vld [vmem:[#allocation11 + $0x154] sm:$0xf]
        %v3829 = vld [vmem:[#allocation11 + $0x158] sm:$0xf]
        %v3830 = vld [vmem:[#allocation11 + $0x15c] sm:$0xf]
        %v3831 = vld [vmem:[#allocation11 + $0x160] sm:$0xf]
        %v3832 = vld [vmem:[#allocation11 + $0x164] sm:$0xf]
        %v3833 = vld [vmem:[#allocation11 + $0x168] sm:$0xf]
        %v3834 = vld [vmem:[#allocation11 + $0x16c] sm:$0xf]
        %v3835 = vld [vmem:[#allocation11 + $0x170] sm:$0xf]
        %v3836 = vld [vmem:[#allocation11 + $0x174] sm:$0xf]
        %v3837 = vld [vmem:[#allocation11 + $0x178] sm:$0xf]
        %v3838 = vld [vmem:[#allocation11 + $0x17c] sm:$0xf]
        %v3839 = vld [vmem:[#allocation11 + $0x180] sm:$0xf]
        %v3840 = vld [vmem:[#allocation11 + $0x184] sm:$0xf]
        %v3841 = vld [vmem:[#allocation11 + $0x188] sm:$0xf]
        %v3842 = vld [vmem:[#allocation11 + $0x18c] sm:$0xf]
        %v3843 = vld [vmem:[#allocation11 + $0x190] sm:$0xf]
        %v3844 = vld [vmem:[#allocation11 + $0x194] sm:$0xf]
        %v3845 = vld [vmem:[#allocation11 + $0x198] sm:$0xf]
        %v3846 = vld [vmem:[#allocation11 + $0x19c] sm:$0xf]
        %v3847 = vld [vmem:[#allocation11 + $0x1a0] sm:$0xf]
        %v3848 = vld [vmem:[#allocation11 + $0x1a4] sm:$0xf]
        %v3849 = vld [vmem:[#allocation11 + $0x1a8] sm:$0xf]
        %v3850 = vld [vmem:[#allocation11 + $0x1ac] sm:$0xf]
        %v3851 = vld [vmem:[#allocation11 + $0x1b0] sm:$0xf]
        %v3852 = vld [vmem:[#allocation11 + $0x1b4] sm:$0xf]
        %v3853 = vld [vmem:[#allocation11 + $0x1b8] sm:$0xf]
        %v3854 = vld [vmem:[#allocation11 + $0x1bc] sm:$0xf]
        %v3855 = vld [vmem:[#allocation11 + $0x1c0] sm:$0xf]
        %v3856 = vld [vmem:[#allocation11 + $0x1c4] sm:$0xf]
        %v3857 = vld [vmem:[#allocation11 + $0x1c8] sm:$0xf]
        %v3858 = vld [vmem:[#allocation11 + $0x1cc] sm:$0xf]
        %v3859 = vld [vmem:[#allocation11 + $0x1d0] sm:$0xf]
        %v3860 = vld [vmem:[#allocation11 + $0x1d4] sm:$0xf]
        %v3861 = vld [vmem:[#allocation11 + $0x1d8] sm:$0xf]
        %v3862 = vld [vmem:[#allocation11 + $0x1dc] sm:$0xf]
        %v3863 = vld [vmem:[#allocation11 + $0x1e0] sm:$0xf]
        %v3864 = vld [vmem:[#allocation11 + $0x1e4] sm:$0xf]
        %v3865 = vld [vmem:[#allocation11 + $0x1e8] sm:$0xf]
        %v3866 = vld [vmem:[#allocation11 + $0x1ec] sm:$0xf]
        %v3867 = vld [vmem:[#allocation11 + $0x1f0] sm:$0xf]
        %v3868 = vld [vmem:[#allocation11 + $0x1f4] sm:$0xf]
        %v3869 = vld [vmem:[#allocation11 + $0x1f8] sm:$0xf]
        %v3870 = vld [vmem:[#allocation11 + $0x1fc] sm:$0xf]
        %v3871 = vld [vmem:[#allocation11 + $0x200] sm:$0xf]
        %v3872 = vld [vmem:[#allocation11 + $0x204] sm:$0xf]
        %v3873 = vld [vmem:[#allocation11 + $0x208] sm:$0xf]
        %v3874 = vld [vmem:[#allocation11 + $0x20c] sm:$0xf]
        %v3875 = vld [vmem:[#allocation11 + $0x210] sm:$0xf]
        %v3876 = vld [vmem:[#allocation11 + $0x214] sm:$0xf]
        %v3877 = vld [vmem:[#allocation11 + $0x218] sm:$0xf]
        %v3878 = vld [vmem:[#allocation11 + $0x21c] sm:$0xf]
        %v3879 = vld [vmem:[#allocation11 + $0x220] sm:$0xf]
        %v3880 = vld [vmem:[#allocation11 + $0x224] sm:$0xf]
        %v3881 = vld [vmem:[#allocation11 + $0x228] sm:$0xf]
        %v3882 = vld [vmem:[#allocation11 + $0x22c] sm:$0xf]
        %v3883 = vld [vmem:[#allocation11 + $0x230] sm:$0xf]
        %v3884 = vld [vmem:[#allocation11 + $0x234] sm:$0xf]
        %v3885 = vld [vmem:[#allocation11 + $0x238] sm:$0xf]
        %v3886 = vld [vmem:[#allocation11 + $0x23c] sm:$0xf]
        %v4047 = vunpack.c.l.b16 %v3583
        %v4048 = vunpack.c.h.b16 %v3583
        %v4049 = vunpack.c.l.b16 %v3584
        %v4050 = vunpack.c.h.b16 %v3584
        %v4051 = vunpack.c.l.b16 %v3585
        %v4052 = vunpack.c.h.b16 %v3585
        %v4053 = vunpack.c.l.b16 %v3586
        %v4054 = vunpack.c.h.b16 %v3586
        %v4055 = vunpack.c.l.b16 %v3587
        %v4056 = vunpack.c.l.b16 %v3588
        %v4057 = vunpack.c.h.b16 %v3588
        %v4058 = vunpack.c.l.b16 %v3589
        %v4059 = vunpack.c.h.b16 %v3589
        %v4060 = vunpack.c.l.b16 %v3590
        %v4061 = vunpack.c.h.b16 %v3590
        %v4062 = vunpack.c.l.b16 %v3591
        %v4063 = vunpack.c.h.b16 %v3591
        %v4064 = vunpack.c.l.b16 %v3592
        %v4065 = vunpack.c.l.b16 %v3593
        %v4066 = vunpack.c.h.b16 %v3593
        %v4067 = vunpack.c.l.b16 %v3594
        %v4068 = vunpack.c.h.b16 %v3594
        %v4069 = vunpack.c.l.b16 %v3595
        %v4070 = vunpack.c.h.b16 %v3595
        %v4071 = vunpack.c.l.b16 %v3596
        %v4072 = vunpack.c.h.b16 %v3596
        %v4073 = vunpack.c.l.b16 %v3597
        %v4074 = vunpack.c.l.b16 %v3598
        %v4075 = vunpack.c.h.b16 %v3598
        %v4076 = vunpack.c.l.b16 %v3599
        %v4077 = vunpack.c.h.b16 %v3599
        %v4078 = vunpack.c.l.b16 %v3600
        %v4079 = vunpack.c.h.b16 %v3600
        %v4080 = vunpack.c.l.b16 %v3601
        %v4081 = vunpack.c.h.b16 %v3601
        %v4082 = vunpack.c.l.b16 %v3602
        %v4083 = vunpack.c.l.b16 %v3603
        %v4084 = vunpack.c.h.b16 %v3603
        %v4085 = vunpack.c.l.b16 %v3604
        %v4086 = vunpack.c.h.b16 %v3604
        %v4087 = vunpack.c.l.b16 %v3605
        %v4088 = vunpack.c.h.b16 %v3605
        %v4089 = vunpack.c.l.b16 %v3606
        %v4090 = vunpack.c.h.b16 %v3606
        %v4091 = vunpack.c.l.b16 %v3607
        %v4092 = vunpack.c.l.b16 %v3608
        %v4093 = vunpack.c.h.b16 %v3608
        %v4094 = vunpack.c.l.b16 %v3609
        %v4095 = vunpack.c.h.b16 %v3609
        %v4096 = vunpack.c.l.b16 %v3610
        %v4097 = vunpack.c.h.b16 %v3610
        %v4098 = vunpack.c.l.b16 %v3611
        %v4099 = vunpack.c.h.b16 %v3611
        %v4100 = vunpack.c.l.b16 %v3612
        %v4101 = vunpack.c.l.b16 %v3613
        %v4102 = vunpack.c.h.b16 %v3613
        %v4103 = vunpack.c.l.b16 %v3614
        %v4104 = vunpack.c.h.b16 %v3614
        %v4105 = vunpack.c.l.b16 %v3615
        %v4106 = vunpack.c.h.b16 %v3615
        %v4107 = vunpack.c.l.b16 %v3616
        %v4108 = vunpack.c.h.b16 %v3616
        %v4109 = vunpack.c.l.b16 %v3617
        %v4110 = vunpack.c.l.b16 %v3618
        %v4111 = vunpack.c.h.b16 %v3618
        %v4112 = vunpack.c.l.b16 %v3619
        %v4113 = vunpack.c.h.b16 %v3619
        %v4114 = vunpack.c.l.b16 %v3620
        %v4115 = vunpack.c.h.b16 %v3620
        %v4116 = vunpack.c.l.b16 %v3621
        %v4117 = vunpack.c.h.b16 %v3621
        %v4118 = vunpack.c.l.b16 %v3622
        %v4119 = vunpack.c.l.b16 %v3623
        %v4120 = vunpack.c.h.b16 %v3623
        %v4121 = vunpack.c.l.b16 %v3624
        %v4122 = vunpack.c.h.b16 %v3624
        %v4123 = vunpack.c.l.b16 %v3625
        %v4124 = vunpack.c.h.b16 %v3625
        %v4125 = vunpack.c.l.b16 %v3626
        %v4126 = vunpack.c.h.b16 %v3626
        %v4127 = vunpack.c.l.b16 %v3627
        %v4128 = vunpack.c.l.b16 %v3628
        %v4129 = vunpack.c.h.b16 %v3628
        %v4130 = vunpack.c.l.b16 %v3629
        %v4131 = vunpack.c.h.b16 %v3629
        %v4132 = vunpack.c.l.b16 %v3630
        %v4133 = vunpack.c.h.b16 %v3630
        %v4134 = vunpack.c.l.b16 %v3631
        %v4135 = vunpack.c.h.b16 %v3631
        %v4136 = vunpack.c.l.b16 %v3632
        %v4137 = vunpack.c.l.b16 %v3633
        %v4138 = vunpack.c.h.b16 %v3633
        %v4139 = vunpack.c.l.b16 %v3634
        %v4140 = vunpack.c.h.b16 %v3634
        %v4141 = vunpack.c.l.b16 %v3635
        %v4142 = vunpack.c.h.b16 %v3635
        %v4143 = vunpack.c.l.b16 %v3636
        %v4144 = vunpack.c.h.b16 %v3636
        %v4145 = vunpack.c.l.b16 %v3637
        %v4146 = vunpack.c.l.b16 %v3638
        %v4147 = vunpack.c.h.b16 %v3638
        %v4148 = vunpack.c.l.b16 %v3639
        %v4149 = vunpack.c.h.b16 %v3639
        %v4150 = vunpack.c.l.b16 %v3640
        %v4151 = vunpack.c.h.b16 %v3640
        %v4152 = vunpack.c.l.b16 %v3641
        %v4153 = vunpack.c.h.b16 %v3641
        %v4154 = vunpack.c.l.b16 %v3642
        %v4155 = vunpack.c.l.b16 %v3643
        %v4156 = vunpack.c.h.b16 %v3643
        %v4157 = vunpack.c.l.b16 %v3644
        %v4158 = vunpack.c.h.b16 %v3644
        %v4159 = vunpack.c.l.b16 %v3645
        %v4160 = vunpack.c.h.b16 %v3645
        %v4161 = vunpack.c.l.b16 %v3646
        %v4162 = vunpack.c.h.b16 %v3646
        %v4163 = vunpack.c.l.b16 %v3647
        %v4164 = vunpack.c.l.b16 %v3648
        %v4165 = vunpack.c.h.b16 %v3648
        %v4166 = vunpack.c.l.b16 %v3649
        %v4167 = vunpack.c.h.b16 %v3649
        %v4168 = vunpack.c.l.b16 %v3650
        %v4169 = vunpack.c.h.b16 %v3650
        %v4170 = vunpack.c.l.b16 %v3651
        %v4171 = vunpack.c.h.b16 %v3651
        %v4172 = vunpack.c.l.b16 %v3652
        %v4173 = vunpack.c.l.b16 %v3653
        %v4174 = vunpack.c.h.b16 %v3653
        %v4175 = vunpack.c.l.b16 %v3654
        %v4176 = vunpack.c.h.b16 %v3654
        %v4177 = vunpack.c.l.b16 %v3655
        %v4178 = vunpack.c.h.b16 %v3655
        %v4179 = vunpack.c.l.b16 %v3656
        %v4180 = vunpack.c.h.b16 %v3656
        %v4181 = vunpack.c.l.b16 %v3657
        %v4182 = vunpack.c.l.b16 %v3658
        %v4183 = vunpack.c.h.b16 %v3658
        %v4184 = vunpack.c.l.b16 %v3659
        %v4185 = vunpack.c.h.b16 %v3659
        %v4186 = vunpack.c.l.b16 %v3660
        %v4187 = vunpack.c.h.b16 %v3660
        %v4188 = vunpack.c.l.b16 %v3661
        %v4189 = vunpack.c.h.b16 %v3661
        %v4190 = vunpack.c.l.b16 %v3662
        %v4191 = vunpack.c.l.b16 %v3663
        %v4192 = vunpack.c.h.b16 %v3663
        %v4193 = vunpack.c.l.b16 %v3664
        %v4194 = vunpack.c.h.b16 %v3664
        %v4195 = vunpack.c.l.b16 %v3665
        %v4196 = vunpack.c.h.b16 %v3665
        %v4197 = vunpack.c.l.b16 %v3666
        %v4198 = vunpack.c.h.b16 %v3666
        %v4199 = vunpack.c.l.b16 %v3667
        %v4200 = vunpack.c.l.b16 %v3668
        %v4201 = vunpack.c.h.b16 %v3668
        %v4202 = vunpack.c.l.b16 %v3669
        %v4203 = vunpack.c.h.b16 %v3669
        %v4204 = vunpack.c.l.b16 %v3670
        %v4205 = vunpack.c.h.b16 %v3670
        %v4206 = vunpack.c.l.b16 %v3671
        %v4207 = vunpack.c.h.b16 %v3671
        %v4208 = vunpack.c.l.b16 %v3672
        %v4209 = vunpack.c.l.b16 %v3673
        %v4210 = vunpack.c.h.b16 %v3673
        %v4211 = vunpack.c.l.b16 %v3674
        %v4212 = vunpack.c.h.b16 %v3674
        %v4213 = vunpack.c.l.b16 %v3675
        %v4214 = vunpack.c.h.b16 %v3675
        %v4215 = vunpack.c.l.b16 %v3676
        %v4216 = vunpack.c.h.b16 %v3676
        %v4217 = vunpack.c.l.b16 %v3677
        %v4218 = vunpack.c.l.b16 %v3678
        %v4219 = vunpack.c.h.b16 %v3678
        %v4220 = vunpack.c.l.b16 %v3679
        %v4221 = vunpack.c.h.b16 %v3679
        %v4222 = vunpack.c.l.b16 %v3680
        %v4223 = vunpack.c.h.b16 %v3680
        %v4224 = vunpack.c.l.b16 %v3681
        %v4225 = vunpack.c.h.b16 %v3681
        %v4226 = vunpack.c.l.b16 %v3682
        %v4227 = vunpack.c.l.b16 %v3683
        %v4228 = vunpack.c.h.b16 %v3683
        %v4229 = vunpack.c.l.b16 %v3684
        %v4230 = vunpack.c.h.b16 %v3684
        %v4231 = vunpack.c.l.b16 %v3685
        %v4232 = vunpack.c.h.b16 %v3685
        %v4233 = vunpack.c.l.b16 %v3686
        %v4234 = vunpack.c.h.b16 %v3686
        %v4235 = vunpack.c.l.b16 %v3687
        %v4236 = vunpack.c.l.b16 %v3688
        %v4237 = vunpack.c.h.b16 %v3688
        %v4238 = vunpack.c.l.b16 %v3689
        %v4239 = vunpack.c.h.b16 %v3689
        %v4240 = vunpack.c.l.b16 %v3690
        %v4241 = vunpack.c.h.b16 %v3690
        %v4242 = vunpack.c.l.b16 %v3691
        %v4243 = vunpack.c.h.b16 %v3691
        %v4244 = vunpack.c.l.b16 %v3692
        %v4245 = vunpack.c.l.b16 %v3693
        %v4246 = vunpack.c.h.b16 %v3693
        %v4247 = vunpack.c.l.b16 %v3694
        %v4248 = vunpack.c.h.b16 %v3694
        %v4249 = vunpack.c.l.b16 %v3695
        %v4250 = vunpack.c.h.b16 %v3695
        %v4251 = vunpack.c.l.b16 %v3696
        %v4252 = vunpack.c.h.b16 %v3696
        %v4253 = vunpack.c.l.b16 %v3697
        %v4254 = vunpack.c.l.b16 %v3698
        %v4255 = vunpack.c.h.b16 %v3698
        %v4256 = vunpack.c.l.b16 %v3699
        %v4257 = vunpack.c.h.b16 %v3699
        %v4258 = vunpack.c.l.b16 %v3700
        %v4259 = vunpack.c.h.b16 %v3700
        %v4260 = vunpack.c.l.b16 %v3701
        %v4261 = vunpack.c.h.b16 %v3701
        %v4262 = vunpack.c.l.b16 %v3702
        %v4263 = vunpack.c.l.b16 %v3703
        %v4264 = vunpack.c.h.b16 %v3703
        %v4265 = vunpack.c.l.b16 %v3704
        %v4266 = vunpack.c.h.b16 %v3704
        %v4267 = vunpack.c.l.b16 %v3705
        %v4268 = vunpack.c.h.b16 %v3705
        %v4269 = vunpack.c.l.b16 %v3706
        %v4270 = vunpack.c.h.b16 %v3706
        %v4271 = vunpack.c.l.b16 %v3707
        %v4272 = vunpack.c.l.b16 %v3708
        %v4273 = vunpack.c.h.b16 %v3708
        %v4274 = vunpack.c.l.b16 %v3709
        %v4275 = vunpack.c.h.b16 %v3709
        %v4276 = vunpack.c.l.b16 %v3710
        %v4277 = vunpack.c.h.b16 %v3710
        %v4278 = vunpack.c.l.b16 %v3711
        %v4279 = vunpack.c.h.b16 %v3711
        %v4280 = vunpack.c.l.b16 %v3712
        %v4281 = vunpack.c.l.b16 %v3713
        %v4282 = vunpack.c.h.b16 %v3713
        %v4283 = vunpack.c.l.b16 %v3714
        %v4284 = vunpack.c.h.b16 %v3714
        %v4285 = vunpack.c.l.b16 %v3715
        %v4286 = vunpack.c.h.b16 %v3715
        %v4287 = vunpack.c.l.b16 %v3716
        %v4288 = vunpack.c.h.b16 %v3716
        %v4289 = vunpack.c.l.b16 %v3717
        %v4290 = vunpack.c.l.b16 %v3718
        %v4291 = vunpack.c.h.b16 %v3718
        %v4292 = vunpack.c.l.b16 %v3719
        %v4293 = vunpack.c.h.b16 %v3719
        %v4294 = vunpack.c.l.b16 %v3720
        %v4295 = vunpack.c.h.b16 %v3720
        %v4296 = vunpack.c.l.b16 %v3721
        %v4297 = vunpack.c.h.b16 %v3721
        %v4298 = vunpack.c.l.b16 %v3722
        %v4299 = vunpack.c.l.b16 %v3723
        %v4300 = vunpack.c.h.b16 %v3723
        %v4301 = vunpack.c.l.b16 %v3724
        %v4302 = vunpack.c.h.b16 %v3724
        %v4303 = vunpack.c.l.b16 %v3725
        %v4304 = vunpack.c.h.b16 %v3725
        %v4305 = vunpack.c.l.b16 %v3726
        %v4306 = vunpack.c.h.b16 %v3726
        %v4307 = vunpack.c.l.b16 %v3727
        %v4308 = vunpack.c.l.b16 %v3728
        %v4309 = vunpack.c.h.b16 %v3728
        %v4310 = vunpack.c.l.b16 %v3729
        %v4311 = vunpack.c.h.b16 %v3729
        %v4312 = vunpack.c.l.b16 %v3730
        %v4313 = vunpack.c.h.b16 %v3730
        %v4314 = vunpack.c.l.b16 %v3731
        %v4315 = vunpack.c.h.b16 %v3731
        %v4316 = vunpack.c.l.b16 %v3732
        %v4317 = vunpack.c.l.b16 %v3733
        %v4318 = vunpack.c.h.b16 %v3733
        %v4319 = vunpack.c.l.b16 %v3734
        %v4320 = vunpack.c.h.b16 %v3734
        %v4321 = vunpack.c.l.b16 %v3735
        %v4322 = vunpack.c.h.b16 %v3735
        %v4323 = vunpack.c.l.b16 %v3736
        %v4324 = vunpack.c.h.b16 %v3736
        %v4325 = vunpack.c.l.b16 %v3737
        %v4326 = vunpack.c.l.b16 %v3738
        %v4327 = vunpack.c.h.b16 %v3738
        %v4328 = vunpack.c.l.b16 %v3739
        %v4329 = vunpack.c.h.b16 %v3739
        %v4330 = vunpack.c.l.b16 %v3740
        %v4331 = vunpack.c.h.b16 %v3740
        %v4332 = vunpack.c.l.b16 %v3741
        %v4333 = vunpack.c.h.b16 %v3741
        %v4334 = vunpack.c.l.b16 %v3742
        %v4335 = vpack.c.b16 %v4056, %v4047
        %v4336 = vpack.c.b16 %v4057, %v4048
        %v4337 = vpack.c.b16 %v4058, %v4049
        %v4338 = vpack.c.b16 %v4059, %v4050
        %v4339 = vpack.c.b16 %v4060, %v4051
        %v4340 = vpack.c.b16 %v4061, %v4052
        %v4341 = vpack.c.b16 %v4062, %v4053
        %v4342 = vpack.c.b16 %v4063, %v4054
        %v4343 = vpack.c.b16 %v4064, %v4055
        %v4344 = vpack.c.b16 %v4074, %v4065
        %v4345 = vpack.c.b16 %v4075, %v4066
        %v4346 = vpack.c.b16 %v4076, %v4067
        %v4347 = vpack.c.b16 %v4077, %v4068
        %v4348 = vpack.c.b16 %v4078, %v4069
        %v4349 = vpack.c.b16 %v4079, %v4070
        %v4350 = vpack.c.b16 %v4080, %v4071
        %v4351 = vpack.c.b16 %v4081, %v4072
        %v4352 = vpack.c.b16 %v4082, %v4073
        %v4353 = vpack.c.b16 %v4092, %v4083
        %v4354 = vpack.c.b16 %v4093, %v4084
        %v4355 = vpack.c.b16 %v4094, %v4085
        %v4356 = vpack.c.b16 %v4095, %v4086
        %v4357 = vpack.c.b16 %v4096, %v4087
        %v4358 = vpack.c.b16 %v4097, %v4088
        %v4359 = vpack.c.b16 %v4098, %v4089
        %v4360 = vpack.c.b16 %v4099, %v4090
        %v4361 = vpack.c.b16 %v4100, %v4091
        %v4362 = vpack.c.b16 %v4110, %v4101
        %v4363 = vpack.c.b16 %v4111, %v4102
        %v4364 = vpack.c.b16 %v4112, %v4103
        %v4365 = vpack.c.b16 %v4113, %v4104
        %v4366 = vpack.c.b16 %v4114, %v4105
        %v4367 = vpack.c.b16 %v4115, %v4106
        %v4368 = vpack.c.b16 %v4116, %v4107
        %v4369 = vpack.c.b16 %v4117, %v4108
        %v4370 = vpack.c.b16 %v4118, %v4109
        %v4371 = vpack.c.b16 %v4128, %v4119
        %v4372 = vpack.c.b16 %v4129, %v4120
        %v4373 = vpack.c.b16 %v4130, %v4121
        %v4374 = vpack.c.b16 %v4131, %v4122
        %v4375 = vpack.c.b16 %v4132, %v4123
        %v4376 = vpack.c.b16 %v4133, %v4124
        %v4377 = vpack.c.b16 %v4134, %v4125
        %v4378 = vpack.c.b16 %v4135, %v4126
        %v4379 = vpack.c.b16 %v4136, %v4127
        %v4380 = vpack.c.b16 %v4146, %v4137
        %v4381 = vpack.c.b16 %v4147, %v4138
        %v4382 = vpack.c.b16 %v4148, %v4139
        %v4383 = vpack.c.b16 %v4149, %v4140
        %v4384 = vpack.c.b16 %v4150, %v4141
        %v4385 = vpack.c.b16 %v4151, %v4142
        %v4386 = vpack.c.b16 %v4152, %v4143
        %v4387 = vpack.c.b16 %v4153, %v4144
        %v4388 = vpack.c.b16 %v4154, %v4145
        %v4389 = vpack.c.b16 %v4164, %v4155
        %v4390 = vpack.c.b16 %v4165, %v4156
        %v4391 = vpack.c.b16 %v4166, %v4157
        %v4392 = vpack.c.b16 %v4167, %v4158
        %v4393 = vpack.c.b16 %v4168, %v4159
        %v4394 = vpack.c.b16 %v4169, %v4160
        %v4395 = vpack.c.b16 %v4170, %v4161
        %v4396 = vpack.c.b16 %v4171, %v4162
        %v4397 = vpack.c.b16 %v4172, %v4163
        %v4398 = vpack.c.b16 %v4182, %v4173
        %v4399 = vpack.c.b16 %v4183, %v4174
        %v4400 = vpack.c.b16 %v4184, %v4175
        %v4401 = vpack.c.b16 %v4185, %v4176
        %v4402 = vpack.c.b16 %v4186, %v4177
        %v4403 = vpack.c.b16 %v4187, %v4178
        %v4404 = vpack.c.b16 %v4188, %v4179
        %v4405 = vpack.c.b16 %v4189, %v4180
        %v4406 = vpack.c.b16 %v4190, %v4181
        %v4407 = vpack.c.b16 %v4200, %v4191
        %v4408 = vpack.c.b16 %v4201, %v4192
        %v4409 = vpack.c.b16 %v4202, %v4193
        %v4410 = vpack.c.b16 %v4203, %v4194
        %v4411 = vpack.c.b16 %v4204, %v4195
        %v4412 = vpack.c.b16 %v4205, %v4196
        %v4413 = vpack.c.b16 %v4206, %v4197
        %v4414 = vpack.c.b16 %v4207, %v4198
        %v4415 = vpack.c.b16 %v4208, %v4199
        %v4416 = vpack.c.b16 %v4218, %v4209
        %v4417 = vpack.c.b16 %v4219, %v4210
        %v4418 = vpack.c.b16 %v4220, %v4211
        %v4419 = vpack.c.b16 %v4221, %v4212
        %v4420 = vpack.c.b16 %v4222, %v4213
        %v4421 = vpack.c.b16 %v4223, %v4214
        %v4422 = vpack.c.b16 %v4224, %v4215
        %v4423 = vpack.c.b16 %v4225, %v4216
        %v4424 = vpack.c.b16 %v4226, %v4217
        %v4425 = vpack.c.b16 %v4236, %v4227
        %v4426 = vpack.c.b16 %v4237, %v4228
        %v4427 = vpack.c.b16 %v4238, %v4229
        %v4428 = vpack.c.b16 %v4239, %v4230
        %v4429 = vpack.c.b16 %v4240, %v4231
        %v4430 = vpack.c.b16 %v4241, %v4232
        %v4431 = vpack.c.b16 %v4242, %v4233
        %v4432 = vpack.c.b16 %v4243, %v4234
        %v4433 = vpack.c.b16 %v4244, %v4235
        %v4434 = vpack.c.b16 %v4254, %v4245
        %v4435 = vpack.c.b16 %v4255, %v4246
        %v4436 = vpack.c.b16 %v4256, %v4247
        %v4437 = vpack.c.b16 %v4257, %v4248
        %v4438 = vpack.c.b16 %v4258, %v4249
        %v4439 = vpack.c.b16 %v4259, %v4250
        %v4440 = vpack.c.b16 %v4260, %v4251
        %v4441 = vpack.c.b16 %v4261, %v4252
        %v4442 = vpack.c.b16 %v4262, %v4253
        %v4443 = vpack.c.b16 %v4272, %v4263
        %v4444 = vpack.c.b16 %v4273, %v4264
        %v4445 = vpack.c.b16 %v4274, %v4265
        %v4446 = vpack.c.b16 %v4275, %v4266
        %v4447 = vpack.c.b16 %v4276, %v4267
        %v4448 = vpack.c.b16 %v4277, %v4268
        %v4449 = vpack.c.b16 %v4278, %v4269
        %v4450 = vpack.c.b16 %v4279, %v4270
        %v4451 = vpack.c.b16 %v4280, %v4271
        %v4452 = vpack.c.b16 %v4290, %v4281
        %v4453 = vpack.c.b16 %v4291, %v4282
        %v4454 = vpack.c.b16 %v4292, %v4283
        %v4455 = vpack.c.b16 %v4293, %v4284
        %v4456 = vpack.c.b16 %v4294, %v4285
        %v4457 = vpack.c.b16 %v4295, %v4286
        %v4458 = vpack.c.b16 %v4296, %v4287
        %v4459 = vpack.c.b16 %v4297, %v4288
        %v4460 = vpack.c.b16 %v4298, %v4289
        %v4461 = vpack.c.b16 %v4308, %v4299
        %v4462 = vpack.c.b16 %v4309, %v4300
        %v4463 = vpack.c.b16 %v4310, %v4301
        %v4464 = vpack.c.b16 %v4311, %v4302
        %v4465 = vpack.c.b16 %v4312, %v4303
        %v4466 = vpack.c.b16 %v4313, %v4304
        %v4467 = vpack.c.b16 %v4314, %v4305
        %v4468 = vpack.c.b16 %v4315, %v4306
        %v4469 = vpack.c.b16 %v4316, %v4307
        %v4470 = vpack.c.b16 %v4326, %v4317
        %v4471 = vpack.c.b16 %v4327, %v4318
        %v4472 = vpack.c.b16 %v4328, %v4319
        %v4473 = vpack.c.b16 %v4329, %v4320
        %v4474 = vpack.c.b16 %v4330, %v4321
        %v4475 = vpack.c.b16 %v4331, %v4322
        %v4476 = vpack.c.b16 %v4332, %v4323
        %v4477 = vpack.c.b16 %v4333, %v4324
        %v4478 = vpack.c.b16 %v4334, %v4325
        %v4767 = vunpack.c.l.b16 %v3743
        %v4768 = vunpack.c.l.b16 %v3744
        %v4769 = vunpack.c.l.b16 %v3745
        %v4770 = vunpack.c.l.b16 %v3746
        %v4771 = vunpack.c.l.b16 %v3747
        %v4772 = vunpack.c.l.b16 %v3748
        %v4773 = vunpack.c.l.b16 %v3749
        %v4774 = vunpack.c.l.b16 %v3750
        %v4775 = vunpack.c.l.b16 %v3751
        %v4776 = vunpack.c.l.b16 %v3752
        %v4777 = vunpack.c.l.b16 %v3753
        %v4778 = vunpack.c.l.b16 %v3754
        %v4779 = vunpack.c.l.b16 %v3755
        %v4780 = vunpack.c.l.b16 %v3756
        %v4781 = vunpack.c.l.b16 %v3757
        %v4782 = vunpack.c.l.b16 %v3758
        %v4783 = vunpack.c.l.b16 %v3759
        %v4784 = vunpack.c.l.b16 %v3760
        %v4785 = vunpack.c.l.b16 %v3761
        %v4786 = vunpack.c.l.b16 %v3762
        %v4787 = vunpack.c.l.b16 %v3763
        %v4788 = vunpack.c.l.b16 %v3764
        %v4789 = vunpack.c.l.b16 %v3765
        %v4790 = vunpack.c.l.b16 %v3766
        %v4791 = vunpack.c.l.b16 %v3767
        %v4792 = vunpack.c.l.b16 %v3768
        %v4793 = vunpack.c.l.b16 %v3769
        %v4794 = vunpack.c.l.b16 %v3770
        %v4795 = vunpack.c.l.b16 %v3771
        %v4796 = vunpack.c.l.b16 %v3772
        %v4797 = vunpack.c.l.b16 %v3773
        %v4798 = vunpack.c.l.b16 %v3774
        %v4799 = vunpack.c.l.b16 %v3775
        %v4800 = vunpack.c.l.b16 %v3776
        %v4801 = vunpack.c.l.b16 %v3777
        %v4802 = vunpack.c.l.b16 %v3778
        %v4803 = vunpack.c.l.b16 %v3779
        %v4804 = vunpack.c.l.b16 %v3780
        %v4805 = vunpack.c.l.b16 %v3781
        %v4806 = vunpack.c.l.b16 %v3782
        %v4807 = vunpack.c.l.b16 %v3783
        %v4808 = vunpack.c.l.b16 %v3784
        %v4809 = vunpack.c.l.b16 %v3785
        %v4810 = vunpack.c.l.b16 %v3786
        %v4811 = vunpack.c.l.b16 %v3787
        %v4812 = vunpack.c.l.b16 %v3788
        %v4813 = vunpack.c.l.b16 %v3789
        %v4814 = vunpack.c.l.b16 %v3790
        %v4815 = vunpack.c.l.b16 %v3791
        %v4816 = vunpack.c.l.b16 %v3792
        %v4817 = vunpack.c.l.b16 %v3793
        %v4818 = vunpack.c.l.b16 %v3794
        %v4819 = vunpack.c.l.b16 %v3795
        %v4820 = vunpack.c.l.b16 %v3796
        %v4821 = vunpack.c.l.b16 %v3797
        %v4822 = vunpack.c.l.b16 %v3798
        %v4823 = vunpack.c.l.b16 %v3799
        %v4824 = vunpack.c.l.b16 %v3800
        %v4825 = vunpack.c.l.b16 %v3801
        %v4826 = vunpack.c.l.b16 %v3802
        %v4827 = vunpack.c.l.b16 %v3803
        %v4828 = vunpack.c.l.b16 %v3804
        %v4829 = vunpack.c.l.b16 %v3805
        %v4830 = vunpack.c.l.b16 %v3806
        %v4831 = vunpack.c.l.b16 %v3807
        %v4832 = vunpack.c.l.b16 %v3808
        %v4833 = vunpack.c.l.b16 %v3809
        %v4834 = vunpack.c.l.b16 %v3810
        %v4835 = vunpack.c.l.b16 %v3811
        %v4836 = vunpack.c.l.b16 %v3812
        %v4837 = vunpack.c.l.b16 %v3813
        %v4838 = vunpack.c.l.b16 %v3814
        %v4839 = vunpack.c.l.b16 %v3815
        %v4840 = vunpack.c.l.b16 %v3816
        %v4841 = vunpack.c.l.b16 %v3817
        %v4842 = vunpack.c.l.b16 %v3818
        %v4843 = vunpack.c.l.b16 %v3819
        %v4844 = vunpack.c.l.b16 %v3820
        %v4845 = vunpack.c.l.b16 %v3821
        %v4846 = vunpack.c.l.b16 %v3822
        %v4847 = vunpack.c.l.b16 %v3823
        %v4848 = vunpack.c.l.b16 %v3824
        %v4849 = vunpack.c.l.b16 %v3825
        %v4850 = vunpack.c.l.b16 %v3826
        %v4851 = vunpack.c.l.b16 %v3827
        %v4852 = vunpack.c.l.b16 %v3828
        %v4853 = vunpack.c.l.b16 %v3829
        %v4854 = vunpack.c.l.b16 %v3830
        %v4855 = vunpack.c.l.b16 %v3831
        %v4856 = vunpack.c.l.b16 %v3832
        %v4857 = vunpack.c.l.b16 %v3833
        %v4858 = vunpack.c.l.b16 %v3834
        %v4859 = vunpack.c.l.b16 %v3835
        %v4860 = vunpack.c.l.b16 %v3836
        %v4861 = vunpack.c.l.b16 %v3837
        %v4862 = vunpack.c.l.b16 %v3838
        %v4863 = vunpack.c.l.b16 %v3839
        %v4864 = vunpack.c.l.b16 %v3840
        %v4865 = vunpack.c.l.b16 %v3841
        %v4866 = vunpack.c.l.b16 %v3842
        %v4867 = vunpack.c.l.b16 %v3843
        %v4868 = vunpack.c.l.b16 %v3844
        %v4869 = vunpack.c.l.b16 %v3845
        %v4870 = vunpack.c.l.b16 %v3846
        %v4871 = vunpack.c.l.b16 %v3847
        %v4872 = vunpack.c.l.b16 %v3848
        %v4873 = vunpack.c.l.b16 %v3849
        %v4874 = vunpack.c.l.b16 %v3850
        %v4875 = vunpack.c.l.b16 %v3851
        %v4876 = vunpack.c.l.b16 %v3852
        %v4877 = vunpack.c.l.b16 %v3853
        %v4878 = vunpack.c.l.b16 %v3854
        %v4879 = vunpack.c.l.b16 %v3855
        %v4880 = vunpack.c.l.b16 %v3856
        %v4881 = vunpack.c.l.b16 %v3857
        %v4882 = vunpack.c.l.b16 %v3858
        %v4883 = vunpack.c.l.b16 %v3859
        %v4884 = vunpack.c.l.b16 %v3860
        %v4885 = vunpack.c.l.b16 %v3861
        %v4886 = vunpack.c.l.b16 %v3862
        %v4887 = vunpack.c.l.b16 %v3863
        %v4888 = vunpack.c.l.b16 %v3864
        %v4889 = vunpack.c.l.b16 %v3865
        %v4890 = vunpack.c.l.b16 %v3866
        %v4891 = vunpack.c.l.b16 %v3867
        %v4892 = vunpack.c.l.b16 %v3868
        %v4893 = vunpack.c.l.b16 %v3869
        %v4894 = vunpack.c.l.b16 %v3870
        %v4895 = vunpack.c.l.b16 %v3871
        %v4896 = vunpack.c.l.b16 %v3872
        %v4897 = vunpack.c.l.b16 %v3873
        %v4898 = vunpack.c.l.b16 %v3874
        %v4899 = vunpack.c.l.b16 %v3875
        %v4900 = vunpack.c.l.b16 %v3876
        %v4901 = vunpack.c.l.b16 %v3877
        %v4902 = vunpack.c.l.b16 %v3878
        %v4903 = vunpack.c.l.b16 %v3879
        %v4904 = vunpack.c.l.b16 %v3880
        %v4905 = vunpack.c.l.b16 %v3881
        %v4906 = vunpack.c.l.b16 %v3882
        %v4907 = vunpack.c.l.b16 %v3883
        %v4908 = vunpack.c.l.b16 %v3884
        %v4909 = vunpack.c.l.b16 %v3885
        %v4910 = vunpack.c.l.b16 %v3886
        %v4911 = vpack.c.b16 %v4768, %v4767
        %v4912 = vpack.c.b16 %v4770, %v4769
        %v4913 = vpack.c.b16 %v4772, %v4771
        %v4914 = vpack.c.b16 %v4774, %v4773
        %v4915 = vpack.c.b16 %v4776, %v4775
        %v4916 = vpack.c.b16 %v4778, %v4777
        %v4917 = vpack.c.b16 %v4780, %v4779
        %v4918 = vpack.c.b16 %v4782, %v4781
        %v4919 = vpack.c.b16 %v4784, %v4783
        %v4920 = vpack.c.b16 %v4786, %v4785
        %v4921 = vpack.c.b16 %v4788, %v4787
        %v4922 = vpack.c.b16 %v4790, %v4789
        %v4923 = vpack.c.b16 %v4792, %v4791
        %v4924 = vpack.c.b16 %v4794, %v4793
        %v4925 = vpack.c.b16 %v4796, %v4795
        %v4926 = vpack.c.b16 %v4798, %v4797
        %v4927 = vpack.c.b16 %v4800, %v4799
        %v4928 = vpack.c.b16 %v4802, %v4801
        %v4929 = vpack.c.b16 %v4804, %v4803
        %v4930 = vpack.c.b16 %v4806, %v4805
        %v4931 = vpack.c.b16 %v4808, %v4807
        %v4932 = vpack.c.b16 %v4810, %v4809
        %v4933 = vpack.c.b16 %v4812, %v4811
        %v4934 = vpack.c.b16 %v4814, %v4813
        %v4935 = vpack.c.b16 %v4816, %v4815
        %v4936 = vpack.c.b16 %v4818, %v4817
        %v4937 = vpack.c.b16 %v4820, %v4819
        %v4938 = vpack.c.b16 %v4822, %v4821
        %v4939 = vpack.c.b16 %v4824, %v4823
        %v4940 = vpack.c.b16 %v4826, %v4825
        %v4941 = vpack.c.b16 %v4828, %v4827
        %v4942 = vpack.c.b16 %v4830, %v4829
        %v4943 = vpack.c.b16 %v4832, %v4831
        %v4944 = vpack.c.b16 %v4834, %v4833
        %v4945 = vpack.c.b16 %v4836, %v4835
        %v4946 = vpack.c.b16 %v4838, %v4837
        %v4947 = vpack.c.b16 %v4840, %v4839
        %v4948 = vpack.c.b16 %v4842, %v4841
        %v4949 = vpack.c.b16 %v4844, %v4843
        %v4950 = vpack.c.b16 %v4846, %v4845
        %v4951 = vpack.c.b16 %v4848, %v4847
        %v4952 = vpack.c.b16 %v4850, %v4849
        %v4953 = vpack.c.b16 %v4852, %v4851
        %v4954 = vpack.c.b16 %v4854, %v4853
        %v4955 = vpack.c.b16 %v4856, %v4855
        %v4956 = vpack.c.b16 %v4858, %v4857
        %v4957 = vpack.c.b16 %v4860, %v4859
        %v4958 = vpack.c.b16 %v4862, %v4861
        %v4959 = vpack.c.b16 %v4864, %v4863
        %v4960 = vpack.c.b16 %v4866, %v4865
        %v4961 = vpack.c.b16 %v4868, %v4867
        %v4962 = vpack.c.b16 %v4870, %v4869
        %v4963 = vpack.c.b16 %v4872, %v4871
        %v4964 = vpack.c.b16 %v4874, %v4873
        %v4965 = vpack.c.b16 %v4876, %v4875
        %v4966 = vpack.c.b16 %v4878, %v4877
        %v4967 = vpack.c.b16 %v4880, %v4879
        %v4968 = vpack.c.b16 %v4882, %v4881
        %v4969 = vpack.c.b16 %v4884, %v4883
        %v4970 = vpack.c.b16 %v4886, %v4885
        %v4971 = vpack.c.b16 %v4888, %v4887
        %v4972 = vpack.c.b16 %v4890, %v4889
        %v4973 = vpack.c.b16 %v4892, %v4891
        %v4974 = vpack.c.b16 %v4894, %v4893
        %v4975 = vpack.c.b16 %v4896, %v4895
        %v4976 = vpack.c.b16 %v4898, %v4897
        %v4977 = vpack.c.b16 %v4900, %v4899
        %v4978 = vpack.c.b16 %v4902, %v4901
        %v4979 = vpack.c.b16 %v4904, %v4903
        %v4980 = vpack.c.b16 %v4906, %v4905
        %v4981 = vpack.c.b16 %v4908, %v4907
        %v4982 = vpack.c.b16 %v4910, %v4909
        %5055 = vmatpush.bf16.msra.mxu0 %v4918
        %5056 = vmatpush.bf16.msra.mxu0 %v4917
        %5057 = vmatpush.bf16.msra.mxu0 %v4916
        %5058 = vmatpush.bf16.msra.mxu0 %v4915
        %5059 = vmatpush.bf16.msra.mxu0 %v4914
        %5060 = vmatpush.bf16.msra.mxu0 %v4913
        %5061 = vmatpush.bf16.msra.mxu0 %v4912
        %5062 = vmatpush.bf16.msra.mxu0 %v4911
        %5063 = vmatmul.bf16.gmra.mxu0 %v4335
        %v5064 = vpop.f32.mrf.mxu0
        %v5065 = vadd.f32 0.0, %v5064
        %v5066 = vpop.f32.mrf.mxu0
        %v5067 = vadd.f32 0.0, %v5066
        %5068 = vmatmul.bf16.gmra.mxu0 %v4344
        %v5069 = vpop.f32.mrf.mxu0
        %v5070 = vadd.f32 0.0, %v5069
        %v5071 = vpop.f32.mrf.mxu0
        %v5072 = vadd.f32 0.0, %v5071
        %5073 = vmatmul.bf16.gmra.mxu0 %v4353
        %v5074 = vpop.f32.mrf.mxu0
        %v5075 = vadd.f32 0.0, %v5074
        %v5076 = vpop.f32.mrf.mxu0
        %v5077 = vadd.f32 0.0, %v5076
        %5078 = vmatmul.bf16.gmra.mxu0 %v4362
        %v5079 = vpop.f32.mrf.mxu0
        %v5080 = vadd.f32 0.0, %v5079
        %v5081 = vpop.f32.mrf.mxu0
        %v5082 = vadd.f32 0.0, %v5081
        %5083 = vmatmul.bf16.gmra.mxu0 %v4371
        %v5084 = vpop.f32.mrf.mxu0
        %v5085 = vadd.f32 0.0, %v5084
        %v5086 = vpop.f32.mrf.mxu0
        %v5087 = vadd.f32 0.0, %v5086
        %5088 = vmatmul.bf16.gmra.mxu0 %v4380
        %v5089 = vpop.f32.mrf.mxu0
        %v5090 = vadd.f32 0.0, %v5089
        %v5091 = vpop.f32.mrf.mxu0
        %v5092 = vadd.f32 0.0, %v5091
        %5093 = vmatmul.bf16.gmra.mxu0 %v4389
        %v5094 = vpop.f32.mrf.mxu0
        %v5095 = vadd.f32 0.0, %v5094
        %v5096 = vpop.f32.mrf.mxu0
        %v5097 = vadd.f32 0.0, %v5096
        %5098 = vmatmul.bf16.gmra.mxu0 %v4398
        %v5099 = vpop.f32.mrf.mxu0
        %v5100 = vadd.f32 0.0, %v5099
        %v5101 = vpop.f32.mrf.mxu0
        %v5102 = vadd.f32 0.0, %v5101
        %5103 = vmatmul.bf16.gmra.mxu0 %v4407
        %v5104 = vpop.f32.mrf.mxu0
        %v5105 = vadd.f32 0.0, %v5104
        %v5106 = vpop.f32.mrf.mxu0
        %v5107 = vadd.f32 0.0, %v5106
        %5108 = vmatmul.bf16.gmra.mxu0 %v4416
        %v5109 = vpop.f32.mrf.mxu0
        %v5110 = vadd.f32 0.0, %v5109
        %v5111 = vpop.f32.mrf.mxu0
        %v5112 = vadd.f32 0.0, %v5111
        %5113 = vmatmul.bf16.gmra.mxu0 %v4425
        %v5114 = vpop.f32.mrf.mxu0
        %v5115 = vadd.f32 0.0, %v5114
        %v5116 = vpop.f32.mrf.mxu0
        %v5117 = vadd.f32 0.0, %v5116
        %5118 = vmatmul.bf16.gmra.mxu0 %v4434
        %v5119 = vpop.f32.mrf.mxu0
        %v5120 = vadd.f32 0.0, %v5119
        %v5121 = vpop.f32.mrf.mxu0
        %v5122 = vadd.f32 0.0, %v5121
        %5123 = vmatmul.bf16.gmra.mxu0 %v4443
        %v5124 = vpop.f32.mrf.mxu0
        %v5125 = vadd.f32 0.0, %v5124
        %v5126 = vpop.f32.mrf.mxu0
        %v5127 = vadd.f32 0.0, %v5126
        %5128 = vmatmul.bf16.gmra.mxu0 %v4452
        %v5129 = vpop.f32.mrf.mxu0
        %v5130 = vadd.f32 0.0, %v5129
        %v5131 = vpop.f32.mrf.mxu0
        %v5132 = vadd.f32 0.0, %v5131
        %5133 = vmatmul.bf16.gmra.mxu0 %v4461
        %v5134 = vpop.f32.mrf.mxu0
        %v5135 = vadd.f32 0.0, %v5134
        %v5136 = vpop.f32.mrf.mxu0
        %v5137 = vadd.f32 0.0, %v5136
        %5138 = vmatmul.bf16.gmra.mxu0 %v4470
        %v5139 = vpop.f32.mrf.mxu0
        %v5140 = vadd.f32 0.0, %v5139
        %v5141 = vpop.f32.mrf.mxu0
        %v5142 = vadd.f32 0.0, %v5141
        %5143 = vdwg.mxu0
        %5144 = vmatpush.bf16.msra.mxu0 %v4926
        %5145 = vmatpush.bf16.msra.mxu0 %v4925
        %5146 = vmatpush.bf16.msra.mxu0 %v4924
        %5147 = vmatpush.bf16.msra.mxu0 %v4923
        %5148 = vmatpush.bf16.msra.mxu0 %v4922
        %5149 = vmatpush.bf16.msra.mxu0 %v4921
        %5150 = vmatpush.bf16.msra.mxu0 %v4920
        %5151 = vmatpush.bf16.msra.mxu0 %v4919
        %5152 = vmatmul.bf16.gmra.mxu0 %v4336
        %v5153 = vpop.f32.mrf.mxu0
        %v5154 = vadd.f32 %v5065, %v5153
        %v5155 = vpop.f32.mrf.mxu0
        %v5156 = vadd.f32 %v5067, %v5155
        %5157 = vmatmul.bf16.gmra.mxu0 %v4345
        %v5158 = vpop.f32.mrf.mxu0
        %v5159 = vadd.f32 %v5070, %v5158
        %v5160 = vpop.f32.mrf.mxu0
        %v5161 = vadd.f32 %v5072, %v5160
        %5162 = vmatmul.bf16.gmra.mxu0 %v4354
        %v5163 = vpop.f32.mrf.mxu0
        %v5164 = vadd.f32 %v5075, %v5163
        %v5165 = vpop.f32.mrf.mxu0
        %v5166 = vadd.f32 %v5077, %v5165
        %5167 = vmatmul.bf16.gmra.mxu0 %v4363
        %v5168 = vpop.f32.mrf.mxu0
        %v5169 = vadd.f32 %v5080, %v5168
        %v5170 = vpop.f32.mrf.mxu0
        %v5171 = vadd.f32 %v5082, %v5170
        %5172 = vmatmul.bf16.gmra.mxu0 %v4372
        %v5173 = vpop.f32.mrf.mxu0
        %v5174 = vadd.f32 %v5085, %v5173
        %v5175 = vpop.f32.mrf.mxu0
        %v5176 = vadd.f32 %v5087, %v5175
        %5177 = vmatmul.bf16.gmra.mxu0 %v4381
        %v5178 = vpop.f32.mrf.mxu0
        %v5179 = vadd.f32 %v5090, %v5178
        %v5180 = vpop.f32.mrf.mxu0
        %v5181 = vadd.f32 %v5092, %v5180
        %5182 = vmatmul.bf16.gmra.mxu0 %v4390
        %v5183 = vpop.f32.mrf.mxu0
        %v5184 = vadd.f32 %v5095, %v5183
        %v5185 = vpop.f32.mrf.mxu0
        %v5186 = vadd.f32 %v5097, %v5185
        %5187 = vmatmul.bf16.gmra.mxu0 %v4399
        %v5188 = vpop.f32.mrf.mxu0
        %v5189 = vadd.f32 %v5100, %v5188
        %v5190 = vpop.f32.mrf.mxu0
        %v5191 = vadd.f32 %v5102, %v5190
        %5192 = vmatmul.bf16.gmra.mxu0 %v4408
        %v5193 = vpop.f32.mrf.mxu0
        %v5194 = vadd.f32 %v5105, %v5193
        %v5195 = vpop.f32.mrf.mxu0
        %v5196 = vadd.f32 %v5107, %v5195
        %5197 = vmatmul.bf16.gmra.mxu0 %v4417
        %v5198 = vpop.f32.mrf.mxu0
        %v5199 = vadd.f32 %v5110, %v5198
        %v5200 = vpop.f32.mrf.mxu0
        %v5201 = vadd.f32 %v5112, %v5200
        %5202 = vmatmul.bf16.gmra.mxu0 %v4426
        %v5203 = vpop.f32.mrf.mxu0
        %v5204 = vadd.f32 %v5115, %v5203
        %v5205 = vpop.f32.mrf.mxu0
        %v5206 = vadd.f32 %v5117, %v5205
        %5207 = vmatmul.bf16.gmra.mxu0 %v4435
        %v5208 = vpop.f32.mrf.mxu0
        %v5209 = vadd.f32 %v5120, %v5208
        %v5210 = vpop.f32.mrf.mxu0
        %v5211 = vadd.f32 %v5122, %v5210
        %5212 = vmatmul.bf16.gmra.mxu0 %v4444
        %v5213 = vpop.f32.mrf.mxu0
        %v5214 = vadd.f32 %v5125, %v5213
        %v5215 = vpop.f32.mrf.mxu0
        %v5216 = vadd.f32 %v5127, %v5215
        %5217 = vmatmul.bf16.gmra.mxu0 %v4453
        %v5218 = vpop.f32.mrf.mxu0
        %v5219 = vadd.f32 %v5130, %v5218
        %v5220 = vpop.f32.mrf.mxu0
        %v5221 = vadd.f32 %v5132, %v5220
        %5222 = vmatmul.bf16.gmra.mxu0 %v4462
        %v5223 = vpop.f32.mrf.mxu0
        %v5224 = vadd.f32 %v5135, %v5223
        %v5225 = vpop.f32.mrf.mxu0
        %v5226 = vadd.f32 %v5137, %v5225
        %5227 = vmatmul.bf16.gmra.mxu0 %v4471
        %v5228 = vpop.f32.mrf.mxu0
        %v5229 = vadd.f32 %v5140, %v5228
        %v5230 = vpop.f32.mrf.mxu0
        %v5231 = vadd.f32 %v5142, %v5230
        %5232 = vdwg.mxu0
        %5233 = vmatpush.bf16.msra.mxu0 %v4934
        %5234 = vmatpush.bf16.msra.mxu0 %v4933
        %5235 = vmatpush.bf16.msra.mxu0 %v4932
        %5236 = vmatpush.bf16.msra.mxu0 %v4931
        %5237 = vmatpush.bf16.msra.mxu0 %v4930
        %5238 = vmatpush.bf16.msra.mxu0 %v4929
        %5239 = vmatpush.bf16.msra.mxu0 %v4928
        %5240 = vmatpush.bf16.msra.mxu0 %v4927
        %5241 = vmatmul.bf16.gmra.mxu0 %v4337
        %v5242 = vpop.f32.mrf.mxu0
        %v5243 = vadd.f32 %v5154, %v5242
        %v5244 = vpop.f32.mrf.mxu0
        %v5245 = vadd.f32 %v5156, %v5244
        %5246 = vmatmul.bf16.gmra.mxu0 %v4346
        %v5247 = vpop.f32.mrf.mxu0
        %v5248 = vadd.f32 %v5159, %v5247
        %v5249 = vpop.f32.mrf.mxu0
        %v5250 = vadd.f32 %v5161, %v5249
        %5251 = vmatmul.bf16.gmra.mxu0 %v4355
        %v5252 = vpop.f32.mrf.mxu0
        %v5253 = vadd.f32 %v5164, %v5252
        %v5254 = vpop.f32.mrf.mxu0
        %v5255 = vadd.f32 %v5166, %v5254
        %5256 = vmatmul.bf16.gmra.mxu0 %v4364
        %v5257 = vpop.f32.mrf.mxu0
        %v5258 = vadd.f32 %v5169, %v5257
        %v5259 = vpop.f32.mrf.mxu0
        %v5260 = vadd.f32 %v5171, %v5259
        %5261 = vmatmul.bf16.gmra.mxu0 %v4373
        %v5262 = vpop.f32.mrf.mxu0
        %v5263 = vadd.f32 %v5174, %v5262
        %v5264 = vpop.f32.mrf.mxu0
        %v5265 = vadd.f32 %v5176, %v5264
        %5266 = vmatmul.bf16.gmra.mxu0 %v4382
        %v5267 = vpop.f32.mrf.mxu0
        %v5268 = vadd.f32 %v5179, %v5267
        %v5269 = vpop.f32.mrf.mxu0
        %v5270 = vadd.f32 %v5181, %v5269
        %5271 = vmatmul.bf16.gmra.mxu0 %v4391
        %v5272 = vpop.f32.mrf.mxu0
        %v5273 = vadd.f32 %v5184, %v5272
        %v5274 = vpop.f32.mrf.mxu0
        %v5275 = vadd.f32 %v5186, %v5274
        %5276 = vmatmul.bf16.gmra.mxu0 %v4400
        %v5277 = vpop.f32.mrf.mxu0
        %v5278 = vadd.f32 %v5189, %v5277
        %v5279 = vpop.f32.mrf.mxu0
        %v5280 = vadd.f32 %v5191, %v5279
        %5281 = vmatmul.bf16.gmra.mxu0 %v4409
        %v5282 = vpop.f32.mrf.mxu0
        %v5283 = vadd.f32 %v5194, %v5282
        %v5284 = vpop.f32.mrf.mxu0
        %v5285 = vadd.f32 %v5196, %v5284
        %5286 = vmatmul.bf16.gmra.mxu0 %v4418
        %v5287 = vpop.f32.mrf.mxu0
        %v5288 = vadd.f32 %v5199, %v5287
        %v5289 = vpop.f32.mrf.mxu0
        %v5290 = vadd.f32 %v5201, %v5289
        %5291 = vmatmul.bf16.gmra.mxu0 %v4427
        %v5292 = vpop.f32.mrf.mxu0
        %v5293 = vadd.f32 %v5204, %v5292
        %v5294 = vpop.f32.mrf.mxu0
        %v5295 = vadd.f32 %v5206, %v5294
        %5296 = vmatmul.bf16.gmra.mxu0 %v4436
        %v5297 = vpop.f32.mrf.mxu0
        %v5298 = vadd.f32 %v5209, %v5297
        %v5299 = vpop.f32.mrf.mxu0
        %v5300 = vadd.f32 %v5211, %v5299
        %5301 = vmatmul.bf16.gmra.mxu0 %v4445
        %v5302 = vpop.f32.mrf.mxu0
        %v5303 = vadd.f32 %v5214, %v5302
        %v5304 = vpop.f32.mrf.mxu0
        %v5305 = vadd.f32 %v5216, %v5304
        %5306 = vmatmul.bf16.gmra.mxu0 %v4454
        %v5307 = vpop.f32.mrf.mxu0
        %v5308 = vadd.f32 %v5219, %v5307
        %v5309 = vpop.f32.mrf.mxu0
        %v5310 = vadd.f32 %v5221, %v5309
        %5311 = vmatmul.bf16.gmra.mxu0 %v4463
        %v5312 = vpop.f32.mrf.mxu0
        %v5313 = vadd.f32 %v5224, %v5312
        %v5314 = vpop.f32.mrf.mxu0
        %v5315 = vadd.f32 %v5226, %v5314
        %5316 = vmatmul.bf16.gmra.mxu0 %v4472
        %v5317 = vpop.f32.mrf.mxu0
        %v5318 = vadd.f32 %v5229, %v5317
        %v5319 = vpop.f32.mrf.mxu0
        %v5320 = vadd.f32 %v5231, %v5319
        %5321 = vdwg.mxu0
        %5322 = vmatpush.bf16.msra.mxu0 %v4942
        %5323 = vmatpush.bf16.msra.mxu0 %v4941
        %5324 = vmatpush.bf16.msra.mxu0 %v4940
        %5325 = vmatpush.bf16.msra.mxu0 %v4939
        %5326 = vmatpush.bf16.msra.mxu0 %v4938
        %5327 = vmatpush.bf16.msra.mxu0 %v4937
        %5328 = vmatpush.bf16.msra.mxu0 %v4936
        %5329 = vmatpush.bf16.msra.mxu0 %v4935
        %5330 = vmatmul.bf16.gmra.mxu0 %v4338
        %v5331 = vpop.f32.mrf.mxu0
        %v5332 = vadd.f32 %v5243, %v5331
        %v5333 = vpop.f32.mrf.mxu0
        %v5334 = vadd.f32 %v5245, %v5333
        %5335 = vmatmul.bf16.gmra.mxu0 %v4347
        %v5336 = vpop.f32.mrf.mxu0
        %v5337 = vadd.f32 %v5248, %v5336
        %v5338 = vpop.f32.mrf.mxu0
        %v5339 = vadd.f32 %v5250, %v5338
        %5340 = vmatmul.bf16.gmra.mxu0 %v4356
        %v5341 = vpop.f32.mrf.mxu0
        %v5342 = vadd.f32 %v5253, %v5341
        %v5343 = vpop.f32.mrf.mxu0
        %v5344 = vadd.f32 %v5255, %v5343
        %5345 = vmatmul.bf16.gmra.mxu0 %v4365
        %v5346 = vpop.f32.mrf.mxu0
        %v5347 = vadd.f32 %v5258, %v5346
        %v5348 = vpop.f32.mrf.mxu0
        %v5349 = vadd.f32 %v5260, %v5348
        %5350 = vmatmul.bf16.gmra.mxu0 %v4374
        %v5351 = vpop.f32.mrf.mxu0
        %v5352 = vadd.f32 %v5263, %v5351
        %v5353 = vpop.f32.mrf.mxu0
        %v5354 = vadd.f32 %v5265, %v5353
        %5355 = vmatmul.bf16.gmra.mxu0 %v4383
        %v5356 = vpop.f32.mrf.mxu0
        %v5357 = vadd.f32 %v5268, %v5356
        %v5358 = vpop.f32.mrf.mxu0
        %v5359 = vadd.f32 %v5270, %v5358
        %5360 = vmatmul.bf16.gmra.mxu0 %v4392
        %v5361 = vpop.f32.mrf.mxu0
        %v5362 = vadd.f32 %v5273, %v5361
        %v5363 = vpop.f32.mrf.mxu0
        %v5364 = vadd.f32 %v5275, %v5363
        %5365 = vmatmul.bf16.gmra.mxu0 %v4401
        %v5366 = vpop.f32.mrf.mxu0
        %v5367 = vadd.f32 %v5278, %v5366
        %v5368 = vpop.f32.mrf.mxu0
        %v5369 = vadd.f32 %v5280, %v5368
        %5370 = vmatmul.bf16.gmra.mxu0 %v4410
        %v5371 = vpop.f32.mrf.mxu0
        %v5372 = vadd.f32 %v5283, %v5371
        %v5373 = vpop.f32.mrf.mxu0
        %v5374 = vadd.f32 %v5285, %v5373
        %5375 = vmatmul.bf16.gmra.mxu0 %v4419
        %v5376 = vpop.f32.mrf.mxu0
        %v5377 = vadd.f32 %v5288, %v5376
        %v5378 = vpop.f32.mrf.mxu0
        %v5379 = vadd.f32 %v5290, %v5378
        %5380 = vmatmul.bf16.gmra.mxu0 %v4428
        %v5381 = vpop.f32.mrf.mxu0
        %v5382 = vadd.f32 %v5293, %v5381
        %v5383 = vpop.f32.mrf.mxu0
        %v5384 = vadd.f32 %v5295, %v5383
        %5385 = vmatmul.bf16.gmra.mxu0 %v4437
        %v5386 = vpop.f32.mrf.mxu0
        %v5387 = vadd.f32 %v5298, %v5386
        %v5388 = vpop.f32.mrf.mxu0
        %v5389 = vadd.f32 %v5300, %v5388
        %5390 = vmatmul.bf16.gmra.mxu0 %v4446
        %v5391 = vpop.f32.mrf.mxu0
        %v5392 = vadd.f32 %v5303, %v5391
        %v5393 = vpop.f32.mrf.mxu0
        %v5394 = vadd.f32 %v5305, %v5393
        %5395 = vmatmul.bf16.gmra.mxu0 %v4455
        %v5396 = vpop.f32.mrf.mxu0
        %v5397 = vadd.f32 %v5308, %v5396
        %v5398 = vpop.f32.mrf.mxu0
        %v5399 = vadd.f32 %v5310, %v5398
        %5400 = vmatmul.bf16.gmra.mxu0 %v4464
        %v5401 = vpop.f32.mrf.mxu0
        %v5402 = vadd.f32 %v5313, %v5401
        %v5403 = vpop.f32.mrf.mxu0
        %v5404 = vadd.f32 %v5315, %v5403
        %5405 = vmatmul.bf16.gmra.mxu0 %v4473
        %v5406 = vpop.f32.mrf.mxu0
        %v5407 = vadd.f32 %v5318, %v5406
        %v5408 = vpop.f32.mrf.mxu0
        %v5409 = vadd.f32 %v5320, %v5408
        %5410 = vdwg.mxu0
        %5411 = vmatpush.bf16.msra.mxu0 %v4950
        %5412 = vmatpush.bf16.msra.mxu0 %v4949
        %5413 = vmatpush.bf16.msra.mxu0 %v4948
        %5414 = vmatpush.bf16.msra.mxu0 %v4947
        %5415 = vmatpush.bf16.msra.mxu0 %v4946
        %5416 = vmatpush.bf16.msra.mxu0 %v4945
        %5417 = vmatpush.bf16.msra.mxu0 %v4944
        %5418 = vmatpush.bf16.msra.mxu0 %v4943
        %5419 = vmatmul.bf16.gmra.mxu0 %v4339
        %v5420 = vpop.f32.mrf.mxu0
        %v5421 = vadd.f32 %v5332, %v5420
        %v5422 = vpop.f32.mrf.mxu0
        %v5423 = vadd.f32 %v5334, %v5422
        %5424 = vmatmul.bf16.gmra.mxu0 %v4348
        %v5425 = vpop.f32.mrf.mxu0
        %v5426 = vadd.f32 %v5337, %v5425
        %v5427 = vpop.f32.mrf.mxu0
        %v5428 = vadd.f32 %v5339, %v5427
        %5429 = vmatmul.bf16.gmra.mxu0 %v4357
        %v5430 = vpop.f32.mrf.mxu0
        %v5431 = vadd.f32 %v5342, %v5430
        %v5432 = vpop.f32.mrf.mxu0
        %v5433 = vadd.f32 %v5344, %v5432
        %5434 = vmatmul.bf16.gmra.mxu0 %v4366
        %v5435 = vpop.f32.mrf.mxu0
        %v5436 = vadd.f32 %v5347, %v5435
        %v5437 = vpop.f32.mrf.mxu0
        %v5438 = vadd.f32 %v5349, %v5437
        %5439 = vmatmul.bf16.gmra.mxu0 %v4375
        %v5440 = vpop.f32.mrf.mxu0
        %v5441 = vadd.f32 %v5352, %v5440
        %v5442 = vpop.f32.mrf.mxu0
        %v5443 = vadd.f32 %v5354, %v5442
        %5444 = vmatmul.bf16.gmra.mxu0 %v4384
        %v5445 = vpop.f32.mrf.mxu0
        %v5446 = vadd.f32 %v5357, %v5445
        %v5447 = vpop.f32.mrf.mxu0
        %v5448 = vadd.f32 %v5359, %v5447
        %5449 = vmatmul.bf16.gmra.mxu0 %v4393
        %v5450 = vpop.f32.mrf.mxu0
        %v5451 = vadd.f32 %v5362, %v5450
        %v5452 = vpop.f32.mrf.mxu0
        %v5453 = vadd.f32 %v5364, %v5452
        %5454 = vmatmul.bf16.gmra.mxu0 %v4402
        %v5455 = vpop.f32.mrf.mxu0
        %v5456 = vadd.f32 %v5367, %v5455
        %v5457 = vpop.f32.mrf.mxu0
        %v5458 = vadd.f32 %v5369, %v5457
        %5459 = vmatmul.bf16.gmra.mxu0 %v4411
        %v5460 = vpop.f32.mrf.mxu0
        %v5461 = vadd.f32 %v5372, %v5460
        %v5462 = vpop.f32.mrf.mxu0
        %v5463 = vadd.f32 %v5374, %v5462
        %5464 = vmatmul.bf16.gmra.mxu0 %v4420
        %v5465 = vpop.f32.mrf.mxu0
        %v5466 = vadd.f32 %v5377, %v5465
        %v5467 = vpop.f32.mrf.mxu0
        %v5468 = vadd.f32 %v5379, %v5467
        %5469 = vmatmul.bf16.gmra.mxu0 %v4429
        %v5470 = vpop.f32.mrf.mxu0
        %v5471 = vadd.f32 %v5382, %v5470
        %v5472 = vpop.f32.mrf.mxu0
        %v5473 = vadd.f32 %v5384, %v5472
        %5474 = vmatmul.bf16.gmra.mxu0 %v4438
        %v5475 = vpop.f32.mrf.mxu0
        %v5476 = vadd.f32 %v5387, %v5475
        %v5477 = vpop.f32.mrf.mxu0
        %v5478 = vadd.f32 %v5389, %v5477
        %5479 = vmatmul.bf16.gmra.mxu0 %v4447
        %v5480 = vpop.f32.mrf.mxu0
        %v5481 = vadd.f32 %v5392, %v5480
        %v5482 = vpop.f32.mrf.mxu0
        %v5483 = vadd.f32 %v5394, %v5482
        %5484 = vmatmul.bf16.gmra.mxu0 %v4456
        %v5485 = vpop.f32.mrf.mxu0
        %v5486 = vadd.f32 %v5397, %v5485
        %v5487 = vpop.f32.mrf.mxu0
        %v5488 = vadd.f32 %v5399, %v5487
        %5489 = vmatmul.bf16.gmra.mxu0 %v4465
        %v5490 = vpop.f32.mrf.mxu0
        %v5491 = vadd.f32 %v5402, %v5490
        %v5492 = vpop.f32.mrf.mxu0
        %v5493 = vadd.f32 %v5404, %v5492
        %5494 = vmatmul.bf16.gmra.mxu0 %v4474
        %v5495 = vpop.f32.mrf.mxu0
        %v5496 = vadd.f32 %v5407, %v5495
        %v5497 = vpop.f32.mrf.mxu0
        %v5498 = vadd.f32 %v5409, %v5497
        %5499 = vdwg.mxu0
        %5500 = vmatpush.bf16.msra.mxu0 %v4958
        %5501 = vmatpush.bf16.msra.mxu0 %v4957
        %5502 = vmatpush.bf16.msra.mxu0 %v4956
        %5503 = vmatpush.bf16.msra.mxu0 %v4955
        %5504 = vmatpush.bf16.msra.mxu0 %v4954
        %5505 = vmatpush.bf16.msra.mxu0 %v4953
        %5506 = vmatpush.bf16.msra.mxu0 %v4952
        %5507 = vmatpush.bf16.msra.mxu0 %v4951
        %5508 = vmatmul.bf16.gmra.mxu0 %v4340
        %v5509 = vpop.f32.mrf.mxu0
        %v5510 = vadd.f32 %v5421, %v5509
        %v5511 = vpop.f32.mrf.mxu0
        %v5512 = vadd.f32 %v5423, %v5511
        %5513 = vmatmul.bf16.gmra.mxu0 %v4349
        %v5514 = vpop.f32.mrf.mxu0
        %v5515 = vadd.f32 %v5426, %v5514
        %v5516 = vpop.f32.mrf.mxu0
        %v5517 = vadd.f32 %v5428, %v5516
        %5518 = vmatmul.bf16.gmra.mxu0 %v4358
        %v5519 = vpop.f32.mrf.mxu0
        %v5520 = vadd.f32 %v5431, %v5519
        %v5521 = vpop.f32.mrf.mxu0
        %v5522 = vadd.f32 %v5433, %v5521
        %5523 = vmatmul.bf16.gmra.mxu0 %v4367
        %v5524 = vpop.f32.mrf.mxu0
        %v5525 = vadd.f32 %v5436, %v5524
        %v5526 = vpop.f32.mrf.mxu0
        %v5527 = vadd.f32 %v5438, %v5526
        %5528 = vmatmul.bf16.gmra.mxu0 %v4376
        %v5529 = vpop.f32.mrf.mxu0
        %v5530 = vadd.f32 %v5441, %v5529
        %v5531 = vpop.f32.mrf.mxu0
        %v5532 = vadd.f32 %v5443, %v5531
        %5533 = vmatmul.bf16.gmra.mxu0 %v4385
        %v5534 = vpop.f32.mrf.mxu0
        %v5535 = vadd.f32 %v5446, %v5534
        %v5536 = vpop.f32.mrf.mxu0
        %v5537 = vadd.f32 %v5448, %v5536
        %5538 = vmatmul.bf16.gmra.mxu0 %v4394
        %v5539 = vpop.f32.mrf.mxu0
        %v5540 = vadd.f32 %v5451, %v5539
        %v5541 = vpop.f32.mrf.mxu0
        %v5542 = vadd.f32 %v5453, %v5541
        %5543 = vmatmul.bf16.gmra.mxu0 %v4403
        %v5544 = vpop.f32.mrf.mxu0
        %v5545 = vadd.f32 %v5456, %v5544
        %v5546 = vpop.f32.mrf.mxu0
        %v5547 = vadd.f32 %v5458, %v5546
        %5548 = vmatmul.bf16.gmra.mxu0 %v4412
        %v5549 = vpop.f32.mrf.mxu0
        %v5550 = vadd.f32 %v5461, %v5549
        %v5551 = vpop.f32.mrf.mxu0
        %v5552 = vadd.f32 %v5463, %v5551
        %5553 = vmatmul.bf16.gmra.mxu0 %v4421
        %v5554 = vpop.f32.mrf.mxu0
        %v5555 = vadd.f32 %v5466, %v5554
        %v5556 = vpop.f32.mrf.mxu0
        %v5557 = vadd.f32 %v5468, %v5556
        %5558 = vmatmul.bf16.gmra.mxu0 %v4430
        %v5559 = vpop.f32.mrf.mxu0
        %v5560 = vadd.f32 %v5471, %v5559
        %v5561 = vpop.f32.mrf.mxu0
        %v5562 = vadd.f32 %v5473, %v5561
        %5563 = vmatmul.bf16.gmra.mxu0 %v4439
        %v5564 = vpop.f32.mrf.mxu0
        %v5565 = vadd.f32 %v5476, %v5564
        %v5566 = vpop.f32.mrf.mxu0
        %v5567 = vadd.f32 %v5478, %v5566
        %5568 = vmatmul.bf16.gmra.mxu0 %v4448
        %v5569 = vpop.f32.mrf.mxu0
        %v5570 = vadd.f32 %v5481, %v5569
        %v5571 = vpop.f32.mrf.mxu0
        %v5572 = vadd.f32 %v5483, %v5571
        %5573 = vmatmul.bf16.gmra.mxu0 %v4457
        %v5574 = vpop.f32.mrf.mxu0
        %v5575 = vadd.f32 %v5486, %v5574
        %v5576 = vpop.f32.mrf.mxu0
        %v5577 = vadd.f32 %v5488, %v5576
        %5578 = vmatmul.bf16.gmra.mxu0 %v4466
        %v5579 = vpop.f32.mrf.mxu0
        %v5580 = vadd.f32 %v5491, %v5579
        %v5581 = vpop.f32.mrf.mxu0
        %v5582 = vadd.f32 %v5493, %v5581
        %5583 = vmatmul.bf16.gmra.mxu0 %v4475
        %v5584 = vpop.f32.mrf.mxu0
        %v5585 = vadd.f32 %v5496, %v5584
        %v5586 = vpop.f32.mrf.mxu0
        %v5587 = vadd.f32 %v5498, %v5586
        %5588 = vdwg.mxu0
        %5589 = vmatpush.bf16.msra.mxu0 %v4966
        %5590 = vmatpush.bf16.msra.mxu0 %v4965
        %5591 = vmatpush.bf16.msra.mxu0 %v4964
        %5592 = vmatpush.bf16.msra.mxu0 %v4963
        %5593 = vmatpush.bf16.msra.mxu0 %v4962
        %5594 = vmatpush.bf16.msra.mxu0 %v4961
        %5595 = vmatpush.bf16.msra.mxu0 %v4960
        %5596 = vmatpush.bf16.msra.mxu0 %v4959
        %5597 = vmatmul.bf16.gmra.mxu0 %v4341
        %v5598 = vpop.f32.mrf.mxu0
        %v5599 = vadd.f32 %v5510, %v5598
        %v5600 = vpop.f32.mrf.mxu0
        %v5601 = vadd.f32 %v5512, %v5600
        %5602 = vmatmul.bf16.gmra.mxu0 %v4350
        %v5603 = vpop.f32.mrf.mxu0
        %v5604 = vadd.f32 %v5515, %v5603
        %v5605 = vpop.f32.mrf.mxu0
        %v5606 = vadd.f32 %v5517, %v5605
        %5607 = vmatmul.bf16.gmra.mxu0 %v4359
        %v5608 = vpop.f32.mrf.mxu0
        %v5609 = vadd.f32 %v5520, %v5608
        %v5610 = vpop.f32.mrf.mxu0
        %v5611 = vadd.f32 %v5522, %v5610
        %5612 = vmatmul.bf16.gmra.mxu0 %v4368
        %v5613 = vpop.f32.mrf.mxu0
        %v5614 = vadd.f32 %v5525, %v5613
        %v5615 = vpop.f32.mrf.mxu0
        %v5616 = vadd.f32 %v5527, %v5615
        %5617 = vmatmul.bf16.gmra.mxu0 %v4377
        %v5618 = vpop.f32.mrf.mxu0
        %v5619 = vadd.f32 %v5530, %v5618
        %v5620 = vpop.f32.mrf.mxu0
        %v5621 = vadd.f32 %v5532, %v5620
        %5622 = vmatmul.bf16.gmra.mxu0 %v4386
        %v5623 = vpop.f32.mrf.mxu0
        %v5624 = vadd.f32 %v5535, %v5623
        %v5625 = vpop.f32.mrf.mxu0
        %v5626 = vadd.f32 %v5537, %v5625
        %5627 = vmatmul.bf16.gmra.mxu0 %v4395
        %v5628 = vpop.f32.mrf.mxu0
        %v5629 = vadd.f32 %v5540, %v5628
        %v5630 = vpop.f32.mrf.mxu0
        %v5631 = vadd.f32 %v5542, %v5630
        %5632 = vmatmul.bf16.gmra.mxu0 %v4404
        %v5633 = vpop.f32.mrf.mxu0
        %v5634 = vadd.f32 %v5545, %v5633
        %v5635 = vpop.f32.mrf.mxu0
        %v5636 = vadd.f32 %v5547, %v5635
        %5637 = vmatmul.bf16.gmra.mxu0 %v4413
        %v5638 = vpop.f32.mrf.mxu0
        %v5639 = vadd.f32 %v5550, %v5638
        %v5640 = vpop.f32.mrf.mxu0
        %v5641 = vadd.f32 %v5552, %v5640
        %5642 = vmatmul.bf16.gmra.mxu0 %v4422
        %v5643 = vpop.f32.mrf.mxu0
        %v5644 = vadd.f32 %v5555, %v5643
        %v5645 = vpop.f32.mrf.mxu0
        %v5646 = vadd.f32 %v5557, %v5645
        %5647 = vmatmul.bf16.gmra.mxu0 %v4431
        %v5648 = vpop.f32.mrf.mxu0
        %v5649 = vadd.f32 %v5560, %v5648
        %v5650 = vpop.f32.mrf.mxu0
        %v5651 = vadd.f32 %v5562, %v5650
        %5652 = vmatmul.bf16.gmra.mxu0 %v4440
        %v5653 = vpop.f32.mrf.mxu0
        %v5654 = vadd.f32 %v5565, %v5653
        %v5655 = vpop.f32.mrf.mxu0
        %v5656 = vadd.f32 %v5567, %v5655
        %5657 = vmatmul.bf16.gmra.mxu0 %v4449
        %v5658 = vpop.f32.mrf.mxu0
        %v5659 = vadd.f32 %v5570, %v5658
        %v5660 = vpop.f32.mrf.mxu0
        %v5661 = vadd.f32 %v5572, %v5660
        %5662 = vmatmul.bf16.gmra.mxu0 %v4458
        %v5663 = vpop.f32.mrf.mxu0
        %v5664 = vadd.f32 %v5575, %v5663
        %v5665 = vpop.f32.mrf.mxu0
        %v5666 = vadd.f32 %v5577, %v5665
        %5667 = vmatmul.bf16.gmra.mxu0 %v4467
        %v5668 = vpop.f32.mrf.mxu0
        %v5669 = vadd.f32 %v5580, %v5668
        %v5670 = vpop.f32.mrf.mxu0
        %v5671 = vadd.f32 %v5582, %v5670
        %5672 = vmatmul.bf16.gmra.mxu0 %v4476
        %v5673 = vpop.f32.mrf.mxu0
        %v5674 = vadd.f32 %v5585, %v5673
        %v5675 = vpop.f32.mrf.mxu0
        %v5676 = vadd.f32 %v5587, %v5675
        %5677 = vdwg.mxu0
        %5678 = vmatpush.bf16.msra.mxu0 %v4974
        %5679 = vmatpush.bf16.msra.mxu0 %v4973
        %5680 = vmatpush.bf16.msra.mxu0 %v4972
        %5681 = vmatpush.bf16.msra.mxu0 %v4971
        %5682 = vmatpush.bf16.msra.mxu0 %v4970
        %5683 = vmatpush.bf16.msra.mxu0 %v4969
        %5684 = vmatpush.bf16.msra.mxu0 %v4968
        %5685 = vmatpush.bf16.msra.mxu0 %v4967
        %5686 = vmatmul.bf16.gmra.mxu0 %v4342
        %v5687 = vpop.f32.mrf.mxu0
        %v5688 = vadd.f32 %v5599, %v5687
        %v5689 = vpop.f32.mrf.mxu0
        %v5690 = vadd.f32 %v5601, %v5689
        %5691 = vmatmul.bf16.gmra.mxu0 %v4351
        %v5692 = vpop.f32.mrf.mxu0
        %v5693 = vadd.f32 %v5604, %v5692
        %v5694 = vpop.f32.mrf.mxu0
        %v5695 = vadd.f32 %v5606, %v5694
        %5696 = vmatmul.bf16.gmra.mxu0 %v4360
        %v5697 = vpop.f32.mrf.mxu0
        %v5698 = vadd.f32 %v5609, %v5697
        %v5699 = vpop.f32.mrf.mxu0
        %v5700 = vadd.f32 %v5611, %v5699
        %5701 = vmatmul.bf16.gmra.mxu0 %v4369
        %v5702 = vpop.f32.mrf.mxu0
        %v5703 = vadd.f32 %v5614, %v5702
        %v5704 = vpop.f32.mrf.mxu0
        %v5705 = vadd.f32 %v5616, %v5704
        %5706 = vmatmul.bf16.gmra.mxu0 %v4378
        %v5707 = vpop.f32.mrf.mxu0
        %v5708 = vadd.f32 %v5619, %v5707
        %v5709 = vpop.f32.mrf.mxu0
        %v5710 = vadd.f32 %v5621, %v5709
        %5711 = vmatmul.bf16.gmra.mxu0 %v4387
        %v5712 = vpop.f32.mrf.mxu0
        %v5713 = vadd.f32 %v5624, %v5712
        %v5714 = vpop.f32.mrf.mxu0
        %v5715 = vadd.f32 %v5626, %v5714
        %5716 = vmatmul.bf16.gmra.mxu0 %v4396
        %v5717 = vpop.f32.mrf.mxu0
        %v5718 = vadd.f32 %v5629, %v5717
        %v5719 = vpop.f32.mrf.mxu0
        %v5720 = vadd.f32 %v5631, %v5719
        %5721 = vmatmul.bf16.gmra.mxu0 %v4405
        %v5722 = vpop.f32.mrf.mxu0
        %v5723 = vadd.f32 %v5634, %v5722
        %v5724 = vpop.f32.mrf.mxu0
        %v5725 = vadd.f32 %v5636, %v5724
        %5726 = vmatmul.bf16.gmra.mxu0 %v4414
        %v5727 = vpop.f32.mrf.mxu0
        %v5728 = vadd.f32 %v5639, %v5727
        %v5729 = vpop.f32.mrf.mxu0
        %v5730 = vadd.f32 %v5641, %v5729
        %5731 = vmatmul.bf16.gmra.mxu0 %v4423
        %v5732 = vpop.f32.mrf.mxu0
        %v5733 = vadd.f32 %v5644, %v5732
        %v5734 = vpop.f32.mrf.mxu0
        %v5735 = vadd.f32 %v5646, %v5734
        %5736 = vmatmul.bf16.gmra.mxu0 %v4432
        %v5737 = vpop.f32.mrf.mxu0
        %v5738 = vadd.f32 %v5649, %v5737
        %v5739 = vpop.f32.mrf.mxu0
        %v5740 = vadd.f32 %v5651, %v5739
        %5741 = vmatmul.bf16.gmra.mxu0 %v4441
        %v5742 = vpop.f32.mrf.mxu0
        %v5743 = vadd.f32 %v5654, %v5742
        %v5744 = vpop.f32.mrf.mxu0
        %v5745 = vadd.f32 %v5656, %v5744
        %5746 = vmatmul.bf16.gmra.mxu0 %v4450
        %v5747 = vpop.f32.mrf.mxu0
        %v5748 = vadd.f32 %v5659, %v5747
        %v5749 = vpop.f32.mrf.mxu0
        %v5750 = vadd.f32 %v5661, %v5749
        %5751 = vmatmul.bf16.gmra.mxu0 %v4459
        %v5752 = vpop.f32.mrf.mxu0
        %v5753 = vadd.f32 %v5664, %v5752
        %v5754 = vpop.f32.mrf.mxu0
        %v5755 = vadd.f32 %v5666, %v5754
        %5756 = vmatmul.bf16.gmra.mxu0 %v4468
        %v5757 = vpop.f32.mrf.mxu0
        %v5758 = vadd.f32 %v5669, %v5757
        %v5759 = vpop.f32.mrf.mxu0
        %v5760 = vadd.f32 %v5671, %v5759
        %5761 = vmatmul.bf16.gmra.mxu0 %v4477
        %v5762 = vpop.f32.mrf.mxu0
        %v5763 = vadd.f32 %v5674, %v5762
        %v5764 = vpop.f32.mrf.mxu0
        %v5765 = vadd.f32 %v5676, %v5764
        %5766 = vdwg.mxu0
        %5767 = vmatpush.bf16.msra.mxu0 %v4982
        %5768 = vmatpush.bf16.msra.mxu0 %v4981
        %5769 = vmatpush.bf16.msra.mxu0 %v4980
        %5770 = vmatpush.bf16.msra.mxu0 %v4979
        %5771 = vmatpush.bf16.msra.mxu0 %v4978
        %5772 = vmatpush.bf16.msra.mxu0 %v4977
        %5773 = vmatpush.bf16.msra.mxu0 %v4976
        %5774 = vmatpush.bf16.msra.mxu0 %v4975
        %5775 = vmatmul.bf16.gmra.mxu0 %v4343
        %v5776 = vpop.f32.mrf.mxu0
        %v5777 = vadd.f32 %v5688, %v5776
        %v5778 = vpop.f32.mrf.mxu0
        %v5779 = vadd.f32 %v5690, %v5778
        %5780 = vmatmul.bf16.gmra.mxu0 %v4352
        %v5781 = vpop.f32.mrf.mxu0
        %v5782 = vadd.f32 %v5693, %v5781
        %v5783 = vpop.f32.mrf.mxu0
        %v5784 = vadd.f32 %v5695, %v5783
        %5785 = vmatmul.bf16.gmra.mxu0 %v4361
        %v5786 = vpop.f32.mrf.mxu0
        %v5787 = vadd.f32 %v5698, %v5786
        %v5788 = vpop.f32.mrf.mxu0
        %v5789 = vadd.f32 %v5700, %v5788
        %5790 = vmatmul.bf16.gmra.mxu0 %v4370
        %v5791 = vpop.f32.mrf.mxu0
        %v5792 = vadd.f32 %v5703, %v5791
        %v5793 = vpop.f32.mrf.mxu0
        %v5794 = vadd.f32 %v5705, %v5793
        %5795 = vmatmul.bf16.gmra.mxu0 %v4379
        %v5796 = vpop.f32.mrf.mxu0
        %v5797 = vadd.f32 %v5708, %v5796
        %v5798 = vpop.f32.mrf.mxu0
        %v5799 = vadd.f32 %v5710, %v5798
        %5800 = vmatmul.bf16.gmra.mxu0 %v4388
        %v5801 = vpop.f32.mrf.mxu0
        %v5802 = vadd.f32 %v5713, %v5801
        %v5803 = vpop.f32.mrf.mxu0
        %v5804 = vadd.f32 %v5715, %v5803
        %5805 = vmatmul.bf16.gmra.mxu0 %v4397
        %v5806 = vpop.f32.mrf.mxu0
        %v5807 = vadd.f32 %v5718, %v5806
        %v5808 = vpop.f32.mrf.mxu0
        %v5809 = vadd.f32 %v5720, %v5808
        %5810 = vmatmul.bf16.gmra.mxu0 %v4406
        %v5811 = vpop.f32.mrf.mxu0
        %v5812 = vadd.f32 %v5723, %v5811
        %v5813 = vpop.f32.mrf.mxu0
        %v5814 = vadd.f32 %v5725, %v5813
        %5815 = vmatmul.bf16.gmra.mxu0 %v4415
        %v5816 = vpop.f32.mrf.mxu0
        %v5817 = vadd.f32 %v5728, %v5816
        %v5818 = vpop.f32.mrf.mxu0
        %v5819 = vadd.f32 %v5730, %v5818
        %5820 = vmatmul.bf16.gmra.mxu0 %v4424
        %v5821 = vpop.f32.mrf.mxu0
        %v5822 = vadd.f32 %v5733, %v5821
        %v5823 = vpop.f32.mrf.mxu0
        %v5824 = vadd.f32 %v5735, %v5823
        %5825 = vmatmul.bf16.gmra.mxu0 %v4433
        %v5826 = vpop.f32.mrf.mxu0
        %v5827 = vadd.f32 %v5738, %v5826
        %v5828 = vpop.f32.mrf.mxu0
        %v5829 = vadd.f32 %v5740, %v5828
        %5830 = vmatmul.bf16.gmra.mxu0 %v4442
        %v5831 = vpop.f32.mrf.mxu0
        %v5832 = vadd.f32 %v5743, %v5831
        %v5833 = vpop.f32.mrf.mxu0
        %v5834 = vadd.f32 %v5745, %v5833
        %5835 = vmatmul.bf16.gmra.mxu0 %v4451
        %v5836 = vpop.f32.mrf.mxu0
        %v5837 = vadd.f32 %v5748, %v5836
        %v5838 = vpop.f32.mrf.mxu0
        %v5839 = vadd.f32 %v5750, %v5838
        %5840 = vmatmul.bf16.gmra.mxu0 %v4460
        %v5841 = vpop.f32.mrf.mxu0
        %v5842 = vadd.f32 %v5753, %v5841
        %v5843 = vpop.f32.mrf.mxu0
        %v5844 = vadd.f32 %v5755, %v5843
        %5845 = vmatmul.bf16.gmra.mxu0 %v4469
        %v5846 = vpop.f32.mrf.mxu0
        %v5847 = vadd.f32 %v5758, %v5846
        %v5848 = vpop.f32.mrf.mxu0
        %v5849 = vadd.f32 %v5760, %v5848
        %5850 = vmatmul.bf16.gmra.mxu0 %v4478
        %v5851 = vpop.f32.mrf.mxu0
        %v5852 = vadd.f32 %v5763, %v5851
        %v5853 = vpop.f32.mrf.mxu0
        %v5854 = vadd.f32 %v5765, %v5853
        %5855 = vdwg.mxu0
        %v5856 = vld [vmem:[%s4] sm:$0x1]
        %v5858 = vperm.slane %v5856, 0
        %v5860 = vmul.f32 %v5777, %v5858
        %v5861 = vmul.f32 %v5779, %v5858
        %v5862 = vmul.f32 %v5782, %v5858
        %v5863 = vmul.f32 %v5784, %v5858
        %v5864 = vmul.f32 %v5787, %v5858
        %v5865 = vmul.f32 %v5789, %v5858
        %v5866 = vmul.f32 %v5792, %v5858
        %v5867 = vmul.f32 %v5794, %v5858
        %v5868 = vmul.f32 %v5797, %v5858
        %v5869 = vmul.f32 %v5799, %v5858
        %v5870 = vmul.f32 %v5802, %v5858
        %v5871 = vmul.f32 %v5804, %v5858
        %v5872 = vmul.f32 %v5807, %v5858
        %v5873 = vmul.f32 %v5809, %v5858
        %v5874 = vmul.f32 %v5812, %v5858
        %v5875 = vmul.f32 %v5814, %v5858
        %v5876 = vmul.f32 %v5817, %v5858
        %v5877 = vmul.f32 %v5819, %v5858
        %v5878 = vmul.f32 %v5822, %v5858
        %v5879 = vmul.f32 %v5824, %v5858
        %v5880 = vmul.f32 %v5827, %v5858
        %v5881 = vmul.f32 %v5829, %v5858
        %v5882 = vmul.f32 %v5832, %v5858
        %v5883 = vmul.f32 %v5834, %v5858
        %v5884 = vmul.f32 %v5837, %v5858
        %v5885 = vmul.f32 %v5839, %v5858
        %v5886 = vmul.f32 %v5842, %v5858
        %v5887 = vmul.f32 %v5844, %v5858
        %v5888 = vmul.f32 %v5847, %v5858
        %v5889 = vmul.f32 %v5849, %v5858
        %v5890 = vmul.f32 %v5852, %v5858
        %v5891 = vmul.f32 %v5854, %v5858
        %v5892 = vld [vmem:[%s5] sm:$0x1]
        %v5894 = vperm.slane %v5892, 0
        %v5896 = vadd.f32 %v5860, %v5894
        %v5897 = vadd.f32 %v5861, %v5894
        %v5898 = vadd.f32 %v5862, %v5894
        %v5899 = vadd.f32 %v5863, %v5894
        %v5900 = vadd.f32 %v5864, %v5894
        %v5901 = vadd.f32 %v5865, %v5894
        %v5902 = vadd.f32 %v5866, %v5894
        %v5903 = vadd.f32 %v5867, %v5894
        %v5904 = vadd.f32 %v5868, %v5894
        %v5905 = vadd.f32 %v5869, %v5894
        %v5906 = vadd.f32 %v5870, %v5894
        %v5907 = vadd.f32 %v5871, %v5894
        %v5908 = vadd.f32 %v5872, %v5894
        %v5909 = vadd.f32 %v5873, %v5894
        %v5910 = vadd.f32 %v5874, %v5894
        %v5911 = vadd.f32 %v5875, %v5894
        %v5912 = vadd.f32 %v5876, %v5894
        %v5913 = vadd.f32 %v5877, %v5894
        %v5914 = vadd.f32 %v5878, %v5894
        %v5915 = vadd.f32 %v5879, %v5894
        %v5916 = vadd.f32 %v5880, %v5894
        %v5917 = vadd.f32 %v5881, %v5894
        %v5918 = vadd.f32 %v5882, %v5894
        %v5919 = vadd.f32 %v5883, %v5894
        %v5920 = vadd.f32 %v5884, %v5894
        %v5921 = vadd.f32 %v5885, %v5894
        %v5922 = vadd.f32 %v5886, %v5894
        %v5923 = vadd.f32 %v5887, %v5894
        %v5924 = vadd.f32 %v5888, %v5894
        %v5925 = vadd.f32 %v5889, %v5894
        %v5926 = vadd.f32 %v5890, %v5894
        %v5927 = vadd.f32 %v5891, %v5894
        %v5928 = vmax.f32 %v5896, 0.0
        %v5929 = vmax.f32 %v5897, 0.0
        %v5930 = vmax.f32 %v5898, 0.0
        %v5931 = vmax.f32 %v5899, 0.0
        %v5932 = vmax.f32 %v5900, 0.0
        %v5933 = vmax.f32 %v5901, 0.0
        %v5934 = vmax.f32 %v5902, 0.0
        %v5935 = vmax.f32 %v5903, 0.0
        %v5936 = vmax.f32 %v5904, 0.0
        %v5937 = vmax.f32 %v5905, 0.0
        %v5938 = vmax.f32 %v5906, 0.0
        %v5939 = vmax.f32 %v5907, 0.0
        %v5940 = vmax.f32 %v5908, 0.0
        %v5941 = vmax.f32 %v5909, 0.0
        %v5942 = vmax.f32 %v5910, 0.0
        %v5943 = vmax.f32 %v5911, 0.0
        %v5944 = vmax.f32 %v5912, 0.0
        %v5945 = vmax.f32 %v5913, 0.0
        %v5946 = vmax.f32 %v5914, 0.0
        %v5947 = vmax.f32 %v5915, 0.0
        %v5948 = vmax.f32 %v5916, 0.0
        %v5949 = vmax.f32 %v5917, 0.0
        %v5950 = vmax.f32 %v5918, 0.0
        %v5951 = vmax.f32 %v5919, 0.0
        %v5952 = vmax.f32 %v5920, 0.0
        %v5953 = vmax.f32 %v5921, 0.0
        %v5954 = vmax.f32 %v5922, 0.0
        %v5955 = vmax.f32 %v5923, 0.0
        %v5956 = vmax.f32 %v5924, 0.0
        %v5957 = vmax.f32 %v5925, 0.0
        %v5958 = vmax.f32 %v5926, 0.0
        %v5959 = vmax.f32 %v5927, 0.0
        %v5960 = vpack.c.bf16 %v5928, %v5928
        %v5961 = vpack.c.bf16 %v5929, %v5929
        %v5962 = vpack.c.bf16 %v5930, %v5930
        %v5963 = vpack.c.bf16 %v5931, %v5931
        %v5964 = vpack.c.bf16 %v5932, %v5932
        %v5965 = vpack.c.bf16 %v5933, %v5933
        %v5966 = vpack.c.bf16 %v5934, %v5934
        %v5967 = vpack.c.bf16 %v5935, %v5935
        %v5968 = vpack.c.bf16 %v5936, %v5936
        %v5969 = vpack.c.bf16 %v5937, %v5937
        %v5970 = vpack.c.bf16 %v5938, %v5938
        %v5971 = vpack.c.bf16 %v5939, %v5939
        %v5972 = vpack.c.bf16 %v5940, %v5940
        %v5973 = vpack.c.bf16 %v5941, %v5941
        %v5974 = vpack.c.bf16 %v5942, %v5942
        %v5975 = vpack.c.bf16 %v5943, %v5943
        %v5976 = vpack.c.bf16 %v5944, %v5944
        %v5977 = vpack.c.bf16 %v5945, %v5945
        %v5978 = vpack.c.bf16 %v5946, %v5946
        %v5979 = vpack.c.bf16 %v5947, %v5947
        %v5980 = vpack.c.bf16 %v5948, %v5948
        %v5981 = vpack.c.bf16 %v5949, %v5949
        %v5982 = vpack.c.bf16 %v5950, %v5950
        %v5983 = vpack.c.bf16 %v5951, %v5951
        %v5984 = vpack.c.bf16 %v5952, %v5952
        %v5985 = vpack.c.bf16 %v5953, %v5953
        %v5986 = vpack.c.bf16 %v5954, %v5954
        %v5987 = vpack.c.bf16 %v5955, %v5955
        %v5988 = vpack.c.bf16 %v5956, %v5956
        %v5989 = vpack.c.bf16 %v5957, %v5957
        %v5990 = vpack.c.bf16 %v5958, %v5958
        %v5991 = vpack.c.bf16 %v5959, %v5959
        %v5993 = vshrl.u32 %v5960, 16
        %v5995 = vrot.slane %v5993, 7
        %v5996 = vshll.u32 %v5960, 16
        %v5998 = vor.u32 %v5995, %v5996
        %v5999 = vrot.slane %v5995, 4
        %v6001 = vshrl.u32 %v5961, 16
        %v6003 = vrot.slane %v6001, 7
        %v6004 = vshll.u32 %v5961, 16
        %v6006 = vor.u32 %v6003, %v6004
        %v6007 = vsel %vm641, %v5999, %v6006
        %v6008 = vrot.slane %v6003, 4
        %v6010 = vshrl.u32 %v5962, 16
        %v6012 = vrot.slane %v6010, 7
        %v6013 = vshll.u32 %v5962, 16
        %v6015 = vor.u32 %v6012, %v6013
        %v6016 = vrot.slane %v6012, 4
        %v6018 = vshrl.u32 %v5963, 16
        %v6020 = vrot.slane %v6018, 7
        %v6021 = vshll.u32 %v5963, 16
        %v6023 = vor.u32 %v6020, %v6021
        %v6024 = vsel %vm641, %v6016, %v6023
        %v6025 = vrot.slane %v6020, 4
        %v6027 = vshrl.u32 %v5964, 16
        %v6029 = vrot.slane %v6027, 7
        %v6030 = vshll.u32 %v5964, 16
        %v6032 = vor.u32 %v6029, %v6030
        %v6033 = vrot.slane %v6029, 4
        %v6035 = vshrl.u32 %v5965, 16
        %v6037 = vrot.slane %v6035, 7
        %v6038 = vshll.u32 %v5965, 16
        %v6040 = vor.u32 %v6037, %v6038
        %v6041 = vsel %vm641, %v6033, %v6040
        %v6042 = vrot.slane %v6037, 4
        %v6044 = vshrl.u32 %v5966, 16
        %v6046 = vrot.slane %v6044, 7
        %v6047 = vshll.u32 %v5966, 16
        %v6049 = vor.u32 %v6046, %v6047
        %v6050 = vrot.slane %v6046, 4
        %v6052 = vshrl.u32 %v5967, 16
        %v6054 = vrot.slane %v6052, 7
        %v6055 = vshll.u32 %v5967, 16
        %v6057 = vor.u32 %v6054, %v6055
        %v6058 = vsel %vm641, %v6050, %v6057
        %v6059 = vrot.slane %v6054, 4
        %v6061 = vshrl.u32 %v5968, 16
        %v6063 = vrot.slane %v6061, 7
        %v6064 = vshll.u32 %v5968, 16
        %v6066 = vor.u32 %v6063, %v6064
        %v6067 = vrot.slane %v6063, 4
        %v6069 = vshrl.u32 %v5969, 16
        %v6071 = vrot.slane %v6069, 7
        %v6072 = vshll.u32 %v5969, 16
        %v6074 = vor.u32 %v6071, %v6072
        %v6075 = vsel %vm641, %v6067, %v6074
        %v6076 = vrot.slane %v6071, 4
        %v6078 = vshrl.u32 %v5970, 16
        %v6080 = vrot.slane %v6078, 7
        %v6081 = vshll.u32 %v5970, 16
        %v6083 = vor.u32 %v6080, %v6081
        %v6084 = vrot.slane %v6080, 4
        %v6086 = vshrl.u32 %v5971, 16
        %v6088 = vrot.slane %v6086, 7
        %v6089 = vshll.u32 %v5971, 16
        %v6091 = vor.u32 %v6088, %v6089
        %v6092 = vsel %vm641, %v6084, %v6091
        %v6093 = vrot.slane %v6088, 4
        %v6095 = vshrl.u32 %v5972, 16
        %v6097 = vrot.slane %v6095, 7
        %v6098 = vshll.u32 %v5972, 16
        %v6100 = vor.u32 %v6097, %v6098
        %v6101 = vrot.slane %v6097, 4
        %v6103 = vshrl.u32 %v5973, 16
        %v6105 = vrot.slane %v6103, 7
        %v6106 = vshll.u32 %v5973, 16
        %v6108 = vor.u32 %v6105, %v6106
        %v6109 = vsel %vm641, %v6101, %v6108
        %v6110 = vrot.slane %v6105, 4
        %v6112 = vshrl.u32 %v5974, 16
        %v6114 = vrot.slane %v6112, 7
        %v6115 = vshll.u32 %v5974, 16
        %v6117 = vor.u32 %v6114, %v6115
        %v6118 = vrot.slane %v6114, 4
        %v6120 = vshrl.u32 %v5975, 16
        %v6122 = vrot.slane %v6120, 7
        %v6123 = vshll.u32 %v5975, 16
        %v6125 = vor.u32 %v6122, %v6123
        %v6126 = vsel %vm641, %v6118, %v6125
        %v6127 = vrot.slane %v6122, 4
        %v6129 = vshrl.u32 %v5976, 16
        %v6131 = vrot.slane %v6129, 7
        %v6132 = vshll.u32 %v5976, 16
        %v6134 = vor.u32 %v6131, %v6132
        %v6135 = vrot.slane %v6131, 4
        %v6137 = vshrl.u32 %v5977, 16
        %v6139 = vrot.slane %v6137, 7
        %v6140 = vshll.u32 %v5977, 16
        %v6142 = vor.u32 %v6139, %v6140
        %v6143 = vsel %vm641, %v6135, %v6142
        %v6144 = vrot.slane %v6139, 4
        %v6146 = vshrl.u32 %v5978, 16
        %v6148 = vrot.slane %v6146, 7
        %v6149 = vshll.u32 %v5978, 16
        %v6151 = vor.u32 %v6148, %v6149
        %v6152 = vrot.slane %v6148, 4
        %v6154 = vshrl.u32 %v5979, 16
        %v6156 = vrot.slane %v6154, 7
        %v6157 = vshll.u32 %v5979, 16
        %v6159 = vor.u32 %v6156, %v6157
        %v6160 = vsel %vm641, %v6152, %v6159
        %v6161 = vrot.slane %v6156, 4
        %v6163 = vshrl.u32 %v5980, 16
        %v6165 = vrot.slane %v6163, 7
        %v6166 = vshll.u32 %v5980, 16
        %v6168 = vor.u32 %v6165, %v6166
        %v6169 = vrot.slane %v6165, 4
        %v6171 = vshrl.u32 %v5981, 16
        %v6173 = vrot.slane %v6171, 7
        %v6174 = vshll.u32 %v5981, 16
        %v6176 = vor.u32 %v6173, %v6174
        %v6177 = vsel %vm641, %v6169, %v6176
        %v6178 = vrot.slane %v6173, 4
        %v6180 = vshrl.u32 %v5982, 16
        %v6182 = vrot.slane %v6180, 7
        %v6183 = vshll.u32 %v5982, 16
        %v6185 = vor.u32 %v6182, %v6183
        %v6186 = vrot.slane %v6182, 4
        %v6188 = vshrl.u32 %v5983, 16
        %v6190 = vrot.slane %v6188, 7
        %v6191 = vshll.u32 %v5983, 16
        %v6193 = vor.u32 %v6190, %v6191
        %v6194 = vsel %vm641, %v6186, %v6193
        %v6195 = vrot.slane %v6190, 4
        %v6197 = vshrl.u32 %v5984, 16
        %v6199 = vrot.slane %v6197, 7
        %v6200 = vshll.u32 %v5984, 16
        %v6202 = vor.u32 %v6199, %v6200
        %v6203 = vrot.slane %v6199, 4
        %v6205 = vshrl.u32 %v5985, 16
        %v6207 = vrot.slane %v6205, 7
        %v6208 = vshll.u32 %v5985, 16
        %v6210 = vor.u32 %v6207, %v6208
        %v6211 = vsel %vm641, %v6203, %v6210
        %v6212 = vrot.slane %v6207, 4
        %v6214 = vshrl.u32 %v5986, 16
        %v6216 = vrot.slane %v6214, 7
        %v6217 = vshll.u32 %v5986, 16
        %v6219 = vor.u32 %v6216, %v6217
        %v6220 = vrot.slane %v6216, 4
        %v6222 = vshrl.u32 %v5987, 16
        %v6224 = vrot.slane %v6222, 7
        %v6225 = vshll.u32 %v5987, 16
        %v6227 = vor.u32 %v6224, %v6225
        %v6228 = vsel %vm641, %v6220, %v6227
        %v6229 = vrot.slane %v6224, 4
        %v6231 = vshrl.u32 %v5988, 16
        %v6233 = vrot.slane %v6231, 7
        %v6234 = vshll.u32 %v5988, 16
        %v6236 = vor.u32 %v6233, %v6234
        %v6237 = vrot.slane %v6233, 4
        %v6239 = vshrl.u32 %v5989, 16
        %v6241 = vrot.slane %v6239, 7
        %v6242 = vshll.u32 %v5989, 16
        %v6244 = vor.u32 %v6241, %v6242
        %v6245 = vsel %vm641, %v6237, %v6244
        %v6246 = vrot.slane %v6241, 4
        %v6248 = vshrl.u32 %v5990, 16
        %v6250 = vrot.slane %v6248, 7
        %v6251 = vshll.u32 %v5990, 16
        %v6253 = vor.u32 %v6250, %v6251
        %v6254 = vrot.slane %v6250, 4
        %v6256 = vshrl.u32 %v5991, 16
        %v6258 = vrot.slane %v6256, 7
        %v6259 = vshll.u32 %v5991, 16
        %v6261 = vor.u32 %v6258, %v6259
        %v6262 = vsel %vm641, %v6254, %v6261
        %v6263 = vrot.slane %v6258, 4
        %s6312 = scalar_lea.vmem [#allocation3], 12
        %v6313 = vld [vmem:[%s6312] sm:$0xf]
        %v6314 = vsel %vm965, %v5998, %v6313
        %6315 = vst [vmem:[%s6312] sm:$0xf] %v6314
        %6316 = vst [vmem:[%s6312 + $0x4] sm:$0xf] %v6007
        %v6317 = vld [vmem:[%s6312 + $0x8] sm:$0x1]
        %v6318 = vsel %vm971, %v6008, %v6317
        %6319 = vst [vmem:[%s6312 + $0x8] sm:$0x1] %v6318
        %v6320 = vld [vmem:[%s6312 + $0xc] sm:$0xf]
        %v6321 = vsel %vm965, %v6015, %v6320
        %6322 = vst [vmem:[%s6312 + $0xc] sm:$0xf] %v6321
        %6323 = vst [vmem:[%s6312 + $0x10] sm:$0xf] %v6024
        %v6324 = vld [vmem:[%s6312 + $0x14] sm:$0x1]
        %v6325 = vsel %vm971, %v6025, %v6324
        %6326 = vst [vmem:[%s6312 + $0x14] sm:$0x1] %v6325
        %v6327 = vld [vmem:[%s6312 + $0x18] sm:$0xf]
        %v6328 = vsel %vm965, %v6032, %v6327
        %6329 = vst [vmem:[%s6312 + $0x18] sm:$0xf] %v6328
        %6330 = vst [vmem:[%s6312 + $0x1c] sm:$0xf] %v6041
        %v6331 = vld [vmem:[%s6312 + $0x20] sm:$0x1]
        %v6332 = vsel %vm971, %v6042, %v6331
        %6333 = vst [vmem:[%s6312 + $0x20] sm:$0x1] %v6332
        %v6334 = vld [vmem:[%s6312 + $0x24] sm:$0xf]
        %v6335 = vsel %vm965, %v6049, %v6334
        %6336 = vst [vmem:[%s6312 + $0x24] sm:$0xf] %v6335
        %6337 = vst [vmem:[%s6312 + $0x28] sm:$0xf] %v6058
        %v6338 = vld [vmem:[%s6312 + $0x2c] sm:$0x1]
        %v6339 = vsel %vm971, %v6059, %v6338
        %6340 = vst [vmem:[%s6312 + $0x2c] sm:$0x1] %v6339
        %v6341 = vld [vmem:[%s6312 + $0x30] sm:$0xf]
        %v6342 = vsel %vm965, %v6066, %v6341
        %6343 = vst [vmem:[%s6312 + $0x30] sm:$0xf] %v6342
        %6344 = vst [vmem:[%s6312 + $0x34] sm:$0xf] %v6075
        %v6345 = vld [vmem:[%s6312 + $0x38] sm:$0x1]
        %v6346 = vsel %vm971, %v6076, %v6345
        %6347 = vst [vmem:[%s6312 + $0x38] sm:$0x1] %v6346
        %v6348 = vld [vmem:[%s6312 + $0x3c] sm:$0xf]
        %v6349 = vsel %vm965, %v6083, %v6348
        %6350 = vst [vmem:[%s6312 + $0x3c] sm:$0xf] %v6349
        %6351 = vst [vmem:[%s6312 + $0x40] sm:$0xf] %v6092
        %v6352 = vld [vmem:[%s6312 + $0x44] sm:$0x1]
        %v6353 = vsel %vm971, %v6093, %v6352
        %6354 = vst [vmem:[%s6312 + $0x44] sm:$0x1] %v6353
        %v6355 = vld [vmem:[%s6312 + $0x48] sm:$0xf]
        %v6356 = vsel %vm965, %v6100, %v6355
        %6357 = vst [vmem:[%s6312 + $0x48] sm:$0xf] %v6356
        %6358 = vst [vmem:[%s6312 + $0x4c] sm:$0xf] %v6109
        %v6359 = vld [vmem:[%s6312 + $0x50] sm:$0x1]
        %v6360 = vsel %vm971, %v6110, %v6359
        %6361 = vst [vmem:[%s6312 + $0x50] sm:$0x1] %v6360
        %v6362 = vld [vmem:[%s6312 + $0x54] sm:$0xf]
        %v6363 = vsel %vm965, %v6117, %v6362
        %6364 = vst [vmem:[%s6312 + $0x54] sm:$0xf] %v6363
        %6365 = vst [vmem:[%s6312 + $0x58] sm:$0xf] %v6126
        %v6366 = vld [vmem:[%s6312 + $0x5c] sm:$0x1]
        %v6367 = vsel %vm971, %v6127, %v6366
        %6368 = vst [vmem:[%s6312 + $0x5c] sm:$0x1] %v6367
        %v6369 = vld [vmem:[%s6312 + $0x60] sm:$0xf]
        %v6370 = vsel %vm965, %v6134, %v6369
        %6371 = vst [vmem:[%s6312 + $0x60] sm:$0xf] %v6370
        %6372 = vst [vmem:[%s6312 + $0x64] sm:$0xf] %v6143
        %v6373 = vld [vmem:[%s6312 + $0x68] sm:$0x1]
        %v6374 = vsel %vm971, %v6144, %v6373
        %6375 = vst [vmem:[%s6312 + $0x68] sm:$0x1] %v6374
        %v6376 = vld [vmem:[%s6312 + $0x6c] sm:$0xf]
        %v6377 = vsel %vm965, %v6151, %v6376
        %6378 = vst [vmem:[%s6312 + $0x6c] sm:$0xf] %v6377
        %6379 = vst [vmem:[%s6312 + $0x70] sm:$0xf] %v6160
        %v6380 = vld [vmem:[%s6312 + $0x74] sm:$0x1]
        %v6381 = vsel %vm971, %v6161, %v6380
        %6382 = vst [vmem:[%s6312 + $0x74] sm:$0x1] %v6381
        %v6383 = vld [vmem:[%s6312 + $0x78] sm:$0xf]
        %v6384 = vsel %vm965, %v6168, %v6383
        %6385 = vst [vmem:[%s6312 + $0x78] sm:$0xf] %v6384
        %6386 = vst [vmem:[%s6312 + $0x7c] sm:$0xf] %v6177
        %v6387 = vld [vmem:[%s6312 + $0x80] sm:$0x1]
        %v6388 = vsel %vm971, %v6178, %v6387
        %6389 = vst [vmem:[%s6312 + $0x80] sm:$0x1] %v6388
        %v6390 = vld [vmem:[%s6312 + $0x84] sm:$0xf]
        %v6391 = vsel %vm965, %v6185, %v6390
        %6392 = vst [vmem:[%s6312 + $0x84] sm:$0xf] %v6391
        %6393 = vst [vmem:[%s6312 + $0x88] sm:$0xf] %v6194
        %v6394 = vld [vmem:[%s6312 + $0x8c] sm:$0x1]
        %v6395 = vsel %vm971, %v6195, %v6394
        %6396 = vst [vmem:[%s6312 + $0x8c] sm:$0x1] %v6395
        %v6397 = vld [vmem:[%s6312 + $0x90] sm:$0xf]
        %v6398 = vsel %vm965, %v6202, %v6397
        %6399 = vst [vmem:[%s6312 + $0x90] sm:$0xf] %v6398
        %6400 = vst [vmem:[%s6312 + $0x94] sm:$0xf] %v6211
        %v6401 = vld [vmem:[%s6312 + $0x98] sm:$0x1]
        %v6402 = vsel %vm971, %v6212, %v6401
        %6403 = vst [vmem:[%s6312 + $0x98] sm:$0x1] %v6402
        %v6404 = vld [vmem:[%s6312 + $0x9c] sm:$0xf]
        %v6405 = vsel %vm965, %v6219, %v6404
        %6406 = vst [vmem:[%s6312 + $0x9c] sm:$0xf] %v6405
        %6407 = vst [vmem:[%s6312 + $0xa0] sm:$0xf] %v6228
        %v6408 = vld [vmem:[%s6312 + $0xa4] sm:$0x1]
        %v6409 = vsel %vm971, %v6229, %v6408
        %6410 = vst [vmem:[%s6312 + $0xa4] sm:$0x1] %v6409
        %v6411 = vld [vmem:[%s6312 + $0xa8] sm:$0xf]
        %v6412 = vsel %vm965, %v6236, %v6411
        %6413 = vst [vmem:[%s6312 + $0xa8] sm:$0xf] %v6412
        %6414 = vst [vmem:[%s6312 + $0xac] sm:$0xf] %v6245
        %v6415 = vld [vmem:[%s6312 + $0xb0] sm:$0x1]
        %v6416 = vsel %vm971, %v6246, %v6415
        %6417 = vst [vmem:[%s6312 + $0xb0] sm:$0x1] %v6416
        %v6418 = vld [vmem:[%s6312 + $0xb4] sm:$0xf]
        %v6419 = vsel %vm965, %v6253, %v6418
        %6420 = vst [vmem:[%s6312 + $0xb4] sm:$0xf] %v6419
        %6421 = vst [vmem:[%s6312 + $0xb8] sm:$0xf] %v6262
        %v6422 = vld [vmem:[%s6312 + $0xbc] sm:$0x1]
        %v6423 = vsel %vm971, %v6263, %v6422
        %6424 = vst [vmem:[%s6312 + $0xbc] sm:$0x1] %v6423
        %v6425 = vld [vmem:[#allocation3] sm:$0xf]
        %v6426 = vld [vmem:[#allocation3 + $0x4] sm:$0xf]
        %v6427 = vld [vmem:[#allocation3 + $0xc] sm:$0xf]
        %v6428 = vld [vmem:[#allocation3 + $0x10] sm:$0xf]
        %v6429 = vld [vmem:[#allocation3 + $0x18] sm:$0xf]
        %v6430 = vld [vmem:[#allocation3 + $0x1c] sm:$0xf]
        %v6431 = vld [vmem:[#allocation3 + $0x24] sm:$0xf]
        %v6432 = vld [vmem:[#allocation3 + $0x28] sm:$0xf]
        %v6433 = vld [vmem:[#allocation3 + $0x30] sm:$0xf]
        %v6434 = vld [vmem:[#allocation3 + $0x34] sm:$0xf]
        %v6435 = vld [vmem:[#allocation3 + $0x3c] sm:$0xf]
        %v6436 = vld [vmem:[#allocation3 + $0x40] sm:$0xf]
        %v6437 = vld [vmem:[#allocation3 + $0x48] sm:$0xf]
        %v6438 = vld [vmem:[#allocation3 + $0x4c] sm:$0xf]
        %v6439 = vld [vmem:[#allocation3 + $0x54] sm:$0xf]
        %v6440 = vld [vmem:[#allocation3 + $0x58] sm:$0xf]
        %v6441 = vld [vmem:[#allocation3 + $0x60] sm:$0xf]
        %v6442 = vld [vmem:[#allocation3 + $0x64] sm:$0xf]
        %v6443 = vld [vmem:[#allocation3 + $0x6c] sm:$0xf]
        %v6444 = vld [vmem:[#allocation3 + $0x70] sm:$0xf]
        %v6445 = vld [vmem:[#allocation3 + $0x78] sm:$0xf]
        %v6446 = vld [vmem:[#allocation3 + $0x7c] sm:$0xf]
        %v6447 = vld [vmem:[#allocation3 + $0x84] sm:$0xf]
        %v6448 = vld [vmem:[#allocation3 + $0x88] sm:$0xf]
        %v6449 = vld [vmem:[#allocation3 + $0x90] sm:$0xf]
        %v6450 = vld [vmem:[#allocation3 + $0x94] sm:$0xf]
        %v6451 = vld [vmem:[#allocation3 + $0x9c] sm:$0xf]
        %v6452 = vld [vmem:[#allocation3 + $0xa0] sm:$0xf]
        %v6453 = vld [vmem:[#allocation3 + $0xa8] sm:$0xf]
        %v6454 = vld [vmem:[#allocation3 + $0xac] sm:$0xf]
        %v6455 = vld [vmem:[#allocation3 + $0xb4] sm:$0xf]
        %v6456 = vld [vmem:[#allocation3 + $0xb8] sm:$0xf]
        %6457 = vst [vmem:[#allocation5] sm:$0xf] %v6425
        %6458 = vst [vmem:[#allocation5 + $0x24] sm:$0xf] %v6426
        %6459 = vst [vmem:[#allocation5 + $0x48] sm:$0xf] %v6427
        %6460 = vst [vmem:[#allocation5 + $0x6c] sm:$0xf] %v6428
        %6461 = vst [vmem:[#allocation5 + $0x90] sm:$0xf] %v6429
        %6462 = vst [vmem:[#allocation5 + $0xb4] sm:$0xf] %v6430
        %6463 = vst [vmem:[#allocation5 + $0xd8] sm:$0xf] %v6431
        %6464 = vst [vmem:[#allocation5 + $0xfc] sm:$0xf] %v6432
        %6465 = vst [vmem:[#allocation5 + $0x120] sm:$0xf] %v6433
        %6466 = vst [vmem:[#allocation5 + $0x144] sm:$0xf] %v6434
        %6467 = vst [vmem:[#allocation5 + $0x168] sm:$0xf] %v6435
        %6468 = vst [vmem:[#allocation5 + $0x18c] sm:$0xf] %v6436
        %6469 = vst [vmem:[#allocation5 + $0x1b0] sm:$0xf] %v6437
        %6470 = vst [vmem:[#allocation5 + $0x1d4] sm:$0xf] %v6438
        %6471 = vst [vmem:[#allocation5 + $0x1f8] sm:$0xf] %v6439
        %6472 = vst [vmem:[#allocation5 + $0x21c] sm:$0xf] %v6440
        %6473 = vst [vmem:[#allocation5 + $0x240] sm:$0xf] %v6441
        %6474 = vst [vmem:[#allocation5 + $0x264] sm:$0xf] %v6442
        %6475 = vst [vmem:[#allocation5 + $0x288] sm:$0xf] %v6443
        %6476 = vst [vmem:[#allocation5 + $0x2ac] sm:$0xf] %v6444
        %6477 = vst [vmem:[#allocation5 + $0x2d0] sm:$0xf] %v6445
        %6478 = vst [vmem:[#allocation5 + $0x2f4] sm:$0xf] %v6446
        %6479 = vst [vmem:[#allocation5 + $0x318] sm:$0xf] %v6447
        %6480 = vst [vmem:[#allocation5 + $0x33c] sm:$0xf] %v6448
        %6481 = vst [vmem:[#allocation5 + $0x360] sm:$0xf] %v6449
        %6482 = vst [vmem:[#allocation5 + $0x384] sm:$0xf] %v6450
        %6483 = vst [vmem:[#allocation5 + $0x3a8] sm:$0xf] %v6451
        %6484 = vst [vmem:[#allocation5 + $0x3cc] sm:$0xf] %v6452
        %6485 = vst [vmem:[#allocation5 + $0x3f0] sm:$0xf] %v6453
        %6486 = vst [vmem:[#allocation5 + $0x414] sm:$0xf] %v6454
        %6487 = vst [vmem:[#allocation5 + $0x438] sm:$0xf] %v6455
        %6488 = vst [vmem:[#allocation5 + $0x45c] sm:$0xf] %v6456
        %v6489 = vld [vmem:[#allocation3] sm:$0xf]
        %v6490 = vld [vmem:[#allocation3 + $0x4] sm:$0xf]
        %v6491 = vld [vmem:[#allocation3 + $0x8] sm:$0x1]
        %v6492 = vld [vmem:[#allocation3 + $0xc] sm:$0xf]
        %v6493 = vld [vmem:[#allocation3 + $0x10] sm:$0xf]
        %v6494 = vld [vmem:[#allocation3 + $0x14] sm:$0x1]
        %v6495 = vld [vmem:[#allocation3 + $0x18] sm:$0xf]
        %v6496 = vld [vmem:[#allocation3 + $0x1c] sm:$0xf]
        %v6497 = vld [vmem:[#allocation3 + $0x20] sm:$0x1]
        %v6498 = vld [vmem:[#allocation3 + $0x24] sm:$0xf]
        %v6499 = vld [vmem:[#allocation3 + $0x28] sm:$0xf]
        %v6500 = vld [vmem:[#allocation3 + $0x2c] sm:$0x1]
        %v6501 = vld [vmem:[#allocation3 + $0x30] sm:$0xf]
        %v6502 = vld [vmem:[#allocation3 + $0x34] sm:$0xf]
        %v6503 = vld [vmem:[#allocation3 + $0x38] sm:$0x1]
        %v6504 = vld [vmem:[#allocation3 + $0x3c] sm:$0xf]
        %v6505 = vld [vmem:[#allocation3 + $0x40] sm:$0xf]
        %v6506 = vld [vmem:[#allocation3 + $0x44] sm:$0x1]
        %v6507 = vld [vmem:[#allocation3 + $0x48] sm:$0xf]
        %v6508 = vld [vmem:[#allocation3 + $0x4c] sm:$0xf]
        %v6509 = vld [vmem:[#allocation3 + $0x50] sm:$0x1]
        %v6510 = vld [vmem:[#allocation3 + $0x54] sm:$0xf]
        %v6511 = vld [vmem:[#allocation3 + $0x58] sm:$0xf]
        %v6512 = vld [vmem:[#allocation3 + $0x5c] sm:$0x1]
        %v6513 = vld [vmem:[#allocation3 + $0x60] sm:$0xf]
        %v6514 = vld [vmem:[#allocation3 + $0x64] sm:$0xf]
        %v6515 = vld [vmem:[#allocation3 + $0x68] sm:$0x1]
        %v6516 = vld [vmem:[#allocation3 + $0x6c] sm:$0xf]
        %v6517 = vld [vmem:[#allocation3 + $0x70] sm:$0xf]
        %v6518 = vld [vmem:[#allocation3 + $0x74] sm:$0x1]
        %v6519 = vld [vmem:[#allocation3 + $0x78] sm:$0xf]
        %v6520 = vld [vmem:[#allocation3 + $0x7c] sm:$0xf]
        %v6521 = vld [vmem:[#allocation3 + $0x80] sm:$0x1]
        %v6522 = vld [vmem:[#allocation3 + $0x84] sm:$0xf]
        %v6523 = vld [vmem:[#allocation3 + $0x88] sm:$0xf]
        %v6524 = vld [vmem:[#allocation3 + $0x8c] sm:$0x1]
        %v6525 = vld [vmem:[#allocation3 + $0x90] sm:$0xf]
        %v6526 = vld [vmem:[#allocation3 + $0x94] sm:$0xf]
        %v6527 = vld [vmem:[#allocation3 + $0x98] sm:$0x1]
        %v6528 = vld [vmem:[#allocation3 + $0x9c] sm:$0xf]
        %v6529 = vld [vmem:[#allocation3 + $0xa0] sm:$0xf]
        %v6530 = vld [vmem:[#allocation3 + $0xa4] sm:$0x1]
        %v6531 = vld [vmem:[#allocation3 + $0xa8] sm:$0xf]
        %v6532 = vld [vmem:[#allocation3 + $0xac] sm:$0xf]
        %v6533 = vld [vmem:[#allocation3 + $0xb0] sm:$0x1]
        %v6534 = vld [vmem:[#allocation3 + $0xb4] sm:$0xf]
        %v6535 = vld [vmem:[#allocation3 + $0xb8] sm:$0xf]
        %v6536 = vld [vmem:[#allocation3 + $0xbc] sm:$0x1]
        %v6538 = vshrl.u32 %v6489, 16
        %v6540 = vrot.slane %v6538, 4
        %v6541 = vshll.u32 %v6489, 16
        %v6543 = vrot.slane %v6541, 5
        %v6544 = vor.u32 %v6540, %v6543
        %v6545 = vrot.slane %v6544, 4
        %v6547 = vshll.u32 %v6490, 16
        %v6549 = vrot.slane %v6547, 5
        %v6550 = vsel %vm1194, %v6545, %v6549
        %v6551 = vshrl.u32 %v6490, 16
        %v6553 = vrot.slane %v6551, 4
        %v6554 = vor.u32 %v6553, %v6549
        %v6555 = vrot.slane %v6554, 4
        %v6557 = vshll.u32 %v6491, 16
        %v6559 = vrot.slane %v6557, 5
        %v6560 = vsel %vm1194, %v6555, %v6559
        %v6562 = vshrl.u32 %v6492, 16
        %v6564 = vrot.slane %v6562, 4
        %v6565 = vshll.u32 %v6492, 16
        %v6567 = vrot.slane %v6565, 5
        %v6568 = vor.u32 %v6564, %v6567
        %v6569 = vrot.slane %v6568, 4
        %v6571 = vshll.u32 %v6493, 16
        %v6573 = vrot.slane %v6571, 5
        %v6574 = vsel %vm1194, %v6569, %v6573
        %v6575 = vshrl.u32 %v6493, 16
        %v6577 = vrot.slane %v6575, 4
        %v6578 = vor.u32 %v6577, %v6573
        %v6579 = vrot.slane %v6578, 4
        %v6581 = vshll.u32 %v6494, 16
        %v6583 = vrot.slane %v6581, 5
        %v6584 = vsel %vm1194, %v6579, %v6583
        %v6586 = vshrl.u32 %v6495, 16
        %v6588 = vrot.slane %v6586, 4
        %v6589 = vshll.u32 %v6495, 16
        %v6591 = vrot.slane %v6589, 5
        %v6592 = vor.u32 %v6588, %v6591
        %v6593 = vrot.slane %v6592, 4
        %v6595 = vshll.u32 %v6496, 16
        %v6597 = vrot.slane %v6595, 5
        %v6598 = vsel %vm1194, %v6593, %v6597
        %v6599 = vshrl.u32 %v6496, 16
        %v6601 = vrot.slane %v6599, 4
        %v6602 = vor.u32 %v6601, %v6597
        %v6603 = vrot.slane %v6602, 4
        %v6605 = vshll.u32 %v6497, 16
        %v6607 = vrot.slane %v6605, 5
        %v6608 = vsel %vm1194, %v6603, %v6607
        %v6610 = vshrl.u32 %v6498, 16
        %v6612 = vrot.slane %v6610, 4
        %v6613 = vshll.u32 %v6498, 16
        %v6615 = vrot.slane %v6613, 5
        %v6616 = vor.u32 %v6612, %v6615
        %v6617 = vrot.slane %v6616, 4
        %v6619 = vshll.u32 %v6499, 16
        %v6621 = vrot.slane %v6619, 5
        %v6622 = vsel %vm1194, %v6617, %v6621
        %v6623 = vshrl.u32 %v6499, 16
        %v6625 = vrot.slane %v6623, 4
        %v6626 = vor.u32 %v6625, %v6621
        %v6627 = vrot.slane %v6626, 4
        %v6629 = vshll.u32 %v6500, 16
        %v6631 = vrot.slane %v6629, 5
        %v6632 = vsel %vm1194, %v6627, %v6631
        %v6634 = vshrl.u32 %v6501, 16
        %v6636 = vrot.slane %v6634, 4
        %v6637 = vshll.u32 %v6501, 16
        %v6639 = vrot.slane %v6637, 5
        %v6640 = vor.u32 %v6636, %v6639
        %v6641 = vrot.slane %v6640, 4
        %v6643 = vshll.u32 %v6502, 16
        %v6645 = vrot.slane %v6643, 5
        %v6646 = vsel %vm1194, %v6641, %v6645
        %v6647 = vshrl.u32 %v6502, 16
        %v6649 = vrot.slane %v6647, 4
        %v6650 = vor.u32 %v6649, %v6645
        %v6651 = vrot.slane %v6650, 4
        %v6653 = vshll.u32 %v6503, 16
        %v6655 = vrot.slane %v6653, 5
        %v6656 = vsel %vm1194, %v6651, %v6655
        %v6658 = vshrl.u32 %v6504, 16
        %v6660 = vrot.slane %v6658, 4
        %v6661 = vshll.u32 %v6504, 16
        %v6663 = vrot.slane %v6661, 5
        %v6664 = vor.u32 %v6660, %v6663
        %v6665 = vrot.slane %v6664, 4
        %v6667 = vshll.u32 %v6505, 16
        %v6669 = vrot.slane %v6667, 5
        %v6670 = vsel %vm1194, %v6665, %v6669
        %v6671 = vshrl.u32 %v6505, 16
        %v6673 = vrot.slane %v6671, 4
        %v6674 = vor.u32 %v6673, %v6669
        %v6675 = vrot.slane %v6674, 4
        %v6677 = vshll.u32 %v6506, 16
        %v6679 = vrot.slane %v6677, 5
        %v6680 = vsel %vm1194, %v6675, %v6679
        %v6682 = vshrl.u32 %v6507, 16
        %v6684 = vrot.slane %v6682, 4
        %v6685 = vshll.u32 %v6507, 16
        %v6687 = vrot.slane %v6685, 5
        %v6688 = vor.u32 %v6684, %v6687
        %v6689 = vrot.slane %v6688, 4
        %v6691 = vshll.u32 %v6508, 16
        %v6693 = vrot.slane %v6691, 5
        %v6694 = vsel %vm1194, %v6689, %v6693
        %v6695 = vshrl.u32 %v6508, 16
        %v6697 = vrot.slane %v6695, 4
        %v6698 = vor.u32 %v6697, %v6693
        %v6699 = vrot.slane %v6698, 4
        %v6701 = vshll.u32 %v6509, 16
        %v6703 = vrot.slane %v6701, 5
        %v6704 = vsel %vm1194, %v6699, %v6703
        %v6706 = vshrl.u32 %v6510, 16
        %v6708 = vrot.slane %v6706, 4
        %v6709 = vshll.u32 %v6510, 16
        %v6711 = vrot.slane %v6709, 5
        %v6712 = vor.u32 %v6708, %v6711
        %v6713 = vrot.slane %v6712, 4
        %v6715 = vshll.u32 %v6511, 16
        %v6717 = vrot.slane %v6715, 5
        %v6718 = vsel %vm1194, %v6713, %v6717
        %v6719 = vshrl.u32 %v6511, 16
        %v6721 = vrot.slane %v6719, 4
        %v6722 = vor.u32 %v6721, %v6717
        %v6723 = vrot.slane %v6722, 4
        %v6725 = vshll.u32 %v6512, 16
        %v6727 = vrot.slane %v6725, 5
        %v6728 = vsel %vm1194, %v6723, %v6727
        %v6730 = vshrl.u32 %v6513, 16
        %v6732 = vrot.slane %v6730, 4
        %v6733 = vshll.u32 %v6513, 16
        %v6735 = vrot.slane %v6733, 5
        %v6736 = vor.u32 %v6732, %v6735
        %v6737 = vrot.slane %v6736, 4
        %v6739 = vshll.u32 %v6514, 16
        %v6741 = vrot.slane %v6739, 5
        %v6742 = vsel %vm1194, %v6737, %v6741
        %v6743 = vshrl.u32 %v6514, 16
        %v6745 = vrot.slane %v6743, 4
        %v6746 = vor.u32 %v6745, %v6741
        %v6747 = vrot.slane %v6746, 4
        %v6749 = vshll.u32 %v6515, 16
        %v6751 = vrot.slane %v6749, 5
        %v6752 = vsel %vm1194, %v6747, %v6751
        %v6754 = vshrl.u32 %v6516, 16
        %v6756 = vrot.slane %v6754, 4
        %v6757 = vshll.u32 %v6516, 16
        %v6759 = vrot.slane %v6757, 5
        %v6760 = vor.u32 %v6756, %v6759
        %v6761 = vrot.slane %v6760, 4
        %v6763 = vshll.u32 %v6517, 16
        %v6765 = vrot.slane %v6763, 5
        %v6766 = vsel %vm1194, %v6761, %v6765
        %v6767 = vshrl.u32 %v6517, 16
        %v6769 = vrot.slane %v6767, 4
        %v6770 = vor.u32 %v6769, %v6765
        %v6771 = vrot.slane %v6770, 4
        %v6773 = vshll.u32 %v6518, 16
        %v6775 = vrot.slane %v6773, 5
        %v6776 = vsel %vm1194, %v6771, %v6775
        %v6778 = vshrl.u32 %v6519, 16
        %v6780 = vrot.slane %v6778, 4
        %v6781 = vshll.u32 %v6519, 16
        %v6783 = vrot.slane %v6781, 5
        %v6784 = vor.u32 %v6780, %v6783
        %v6785 = vrot.slane %v6784, 4
        %v6787 = vshll.u32 %v6520, 16
        %v6789 = vrot.slane %v6787, 5
        %v6790 = vsel %vm1194, %v6785, %v6789
        %v6791 = vshrl.u32 %v6520, 16
        %v6793 = vrot.slane %v6791, 4
        %v6794 = vor.u32 %v6793, %v6789
        %v6795 = vrot.slane %v6794, 4
        %v6797 = vshll.u32 %v6521, 16
        %v6799 = vrot.slane %v6797, 5
        %v6800 = vsel %vm1194, %v6795, %v6799
        %v6802 = vshrl.u32 %v6522, 16
        %v6804 = vrot.slane %v6802, 4
        %v6805 = vshll.u32 %v6522, 16
        %v6807 = vrot.slane %v6805, 5
        %v6808 = vor.u32 %v6804, %v6807
        %v6809 = vrot.slane %v6808, 4
        %v6811 = vshll.u32 %v6523, 16
        %v6813 = vrot.slane %v6811, 5
        %v6814 = vsel %vm1194, %v6809, %v6813
        %v6815 = vshrl.u32 %v6523, 16
        %v6817 = vrot.slane %v6815, 4
        %v6818 = vor.u32 %v6817, %v6813
        %v6819 = vrot.slane %v6818, 4
        %v6821 = vshll.u32 %v6524, 16
        %v6823 = vrot.slane %v6821, 5
        %v6824 = vsel %vm1194, %v6819, %v6823
        %v6826 = vshrl.u32 %v6525, 16
        %v6828 = vrot.slane %v6826, 4
        %v6829 = vshll.u32 %v6525, 16
        %v6831 = vrot.slane %v6829, 5
        %v6832 = vor.u32 %v6828, %v6831
        %v6833 = vrot.slane %v6832, 4
        %v6835 = vshll.u32 %v6526, 16
        %v6837 = vrot.slane %v6835, 5
        %v6838 = vsel %vm1194, %v6833, %v6837
        %v6839 = vshrl.u32 %v6526, 16
        %v6841 = vrot.slane %v6839, 4
        %v6842 = vor.u32 %v6841, %v6837
        %v6843 = vrot.slane %v6842, 4
        %v6845 = vshll.u32 %v6527, 16
        %v6847 = vrot.slane %v6845, 5
        %v6848 = vsel %vm1194, %v6843, %v6847
        %v6850 = vshrl.u32 %v6528, 16
        %v6852 = vrot.slane %v6850, 4
        %v6853 = vshll.u32 %v6528, 16
        %v6855 = vrot.slane %v6853, 5
        %v6856 = vor.u32 %v6852, %v6855
        %v6857 = vrot.slane %v6856, 4
        %v6859 = vshll.u32 %v6529, 16
        %v6861 = vrot.slane %v6859, 5
        %v6862 = vsel %vm1194, %v6857, %v6861
        %v6863 = vshrl.u32 %v6529, 16
        %v6865 = vrot.slane %v6863, 4
        %v6866 = vor.u32 %v6865, %v6861
        %v6867 = vrot.slane %v6866, 4
        %v6869 = vshll.u32 %v6530, 16
        %v6871 = vrot.slane %v6869, 5
        %v6872 = vsel %vm1194, %v6867, %v6871
        %v6874 = vshrl.u32 %v6531, 16
        %v6876 = vrot.slane %v6874, 4
        %v6877 = vshll.u32 %v6531, 16
        %v6879 = vrot.slane %v6877, 5
        %v6880 = vor.u32 %v6876, %v6879
        %v6881 = vrot.slane %v6880, 4
        %v6883 = vshll.u32 %v6532, 16
        %v6885 = vrot.slane %v6883, 5
        %v6886 = vsel %vm1194, %v6881, %v6885
        %v6887 = vshrl.u32 %v6532, 16
        %v6889 = vrot.slane %v6887, 4
        %v6890 = vor.u32 %v6889, %v6885
        %v6891 = vrot.slane %v6890, 4
        %v6893 = vshll.u32 %v6533, 16
        %v6895 = vrot.slane %v6893, 5
        %v6896 = vsel %vm1194, %v6891, %v6895
        %v6898 = vshrl.u32 %v6534, 16
        %v6900 = vrot.slane %v6898, 4
        %v6901 = vshll.u32 %v6534, 16
        %v6903 = vrot.slane %v6901, 5
        %v6904 = vor.u32 %v6900, %v6903
        %v6905 = vrot.slane %v6904, 4
        %v6907 = vshll.u32 %v6535, 16
        %v6909 = vrot.slane %v6907, 5
        %v6910 = vsel %vm1194, %v6905, %v6909
        %v6911 = vshrl.u32 %v6535, 16
        %v6913 = vrot.slane %v6911, 4
        %v6914 = vor.u32 %v6913, %v6909
        %v6915 = vrot.slane %v6914, 4
        %v6917 = vshll.u32 %v6536, 16
        %v6919 = vrot.slane %v6917, 5
        %v6920 = vsel %vm1194, %v6915, %v6919
        %6953 = vst [vmem:[#allocation5 + $0x4] sm:$0xf] %v6550
        %6954 = vst [vmem:[#allocation5 + $0x28] sm:$0xf] %v6560
        %6955 = vst [vmem:[#allocation5 + $0x4c] sm:$0xf] %v6574
        %6956 = vst [vmem:[#allocation5 + $0x70] sm:$0xf] %v6584
        %6957 = vst [vmem:[#allocation5 + $0x94] sm:$0xf] %v6598
        %6958 = vst [vmem:[#allocation5 + $0xb8] sm:$0xf] %v6608
        %6959 = vst [vmem:[#allocation5 + $0xdc] sm:$0xf] %v6622
        %6960 = vst [vmem:[#allocation5 + $0x100] sm:$0xf] %v6632
        %6961 = vst [vmem:[#allocation5 + $0x124] sm:$0xf] %v6646
        %6962 = vst [vmem:[#allocation5 + $0x148] sm:$0xf] %v6656
        %6963 = vst [vmem:[#allocation5 + $0x16c] sm:$0xf] %v6670
        %6964 = vst [vmem:[#allocation5 + $0x190] sm:$0xf] %v6680
        %6965 = vst [vmem:[#allocation5 + $0x1b4] sm:$0xf] %v6694
        %6966 = vst [vmem:[#allocation5 + $0x1d8] sm:$0xf] %v6704
        %6967 = vst [vmem:[#allocation5 + $0x1fc] sm:$0xf] %v6718
        %6968 = vst [vmem:[#allocation5 + $0x220] sm:$0xf] %v6728
        %6969 = vst [vmem:[#allocation5 + $0x244] sm:$0xf] %v6742
        %6970 = vst [vmem:[#allocation5 + $0x268] sm:$0xf] %v6752
        %6971 = vst [vmem:[#allocation5 + $0x28c] sm:$0xf] %v6766
        %6972 = vst [vmem:[#allocation5 + $0x2b0] sm:$0xf] %v6776
        %6973 = vst [vmem:[#allocation5 + $0x2d4] sm:$0xf] %v6790
        %6974 = vst [vmem:[#allocation5 + $0x2f8] sm:$0xf] %v6800
        %6975 = vst [vmem:[#allocation5 + $0x31c] sm:$0xf] %v6814
        %6976 = vst [vmem:[#allocation5 + $0x340] sm:$0xf] %v6824
        %6977 = vst [vmem:[#allocation5 + $0x364] sm:$0xf] %v6838
        %6978 = vst [vmem:[#allocation5 + $0x388] sm:$0xf] %v6848
        %6979 = vst [vmem:[#allocation5 + $0x3ac] sm:$0xf] %v6862
        %6980 = vst [vmem:[#allocation5 + $0x3d0] sm:$0xf] %v6872
        %6981 = vst [vmem:[#allocation5 + $0x3f4] sm:$0xf] %v6886
        %6982 = vst [vmem:[#allocation5 + $0x418] sm:$0xf] %v6896
        %6983 = vst [vmem:[#allocation5 + $0x43c] sm:$0xf] %v6910
        %6984 = vst [vmem:[#allocation5 + $0x460] sm:$0xf] %v6920
        %v6985 = vld [vmem:[#allocation3] sm:$0xe]
        %v6986 = vld [vmem:[#allocation3 + $0x4] sm:$0xf]
        %v6987 = vld [vmem:[#allocation3 + $0x8] sm:$0x1]
        %v6988 = vld [vmem:[#allocation3 + $0xc] sm:$0xe]
        %v6989 = vld [vmem:[#allocation3 + $0x10] sm:$0xf]
        %v6990 = vld [vmem:[#allocation3 + $0x14] sm:$0x1]
        %v6991 = vld [vmem:[#allocation3 + $0x18] sm:$0xe]
        %v6992 = vld [vmem:[#allocation3 + $0x1c] sm:$0xf]
        %v6993 = vld [vmem:[#allocation3 + $0x20] sm:$0x1]
        %v6994 = vld [vmem:[#allocation3 + $0x24] sm:$0xe]
        %v6995 = vld [vmem:[#allocation3 + $0x28] sm:$0xf]
        %v6996 = vld [vmem:[#allocation3 + $0x2c] sm:$0x1]
        %v6997 = vld [vmem:[#allocation3 + $0x30] sm:$0xe]
        %v6998 = vld [vmem:[#allocation3 + $0x34] sm:$0xf]
        %v6999 = vld [vmem:[#allocation3 + $0x38] sm:$0x1]
        %v7000 = vld [vmem:[#allocation3 + $0x3c] sm:$0xe]
        %v7001 = vld [vmem:[#allocation3 + $0x40] sm:$0xf]
        %v7002 = vld [vmem:[#allocation3 + $0x44] sm:$0x1]
        %v7003 = vld [vmem:[#allocation3 + $0x48] sm:$0xe]
        %v7004 = vld [vmem:[#allocation3 + $0x4c] sm:$0xf]
        %v7005 = vld [vmem:[#allocation3 + $0x50] sm:$0x1]
        %v7006 = vld [vmem:[#allocation3 + $0x54] sm:$0xe]
        %v7007 = vld [vmem:[#allocation3 + $0x58] sm:$0xf]
        %v7008 = vld [vmem:[#allocation3 + $0x5c] sm:$0x1]
        %v7009 = vld [vmem:[#allocation3 + $0x60] sm:$0xe]
        %v7010 = vld [vmem:[#allocation3 + $0x64] sm:$0xf]
        %v7011 = vld [vmem:[#allocation3 + $0x68] sm:$0x1]
        %v7012 = vld [vmem:[#allocation3 + $0x6c] sm:$0xe]
        %v7013 = vld [vmem:[#allocation3 + $0x70] sm:$0xf]
        %v7014 = vld [vmem:[#allocation3 + $0x74] sm:$0x1]
        %v7015 = vld [vmem:[#allocation3 + $0x78] sm:$0xe]
        %v7016 = vld [vmem:[#allocation3 + $0x7c] sm:$0xf]
        %v7017 = vld [vmem:[#allocation3 + $0x80] sm:$0x1]
        %v7018 = vld [vmem:[#allocation3 + $0x84] sm:$0xe]
        %v7019 = vld [vmem:[#allocation3 + $0x88] sm:$0xf]
        %v7020 = vld [vmem:[#allocation3 + $0x8c] sm:$0x1]
        %v7021 = vld [vmem:[#allocation3 + $0x90] sm:$0xe]
        %v7022 = vld [vmem:[#allocation3 + $0x94] sm:$0xf]
        %v7023 = vld [vmem:[#allocation3 + $0x98] sm:$0x1]
        %v7024 = vld [vmem:[#allocation3 + $0x9c] sm:$0xe]
        %v7025 = vld [vmem:[#allocation3 + $0xa0] sm:$0xf]
        %v7026 = vld [vmem:[#allocation3 + $0xa4] sm:$0x1]
        %v7027 = vld [vmem:[#allocation3 + $0xa8] sm:$0xe]
        %v7028 = vld [vmem:[#allocation3 + $0xac] sm:$0xf]
        %v7029 = vld [vmem:[#allocation3 + $0xb0] sm:$0x1]
        %v7030 = vld [vmem:[#allocation3 + $0xb4] sm:$0xe]
        %v7031 = vld [vmem:[#allocation3 + $0xb8] sm:$0xf]
        %v7032 = vld [vmem:[#allocation3 + $0xbc] sm:$0x1]
        %v7081 = vrot.slane %v6985, 5
        %v7082 = vrot.slane %v7081, 4
        %v7083 = vrot.slane %v6986, 5
        %v7084 = vsel %vm1741, %v7082, %v7083
        %v7085 = vrot.slane %v7083, 4
        %v7086 = vrot.slane %v6987, 5
        %v7087 = vsel %vm1741, %v7085, %v7086
        %v7088 = vrot.slane %v6988, 5
        %v7089 = vrot.slane %v7088, 4
        %v7090 = vrot.slane %v6989, 5
        %v7091 = vsel %vm1741, %v7089, %v7090
        %v7092 = vrot.slane %v7090, 4
        %v7093 = vrot.slane %v6990, 5
        %v7094 = vsel %vm1741, %v7092, %v7093
        %v7095 = vrot.slane %v6991, 5
        %v7096 = vrot.slane %v7095, 4
        %v7097 = vrot.slane %v6992, 5
        %v7098 = vsel %vm1741, %v7096, %v7097
        %v7099 = vrot.slane %v7097, 4
        %v7100 = vrot.slane %v6993, 5
        %v7101 = vsel %vm1741, %v7099, %v7100
        %v7102 = vrot.slane %v6994, 5
        %v7103 = vrot.slane %v7102, 4
        %v7104 = vrot.slane %v6995, 5
        %v7105 = vsel %vm1741, %v7103, %v7104
        %v7106 = vrot.slane %v7104, 4
        %v7107 = vrot.slane %v6996, 5
        %v7108 = vsel %vm1741, %v7106, %v7107
        %v7109 = vrot.slane %v6997, 5
        %v7110 = vrot.slane %v7109, 4
        %v7111 = vrot.slane %v6998, 5
        %v7112 = vsel %vm1741, %v7110, %v7111
        %v7113 = vrot.slane %v7111, 4
        %v7114 = vrot.slane %v6999, 5
        %v7115 = vsel %vm1741, %v7113, %v7114
        %v7116 = vrot.slane %v7000, 5
        %v7117 = vrot.slane %v7116, 4
        %v7118 = vrot.slane %v7001, 5
        %v7119 = vsel %vm1741, %v7117, %v7118
        %v7120 = vrot.slane %v7118, 4
        %v7121 = vrot.slane %v7002, 5
        %v7122 = vsel %vm1741, %v7120, %v7121
        %v7123 = vrot.slane %v7003, 5
        %v7124 = vrot.slane %v7123, 4
        %v7125 = vrot.slane %v7004, 5
        %v7126 = vsel %vm1741, %v7124, %v7125
        %v7127 = vrot.slane %v7125, 4
        %v7128 = vrot.slane %v7005, 5
        %v7129 = vsel %vm1741, %v7127, %v7128
        %v7130 = vrot.slane %v7006, 5
        %v7131 = vrot.slane %v7130, 4
        %v7132 = vrot.slane %v7007, 5
        %v7133 = vsel %vm1741, %v7131, %v7132
        %v7134 = vrot.slane %v7132, 4
        %v7135 = vrot.slane %v7008, 5
        %v7136 = vsel %vm1741, %v7134, %v7135
        %v7137 = vrot.slane %v7009, 5
        %v7138 = vrot.slane %v7137, 4
        %v7139 = vrot.slane %v7010, 5
        %v7140 = vsel %vm1741, %v7138, %v7139
        %v7141 = vrot.slane %v7139, 4
        %v7142 = vrot.slane %v7011, 5
        %v7143 = vsel %vm1741, %v7141, %v7142
        %v7144 = vrot.slane %v7012, 5
        %v7145 = vrot.slane %v7144, 4
        %v7146 = vrot.slane %v7013, 5
        %v7147 = vsel %vm1741, %v7145, %v7146
        %v7148 = vrot.slane %v7146, 4
        %v7149 = vrot.slane %v7014, 5
        %v7150 = vsel %vm1741, %v7148, %v7149
        %v7151 = vrot.slane %v7015, 5
        %v7152 = vrot.slane %v7151, 4
        %v7153 = vrot.slane %v7016, 5
        %v7154 = vsel %vm1741, %v7152, %v7153
        %v7155 = vrot.slane %v7153, 4
        %v7156 = vrot.slane %v7017, 5
        %v7157 = vsel %vm1741, %v7155, %v7156
        %v7158 = vrot.slane %v7018, 5
        %v7159 = vrot.slane %v7158, 4
        %v7160 = vrot.slane %v7019, 5
        %v7161 = vsel %vm1741, %v7159, %v7160
        %v7162 = vrot.slane %v7160, 4
        %v7163 = vrot.slane %v7020, 5
        %v7164 = vsel %vm1741, %v7162, %v7163
        %v7165 = vrot.slane %v7021, 5
        %v7166 = vrot.slane %v7165, 4
        %v7167 = vrot.slane %v7022, 5
        %v7168 = vsel %vm1741, %v7166, %v7167
        %v7169 = vrot.slane %v7167, 4
        %v7170 = vrot.slane %v7023, 5
        %v7171 = vsel %vm1741, %v7169, %v7170
        %v7172 = vrot.slane %v7024, 5
        %v7173 = vrot.slane %v7172, 4
        %v7174 = vrot.slane %v7025, 5
        %v7175 = vsel %vm1741, %v7173, %v7174
        %v7176 = vrot.slane %v7174, 4
        %v7177 = vrot.slane %v7026, 5
        %v7178 = vsel %vm1741, %v7176, %v7177
        %v7179 = vrot.slane %v7027, 5
        %v7180 = vrot.slane %v7179, 4
        %v7181 = vrot.slane %v7028, 5
        %v7182 = vsel %vm1741, %v7180, %v7181
        %v7183 = vrot.slane %v7181, 4
        %v7184 = vrot.slane %v7029, 5
        %v7185 = vsel %vm1741, %v7183, %v7184
        %v7186 = vrot.slane %v7030, 5
        %v7187 = vrot.slane %v7186, 4
        %v7188 = vrot.slane %v7031, 5
        %v7189 = vsel %vm1741, %v7187, %v7188
        %v7190 = vrot.slane %v7188, 4
        %v7191 = vrot.slane %v7032, 5
        %v7192 = vsel %vm1741, %v7190, %v7191
        %7225 = vst [vmem:[#allocation5 + $0x8] sm:$0xf] %v7084
        %7226 = vst [vmem:[#allocation5 + $0x2c] sm:$0xf] %v7087
        %7227 = vst [vmem:[#allocation5 + $0x50] sm:$0xf] %v7091
        %7228 = vst [vmem:[#allocation5 + $0x74] sm:$0xf] %v7094
        %7229 = vst [vmem:[#allocation5 + $0x98] sm:$0xf] %v7098
        %7230 = vst [vmem:[#allocation5 + $0xbc] sm:$0xf] %v7101
        %7231 = vst [vmem:[#allocation5 + $0xe0] sm:$0xf] %v7105
        %7232 = vst [vmem:[#allocation5 + $0x104] sm:$0xf] %v7108
        %7233 = vst [vmem:[#allocation5 + $0x128] sm:$0xf] %v7112
        %7234 = vst [vmem:[#allocation5 + $0x14c] sm:$0xf] %v7115
        %7235 = vst [vmem:[#allocation5 + $0x170] sm:$0xf] %v7119
        %7236 = vst [vmem:[#allocation5 + $0x194] sm:$0xf] %v7122
        %7237 = vst [vmem:[#allocation5 + $0x1b8] sm:$0xf] %v7126
        %7238 = vst [vmem:[#allocation5 + $0x1dc] sm:$0xf] %v7129
        %7239 = vst [vmem:[#allocation5 + $0x200] sm:$0xf] %v7133
        %7240 = vst [vmem:[#allocation5 + $0x224] sm:$0xf] %v7136
        %7241 = vst [vmem:[#allocation5 + $0x248] sm:$0xf] %v7140
        %7242 = vst [vmem:[#allocation5 + $0x26c] sm:$0xf] %v7143
        %7243 = vst [vmem:[#allocation5 + $0x290] sm:$0xf] %v7147
        %7244 = vst [vmem:[#allocation5 + $0x2b4] sm:$0xf] %v7150
        %7245 = vst [vmem:[#allocation5 + $0x2d8] sm:$0xf] %v7154
        %7246 = vst [vmem:[#allocation5 + $0x2fc] sm:$0xf] %v7157
        %7247 = vst [vmem:[#allocation5 + $0x320] sm:$0xf] %v7161
        %7248 = vst [vmem:[#allocation5 + $0x344] sm:$0xf] %v7164
        %7249 = vst [vmem:[#allocation5 + $0x368] sm:$0xf] %v7168
        %7250 = vst [vmem:[#allocation5 + $0x38c] sm:$0xf] %v7171
        %7251 = vst [vmem:[#allocation5 + $0x3b0] sm:$0xf] %v7175
        %7252 = vst [vmem:[#allocation5 + $0x3d4] sm:$0xf] %v7178
        %7253 = vst [vmem:[#allocation5 + $0x3f8] sm:$0xf] %v7182
        %7254 = vst [vmem:[#allocation5 + $0x41c] sm:$0xf] %v7185
        %7255 = vst [vmem:[#allocation5 + $0x440] sm:$0xf] %v7189
        %7256 = vst [vmem:[#allocation5 + $0x464] sm:$0xf] %v7192
        %v7257 = vld [vmem:[%s6312] sm:$0xf]
        %v7258 = vld [vmem:[%s6312 + $0x4] sm:$0xf]
        %v7259 = vld [vmem:[%s6312 + $0xc] sm:$0xf]
        %v7260 = vld [vmem:[%s6312 + $0x10] sm:$0xf]
        %v7261 = vld [vmem:[%s6312 + $0x18] sm:$0xf]
        %v7262 = vld [vmem:[%s6312 + $0x1c] sm:$0xf]
        %v7263 = vld [vmem:[%s6312 + $0x24] sm:$0xf]
        %v7264 = vld [vmem:[%s6312 + $0x28] sm:$0xf]
        %v7265 = vld [vmem:[%s6312 + $0x30] sm:$0xf]
        %v7266 = vld [vmem:[%s6312 + $0x34] sm:$0xf]
        %v7267 = vld [vmem:[%s6312 + $0x3c] sm:$0xf]
        %v7268 = vld [vmem:[%s6312 + $0x40] sm:$0xf]
        %v7269 = vld [vmem:[%s6312 + $0x48] sm:$0xf]
        %v7270 = vld [vmem:[%s6312 + $0x4c] sm:$0xf]
        %v7271 = vld [vmem:[%s6312 + $0x54] sm:$0xf]
        %v7272 = vld [vmem:[%s6312 + $0x58] sm:$0xf]
        %v7273 = vld [vmem:[%s6312 + $0x60] sm:$0xf]
        %v7274 = vld [vmem:[%s6312 + $0x64] sm:$0xf]
        %v7275 = vld [vmem:[%s6312 + $0x6c] sm:$0xf]
        %v7276 = vld [vmem:[%s6312 + $0x70] sm:$0xf]
        %v7277 = vld [vmem:[%s6312 + $0x78] sm:$0xf]
        %v7278 = vld [vmem:[%s6312 + $0x7c] sm:$0xf]
        %v7279 = vld [vmem:[%s6312 + $0x84] sm:$0xf]
        %v7280 = vld [vmem:[%s6312 + $0x88] sm:$0xf]
        %v7281 = vld [vmem:[%s6312 + $0x90] sm:$0xf]
        %v7282 = vld [vmem:[%s6312 + $0x94] sm:$0xf]
        %v7283 = vld [vmem:[%s6312 + $0x9c] sm:$0xf]
        %v7284 = vld [vmem:[%s6312 + $0xa0] sm:$0xf]
        %v7285 = vld [vmem:[%s6312 + $0xa8] sm:$0xf]
        %v7286 = vld [vmem:[%s6312 + $0xac] sm:$0xf]
        %v7287 = vld [vmem:[%s6312 + $0xb4] sm:$0xf]
        %v7288 = vld [vmem:[%s6312 + $0xb8] sm:$0xf]
        %7289 = vst [vmem:[#allocation5 + $0xc] sm:$0xf] %v7257
        %7290 = vst [vmem:[#allocation5 + $0x30] sm:$0xf] %v7258
        %7291 = vst [vmem:[#allocation5 + $0x54] sm:$0xf] %v7259
        %7292 = vst [vmem:[#allocation5 + $0x78] sm:$0xf] %v7260
        %7293 = vst [vmem:[#allocation5 + $0x9c] sm:$0xf] %v7261
        %7294 = vst [vmem:[#allocation5 + $0xc0] sm:$0xf] %v7262
        %7295 = vst [vmem:[#allocation5 + $0xe4] sm:$0xf] %v7263
        %7296 = vst [vmem:[#allocation5 + $0x108] sm:$0xf] %v7264
        %7297 = vst [vmem:[#allocation5 + $0x12c] sm:$0xf] %v7265
        %7298 = vst [vmem:[#allocation5 + $0x150] sm:$0xf] %v7266
        %7299 = vst [vmem:[#allocation5 + $0x174] sm:$0xf] %v7267
        %7300 = vst [vmem:[#allocation5 + $0x198] sm:$0xf] %v7268
        %7301 = vst [vmem:[#allocation5 + $0x1bc] sm:$0xf] %v7269
        %7302 = vst [vmem:[#allocation5 + $0x1e0] sm:$0xf] %v7270
        %7303 = vst [vmem:[#allocation5 + $0x204] sm:$0xf] %v7271
        %7304 = vst [vmem:[#allocation5 + $0x228] sm:$0xf] %v7272
        %7305 = vst [vmem:[#allocation5 + $0x24c] sm:$0xf] %v7273
        %7306 = vst [vmem:[#allocation5 + $0x270] sm:$0xf] %v7274
        %7307 = vst [vmem:[#allocation5 + $0x294] sm:$0xf] %v7275
        %7308 = vst [vmem:[#allocation5 + $0x2b8] sm:$0xf] %v7276
        %7309 = vst [vmem:[#allocation5 + $0x2dc] sm:$0xf] %v7277
        %7310 = vst [vmem:[#allocation5 + $0x300] sm:$0xf] %v7278
        %7311 = vst [vmem:[#allocation5 + $0x324] sm:$0xf] %v7279
        %7312 = vst [vmem:[#allocation5 + $0x348] sm:$0xf] %v7280
        %7313 = vst [vmem:[#allocation5 + $0x36c] sm:$0xf] %v7281
        %7314 = vst [vmem:[#allocation5 + $0x390] sm:$0xf] %v7282
        %7315 = vst [vmem:[#allocation5 + $0x3b4] sm:$0xf] %v7283
        %7316 = vst [vmem:[#allocation5 + $0x3d8] sm:$0xf] %v7284
        %7317 = vst [vmem:[#allocation5 + $0x3fc] sm:$0xf] %v7285
        %7318 = vst [vmem:[#allocation5 + $0x420] sm:$0xf] %v7286
        %7319 = vst [vmem:[#allocation5 + $0x444] sm:$0xf] %v7287
        %7320 = vst [vmem:[#allocation5 + $0x468] sm:$0xf] %v7288
        %v7321 = vld [vmem:[%s6312] sm:$0xf]
        %v7322 = vld [vmem:[%s6312 + $0x4] sm:$0xf]
        %v7323 = vld [vmem:[%s6312 + $0x8] sm:$0x1]
        %v7324 = vld [vmem:[%s6312 + $0xc] sm:$0xf]
        %v7325 = vld [vmem:[%s6312 + $0x10] sm:$0xf]
        %v7326 = vld [vmem:[%s6312 + $0x14] sm:$0x1]
        %v7327 = vld [vmem:[%s6312 + $0x18] sm:$0xf]
        %v7328 = vld [vmem:[%s6312 + $0x1c] sm:$0xf]
        %v7329 = vld [vmem:[%s6312 + $0x20] sm:$0x1]
        %v7330 = vld [vmem:[%s6312 + $0x24] sm:$0xf]
        %v7331 = vld [vmem:[%s6312 + $0x28] sm:$0xf]
        %v7332 = vld [vmem:[%s6312 + $0x2c] sm:$0x1]
        %v7333 = vld [vmem:[%s6312 + $0x30] sm:$0xf]
        %v7334 = vld [vmem:[%s6312 + $0x34] sm:$0xf]
        %v7335 = vld [vmem:[%s6312 + $0x38] sm:$0x1]
        %v7336 = vld [vmem:[%s6312 + $0x3c] sm:$0xf]
        %v7337 = vld [vmem:[%s6312 + $0x40] sm:$0xf]
        %v7338 = vld [vmem:[%s6312 + $0x44] sm:$0x1]
        %v7339 = vld [vmem:[%s6312 + $0x48] sm:$0xf]
        %v7340 = vld [vmem:[%s6312 + $0x4c] sm:$0xf]
        %v7341 = vld [vmem:[%s6312 + $0x50] sm:$0x1]
        %v7342 = vld [vmem:[%s6312 + $0x54] sm:$0xf]
        %v7343 = vld [vmem:[%s6312 + $0x58] sm:$0xf]
        %v7344 = vld [vmem:[%s6312 + $0x5c] sm:$0x1]
        %v7345 = vld [vmem:[%s6312 + $0x60] sm:$0xf]
        %v7346 = vld [vmem:[%s6312 + $0x64] sm:$0xf]
        %v7347 = vld [vmem:[%s6312 + $0x68] sm:$0x1]
        %v7348 = vld [vmem:[%s6312 + $0x6c] sm:$0xf]
        %v7349 = vld [vmem:[%s6312 + $0x70] sm:$0xf]
        %v7350 = vld [vmem:[%s6312 + $0x74] sm:$0x1]
        %v7351 = vld [vmem:[%s6312 + $0x78] sm:$0xf]
        %v7352 = vld [vmem:[%s6312 + $0x7c] sm:$0xf]
        %v7353 = vld [vmem:[%s6312 + $0x80] sm:$0x1]
        %v7354 = vld [vmem:[%s6312 + $0x84] sm:$0xf]
        %v7355 = vld [vmem:[%s6312 + $0x88] sm:$0xf]
        %v7356 = vld [vmem:[%s6312 + $0x8c] sm:$0x1]
        %v7357 = vld [vmem:[%s6312 + $0x90] sm:$0xf]
        %v7358 = vld [vmem:[%s6312 + $0x94] sm:$0xf]
        %v7359 = vld [vmem:[%s6312 + $0x98] sm:$0x1]
        %v7360 = vld [vmem:[%s6312 + $0x9c] sm:$0xf]
        %v7361 = vld [vmem:[%s6312 + $0xa0] sm:$0xf]
        %v7362 = vld [vmem:[%s6312 + $0xa4] sm:$0x1]
        %v7363 = vld [vmem:[%s6312 + $0xa8] sm:$0xf]
        %v7364 = vld [vmem:[%s6312 + $0xac] sm:$0xf]
        %v7365 = vld [vmem:[%s6312 + $0xb0] sm:$0x1]
        %v7366 = vld [vmem:[%s6312 + $0xb4] sm:$0xf]
        %v7367 = vld [vmem:[%s6312 + $0xb8] sm:$0xf]
        %v7368 = vld [vmem:[%s6312 + $0xbc] sm:$0x1]
        %v7370 = vshrl.u32 %v7321, 16
        %v7372 = vrot.slane %v7370, 4
        %v7373 = vshll.u32 %v7321, 16
        %v7375 = vrot.slane %v7373, 5
        %v7376 = vor.u32 %v7372, %v7375
        %v7377 = vrot.slane %v7376, 4
        %v7379 = vshll.u32 %v7322, 16
        %v7381 = vrot.slane %v7379, 5
        %v7382 = vsel %vm1194, %v7377, %v7381
        %v7383 = vshrl.u32 %v7322, 16
        %v7385 = vrot.slane %v7383, 4
        %v7386 = vor.u32 %v7385, %v7381
        %v7387 = vrot.slane %v7386, 4
        %v7389 = vshll.u32 %v7323, 16
        %v7391 = vrot.slane %v7389, 5
        %v7392 = vsel %vm1194, %v7387, %v7391
        %v7394 = vshrl.u32 %v7324, 16
        %v7396 = vrot.slane %v7394, 4
        %v7397 = vshll.u32 %v7324, 16
        %v7399 = vrot.slane %v7397, 5
        %v7400 = vor.u32 %v7396, %v7399
        %v7401 = vrot.slane %v7400, 4
        %v7403 = vshll.u32 %v7325, 16
        %v7405 = vrot.slane %v7403, 5
        %v7406 = vsel %vm1194, %v7401, %v7405
        %v7407 = vshrl.u32 %v7325, 16
        %v7409 = vrot.slane %v7407, 4
        %v7410 = vor.u32 %v7409, %v7405
        %v7411 = vrot.slane %v7410, 4
        %v7413 = vshll.u32 %v7326, 16
        %v7415 = vrot.slane %v7413, 5
        %v7416 = vsel %vm1194, %v7411, %v7415
        %v7418 = vshrl.u32 %v7327, 16
        %v7420 = vrot.slane %v7418, 4
        %v7421 = vshll.u32 %v7327, 16
        %v7423 = vrot.slane %v7421, 5
        %v7424 = vor.u32 %v7420, %v7423
        %v7425 = vrot.slane %v7424, 4
        %v7427 = vshll.u32 %v7328, 16
        %v7429 = vrot.slane %v7427, 5
        %v7430 = vsel %vm1194, %v7425, %v7429
        %v7431 = vshrl.u32 %v7328, 16
        %v7433 = vrot.slane %v7431, 4
        %v7434 = vor.u32 %v7433, %v7429
        %v7435 = vrot.slane %v7434, 4
        %v7437 = vshll.u32 %v7329, 16
        %v7439 = vrot.slane %v7437, 5
        %v7440 = vsel %vm1194, %v7435, %v7439
        %v7442 = vshrl.u32 %v7330, 16
        %v7444 = vrot.slane %v7442, 4
        %v7445 = vshll.u32 %v7330, 16
        %v7447 = vrot.slane %v7445, 5
        %v7448 = vor.u32 %v7444, %v7447
        %v7449 = vrot.slane %v7448, 4
        %v7451 = vshll.u32 %v7331, 16
        %v7453 = vrot.slane %v7451, 5
        %v7454 = vsel %vm1194, %v7449, %v7453
        %v7455 = vshrl.u32 %v7331, 16
        %v7457 = vrot.slane %v7455, 4
        %v7458 = vor.u32 %v7457, %v7453
        %v7459 = vrot.slane %v7458, 4
        %v7461 = vshll.u32 %v7332, 16
        %v7463 = vrot.slane %v7461, 5
        %v7464 = vsel %vm1194, %v7459, %v7463
        %v7466 = vshrl.u32 %v7333, 16
        %v7468 = vrot.slane %v7466, 4
        %v7469 = vshll.u32 %v7333, 16
        %v7471 = vrot.slane %v7469, 5
        %v7472 = vor.u32 %v7468, %v7471
        %v7473 = vrot.slane %v7472, 4
        %v7475 = vshll.u32 %v7334, 16
        %v7477 = vrot.slane %v7475, 5
        %v7478 = vsel %vm1194, %v7473, %v7477
        %v7479 = vshrl.u32 %v7334, 16
        %v7481 = vrot.slane %v7479, 4
        %v7482 = vor.u32 %v7481, %v7477
        %v7483 = vrot.slane %v7482, 4
        %v7485 = vshll.u32 %v7335, 16
        %v7487 = vrot.slane %v7485, 5
        %v7488 = vsel %vm1194, %v7483, %v7487
        %v7490 = vshrl.u32 %v7336, 16
        %v7492 = vrot.slane %v7490, 4
        %v7493 = vshll.u32 %v7336, 16
        %v7495 = vrot.slane %v7493, 5
        %v7496 = vor.u32 %v7492, %v7495
        %v7497 = vrot.slane %v7496, 4
        %v7499 = vshll.u32 %v7337, 16
        %v7501 = vrot.slane %v7499, 5
        %v7502 = vsel %vm1194, %v7497, %v7501
        %v7503 = vshrl.u32 %v7337, 16
        %v7505 = vrot.slane %v7503, 4
        %v7506 = vor.u32 %v7505, %v7501
        %v7507 = vrot.slane %v7506, 4
        %v7509 = vshll.u32 %v7338, 16
        %v7511 = vrot.slane %v7509, 5
        %v7512 = vsel %vm1194, %v7507, %v7511
        %v7514 = vshrl.u32 %v7339, 16
        %v7516 = vrot.slane %v7514, 4
        %v7517 = vshll.u32 %v7339, 16
        %v7519 = vrot.slane %v7517, 5
        %v7520 = vor.u32 %v7516, %v7519
        %v7521 = vrot.slane %v7520, 4
        %v7523 = vshll.u32 %v7340, 16
        %v7525 = vrot.slane %v7523, 5
        %v7526 = vsel %vm1194, %v7521, %v7525
        %v7527 = vshrl.u32 %v7340, 16
        %v7529 = vrot.slane %v7527, 4
        %v7530 = vor.u32 %v7529, %v7525
        %v7531 = vrot.slane %v7530, 4
        %v7533 = vshll.u32 %v7341, 16
        %v7535 = vrot.slane %v7533, 5
        %v7536 = vsel %vm1194, %v7531, %v7535
        %v7538 = vshrl.u32 %v7342, 16
        %v7540 = vrot.slane %v7538, 4
        %v7541 = vshll.u32 %v7342, 16
        %v7543 = vrot.slane %v7541, 5
        %v7544 = vor.u32 %v7540, %v7543
        %v7545 = vrot.slane %v7544, 4
        %v7547 = vshll.u32 %v7343, 16
        %v7549 = vrot.slane %v7547, 5
        %v7550 = vsel %vm1194, %v7545, %v7549
        %v7551 = vshrl.u32 %v7343, 16
        %v7553 = vrot.slane %v7551, 4
        %v7554 = vor.u32 %v7553, %v7549
        %v7555 = vrot.slane %v7554, 4
        %v7557 = vshll.u32 %v7344, 16
        %v7559 = vrot.slane %v7557, 5
        %v7560 = vsel %vm1194, %v7555, %v7559
        %v7562 = vshrl.u32 %v7345, 16
        %v7564 = vrot.slane %v7562, 4
        %v7565 = vshll.u32 %v7345, 16
        %v7567 = vrot.slane %v7565, 5
        %v7568 = vor.u32 %v7564, %v7567
        %v7569 = vrot.slane %v7568, 4
        %v7571 = vshll.u32 %v7346, 16
        %v7573 = vrot.slane %v7571, 5
        %v7574 = vsel %vm1194, %v7569, %v7573
        %v7575 = vshrl.u32 %v7346, 16
        %v7577 = vrot.slane %v7575, 4
        %v7578 = vor.u32 %v7577, %v7573
        %v7579 = vrot.slane %v7578, 4
        %v7581 = vshll.u32 %v7347, 16
        %v7583 = vrot.slane %v7581, 5
        %v7584 = vsel %vm1194, %v7579, %v7583
        %v7586 = vshrl.u32 %v7348, 16
        %v7588 = vrot.slane %v7586, 4
        %v7589 = vshll.u32 %v7348, 16
        %v7591 = vrot.slane %v7589, 5
        %v7592 = vor.u32 %v7588, %v7591
        %v7593 = vrot.slane %v7592, 4
        %v7595 = vshll.u32 %v7349, 16
        %v7597 = vrot.slane %v7595, 5
        %v7598 = vsel %vm1194, %v7593, %v7597
        %v7599 = vshrl.u32 %v7349, 16
        %v7601 = vrot.slane %v7599, 4
        %v7602 = vor.u32 %v7601, %v7597
        %v7603 = vrot.slane %v7602, 4
        %v7605 = vshll.u32 %v7350, 16
        %v7607 = vrot.slane %v7605, 5
        %v7608 = vsel %vm1194, %v7603, %v7607
        %v7610 = vshrl.u32 %v7351, 16
        %v7612 = vrot.slane %v7610, 4
        %v7613 = vshll.u32 %v7351, 16
        %v7615 = vrot.slane %v7613, 5
        %v7616 = vor.u32 %v7612, %v7615
        %v7617 = vrot.slane %v7616, 4
        %v7619 = vshll.u32 %v7352, 16
        %v7621 = vrot.slane %v7619, 5
        %v7622 = vsel %vm1194, %v7617, %v7621
        %v7623 = vshrl.u32 %v7352, 16
        %v7625 = vrot.slane %v7623, 4
        %v7626 = vor.u32 %v7625, %v7621
        %v7627 = vrot.slane %v7626, 4
        %v7629 = vshll.u32 %v7353, 16
        %v7631 = vrot.slane %v7629, 5
        %v7632 = vsel %vm1194, %v7627, %v7631
        %v7634 = vshrl.u32 %v7354, 16
        %v7636 = vrot.slane %v7634, 4
        %v7637 = vshll.u32 %v7354, 16
        %v7639 = vrot.slane %v7637, 5
        %v7640 = vor.u32 %v7636, %v7639
        %v7641 = vrot.slane %v7640, 4
        %v7643 = vshll.u32 %v7355, 16
        %v7645 = vrot.slane %v7643, 5
        %v7646 = vsel %vm1194, %v7641, %v7645
        %v7647 = vshrl.u32 %v7355, 16
        %v7649 = vrot.slane %v7647, 4
        %v7650 = vor.u32 %v7649, %v7645
        %v7651 = vrot.slane %v7650, 4
        %v7653 = vshll.u32 %v7356, 16
        %v7655 = vrot.slane %v7653, 5
        %v7656 = vsel %vm1194, %v7651, %v7655
        %v7658 = vshrl.u32 %v7357, 16
        %v7660 = vrot.slane %v7658, 4
        %v7661 = vshll.u32 %v7357, 16
        %v7663 = vrot.slane %v7661, 5
        %v7664 = vor.u32 %v7660, %v7663
        %v7665 = vrot.slane %v7664, 4
        %v7667 = vshll.u32 %v7358, 16
        %v7669 = vrot.slane %v7667, 5
        %v7670 = vsel %vm1194, %v7665, %v7669
        %v7671 = vshrl.u32 %v7358, 16
        %v7673 = vrot.slane %v7671, 4
        %v7674 = vor.u32 %v7673, %v7669
        %v7675 = vrot.slane %v7674, 4
        %v7677 = vshll.u32 %v7359, 16
        %v7679 = vrot.slane %v7677, 5
        %v7680 = vsel %vm1194, %v7675, %v7679
        %v7682 = vshrl.u32 %v7360, 16
        %v7684 = vrot.slane %v7682, 4
        %v7685 = vshll.u32 %v7360, 16
        %v7687 = vrot.slane %v7685, 5
        %v7688 = vor.u32 %v7684, %v7687
        %v7689 = vrot.slane %v7688, 4
        %v7691 = vshll.u32 %v7361, 16
        %v7693 = vrot.slane %v7691, 5
        %v7694 = vsel %vm1194, %v7689, %v7693
        %v7695 = vshrl.u32 %v7361, 16
        %v7697 = vrot.slane %v7695, 4
        %v7698 = vor.u32 %v7697, %v7693
        %v7699 = vrot.slane %v7698, 4
        %v7701 = vshll.u32 %v7362, 16
        %v7703 = vrot.slane %v7701, 5
        %v7704 = vsel %vm1194, %v7699, %v7703
        %v7706 = vshrl.u32 %v7363, 16
        %v7708 = vrot.slane %v7706, 4
        %v7709 = vshll.u32 %v7363, 16
        %v7711 = vrot.slane %v7709, 5
        %v7712 = vor.u32 %v7708, %v7711
        %v7713 = vrot.slane %v7712, 4
        %v7715 = vshll.u32 %v7364, 16
        %v7717 = vrot.slane %v7715, 5
        %v7718 = vsel %vm1194, %v7713, %v7717
        %v7719 = vshrl.u32 %v7364, 16
        %v7721 = vrot.slane %v7719, 4
        %v7722 = vor.u32 %v7721, %v7717
        %v7723 = vrot.slane %v7722, 4
        %v7725 = vshll.u32 %v7365, 16
        %v7727 = vrot.slane %v7725, 5
        %v7728 = vsel %vm1194, %v7723, %v7727
        %v7730 = vshrl.u32 %v7366, 16
        %v7732 = vrot.slane %v7730, 4
        %v7733 = vshll.u32 %v7366, 16
        %v7735 = vrot.slane %v7733, 5
        %v7736 = vor.u32 %v7732, %v7735
        %v7737 = vrot.slane %v7736, 4
        %v7739 = vshll.u32 %v7367, 16
        %v7741 = vrot.slane %v7739, 5
        %v7742 = vsel %vm1194, %v7737, %v7741
        %v7743 = vshrl.u32 %v7367, 16
        %v7745 = vrot.slane %v7743, 4
        %v7746 = vor.u32 %v7745, %v7741
        %v7747 = vrot.slane %v7746, 4
        %v7749 = vshll.u32 %v7368, 16
        %v7751 = vrot.slane %v7749, 5
        %v7752 = vsel %vm1194, %v7747, %v7751
        %7785 = vst [vmem:[#allocation5 + $0x10] sm:$0xf] %v7382
        %7786 = vst [vmem:[#allocation5 + $0x34] sm:$0xf] %v7392
        %7787 = vst [vmem:[#allocation5 + $0x58] sm:$0xf] %v7406
        %7788 = vst [vmem:[#allocation5 + $0x7c] sm:$0xf] %v7416
        %7789 = vst [vmem:[#allocation5 + $0xa0] sm:$0xf] %v7430
        %7790 = vst [vmem:[#allocation5 + $0xc4] sm:$0xf] %v7440
        %7791 = vst [vmem:[#allocation5 + $0xe8] sm:$0xf] %v7454
        %7792 = vst [vmem:[#allocation5 + $0x10c] sm:$0xf] %v7464
        %7793 = vst [vmem:[#allocation5 + $0x130] sm:$0xf] %v7478
        %7794 = vst [vmem:[#allocation5 + $0x154] sm:$0xf] %v7488
        %7795 = vst [vmem:[#allocation5 + $0x178] sm:$0xf] %v7502
        %7796 = vst [vmem:[#allocation5 + $0x19c] sm:$0xf] %v7512
        %7797 = vst [vmem:[#allocation5 + $0x1c0] sm:$0xf] %v7526
        %7798 = vst [vmem:[#allocation5 + $0x1e4] sm:$0xf] %v7536
        %7799 = vst [vmem:[#allocation5 + $0x208] sm:$0xf] %v7550
        %7800 = vst [vmem:[#allocation5 + $0x22c] sm:$0xf] %v7560
        %7801 = vst [vmem:[#allocation5 + $0x250] sm:$0xf] %v7574
        %7802 = vst [vmem:[#allocation5 + $0x274] sm:$0xf] %v7584
        %7803 = vst [vmem:[#allocation5 + $0x298] sm:$0xf] %v7598
        %7804 = vst [vmem:[#allocation5 + $0x2bc] sm:$0xf] %v7608
        %7805 = vst [vmem:[#allocation5 + $0x2e0] sm:$0xf] %v7622
        %7806 = vst [vmem:[#allocation5 + $0x304] sm:$0xf] %v7632
        %7807 = vst [vmem:[#allocation5 + $0x328] sm:$0xf] %v7646
        %7808 = vst [vmem:[#allocation5 + $0x34c] sm:$0xf] %v7656
        %7809 = vst [vmem:[#allocation5 + $0x370] sm:$0xf] %v7670
        %7810 = vst [vmem:[#allocation5 + $0x394] sm:$0xf] %v7680
        %7811 = vst [vmem:[#allocation5 + $0x3b8] sm:$0xf] %v7694
        %7812 = vst [vmem:[#allocation5 + $0x3dc] sm:$0xf] %v7704
        %7813 = vst [vmem:[#allocation5 + $0x400] sm:$0xf] %v7718
        %7814 = vst [vmem:[#allocation5 + $0x424] sm:$0xf] %v7728
        %7815 = vst [vmem:[#allocation5 + $0x448] sm:$0xf] %v7742
        %7816 = vst [vmem:[#allocation5 + $0x46c] sm:$0xf] %v7752
        %v7817 = vld [vmem:[%s6312] sm:$0xe]
        %v7818 = vld [vmem:[%s6312 + $0x4] sm:$0xf]
        %v7819 = vld [vmem:[%s6312 + $0x8] sm:$0x1]
        %v7820 = vld [vmem:[%s6312 + $0xc] sm:$0xe]
        %v7821 = vld [vmem:[%s6312 + $0x10] sm:$0xf]
        %v7822 = vld [vmem:[%s6312 + $0x14] sm:$0x1]
        %v7823 = vld [vmem:[%s6312 + $0x18] sm:$0xe]
        %v7824 = vld [vmem:[%s6312 + $0x1c] sm:$0xf]
        %v7825 = vld [vmem:[%s6312 + $0x20] sm:$0x1]
        %v7826 = vld [vmem:[%s6312 + $0x24] sm:$0xe]
        %v7827 = vld [vmem:[%s6312 + $0x28] sm:$0xf]
        %v7828 = vld [vmem:[%s6312 + $0x2c] sm:$0x1]
        %v7829 = vld [vmem:[%s6312 + $0x30] sm:$0xe]
        %v7830 = vld [vmem:[%s6312 + $0x34] sm:$0xf]
        %v7831 = vld [vmem:[%s6312 + $0x38] sm:$0x1]
        %v7832 = vld [vmem:[%s6312 + $0x3c] sm:$0xe]
        %v7833 = vld [vmem:[%s6312 + $0x40] sm:$0xf]
        %v7834 = vld [vmem:[%s6312 + $0x44] sm:$0x1]
        %v7835 = vld [vmem:[%s6312 + $0x48] sm:$0xe]
        %v7836 = vld [vmem:[%s6312 + $0x4c] sm:$0xf]
        %v7837 = vld [vmem:[%s6312 + $0x50] sm:$0x1]
        %v7838 = vld [vmem:[%s6312 + $0x54] sm:$0xe]
        %v7839 = vld [vmem:[%s6312 + $0x58] sm:$0xf]
        %v7840 = vld [vmem:[%s6312 + $0x5c] sm:$0x1]
        %v7841 = vld [vmem:[%s6312 + $0x60] sm:$0xe]
        %v7842 = vld [vmem:[%s6312 + $0x64] sm:$0xf]
        %v7843 = vld [vmem:[%s6312 + $0x68] sm:$0x1]
        %v7844 = vld [vmem:[%s6312 + $0x6c] sm:$0xe]
        %v7845 = vld [vmem:[%s6312 + $0x70] sm:$0xf]
        %v7846 = vld [vmem:[%s6312 + $0x74] sm:$0x1]
        %v7847 = vld [vmem:[%s6312 + $0x78] sm:$0xe]
        %v7848 = vld [vmem:[%s6312 + $0x7c] sm:$0xf]
        %v7849 = vld [vmem:[%s6312 + $0x80] sm:$0x1]
        %v7850 = vld [vmem:[%s6312 + $0x84] sm:$0xe]
        %v7851 = vld [vmem:[%s6312 + $0x88] sm:$0xf]
        %v7852 = vld [vmem:[%s6312 + $0x8c] sm:$0x1]
        %v7853 = vld [vmem:[%s6312 + $0x90] sm:$0xe]
        %v7854 = vld [vmem:[%s6312 + $0x94] sm:$0xf]
        %v7855 = vld [vmem:[%s6312 + $0x98] sm:$0x1]
        %v7856 = vld [vmem:[%s6312 + $0x9c] sm:$0xe]
        %v7857 = vld [vmem:[%s6312 + $0xa0] sm:$0xf]
        %v7858 = vld [vmem:[%s6312 + $0xa4] sm:$0x1]
        %v7859 = vld [vmem:[%s6312 + $0xa8] sm:$0xe]
        %v7860 = vld [vmem:[%s6312 + $0xac] sm:$0xf]
        %v7861 = vld [vmem:[%s6312 + $0xb0] sm:$0x1]
        %v7862 = vld [vmem:[%s6312 + $0xb4] sm:$0xe]
        %v7863 = vld [vmem:[%s6312 + $0xb8] sm:$0xf]
        %v7864 = vld [vmem:[%s6312 + $0xbc] sm:$0x1]
        %v7913 = vrot.slane %v7817, 5
        %v7914 = vrot.slane %v7913, 4
        %v7915 = vrot.slane %v7818, 5
        %v7916 = vsel %vm1741, %v7914, %v7915
        %v7917 = vrot.slane %v7915, 4
        %v7918 = vrot.slane %v7819, 5
        %v7919 = vsel %vm1741, %v7917, %v7918
        %v7920 = vrot.slane %v7820, 5
        %v7921 = vrot.slane %v7920, 4
        %v7922 = vrot.slane %v7821, 5
        %v7923 = vsel %vm1741, %v7921, %v7922
        %v7924 = vrot.slane %v7922, 4
        %v7925 = vrot.slane %v7822, 5
        %v7926 = vsel %vm1741, %v7924, %v7925
        %v7927 = vrot.slane %v7823, 5
        %v7928 = vrot.slane %v7927, 4
        %v7929 = vrot.slane %v7824, 5
        %v7930 = vsel %vm1741, %v7928, %v7929
        %v7931 = vrot.slane %v7929, 4
        %v7932 = vrot.slane %v7825, 5
        %v7933 = vsel %vm1741, %v7931, %v7932
        %v7934 = vrot.slane %v7826, 5
        %v7935 = vrot.slane %v7934, 4
        %v7936 = vrot.slane %v7827, 5
        %v7937 = vsel %vm1741, %v7935, %v7936
        %v7938 = vrot.slane %v7936, 4
        %v7939 = vrot.slane %v7828, 5
        %v7940 = vsel %vm1741, %v7938, %v7939
        %v7941 = vrot.slane %v7829, 5
        %v7942 = vrot.slane %v7941, 4
        %v7943 = vrot.slane %v7830, 5
        %v7944 = vsel %vm1741, %v7942, %v7943
        %v7945 = vrot.slane %v7943, 4
        %v7946 = vrot.slane %v7831, 5
        %v7947 = vsel %vm1741, %v7945, %v7946
        %v7948 = vrot.slane %v7832, 5
        %v7949 = vrot.slane %v7948, 4
        %v7950 = vrot.slane %v7833, 5
        %v7951 = vsel %vm1741, %v7949, %v7950
        %v7952 = vrot.slane %v7950, 4
        %v7953 = vrot.slane %v7834, 5
        %v7954 = vsel %vm1741, %v7952, %v7953
        %v7955 = vrot.slane %v7835, 5
        %v7956 = vrot.slane %v7955, 4
        %v7957 = vrot.slane %v7836, 5
        %v7958 = vsel %vm1741, %v7956, %v7957
        %v7959 = vrot.slane %v7957, 4
        %v7960 = vrot.slane %v7837, 5
        %v7961 = vsel %vm1741, %v7959, %v7960
        %v7962 = vrot.slane %v7838, 5
        %v7963 = vrot.slane %v7962, 4
        %v7964 = vrot.slane %v7839, 5
        %v7965 = vsel %vm1741, %v7963, %v7964
        %v7966 = vrot.slane %v7964, 4
        %v7967 = vrot.slane %v7840, 5
        %v7968 = vsel %vm1741, %v7966, %v7967
        %v7969 = vrot.slane %v7841, 5
        %v7970 = vrot.slane %v7969, 4
        %v7971 = vrot.slane %v7842, 5
        %v7972 = vsel %vm1741, %v7970, %v7971
        %v7973 = vrot.slane %v7971, 4
        %v7974 = vrot.slane %v7843, 5
        %v7975 = vsel %vm1741, %v7973, %v7974
        %v7976 = vrot.slane %v7844, 5
        %v7977 = vrot.slane %v7976, 4
        %v7978 = vrot.slane %v7845, 5
        %v7979 = vsel %vm1741, %v7977, %v7978
        %v7980 = vrot.slane %v7978, 4
        %v7981 = vrot.slane %v7846, 5
        %v7982 = vsel %vm1741, %v7980, %v7981
        %v7983 = vrot.slane %v7847, 5
        %v7984 = vrot.slane %v7983, 4
        %v7985 = vrot.slane %v7848, 5
        %v7986 = vsel %vm1741, %v7984, %v7985
        %v7987 = vrot.slane %v7985, 4
        %v7988 = vrot.slane %v7849, 5
        %v7989 = vsel %vm1741, %v7987, %v7988
        %v7990 = vrot.slane %v7850, 5
        %v7991 = vrot.slane %v7990, 4
        %v7992 = vrot.slane %v7851, 5
        %v7993 = vsel %vm1741, %v7991, %v7992
        %v7994 = vrot.slane %v7992, 4
        %v7995 = vrot.slane %v7852, 5
        %v7996 = vsel %vm1741, %v7994, %v7995
        %v7997 = vrot.slane %v7853, 5
        %v7998 = vrot.slane %v7997, 4
        %v7999 = vrot.slane %v7854, 5
        %v8000 = vsel %vm1741, %v7998, %v7999
        %v8001 = vrot.slane %v7999, 4
        %v8002 = vrot.slane %v7855, 5
        %v8003 = vsel %vm1741, %v8001, %v8002
        %v8004 = vrot.slane %v7856, 5
        %v8005 = vrot.slane %v8004, 4
        %v8006 = vrot.slane %v7857, 5
        %v8007 = vsel %vm1741, %v8005, %v8006
        %v8008 = vrot.slane %v8006, 4
        %v8009 = vrot.slane %v7858, 5
        %v8010 = vsel %vm1741, %v8008, %v8009
        %v8011 = vrot.slane %v7859, 5
        %v8012 = vrot.slane %v8011, 4
        %v8013 = vrot.slane %v7860, 5
        %v8014 = vsel %vm1741, %v8012, %v8013
        %v8015 = vrot.slane %v8013, 4
        %v8016 = vrot.slane %v7861, 5
        %v8017 = vsel %vm1741, %v8015, %v8016
        %v8018 = vrot.slane %v7862, 5
        %v8019 = vrot.slane %v8018, 4
        %v8020 = vrot.slane %v7863, 5
        %v8021 = vsel %vm1741, %v8019, %v8020
        %v8022 = vrot.slane %v8020, 4
        %v8023 = vrot.slane %v7864, 5
        %v8024 = vsel %vm1741, %v8022, %v8023
        %8057 = vst [vmem:[#allocation5 + $0x14] sm:$0xf] %v7916
        %8058 = vst [vmem:[#allocation5 + $0x38] sm:$0xf] %v7919
        %8059 = vst [vmem:[#allocation5 + $0x5c] sm:$0xf] %v7923
        %8060 = vst [vmem:[#allocation5 + $0x80] sm:$0xf] %v7926
        %8061 = vst [vmem:[#allocation5 + $0xa4] sm:$0xf] %v7930
        %8062 = vst [vmem:[#allocation5 + $0xc8] sm:$0xf] %v7933
        %8063 = vst [vmem:[#allocation5 + $0xec] sm:$0xf] %v7937
        %8064 = vst [vmem:[#allocation5 + $0x110] sm:$0xf] %v7940
        %8065 = vst [vmem:[#allocation5 + $0x134] sm:$0xf] %v7944
        %8066 = vst [vmem:[#allocation5 + $0x158] sm:$0xf] %v7947
        %8067 = vst [vmem:[#allocation5 + $0x17c] sm:$0xf] %v7951
        %8068 = vst [vmem:[#allocation5 + $0x1a0] sm:$0xf] %v7954
        %8069 = vst [vmem:[#allocation5 + $0x1c4] sm:$0xf] %v7958
        %8070 = vst [vmem:[#allocation5 + $0x1e8] sm:$0xf] %v7961
        %8071 = vst [vmem:[#allocation5 + $0x20c] sm:$0xf] %v7965
        %8072 = vst [vmem:[#allocation5 + $0x230] sm:$0xf] %v7968
        %8073 = vst [vmem:[#allocation5 + $0x254] sm:$0xf] %v7972
        %8074 = vst [vmem:[#allocation5 + $0x278] sm:$0xf] %v7975
        %8075 = vst [vmem:[#allocation5 + $0x29c] sm:$0xf] %v7979
        %8076 = vst [vmem:[#allocation5 + $0x2c0] sm:$0xf] %v7982
        %8077 = vst [vmem:[#allocation5 + $0x2e4] sm:$0xf] %v7986
        %8078 = vst [vmem:[#allocation5 + $0x308] sm:$0xf] %v7989
        %8079 = vst [vmem:[#allocation5 + $0x32c] sm:$0xf] %v7993
        %8080 = vst [vmem:[#allocation5 + $0x350] sm:$0xf] %v7996
        %8081 = vst [vmem:[#allocation5 + $0x374] sm:$0xf] %v8000
        %8082 = vst [vmem:[#allocation5 + $0x398] sm:$0xf] %v8003
        %8083 = vst [vmem:[#allocation5 + $0x3bc] sm:$0xf] %v8007
        %8084 = vst [vmem:[#allocation5 + $0x3e0] sm:$0xf] %v8010
        %8085 = vst [vmem:[#allocation5 + $0x404] sm:$0xf] %v8014
        %8086 = vst [vmem:[#allocation5 + $0x428] sm:$0xf] %v8017
        %8087 = vst [vmem:[#allocation5 + $0x44c] sm:$0xf] %v8021
        %8088 = vst [vmem:[#allocation5 + $0x470] sm:$0xf] %v8024
        %s8089 = scalar_lea.vmem [#allocation3], 24
        %v8090 = vld [vmem:[%s8089] sm:$0xf]
        %v8091 = vld [vmem:[%s8089 + $0x4] sm:$0xf]
        %v8092 = vld [vmem:[%s8089 + $0xc] sm:$0xf]
        %v8093 = vld [vmem:[%s8089 + $0x10] sm:$0xf]
        %v8094 = vld [vmem:[%s8089 + $0x18] sm:$0xf]
        %v8095 = vld [vmem:[%s8089 + $0x1c] sm:$0xf]
        %v8096 = vld [vmem:[%s8089 + $0x24] sm:$0xf]
        %v8097 = vld [vmem:[%s8089 + $0x28] sm:$0xf]
        %v8098 = vld [vmem:[%s8089 + $0x30] sm:$0xf]
        %v8099 = vld [vmem:[%s8089 + $0x34] sm:$0xf]
        %v8100 = vld [vmem:[%s8089 + $0x3c] sm:$0xf]
        %v8101 = vld [vmem:[%s8089 + $0x40] sm:$0xf]
        %v8102 = vld [vmem:[%s8089 + $0x48] sm:$0xf]
        %v8103 = vld [vmem:[%s8089 + $0x4c] sm:$0xf]
        %v8104 = vld [vmem:[%s8089 + $0x54] sm:$0xf]
        %v8105 = vld [vmem:[%s8089 + $0x58] sm:$0xf]
        %v8106 = vld [vmem:[%s8089 + $0x60] sm:$0xf]
        %v8107 = vld [vmem:[%s8089 + $0x64] sm:$0xf]
        %v8108 = vld [vmem:[%s8089 + $0x6c] sm:$0xf]
        %v8109 = vld [vmem:[%s8089 + $0x70] sm:$0xf]
        %v8110 = vld [vmem:[%s8089 + $0x78] sm:$0xf]
        %v8111 = vld [vmem:[%s8089 + $0x7c] sm:$0xf]
        %v8112 = vld [vmem:[%s8089 + $0x84] sm:$0xf]
        %v8113 = vld [vmem:[%s8089 + $0x88] sm:$0xf]
        %v8114 = vld [vmem:[%s8089 + $0x90] sm:$0xf]
        %v8115 = vld [vmem:[%s8089 + $0x94] sm:$0xf]
        %v8116 = vld [vmem:[%s8089 + $0x9c] sm:$0xf]
        %v8117 = vld [vmem:[%s8089 + $0xa0] sm:$0xf]
        %v8118 = vld [vmem:[%s8089 + $0xa8] sm:$0xf]
        %v8119 = vld [vmem:[%s8089 + $0xac] sm:$0xf]
        %v8120 = vld [vmem:[%s8089 + $0xb4] sm:$0xf]
        %v8121 = vld [vmem:[%s8089 + $0xb8] sm:$0xf]
        %8122 = vst [vmem:[#allocation5 + $0x18] sm:$0xf] %v8090
        %8123 = vst [vmem:[#allocation5 + $0x3c] sm:$0xf] %v8091
        %8124 = vst [vmem:[#allocation5 + $0x60] sm:$0xf] %v8092
        %8125 = vst [vmem:[#allocation5 + $0x84] sm:$0xf] %v8093
        %8126 = vst [vmem:[#allocation5 + $0xa8] sm:$0xf] %v8094
        %8127 = vst [vmem:[#allocation5 + $0xcc] sm:$0xf] %v8095
        %8128 = vst [vmem:[#allocation5 + $0xf0] sm:$0xf] %v8096
        %8129 = vst [vmem:[#allocation5 + $0x114] sm:$0xf] %v8097
        %8130 = vst [vmem:[#allocation5 + $0x138] sm:$0xf] %v8098
        %8131 = vst [vmem:[#allocation5 + $0x15c] sm:$0xf] %v8099
        %8132 = vst [vmem:[#allocation5 + $0x180] sm:$0xf] %v8100
        %8133 = vst [vmem:[#allocation5 + $0x1a4] sm:$0xf] %v8101
        %8134 = vst [vmem:[#allocation5 + $0x1c8] sm:$0xf] %v8102
        %8135 = vst [vmem:[#allocation5 + $0x1ec] sm:$0xf] %v8103
        %8136 = vst [vmem:[#allocation5 + $0x210] sm:$0xf] %v8104
        %8137 = vst [vmem:[#allocation5 + $0x234] sm:$0xf] %v8105
        %8138 = vst [vmem:[#allocation5 + $0x258] sm:$0xf] %v8106
        %8139 = vst [vmem:[#allocation5 + $0x27c] sm:$0xf] %v8107
        %8140 = vst [vmem:[#allocation5 + $0x2a0] sm:$0xf] %v8108
        %8141 = vst [vmem:[#allocation5 + $0x2c4] sm:$0xf] %v8109
        %8142 = vst [vmem:[#allocation5 + $0x2e8] sm:$0xf] %v8110
        %8143 = vst [vmem:[#allocation5 + $0x30c] sm:$0xf] %v8111
        %8144 = vst [vmem:[#allocation5 + $0x330] sm:$0xf] %v8112
        %8145 = vst [vmem:[#allocation5 + $0x354] sm:$0xf] %v8113
        %8146 = vst [vmem:[#allocation5 + $0x378] sm:$0xf] %v8114
        %8147 = vst [vmem:[#allocation5 + $0x39c] sm:$0xf] %v8115
        %8148 = vst [vmem:[#allocation5 + $0x3c0] sm:$0xf] %v8116
        %8149 = vst [vmem:[#allocation5 + $0x3e4] sm:$0xf] %v8117
        %8150 = vst [vmem:[#allocation5 + $0x408] sm:$0xf] %v8118
        %8151 = vst [vmem:[#allocation5 + $0x42c] sm:$0xf] %v8119
        %8152 = vst [vmem:[#allocation5 + $0x450] sm:$0xf] %v8120
        %8153 = vst [vmem:[#allocation5 + $0x474] sm:$0xf] %v8121
        %v8154 = vld [vmem:[%s8089] sm:$0xf]
        %v8155 = vld [vmem:[%s8089 + $0x4] sm:$0xf]
        %v8156 = vld [vmem:[%s8089 + $0x8] sm:$0x1]
        %v8157 = vld [vmem:[%s8089 + $0xc] sm:$0xf]
        %v8158 = vld [vmem:[%s8089 + $0x10] sm:$0xf]
        %v8159 = vld [vmem:[%s8089 + $0x14] sm:$0x1]
        %v8160 = vld [vmem:[%s8089 + $0x18] sm:$0xf]
        %v8161 = vld [vmem:[%s8089 + $0x1c] sm:$0xf]
        %v8162 = vld [vmem:[%s8089 + $0x20] sm:$0x1]
        %v8163 = vld [vmem:[%s8089 + $0x24] sm:$0xf]
        %v8164 = vld [vmem:[%s8089 + $0x28] sm:$0xf]
        %v8165 = vld [vmem:[%s8089 + $0x2c] sm:$0x1]
        %v8166 = vld [vmem:[%s8089 + $0x30] sm:$0xf]
        %v8167 = vld [vmem:[%s8089 + $0x34] sm:$0xf]
        %v8168 = vld [vmem:[%s8089 + $0x38] sm:$0x1]
        %v8169 = vld [vmem:[%s8089 + $0x3c] sm:$0xf]
        %v8170 = vld [vmem:[%s8089 + $0x40] sm:$0xf]
        %v8171 = vld [vmem:[%s8089 + $0x44] sm:$0x1]
        %v8172 = vld [vmem:[%s8089 + $0x48] sm:$0xf]
        %v8173 = vld [vmem:[%s8089 + $0x4c] sm:$0xf]
        %v8174 = vld [vmem:[%s8089 + $0x50] sm:$0x1]
        %v8175 = vld [vmem:[%s8089 + $0x54] sm:$0xf]
        %v8176 = vld [vmem:[%s8089 + $0x58] sm:$0xf]
        %v8177 = vld [vmem:[%s8089 + $0x5c] sm:$0x1]
        %v8178 = vld [vmem:[%s8089 + $0x60] sm:$0xf]
        %v8179 = vld [vmem:[%s8089 + $0x64] sm:$0xf]
        %v8180 = vld [vmem:[%s8089 + $0x68] sm:$0x1]
        %v8181 = vld [vmem:[%s8089 + $0x6c] sm:$0xf]
        %v8182 = vld [vmem:[%s8089 + $0x70] sm:$0xf]
        %v8183 = vld [vmem:[%s8089 + $0x74] sm:$0x1]
        %v8184 = vld [vmem:[%s8089 + $0x78] sm:$0xf]
        %v8185 = vld [vmem:[%s8089 + $0x7c] sm:$0xf]
        %v8186 = vld [vmem:[%s8089 + $0x80] sm:$0x1]
        %v8187 = vld [vmem:[%s8089 + $0x84] sm:$0xf]
        %v8188 = vld [vmem:[%s8089 + $0x88] sm:$0xf]
        %v8189 = vld [vmem:[%s8089 + $0x8c] sm:$0x1]
        %v8190 = vld [vmem:[%s8089 + $0x90] sm:$0xf]
        %v8191 = vld [vmem:[%s8089 + $0x94] sm:$0xf]
        %v8192 = vld [vmem:[%s8089 + $0x98] sm:$0x1]
        %v8193 = vld [vmem:[%s8089 + $0x9c] sm:$0xf]
        %v8194 = vld [vmem:[%s8089 + $0xa0] sm:$0xf]
        %v8195 = vld [vmem:[%s8089 + $0xa4] sm:$0x1]
        %v8196 = vld [vmem:[%s8089 + $0xa8] sm:$0xf]
        %v8197 = vld [vmem:[%s8089 + $0xac] sm:$0xf]
        %v8198 = vld [vmem:[%s8089 + $0xb0] sm:$0x1]
        %v8199 = vld [vmem:[%s8089 + $0xb4] sm:$0xf]
        %v8200 = vld [vmem:[%s8089 + $0xb8] sm:$0xf]
        %v8201 = vld [vmem:[%s8089 + $0xbc] sm:$0x1]
        %v8203 = vshrl.u32 %v8154, 16
        %v8205 = vrot.slane %v8203, 4
        %v8206 = vshll.u32 %v8154, 16
        %v8208 = vrot.slane %v8206, 5
        %v8209 = vor.u32 %v8205, %v8208
        %v8210 = vrot.slane %v8209, 4
        %v8212 = vshll.u32 %v8155, 16
        %v8214 = vrot.slane %v8212, 5
        %v8215 = vsel %vm1194, %v8210, %v8214
        %v8216 = vshrl.u32 %v8155, 16
        %v8218 = vrot.slane %v8216, 4
        %v8219 = vor.u32 %v8218, %v8214
        %v8220 = vrot.slane %v8219, 4
        %v8222 = vshll.u32 %v8156, 16
        %v8224 = vrot.slane %v8222, 5
        %v8225 = vsel %vm1194, %v8220, %v8224
        %v8227 = vshrl.u32 %v8157, 16
        %v8229 = vrot.slane %v8227, 4
        %v8230 = vshll.u32 %v8157, 16
        %v8232 = vrot.slane %v8230, 5
        %v8233 = vor.u32 %v8229, %v8232
        %v8234 = vrot.slane %v8233, 4
        %v8236 = vshll.u32 %v8158, 16
        %v8238 = vrot.slane %v8236, 5
        %v8239 = vsel %vm1194, %v8234, %v8238
        %v8240 = vshrl.u32 %v8158, 16
        %v8242 = vrot.slane %v8240, 4
        %v8243 = vor.u32 %v8242, %v8238
        %v8244 = vrot.slane %v8243, 4
        %v8246 = vshll.u32 %v8159, 16
        %v8248 = vrot.slane %v8246, 5
        %v8249 = vsel %vm1194, %v8244, %v8248
        %v8251 = vshrl.u32 %v8160, 16
        %v8253 = vrot.slane %v8251, 4
        %v8254 = vshll.u32 %v8160, 16
        %v8256 = vrot.slane %v8254, 5
        %v8257 = vor.u32 %v8253, %v8256
        %v8258 = vrot.slane %v8257, 4
        %v8260 = vshll.u32 %v8161, 16
        %v8262 = vrot.slane %v8260, 5
        %v8263 = vsel %vm1194, %v8258, %v8262
        %v8264 = vshrl.u32 %v8161, 16
        %v8266 = vrot.slane %v8264, 4
        %v8267 = vor.u32 %v8266, %v8262
        %v8268 = vrot.slane %v8267, 4
        %v8270 = vshll.u32 %v8162, 16
        %v8272 = vrot.slane %v8270, 5
        %v8273 = vsel %vm1194, %v8268, %v8272
        %v8275 = vshrl.u32 %v8163, 16
        %v8277 = vrot.slane %v8275, 4
        %v8278 = vshll.u32 %v8163, 16
        %v8280 = vrot.slane %v8278, 5
        %v8281 = vor.u32 %v8277, %v8280
        %v8282 = vrot.slane %v8281, 4
        %v8284 = vshll.u32 %v8164, 16
        %v8286 = vrot.slane %v8284, 5
        %v8287 = vsel %vm1194, %v8282, %v8286
        %v8288 = vshrl.u32 %v8164, 16
        %v8290 = vrot.slane %v8288, 4
        %v8291 = vor.u32 %v8290, %v8286
        %v8292 = vrot.slane %v8291, 4
        %v8294 = vshll.u32 %v8165, 16
        %v8296 = vrot.slane %v8294, 5
        %v8297 = vsel %vm1194, %v8292, %v8296
        %v8299 = vshrl.u32 %v8166, 16
        %v8301 = vrot.slane %v8299, 4
        %v8302 = vshll.u32 %v8166, 16
        %v8304 = vrot.slane %v8302, 5
        %v8305 = vor.u32 %v8301, %v8304
        %v8306 = vrot.slane %v8305, 4
        %v8308 = vshll.u32 %v8167, 16
        %v8310 = vrot.slane %v8308, 5
        %v8311 = vsel %vm1194, %v8306, %v8310
        %v8312 = vshrl.u32 %v8167, 16
        %v8314 = vrot.slane %v8312, 4
        %v8315 = vor.u32 %v8314, %v8310
        %v8316 = vrot.slane %v8315, 4
        %v8318 = vshll.u32 %v8168, 16
        %v8320 = vrot.slane %v8318, 5
        %v8321 = vsel %vm1194, %v8316, %v8320
        %v8323 = vshrl.u32 %v8169, 16
        %v8325 = vrot.slane %v8323, 4
        %v8326 = vshll.u32 %v8169, 16
        %v8328 = vrot.slane %v8326, 5
        %v8329 = vor.u32 %v8325, %v8328
        %v8330 = vrot.slane %v8329, 4
        %v8332 = vshll.u32 %v8170, 16
        %v8334 = vrot.slane %v8332, 5
        %v8335 = vsel %vm1194, %v8330, %v8334
        %v8336 = vshrl.u32 %v8170, 16
        %v8338 = vrot.slane %v8336, 4
        %v8339 = vor.u32 %v8338, %v8334
        %v8340 = vrot.slane %v8339, 4
        %v8342 = vshll.u32 %v8171, 16
        %v8344 = vrot.slane %v8342, 5
        %v8345 = vsel %vm1194, %v8340, %v8344
        %v8347 = vshrl.u32 %v8172, 16
        %v8349 = vrot.slane %v8347, 4
        %v8350 = vshll.u32 %v8172, 16
        %v8352 = vrot.slane %v8350, 5
        %v8353 = vor.u32 %v8349, %v8352
        %v8354 = vrot.slane %v8353, 4
        %v8356 = vshll.u32 %v8173, 16
        %v8358 = vrot.slane %v8356, 5
        %v8359 = vsel %vm1194, %v8354, %v8358
        %v8360 = vshrl.u32 %v8173, 16
        %v8362 = vrot.slane %v8360, 4
        %v8363 = vor.u32 %v8362, %v8358
        %v8364 = vrot.slane %v8363, 4
        %v8366 = vshll.u32 %v8174, 16
        %v8368 = vrot.slane %v8366, 5
        %v8369 = vsel %vm1194, %v8364, %v8368
        %v8371 = vshrl.u32 %v8175, 16
        %v8373 = vrot.slane %v8371, 4
        %v8374 = vshll.u32 %v8175, 16
        %v8376 = vrot.slane %v8374, 5
        %v8377 = vor.u32 %v8373, %v8376
        %v8378 = vrot.slane %v8377, 4
        %v8380 = vshll.u32 %v8176, 16
        %v8382 = vrot.slane %v8380, 5
        %v8383 = vsel %vm1194, %v8378, %v8382
        %v8384 = vshrl.u32 %v8176, 16
        %v8386 = vrot.slane %v8384, 4
        %v8387 = vor.u32 %v8386, %v8382
        %v8388 = vrot.slane %v8387, 4
        %v8390 = vshll.u32 %v8177, 16
        %v8392 = vrot.slane %v8390, 5
        %v8393 = vsel %vm1194, %v8388, %v8392
        %v8395 = vshrl.u32 %v8178, 16
        %v8397 = vrot.slane %v8395, 4
        %v8398 = vshll.u32 %v8178, 16
        %v8400 = vrot.slane %v8398, 5
        %v8401 = vor.u32 %v8397, %v8400
        %v8402 = vrot.slane %v8401, 4
        %v8404 = vshll.u32 %v8179, 16
        %v8406 = vrot.slane %v8404, 5
        %v8407 = vsel %vm1194, %v8402, %v8406
        %v8408 = vshrl.u32 %v8179, 16
        %v8410 = vrot.slane %v8408, 4
        %v8411 = vor.u32 %v8410, %v8406
        %v8412 = vrot.slane %v8411, 4
        %v8414 = vshll.u32 %v8180, 16
        %v8416 = vrot.slane %v8414, 5
        %v8417 = vsel %vm1194, %v8412, %v8416
        %v8419 = vshrl.u32 %v8181, 16
        %v8421 = vrot.slane %v8419, 4
        %v8422 = vshll.u32 %v8181, 16
        %v8424 = vrot.slane %v8422, 5
        %v8425 = vor.u32 %v8421, %v8424
        %v8426 = vrot.slane %v8425, 4
        %v8428 = vshll.u32 %v8182, 16
        %v8430 = vrot.slane %v8428, 5
        %v8431 = vsel %vm1194, %v8426, %v8430
        %v8432 = vshrl.u32 %v8182, 16
        %v8434 = vrot.slane %v8432, 4
        %v8435 = vor.u32 %v8434, %v8430
        %v8436 = vrot.slane %v8435, 4
        %v8438 = vshll.u32 %v8183, 16
        %v8440 = vrot.slane %v8438, 5
        %v8441 = vsel %vm1194, %v8436, %v8440
        %v8443 = vshrl.u32 %v8184, 16
        %v8445 = vrot.slane %v8443, 4
        %v8446 = vshll.u32 %v8184, 16
        %v8448 = vrot.slane %v8446, 5
        %v8449 = vor.u32 %v8445, %v8448
        %v8450 = vrot.slane %v8449, 4
        %v8452 = vshll.u32 %v8185, 16
        %v8454 = vrot.slane %v8452, 5
        %v8455 = vsel %vm1194, %v8450, %v8454
        %v8456 = vshrl.u32 %v8185, 16
        %v8458 = vrot.slane %v8456, 4
        %v8459 = vor.u32 %v8458, %v8454
        %v8460 = vrot.slane %v8459, 4
        %v8462 = vshll.u32 %v8186, 16
        %v8464 = vrot.slane %v8462, 5
        %v8465 = vsel %vm1194, %v8460, %v8464
        %v8467 = vshrl.u32 %v8187, 16
        %v8469 = vrot.slane %v8467, 4
        %v8470 = vshll.u32 %v8187, 16
        %v8472 = vrot.slane %v8470, 5
        %v8473 = vor.u32 %v8469, %v8472
        %v8474 = vrot.slane %v8473, 4
        %v8476 = vshll.u32 %v8188, 16
        %v8478 = vrot.slane %v8476, 5
        %v8479 = vsel %vm1194, %v8474, %v8478
        %v8480 = vshrl.u32 %v8188, 16
        %v8482 = vrot.slane %v8480, 4
        %v8483 = vor.u32 %v8482, %v8478
        %v8484 = vrot.slane %v8483, 4
        %v8486 = vshll.u32 %v8189, 16
        %v8488 = vrot.slane %v8486, 5
        %v8489 = vsel %vm1194, %v8484, %v8488
        %v8491 = vshrl.u32 %v8190, 16
        %v8493 = vrot.slane %v8491, 4
        %v8494 = vshll.u32 %v8190, 16
        %v8496 = vrot.slane %v8494, 5
        %v8497 = vor.u32 %v8493, %v8496
        %v8498 = vrot.slane %v8497, 4
        %v8500 = vshll.u32 %v8191, 16
        %v8502 = vrot.slane %v8500, 5
        %v8503 = vsel %vm1194, %v8498, %v8502
        %v8504 = vshrl.u32 %v8191, 16
        %v8506 = vrot.slane %v8504, 4
        %v8507 = vor.u32 %v8506, %v8502
        %v8508 = vrot.slane %v8507, 4
        %v8510 = vshll.u32 %v8192, 16
        %v8512 = vrot.slane %v8510, 5
        %v8513 = vsel %vm1194, %v8508, %v8512
        %v8515 = vshrl.u32 %v8193, 16
        %v8517 = vrot.slane %v8515, 4
        %v8518 = vshll.u32 %v8193, 16
        %v8520 = vrot.slane %v8518, 5
        %v8521 = vor.u32 %v8517, %v8520
        %v8522 = vrot.slane %v8521, 4
        %v8524 = vshll.u32 %v8194, 16
        %v8526 = vrot.slane %v8524, 5
        %v8527 = vsel %vm1194, %v8522, %v8526
        %v8528 = vshrl.u32 %v8194, 16
        %v8530 = vrot.slane %v8528, 4
        %v8531 = vor.u32 %v8530, %v8526
        %v8532 = vrot.slane %v8531, 4
        %v8534 = vshll.u32 %v8195, 16
        %v8536 = vrot.slane %v8534, 5
        %v8537 = vsel %vm1194, %v8532, %v8536
        %v8539 = vshrl.u32 %v8196, 16
        %v8541 = vrot.slane %v8539, 4
        %v8542 = vshll.u32 %v8196, 16
        %v8544 = vrot.slane %v8542, 5
        %v8545 = vor.u32 %v8541, %v8544
        %v8546 = vrot.slane %v8545, 4
        %v8548 = vshll.u32 %v8197, 16
        %v8550 = vrot.slane %v8548, 5
        %v8551 = vsel %vm1194, %v8546, %v8550
        %v8552 = vshrl.u32 %v8197, 16
        %v8554 = vrot.slane %v8552, 4
        %v8555 = vor.u32 %v8554, %v8550
        %v8556 = vrot.slane %v8555, 4
        %v8558 = vshll.u32 %v8198, 16
        %v8560 = vrot.slane %v8558, 5
        %v8561 = vsel %vm1194, %v8556, %v8560
        %v8563 = vshrl.u32 %v8199, 16
        %v8565 = vrot.slane %v8563, 4
        %v8566 = vshll.u32 %v8199, 16
        %v8568 = vrot.slane %v8566, 5
        %v8569 = vor.u32 %v8565, %v8568
        %v8570 = vrot.slane %v8569, 4
        %v8572 = vshll.u32 %v8200, 16
        %v8574 = vrot.slane %v8572, 5
        %v8575 = vsel %vm1194, %v8570, %v8574
        %v8576 = vshrl.u32 %v8200, 16
        %v8578 = vrot.slane %v8576, 4
        %v8579 = vor.u32 %v8578, %v8574
        %v8580 = vrot.slane %v8579, 4
        %v8582 = vshll.u32 %v8201, 16
        %v8584 = vrot.slane %v8582, 5
        %v8585 = vsel %vm1194, %v8580, %v8584
        %8618 = vst [vmem:[#allocation5 + $0x1c] sm:$0xf] %v8215
        %8619 = vst [vmem:[#allocation5 + $0x40] sm:$0xf] %v8225
        %8620 = vst [vmem:[#allocation5 + $0x64] sm:$0xf] %v8239
        %8621 = vst [vmem:[#allocation5 + $0x88] sm:$0xf] %v8249
        %8622 = vst [vmem:[#allocation5 + $0xac] sm:$0xf] %v8263
        %8623 = vst [vmem:[#allocation5 + $0xd0] sm:$0xf] %v8273
        %8624 = vst [vmem:[#allocation5 + $0xf4] sm:$0xf] %v8287
        %8625 = vst [vmem:[#allocation5 + $0x118] sm:$0xf] %v8297
        %8626 = vst [vmem:[#allocation5 + $0x13c] sm:$0xf] %v8311
        %8627 = vst [vmem:[#allocation5 + $0x160] sm:$0xf] %v8321
        %8628 = vst [vmem:[#allocation5 + $0x184] sm:$0xf] %v8335
        %8629 = vst [vmem:[#allocation5 + $0x1a8] sm:$0xf] %v8345
        %8630 = vst [vmem:[#allocation5 + $0x1cc] sm:$0xf] %v8359
        %8631 = vst [vmem:[#allocation5 + $0x1f0] sm:$0xf] %v8369
        %8632 = vst [vmem:[#allocation5 + $0x214] sm:$0xf] %v8383
        %8633 = vst [vmem:[#allocation5 + $0x238] sm:$0xf] %v8393
        %8634 = vst [vmem:[#allocation5 + $0x25c] sm:$0xf] %v8407
        %8635 = vst [vmem:[#allocation5 + $0x280] sm:$0xf] %v8417
        %8636 = vst [vmem:[#allocation5 + $0x2a4] sm:$0xf] %v8431
        %8637 = vst [vmem:[#allocation5 + $0x2c8] sm:$0xf] %v8441
        %8638 = vst [vmem:[#allocation5 + $0x2ec] sm:$0xf] %v8455
        %8639 = vst [vmem:[#allocation5 + $0x310] sm:$0xf] %v8465
        %8640 = vst [vmem:[#allocation5 + $0x334] sm:$0xf] %v8479
        %8641 = vst [vmem:[#allocation5 + $0x358] sm:$0xf] %v8489
        %8642 = vst [vmem:[#allocation5 + $0x37c] sm:$0xf] %v8503
        %8643 = vst [vmem:[#allocation5 + $0x3a0] sm:$0xf] %v8513
        %8644 = vst [vmem:[#allocation5 + $0x3c4] sm:$0xf] %v8527
        %8645 = vst [vmem:[#allocation5 + $0x3e8] sm:$0xf] %v8537
        %8646 = vst [vmem:[#allocation5 + $0x40c] sm:$0xf] %v8551
        %8647 = vst [vmem:[#allocation5 + $0x430] sm:$0xf] %v8561
        %8648 = vst [vmem:[#allocation5 + $0x454] sm:$0xf] %v8575
        %8649 = vst [vmem:[#allocation5 + $0x478] sm:$0xf] %v8585
        %v8650 = vld [vmem:[%s8089] sm:$0xe]
        %v8651 = vld [vmem:[%s8089 + $0x4] sm:$0xf]
        %v8652 = vld [vmem:[%s8089 + $0x8] sm:$0x1]
        %v8653 = vld [vmem:[%s8089 + $0xc] sm:$0xe]
        %v8654 = vld [vmem:[%s8089 + $0x10] sm:$0xf]
        %v8655 = vld [vmem:[%s8089 + $0x14] sm:$0x1]
        %v8656 = vld [vmem:[%s8089 + $0x18] sm:$0xe]
        %v8657 = vld [vmem:[%s8089 + $0x1c] sm:$0xf]
        %v8658 = vld [vmem:[%s8089 + $0x20] sm:$0x1]
        %v8659 = vld [vmem:[%s8089 + $0x24] sm:$0xe]
        %v8660 = vld [vmem:[%s8089 + $0x28] sm:$0xf]
        %v8661 = vld [vmem:[%s8089 + $0x2c] sm:$0x1]
        %v8662 = vld [vmem:[%s8089 + $0x30] sm:$0xe]
        %v8663 = vld [vmem:[%s8089 + $0x34] sm:$0xf]
        %v8664 = vld [vmem:[%s8089 + $0x38] sm:$0x1]
        %v8665 = vld [vmem:[%s8089 + $0x3c] sm:$0xe]
        %v8666 = vld [vmem:[%s8089 + $0x40] sm:$0xf]
        %v8667 = vld [vmem:[%s8089 + $0x44] sm:$0x1]
        %v8668 = vld [vmem:[%s8089 + $0x48] sm:$0xe]
        %v8669 = vld [vmem:[%s8089 + $0x4c] sm:$0xf]
        %v8670 = vld [vmem:[%s8089 + $0x50] sm:$0x1]
        %v8671 = vld [vmem:[%s8089 + $0x54] sm:$0xe]
        %v8672 = vld [vmem:[%s8089 + $0x58] sm:$0xf]
        %v8673 = vld [vmem:[%s8089 + $0x5c] sm:$0x1]
        %v8674 = vld [vmem:[%s8089 + $0x60] sm:$0xe]
        %v8675 = vld [vmem:[%s8089 + $0x64] sm:$0xf]
        %v8676 = vld [vmem:[%s8089 + $0x68] sm:$0x1]
        %v8677 = vld [vmem:[%s8089 + $0x6c] sm:$0xe]
        %v8678 = vld [vmem:[%s8089 + $0x70] sm:$0xf]
        %v8679 = vld [vmem:[%s8089 + $0x74] sm:$0x1]
        %v8680 = vld [vmem:[%s8089 + $0x78] sm:$0xe]
        %v8681 = vld [vmem:[%s8089 + $0x7c] sm:$0xf]
        %v8682 = vld [vmem:[%s8089 + $0x80] sm:$0x1]
        %v8683 = vld [vmem:[%s8089 + $0x84] sm:$0xe]
        %v8684 = vld [vmem:[%s8089 + $0x88] sm:$0xf]
        %v8685 = vld [vmem:[%s8089 + $0x8c] sm:$0x1]
        %v8686 = vld [vmem:[%s8089 + $0x90] sm:$0xe]
        %v8687 = vld [vmem:[%s8089 + $0x94] sm:$0xf]
        %v8688 = vld [vmem:[%s8089 + $0x98] sm:$0x1]
        %v8689 = vld [vmem:[%s8089 + $0x9c] sm:$0xe]
        %v8690 = vld [vmem:[%s8089 + $0xa0] sm:$0xf]
        %v8691 = vld [vmem:[%s8089 + $0xa4] sm:$0x1]
        %v8692 = vld [vmem:[%s8089 + $0xa8] sm:$0xe]
        %v8693 = vld [vmem:[%s8089 + $0xac] sm:$0xf]
        %v8694 = vld [vmem:[%s8089 + $0xb0] sm:$0x1]
        %v8695 = vld [vmem:[%s8089 + $0xb4] sm:$0xe]
        %v8696 = vld [vmem:[%s8089 + $0xb8] sm:$0xf]
        %v8697 = vld [vmem:[%s8089 + $0xbc] sm:$0x1]
        %v8746 = vrot.slane %v8650, 5
        %v8747 = vrot.slane %v8746, 4
        %v8748 = vrot.slane %v8651, 5
        %v8749 = vsel %vm1741, %v8747, %v8748
        %v8750 = vrot.slane %v8748, 4
        %v8751 = vrot.slane %v8652, 5
        %v8752 = vsel %vm1741, %v8750, %v8751
        %v8753 = vrot.slane %v8653, 5
        %v8754 = vrot.slane %v8753, 4
        %v8755 = vrot.slane %v8654, 5
        %v8756 = vsel %vm1741, %v8754, %v8755
        %v8757 = vrot.slane %v8755, 4
        %v8758 = vrot.slane %v8655, 5
        %v8759 = vsel %vm1741, %v8757, %v8758
        %v8760 = vrot.slane %v8656, 5
        %v8761 = vrot.slane %v8760, 4
        %v8762 = vrot.slane %v8657, 5
        %v8763 = vsel %vm1741, %v8761, %v8762
        %v8764 = vrot.slane %v8762, 4
        %v8765 = vrot.slane %v8658, 5
        %v8766 = vsel %vm1741, %v8764, %v8765
        %v8767 = vrot.slane %v8659, 5
        %v8768 = vrot.slane %v8767, 4
        %v8769 = vrot.slane %v8660, 5
        %v8770 = vsel %vm1741, %v8768, %v8769
        %v8771 = vrot.slane %v8769, 4
        %v8772 = vrot.slane %v8661, 5
        %v8773 = vsel %vm1741, %v8771, %v8772
        %v8774 = vrot.slane %v8662, 5
        %v8775 = vrot.slane %v8774, 4
        %v8776 = vrot.slane %v8663, 5
        %v8777 = vsel %vm1741, %v8775, %v8776
        %v8778 = vrot.slane %v8776, 4
        %v8779 = vrot.slane %v8664, 5
        %v8780 = vsel %vm1741, %v8778, %v8779
        %v8781 = vrot.slane %v8665, 5
        %v8782 = vrot.slane %v8781, 4
        %v8783 = vrot.slane %v8666, 5
        %v8784 = vsel %vm1741, %v8782, %v8783
        %v8785 = vrot.slane %v8783, 4
        %v8786 = vrot.slane %v8667, 5
        %v8787 = vsel %vm1741, %v8785, %v8786
        %v8788 = vrot.slane %v8668, 5
        %v8789 = vrot.slane %v8788, 4
        %v8790 = vrot.slane %v8669, 5
        %v8791 = vsel %vm1741, %v8789, %v8790
        %v8792 = vrot.slane %v8790, 4
        %v8793 = vrot.slane %v8670, 5
        %v8794 = vsel %vm1741, %v8792, %v8793
        %v8795 = vrot.slane %v8671, 5
        %v8796 = vrot.slane %v8795, 4
        %v8797 = vrot.slane %v8672, 5
        %v8798 = vsel %vm1741, %v8796, %v8797
        %v8799 = vrot.slane %v8797, 4
        %v8800 = vrot.slane %v8673, 5
        %v8801 = vsel %vm1741, %v8799, %v8800
        %v8802 = vrot.slane %v8674, 5
        %v8803 = vrot.slane %v8802, 4
        %v8804 = vrot.slane %v8675, 5
        %v8805 = vsel %vm1741, %v8803, %v8804
        %v8806 = vrot.slane %v8804, 4
        %v8807 = vrot.slane %v8676, 5
        %v8808 = vsel %vm1741, %v8806, %v8807
        %v8809 = vrot.slane %v8677, 5
        %v8810 = vrot.slane %v8809, 4
        %v8811 = vrot.slane %v8678, 5
        %v8812 = vsel %vm1741, %v8810, %v8811
        %v8813 = vrot.slane %v8811, 4
        %v8814 = vrot.slane %v8679, 5
        %v8815 = vsel %vm1741, %v8813, %v8814
        %v8816 = vrot.slane %v8680, 5
        %v8817 = vrot.slane %v8816, 4
        %v8818 = vrot.slane %v8681, 5
        %v8819 = vsel %vm1741, %v8817, %v8818
        %v8820 = vrot.slane %v8818, 4
        %v8821 = vrot.slane %v8682, 5
        %v8822 = vsel %vm1741, %v8820, %v8821
        %v8823 = vrot.slane %v8683, 5
        %v8824 = vrot.slane %v8823, 4
        %v8825 = vrot.slane %v8684, 5
        %v8826 = vsel %vm1741, %v8824, %v8825
        %v8827 = vrot.slane %v8825, 4
        %v8828 = vrot.slane %v8685, 5
        %v8829 = vsel %vm1741, %v8827, %v8828
        %v8830 = vrot.slane %v8686, 5
        %v8831 = vrot.slane %v8830, 4
        %v8832 = vrot.slane %v8687, 5
        %v8833 = vsel %vm1741, %v8831, %v8832
        %v8834 = vrot.slane %v8832, 4
        %v8835 = vrot.slane %v8688, 5
        %v8836 = vsel %vm1741, %v8834, %v8835
        %v8837 = vrot.slane %v8689, 5
        %v8838 = vrot.slane %v8837, 4
        %v8839 = vrot.slane %v8690, 5
        %v8840 = vsel %vm1741, %v8838, %v8839
        %v8841 = vrot.slane %v8839, 4
        %v8842 = vrot.slane %v8691, 5
        %v8843 = vsel %vm1741, %v8841, %v8842
        %v8844 = vrot.slane %v8692, 5
        %v8845 = vrot.slane %v8844, 4
        %v8846 = vrot.slane %v8693, 5
        %v8847 = vsel %vm1741, %v8845, %v8846
        %v8848 = vrot.slane %v8846, 4
        %v8849 = vrot.slane %v8694, 5
        %v8850 = vsel %vm1741, %v8848, %v8849
        %v8851 = vrot.slane %v8695, 5
        %v8852 = vrot.slane %v8851, 4
        %v8853 = vrot.slane %v8696, 5
        %v8854 = vsel %vm1741, %v8852, %v8853
        %v8855 = vrot.slane %v8853, 4
        %v8856 = vrot.slane %v8697, 5
        %v8857 = vsel %vm1741, %v8855, %v8856
        %8890 = vst [vmem:[#allocation5 + $0x20] sm:$0xf] %v8749
        %8891 = vst [vmem:[#allocation5 + $0x44] sm:$0xf] %v8752
        %8892 = vst [vmem:[#allocation5 + $0x68] sm:$0xf] %v8756
        %8893 = vst [vmem:[#allocation5 + $0x8c] sm:$0xf] %v8759
        %8894 = vst [vmem:[#allocation5 + $0xb0] sm:$0xf] %v8763
        %8895 = vst [vmem:[#allocation5 + $0xd4] sm:$0xf] %v8766
        %8896 = vst [vmem:[#allocation5 + $0xf8] sm:$0xf] %v8770
        %8897 = vst [vmem:[#allocation5 + $0x11c] sm:$0xf] %v8773
        %8898 = vst [vmem:[#allocation5 + $0x140] sm:$0xf] %v8777
        %8899 = vst [vmem:[#allocation5 + $0x164] sm:$0xf] %v8780
        %8900 = vst [vmem:[#allocation5 + $0x188] sm:$0xf] %v8784
        %8901 = vst [vmem:[#allocation5 + $0x1ac] sm:$0xf] %v8787
        %8902 = vst [vmem:[#allocation5 + $0x1d0] sm:$0xf] %v8791
        %8903 = vst [vmem:[#allocation5 + $0x1f4] sm:$0xf] %v8794
        %8904 = vst [vmem:[#allocation5 + $0x218] sm:$0xf] %v8798
        %8905 = vst [vmem:[#allocation5 + $0x23c] sm:$0xf] %v8801
        %8906 = vst [vmem:[#allocation5 + $0x260] sm:$0xf] %v8805
        %8907 = vst [vmem:[#allocation5 + $0x284] sm:$0xf] %v8808
        %8908 = vst [vmem:[#allocation5 + $0x2a8] sm:$0xf] %v8812
        %8909 = vst [vmem:[#allocation5 + $0x2cc] sm:$0xf] %v8815
        %8910 = vst [vmem:[#allocation5 + $0x2f0] sm:$0xf] %v8819
        %8911 = vst [vmem:[#allocation5 + $0x314] sm:$0xf] %v8822
        %8912 = vst [vmem:[#allocation5 + $0x338] sm:$0xf] %v8826
        %8913 = vst [vmem:[#allocation5 + $0x35c] sm:$0xf] %v8829
        %8914 = vst [vmem:[#allocation5 + $0x380] sm:$0xf] %v8833
        %8915 = vst [vmem:[#allocation5 + $0x3a4] sm:$0xf] %v8836
        %8916 = vst [vmem:[#allocation5 + $0x3c8] sm:$0xf] %v8840
        %8917 = vst [vmem:[#allocation5 + $0x3ec] sm:$0xf] %v8843
        %8918 = vst [vmem:[#allocation5 + $0x410] sm:$0xf] %v8847
        %8919 = vst [vmem:[#allocation5 + $0x434] sm:$0xf] %v8850
        %8920 = vst [vmem:[#allocation5 + $0x458] sm:$0xf] %v8854
        %8921 = vst [vmem:[#allocation5 + $0x47c] sm:$0xf] %v8857
        %v8922 = vld [vmem:[#allocation5] sm:$0xff]
        %v8923 = vld [vmem:[#allocation5 + $0x8] sm:$0xff]
        %v8924 = vld [vmem:[#allocation5 + $0x10] sm:$0xff]
        %v8925 = vld [vmem:[#allocation5 + $0x18] sm:$0xff]
        %v8926 = vld [vmem:[#allocation5 + $0x20] sm:$0xf]
        %v8927 = vld [vmem:[#allocation5 + $0x24] sm:$0xff]
        %v8928 = vld [vmem:[#allocation5 + $0x2c] sm:$0xff]
        %v8929 = vld [vmem:[#allocation5 + $0x34] sm:$0xff]
        %v8930 = vld [vmem:[#allocation5 + $0x3c] sm:$0xff]
        %v8931 = vld [vmem:[#allocation5 + $0x44] sm:$0xf]
        %v8932 = vld [vmem:[#allocation5 + $0x48] sm:$0xff]
        %v8933 = vld [vmem:[#allocation5 + $0x50] sm:$0xff]
        %v8934 = vld [vmem:[#allocation5 + $0x58] sm:$0xff]
        %v8935 = vld [vmem:[#allocation5 + $0x60] sm:$0xff]
        %v8936 = vld [vmem:[#allocation5 + $0x68] sm:$0xf]
        %v8937 = vld [vmem:[#allocation5 + $0x6c] sm:$0xff]
        %v8938 = vld [vmem:[#allocation5 + $0x74] sm:$0xff]
        %v8939 = vld [vmem:[#allocation5 + $0x7c] sm:$0xff]
        %v8940 = vld [vmem:[#allocation5 + $0x84] sm:$0xff]
        %v8941 = vld [vmem:[#allocation5 + $0x8c] sm:$0xf]
        %v8942 = vld [vmem:[#allocation5 + $0x90] sm:$0xff]
        %v8943 = vld [vmem:[#allocation5 + $0x98] sm:$0xff]
        %v8944 = vld [vmem:[#allocation5 + $0xa0] sm:$0xff]
        %v8945 = vld [vmem:[#allocation5 + $0xa8] sm:$0xff]
        %v8946 = vld [vmem:[#allocation5 + $0xb0] sm:$0xf]
        %v8947 = vld [vmem:[#allocation5 + $0xb4] sm:$0xff]
        %v8948 = vld [vmem:[#allocation5 + $0xbc] sm:$0xff]
        %v8949 = vld [vmem:[#allocation5 + $0xc4] sm:$0xff]
        %v8950 = vld [vmem:[#allocation5 + $0xcc] sm:$0xff]
        %v8951 = vld [vmem:[#allocation5 + $0xd4] sm:$0xf]
        %v8952 = vld [vmem:[#allocation5 + $0xd8] sm:$0xff]
        %v8953 = vld [vmem:[#allocation5 + $0xe0] sm:$0xff]
        %v8954 = vld [vmem:[#allocation5 + $0xe8] sm:$0xff]
        %v8955 = vld [vmem:[#allocation5 + $0xf0] sm:$0xff]
        %v8956 = vld [vmem:[#allocation5 + $0xf8] sm:$0xf]
        %v8957 = vld [vmem:[#allocation5 + $0xfc] sm:$0xff]
        %v8958 = vld [vmem:[#allocation5 + $0x104] sm:$0xff]
        %v8959 = vld [vmem:[#allocation5 + $0x10c] sm:$0xff]
        %v8960 = vld [vmem:[#allocation5 + $0x114] sm:$0xff]
        %v8961 = vld [vmem:[#allocation5 + $0x11c] sm:$0xf]
        %v8962 = vld [vmem:[#allocation5 + $0x120] sm:$0xff]
        %v8963 = vld [vmem:[#allocation5 + $0x128] sm:$0xff]
        %v8964 = vld [vmem:[#allocation5 + $0x130] sm:$0xff]
        %v8965 = vld [vmem:[#allocation5 + $0x138] sm:$0xff]
        %v8966 = vld [vmem:[#allocation5 + $0x140] sm:$0xf]
        %v8967 = vld [vmem:[#allocation5 + $0x144] sm:$0xff]
        %v8968 = vld [vmem:[#allocation5 + $0x14c] sm:$0xff]
        %v8969 = vld [vmem:[#allocation5 + $0x154] sm:$0xff]
        %v8970 = vld [vmem:[#allocation5 + $0x15c] sm:$0xff]
        %v8971 = vld [vmem:[#allocation5 + $0x164] sm:$0xf]
        %v8972 = vld [vmem:[#allocation5 + $0x168] sm:$0xff]
        %v8973 = vld [vmem:[#allocation5 + $0x170] sm:$0xff]
        %v8974 = vld [vmem:[#allocation5 + $0x178] sm:$0xff]
        %v8975 = vld [vmem:[#allocation5 + $0x180] sm:$0xff]
        %v8976 = vld [vmem:[#allocation5 + $0x188] sm:$0xf]
        %v8977 = vld [vmem:[#allocation5 + $0x18c] sm:$0xff]
        %v8978 = vld [vmem:[#allocation5 + $0x194] sm:$0xff]
        %v8979 = vld [vmem:[#allocation5 + $0x19c] sm:$0xff]
        %v8980 = vld [vmem:[#allocation5 + $0x1a4] sm:$0xff]
        %v8981 = vld [vmem:[#allocation5 + $0x1ac] sm:$0xf]
        %v8982 = vld [vmem:[#allocation5 + $0x1b0] sm:$0xff]
        %v8983 = vld [vmem:[#allocation5 + $0x1b8] sm:$0xff]
        %v8984 = vld [vmem:[#allocation5 + $0x1c0] sm:$0xff]
        %v8985 = vld [vmem:[#allocation5 + $0x1c8] sm:$0xff]
        %v8986 = vld [vmem:[#allocation5 + $0x1d0] sm:$0xf]
        %v8987 = vld [vmem:[#allocation5 + $0x1d4] sm:$0xff]
        %v8988 = vld [vmem:[#allocation5 + $0x1dc] sm:$0xff]
        %v8989 = vld [vmem:[#allocation5 + $0x1e4] sm:$0xff]
        %v8990 = vld [vmem:[#allocation5 + $0x1ec] sm:$0xff]
        %v8991 = vld [vmem:[#allocation5 + $0x1f4] sm:$0xf]
        %v8992 = vld [vmem:[#allocation5 + $0x1f8] sm:$0xff]
        %v8993 = vld [vmem:[#allocation5 + $0x200] sm:$0xff]
        %v8994 = vld [vmem:[#allocation5 + $0x208] sm:$0xff]
        %v8995 = vld [vmem:[#allocation5 + $0x210] sm:$0xff]
        %v8996 = vld [vmem:[#allocation5 + $0x218] sm:$0xf]
        %v8997 = vld [vmem:[#allocation5 + $0x21c] sm:$0xff]
        %v8998 = vld [vmem:[#allocation5 + $0x224] sm:$0xff]
        %v8999 = vld [vmem:[#allocation5 + $0x22c] sm:$0xff]
        %v9000 = vld [vmem:[#allocation5 + $0x234] sm:$0xff]
        %v9001 = vld [vmem:[#allocation5 + $0x23c] sm:$0xf]
        %v9002 = vld [vmem:[#allocation5 + $0x240] sm:$0xff]
        %v9003 = vld [vmem:[#allocation5 + $0x248] sm:$0xff]
        %v9004 = vld [vmem:[#allocation5 + $0x250] sm:$0xff]
        %v9005 = vld [vmem:[#allocation5 + $0x258] sm:$0xff]
        %v9006 = vld [vmem:[#allocation5 + $0x260] sm:$0xf]
        %v9007 = vld [vmem:[#allocation5 + $0x264] sm:$0xff]
        %v9008 = vld [vmem:[#allocation5 + $0x26c] sm:$0xff]
        %v9009 = vld [vmem:[#allocation5 + $0x274] sm:$0xff]
        %v9010 = vld [vmem:[#allocation5 + $0x27c] sm:$0xff]
        %v9011 = vld [vmem:[#allocation5 + $0x284] sm:$0xf]
        %v9012 = vld [vmem:[#allocation5 + $0x288] sm:$0xff]
        %v9013 = vld [vmem:[#allocation5 + $0x290] sm:$0xff]
        %v9014 = vld [vmem:[#allocation5 + $0x298] sm:$0xff]
        %v9015 = vld [vmem:[#allocation5 + $0x2a0] sm:$0xff]
        %v9016 = vld [vmem:[#allocation5 + $0x2a8] sm:$0xf]
        %v9017 = vld [vmem:[#allocation5 + $0x2ac] sm:$0xff]
        %v9018 = vld [vmem:[#allocation5 + $0x2b4] sm:$0xff]
        %v9019 = vld [vmem:[#allocation5 + $0x2bc] sm:$0xff]
        %v9020 = vld [vmem:[#allocation5 + $0x2c4] sm:$0xff]
        %v9021 = vld [vmem:[#allocation5 + $0x2cc] sm:$0xf]
        %v9022 = vld [vmem:[#allocation5 + $0x2d0] sm:$0xff]
        %v9023 = vld [vmem:[#allocation5 + $0x2d8] sm:$0xff]
        %v9024 = vld [vmem:[#allocation5 + $0x2e0] sm:$0xff]
        %v9025 = vld [vmem:[#allocation5 + $0x2e8] sm:$0xff]
        %v9026 = vld [vmem:[#allocation5 + $0x2f0] sm:$0xf]
        %v9027 = vld [vmem:[#allocation5 + $0x2f4] sm:$0xff]
        %v9028 = vld [vmem:[#allocation5 + $0x2fc] sm:$0xff]
        %v9029 = vld [vmem:[#allocation5 + $0x304] sm:$0xff]
        %v9030 = vld [vmem:[#allocation5 + $0x30c] sm:$0xff]
        %v9031 = vld [vmem:[#allocation5 + $0x314] sm:$0xf]
        %v9032 = vld [vmem:[#allocation5 + $0x318] sm:$0xff]
        %v9033 = vld [vmem:[#allocation5 + $0x320] sm:$0xff]
        %v9034 = vld [vmem:[#allocation5 + $0x328] sm:$0xff]
        %v9035 = vld [vmem:[#allocation5 + $0x330] sm:$0xff]
        %v9036 = vld [vmem:[#allocation5 + $0x338] sm:$0xf]
        %v9037 = vld [vmem:[#allocation5 + $0x33c] sm:$0xff]
        %v9038 = vld [vmem:[#allocation5 + $0x344] sm:$0xff]
        %v9039 = vld [vmem:[#allocation5 + $0x34c] sm:$0xff]
        %v9040 = vld [vmem:[#allocation5 + $0x354] sm:$0xff]
        %v9041 = vld [vmem:[#allocation5 + $0x35c] sm:$0xf]
        %v9042 = vld [vmem:[#allocation5 + $0x360] sm:$0xff]
        %v9043 = vld [vmem:[#allocation5 + $0x368] sm:$0xff]
        %v9044 = vld [vmem:[#allocation5 + $0x370] sm:$0xff]
        %v9045 = vld [vmem:[#allocation5 + $0x378] sm:$0xff]
        %v9046 = vld [vmem:[#allocation5 + $0x380] sm:$0xf]
        %v9047 = vld [vmem:[#allocation5 + $0x384] sm:$0xff]
        %v9048 = vld [vmem:[#allocation5 + $0x38c] sm:$0xff]
        %v9049 = vld [vmem:[#allocation5 + $0x394] sm:$0xff]
        %v9050 = vld [vmem:[#allocation5 + $0x39c] sm:$0xff]
        %v9051 = vld [vmem:[#allocation5 + $0x3a4] sm:$0xf]
        %v9052 = vld [vmem:[#allocation5 + $0x3a8] sm:$0xff]
        %v9053 = vld [vmem:[#allocation5 + $0x3b0] sm:$0xff]
        %v9054 = vld [vmem:[#allocation5 + $0x3b8] sm:$0xff]
        %v9055 = vld [vmem:[#allocation5 + $0x3c0] sm:$0xff]
        %v9056 = vld [vmem:[#allocation5 + $0x3c8] sm:$0xf]
        %v9057 = vld [vmem:[#allocation5 + $0x3cc] sm:$0xff]
        %v9058 = vld [vmem:[#allocation5 + $0x3d4] sm:$0xff]
        %v9059 = vld [vmem:[#allocation5 + $0x3dc] sm:$0xff]
        %v9060 = vld [vmem:[#allocation5 + $0x3e4] sm:$0xff]
        %v9061 = vld [vmem:[#allocation5 + $0x3ec] sm:$0xf]
        %v9062 = vld [vmem:[#allocation5 + $0x3f0] sm:$0xff]
        %v9063 = vld [vmem:[#allocation5 + $0x3f8] sm:$0xff]
        %v9064 = vld [vmem:[#allocation5 + $0x400] sm:$0xff]
        %v9065 = vld [vmem:[#allocation5 + $0x408] sm:$0xff]
        %v9066 = vld [vmem:[#allocation5 + $0x410] sm:$0xf]
        %v9067 = vld [vmem:[#allocation5 + $0x414] sm:$0xff]
        %v9068 = vld [vmem:[#allocation5 + $0x41c] sm:$0xff]
        %v9069 = vld [vmem:[#allocation5 + $0x424] sm:$0xff]
        %v9070 = vld [vmem:[#allocation5 + $0x42c] sm:$0xff]
        %v9071 = vld [vmem:[#allocation5 + $0x434] sm:$0xf]
        %v9072 = vld [vmem:[#allocation5 + $0x438] sm:$0xff]
        %v9073 = vld [vmem:[#allocation5 + $0x440] sm:$0xff]
        %v9074 = vld [vmem:[#allocation5 + $0x448] sm:$0xff]
        %v9075 = vld [vmem:[#allocation5 + $0x450] sm:$0xff]
        %v9076 = vld [vmem:[#allocation5 + $0x458] sm:$0xf]
        %v9077 = vld [vmem:[#allocation5 + $0x45c] sm:$0xff]
        %v9078 = vld [vmem:[#allocation5 + $0x464] sm:$0xff]
        %v9079 = vld [vmem:[#allocation5 + $0x46c] sm:$0xff]
        %v9080 = vld [vmem:[#allocation5 + $0x474] sm:$0xff]
        %v9081 = vld [vmem:[#allocation5 + $0x47c] sm:$0xf]
        %v9082 = vld [vmem:[#allocation12] sm:$0xf]
        %v9083 = vld [vmem:[#allocation12 + $0x4] sm:$0xf]
        %v9084 = vld [vmem:[#allocation12 + $0x8] sm:$0xf]
        %v9085 = vld [vmem:[#allocation12 + $0xc] sm:$0xf]
        %v9086 = vld [vmem:[#allocation12 + $0x10] sm:$0xf]
        %v9087 = vld [vmem:[#allocation12 + $0x14] sm:$0xf]
        %v9088 = vld [vmem:[#allocation12 + $0x18] sm:$0xf]
        %v9089 = vld [vmem:[#allocation12 + $0x1c] sm:$0xf]
        %v9090 = vld [vmem:[#allocation12 + $0x20] sm:$0xf]
        %v9091 = vld [vmem:[#allocation12 + $0x24] sm:$0xf]
        %v9092 = vld [vmem:[#allocation12 + $0x28] sm:$0xf]
        %v9093 = vld [vmem:[#allocation12 + $0x2c] sm:$0xf]
        %v9094 = vld [vmem:[#allocation12 + $0x30] sm:$0xf]
        %v9095 = vld [vmem:[#allocation12 + $0x34] sm:$0xf]
        %v9096 = vld [vmem:[#allocation12 + $0x38] sm:$0xf]
        %v9097 = vld [vmem:[#allocation12 + $0x3c] sm:$0xf]
        %v9098 = vld [vmem:[#allocation12 + $0x40] sm:$0xf]
        %v9099 = vld [vmem:[#allocation12 + $0x44] sm:$0xf]
        %v9100 = vld [vmem:[#allocation12 + $0x48] sm:$0xf]
        %v9101 = vld [vmem:[#allocation12 + $0x4c] sm:$0xf]
        %v9102 = vld [vmem:[#allocation12 + $0x50] sm:$0xf]
        %v9103 = vld [vmem:[#allocation12 + $0x54] sm:$0xf]
        %v9104 = vld [vmem:[#allocation12 + $0x58] sm:$0xf]
        %v9105 = vld [vmem:[#allocation12 + $0x5c] sm:$0xf]
        %v9106 = vld [vmem:[#allocation12 + $0x60] sm:$0xf]
        %v9107 = vld [vmem:[#allocation12 + $0x64] sm:$0xf]
        %v9108 = vld [vmem:[#allocation12 + $0x68] sm:$0xf]
        %v9109 = vld [vmem:[#allocation12 + $0x6c] sm:$0xf]
        %v9110 = vld [vmem:[#allocation12 + $0x70] sm:$0xf]
        %v9111 = vld [vmem:[#allocation12 + $0x74] sm:$0xf]
        %v9112 = vld [vmem:[#allocation12 + $0x78] sm:$0xf]
        %v9113 = vld [vmem:[#allocation12 + $0x7c] sm:$0xf]
        %v9114 = vld [vmem:[#allocation12 + $0x80] sm:$0xf]
        %v9115 = vld [vmem:[#allocation12 + $0x84] sm:$0xf]
        %v9116 = vld [vmem:[#allocation12 + $0x88] sm:$0xf]
        %v9117 = vld [vmem:[#allocation12 + $0x8c] sm:$0xf]
        %v9118 = vld [vmem:[#allocation12 + $0x90] sm:$0xf]
        %v9119 = vld [vmem:[#allocation12 + $0x94] sm:$0xf]
        %v9120 = vld [vmem:[#allocation12 + $0x98] sm:$0xf]
        %v9121 = vld [vmem:[#allocation12 + $0x9c] sm:$0xf]
        %v9122 = vld [vmem:[#allocation12 + $0xa0] sm:$0xf]
        %v9123 = vld [vmem:[#allocation12 + $0xa4] sm:$0xf]
        %v9124 = vld [vmem:[#allocation12 + $0xa8] sm:$0xf]
        %v9125 = vld [vmem:[#allocation12 + $0xac] sm:$0xf]
        %v9126 = vld [vmem:[#allocation12 + $0xb0] sm:$0xf]
        %v9127 = vld [vmem:[#allocation12 + $0xb4] sm:$0xf]
        %v9128 = vld [vmem:[#allocation12 + $0xb8] sm:$0xf]
        %v9129 = vld [vmem:[#allocation12 + $0xbc] sm:$0xf]
        %v9130 = vld [vmem:[#allocation12 + $0xc0] sm:$0xf]
        %v9131 = vld [vmem:[#allocation12 + $0xc4] sm:$0xf]
        %v9132 = vld [vmem:[#allocation12 + $0xc8] sm:$0xf]
        %v9133 = vld [vmem:[#allocation12 + $0xcc] sm:$0xf]
        %v9134 = vld [vmem:[#allocation12 + $0xd0] sm:$0xf]
        %v9135 = vld [vmem:[#allocation12 + $0xd4] sm:$0xf]
        %v9136 = vld [vmem:[#allocation12 + $0xd8] sm:$0xf]
        %v9137 = vld [vmem:[#allocation12 + $0xdc] sm:$0xf]
        %v9138 = vld [vmem:[#allocation12 + $0xe0] sm:$0xf]
        %v9139 = vld [vmem:[#allocation12 + $0xe4] sm:$0xf]
        %v9140 = vld [vmem:[#allocation12 + $0xe8] sm:$0xf]
        %v9141 = vld [vmem:[#allocation12 + $0xec] sm:$0xf]
        %v9142 = vld [vmem:[#allocation12 + $0xf0] sm:$0xf]
        %v9143 = vld [vmem:[#allocation12 + $0xf4] sm:$0xf]
        %v9144 = vld [vmem:[#allocation12 + $0xf8] sm:$0xf]
        %v9145 = vld [vmem:[#allocation12 + $0xfc] sm:$0xf]
        %v9146 = vld [vmem:[#allocation12 + $0x100] sm:$0xf]
        %v9147 = vld [vmem:[#allocation12 + $0x104] sm:$0xf]
        %v9148 = vld [vmem:[#allocation12 + $0x108] sm:$0xf]
        %v9149 = vld [vmem:[#allocation12 + $0x10c] sm:$0xf]
        %v9150 = vld [vmem:[#allocation12 + $0x110] sm:$0xf]
        %v9151 = vld [vmem:[#allocation12 + $0x114] sm:$0xf]
        %v9152 = vld [vmem:[#allocation12 + $0x118] sm:$0xf]
        %v9153 = vld [vmem:[#allocation12 + $0x11c] sm:$0xf]
        %v9154 = vld [vmem:[#allocation12 + $0x120] sm:$0xf]
        %v9155 = vld [vmem:[#allocation12 + $0x124] sm:$0xf]
        %v9156 = vld [vmem:[#allocation12 + $0x128] sm:$0xf]
        %v9157 = vld [vmem:[#allocation12 + $0x12c] sm:$0xf]
        %v9158 = vld [vmem:[#allocation12 + $0x130] sm:$0xf]
        %v9159 = vld [vmem:[#allocation12 + $0x134] sm:$0xf]
        %v9160 = vld [vmem:[#allocation12 + $0x138] sm:$0xf]
        %v9161 = vld [vmem:[#allocation12 + $0x13c] sm:$0xf]
        %v9162 = vld [vmem:[#allocation12 + $0x140] sm:$0xf]
        %v9163 = vld [vmem:[#allocation12 + $0x144] sm:$0xf]
        %v9164 = vld [vmem:[#allocation12 + $0x148] sm:$0xf]
        %v9165 = vld [vmem:[#allocation12 + $0x14c] sm:$0xf]
        %v9166 = vld [vmem:[#allocation12 + $0x150] sm:$0xf]
        %v9167 = vld [vmem:[#allocation12 + $0x154] sm:$0xf]
        %v9168 = vld [vmem:[#allocation12 + $0x158] sm:$0xf]
        %v9169 = vld [vmem:[#allocation12 + $0x15c] sm:$0xf]
        %v9170 = vld [vmem:[#allocation12 + $0x160] sm:$0xf]
        %v9171 = vld [vmem:[#allocation12 + $0x164] sm:$0xf]
        %v9172 = vld [vmem:[#allocation12 + $0x168] sm:$0xf]
        %v9173 = vld [vmem:[#allocation12 + $0x16c] sm:$0xf]
        %v9174 = vld [vmem:[#allocation12 + $0x170] sm:$0xf]
        %v9175 = vld [vmem:[#allocation12 + $0x174] sm:$0xf]
        %v9176 = vld [vmem:[#allocation12 + $0x178] sm:$0xf]
        %v9177 = vld [vmem:[#allocation12 + $0x17c] sm:$0xf]
        %v9178 = vld [vmem:[#allocation12 + $0x180] sm:$0xf]
        %v9179 = vld [vmem:[#allocation12 + $0x184] sm:$0xf]
        %v9180 = vld [vmem:[#allocation12 + $0x188] sm:$0xf]
        %v9181 = vld [vmem:[#allocation12 + $0x18c] sm:$0xf]
        %v9182 = vld [vmem:[#allocation12 + $0x190] sm:$0xf]
        %v9183 = vld [vmem:[#allocation12 + $0x194] sm:$0xf]
        %v9184 = vld [vmem:[#allocation12 + $0x198] sm:$0xf]
        %v9185 = vld [vmem:[#allocation12 + $0x19c] sm:$0xf]
        %v9186 = vld [vmem:[#allocation12 + $0x1a0] sm:$0xf]
        %v9187 = vld [vmem:[#allocation12 + $0x1a4] sm:$0xf]
        %v9188 = vld [vmem:[#allocation12 + $0x1a8] sm:$0xf]
        %v9189 = vld [vmem:[#allocation12 + $0x1ac] sm:$0xf]
        %v9190 = vld [vmem:[#allocation12 + $0x1b0] sm:$0xf]
        %v9191 = vld [vmem:[#allocation12 + $0x1b4] sm:$0xf]
        %v9192 = vld [vmem:[#allocation12 + $0x1b8] sm:$0xf]
        %v9193 = vld [vmem:[#allocation12 + $0x1bc] sm:$0xf]
        %v9194 = vld [vmem:[#allocation12 + $0x1c0] sm:$0xf]
        %v9195 = vld [vmem:[#allocation12 + $0x1c4] sm:$0xf]
        %v9196 = vld [vmem:[#allocation12 + $0x1c8] sm:$0xf]
        %v9197 = vld [vmem:[#allocation12 + $0x1cc] sm:$0xf]
        %v9198 = vld [vmem:[#allocation12 + $0x1d0] sm:$0xf]
        %v9199 = vld [vmem:[#allocation12 + $0x1d4] sm:$0xf]
        %v9200 = vld [vmem:[#allocation12 + $0x1d8] sm:$0xf]
        %v9201 = vld [vmem:[#allocation12 + $0x1dc] sm:$0xf]
        %v9202 = vld [vmem:[#allocation12 + $0x1e0] sm:$0xf]
        %v9203 = vld [vmem:[#allocation12 + $0x1e4] sm:$0xf]
        %v9204 = vld [vmem:[#allocation12 + $0x1e8] sm:$0xf]
        %v9205 = vld [vmem:[#allocation12 + $0x1ec] sm:$0xf]
        %v9206 = vld [vmem:[#allocation12 + $0x1f0] sm:$0xf]
        %v9207 = vld [vmem:[#allocation12 + $0x1f4] sm:$0xf]
        %v9208 = vld [vmem:[#allocation12 + $0x1f8] sm:$0xf]
        %v9209 = vld [vmem:[#allocation12 + $0x1fc] sm:$0xf]
        %v9210 = vld [vmem:[#allocation12 + $0x200] sm:$0xf]
        %v9211 = vld [vmem:[#allocation12 + $0x204] sm:$0xf]
        %v9212 = vld [vmem:[#allocation12 + $0x208] sm:$0xf]
        %v9213 = vld [vmem:[#allocation12 + $0x20c] sm:$0xf]
        %v9214 = vld [vmem:[#allocation12 + $0x210] sm:$0xf]
        %v9215 = vld [vmem:[#allocation12 + $0x214] sm:$0xf]
        %v9216 = vld [vmem:[#allocation12 + $0x218] sm:$0xf]
        %v9217 = vld [vmem:[#allocation12 + $0x21c] sm:$0xf]
        %v9218 = vld [vmem:[#allocation12 + $0x220] sm:$0xf]
        %v9219 = vld [vmem:[#allocation12 + $0x224] sm:$0xf]
        %v9220 = vld [vmem:[#allocation12 + $0x228] sm:$0xf]
        %v9221 = vld [vmem:[#allocation12 + $0x22c] sm:$0xf]
        %v9222 = vld [vmem:[#allocation12 + $0x230] sm:$0xf]
        %v9223 = vld [vmem:[#allocation12 + $0x234] sm:$0xf]
        %v9224 = vld [vmem:[#allocation12 + $0x238] sm:$0xf]
        %v9225 = vld [vmem:[#allocation12 + $0x23c] sm:$0xf]
        %v9386 = vunpack.c.l.b16 %v8922
        %v9387 = vunpack.c.h.b16 %v8922
        %v9388 = vunpack.c.l.b16 %v8923
        %v9389 = vunpack.c.h.b16 %v8923
        %v9390 = vunpack.c.l.b16 %v8924
        %v9391 = vunpack.c.h.b16 %v8924
        %v9392 = vunpack.c.l.b16 %v8925
        %v9393 = vunpack.c.h.b16 %v8925
        %v9394 = vunpack.c.l.b16 %v8926
        %v9395 = vunpack.c.l.b16 %v8927
        %v9396 = vunpack.c.h.b16 %v8927
        %v9397 = vunpack.c.l.b16 %v8928
        %v9398 = vunpack.c.h.b16 %v8928
        %v9399 = vunpack.c.l.b16 %v8929
        %v9400 = vunpack.c.h.b16 %v8929
        %v9401 = vunpack.c.l.b16 %v8930
        %v9402 = vunpack.c.h.b16 %v8930
        %v9403 = vunpack.c.l.b16 %v8931
        %v9404 = vunpack.c.l.b16 %v8932
        %v9405 = vunpack.c.h.b16 %v8932
        %v9406 = vunpack.c.l.b16 %v8933
        %v9407 = vunpack.c.h.b16 %v8933
        %v9408 = vunpack.c.l.b16 %v8934
        %v9409 = vunpack.c.h.b16 %v8934
        %v9410 = vunpack.c.l.b16 %v8935
        %v9411 = vunpack.c.h.b16 %v8935
        %v9412 = vunpack.c.l.b16 %v8936
        %v9413 = vunpack.c.l.b16 %v8937
        %v9414 = vunpack.c.h.b16 %v8937
        %v9415 = vunpack.c.l.b16 %v8938
        %v9416 = vunpack.c.h.b16 %v8938
        %v9417 = vunpack.c.l.b16 %v8939
        %v9418 = vunpack.c.h.b16 %v8939
        %v9419 = vunpack.c.l.b16 %v8940
        %v9420 = vunpack.c.h.b16 %v8940
        %v9421 = vunpack.c.l.b16 %v8941
        %v9422 = vunpack.c.l.b16 %v8942
        %v9423 = vunpack.c.h.b16 %v8942
        %v9424 = vunpack.c.l.b16 %v8943
        %v9425 = vunpack.c.h.b16 %v8943
        %v9426 = vunpack.c.l.b16 %v8944
        %v9427 = vunpack.c.h.b16 %v8944
        %v9428 = vunpack.c.l.b16 %v8945
        %v9429 = vunpack.c.h.b16 %v8945
        %v9430 = vunpack.c.l.b16 %v8946
        %v9431 = vunpack.c.l.b16 %v8947
        %v9432 = vunpack.c.h.b16 %v8947
        %v9433 = vunpack.c.l.b16 %v8948
        %v9434 = vunpack.c.h.b16 %v8948
        %v9435 = vunpack.c.l.b16 %v8949
        %v9436 = vunpack.c.h.b16 %v8949
        %v9437 = vunpack.c.l.b16 %v8950
        %v9438 = vunpack.c.h.b16 %v8950
        %v9439 = vunpack.c.l.b16 %v8951
        %v9440 = vunpack.c.l.b16 %v8952
        %v9441 = vunpack.c.h.b16 %v8952
        %v9442 = vunpack.c.l.b16 %v8953
        %v9443 = vunpack.c.h.b16 %v8953
        %v9444 = vunpack.c.l.b16 %v8954
        %v9445 = vunpack.c.h.b16 %v8954
        %v9446 = vunpack.c.l.b16 %v8955
        %v9447 = vunpack.c.h.b16 %v8955
        %v9448 = vunpack.c.l.b16 %v8956
        %v9449 = vunpack.c.l.b16 %v8957
        %v9450 = vunpack.c.h.b16 %v8957
        %v9451 = vunpack.c.l.b16 %v8958
        %v9452 = vunpack.c.h.b16 %v8958
        %v9453 = vunpack.c.l.b16 %v8959
        %v9454 = vunpack.c.h.b16 %v8959
        %v9455 = vunpack.c.l.b16 %v8960
        %v9456 = vunpack.c.h.b16 %v8960
        %v9457 = vunpack.c.l.b16 %v8961
        %v9458 = vunpack.c.l.b16 %v8962
        %v9459 = vunpack.c.h.b16 %v8962
        %v9460 = vunpack.c.l.b16 %v8963
        %v9461 = vunpack.c.h.b16 %v8963
        %v9462 = vunpack.c.l.b16 %v8964
        %v9463 = vunpack.c.h.b16 %v8964
        %v9464 = vunpack.c.l.b16 %v8965
        %v9465 = vunpack.c.h.b16 %v8965
        %v9466 = vunpack.c.l.b16 %v8966
        %v9467 = vunpack.c.l.b16 %v8967
        %v9468 = vunpack.c.h.b16 %v8967
        %v9469 = vunpack.c.l.b16 %v8968
        %v9470 = vunpack.c.h.b16 %v8968
        %v9471 = vunpack.c.l.b16 %v8969
        %v9472 = vunpack.c.h.b16 %v8969
        %v9473 = vunpack.c.l.b16 %v8970
        %v9474 = vunpack.c.h.b16 %v8970
        %v9475 = vunpack.c.l.b16 %v8971
        %v9476 = vunpack.c.l.b16 %v8972
        %v9477 = vunpack.c.h.b16 %v8972
        %v9478 = vunpack.c.l.b16 %v8973
        %v9479 = vunpack.c.h.b16 %v8973
        %v9480 = vunpack.c.l.b16 %v8974
        %v9481 = vunpack.c.h.b16 %v8974
        %v9482 = vunpack.c.l.b16 %v8975
        %v9483 = vunpack.c.h.b16 %v8975
        %v9484 = vunpack.c.l.b16 %v8976
        %v9485 = vunpack.c.l.b16 %v8977
        %v9486 = vunpack.c.h.b16 %v8977
        %v9487 = vunpack.c.l.b16 %v8978
        %v9488 = vunpack.c.h.b16 %v8978
        %v9489 = vunpack.c.l.b16 %v8979
        %v9490 = vunpack.c.h.b16 %v8979
        %v9491 = vunpack.c.l.b16 %v8980
        %v9492 = vunpack.c.h.b16 %v8980
        %v9493 = vunpack.c.l.b16 %v8981
        %v9494 = vunpack.c.l.b16 %v8982
        %v9495 = vunpack.c.h.b16 %v8982
        %v9496 = vunpack.c.l.b16 %v8983
        %v9497 = vunpack.c.h.b16 %v8983
        %v9498 = vunpack.c.l.b16 %v8984
        %v9499 = vunpack.c.h.b16 %v8984
        %v9500 = vunpack.c.l.b16 %v8985
        %v9501 = vunpack.c.h.b16 %v8985
        %v9502 = vunpack.c.l.b16 %v8986
        %v9503 = vunpack.c.l.b16 %v8987
        %v9504 = vunpack.c.h.b16 %v8987
        %v9505 = vunpack.c.l.b16 %v8988
        %v9506 = vunpack.c.h.b16 %v8988
        %v9507 = vunpack.c.l.b16 %v8989
        %v9508 = vunpack.c.h.b16 %v8989
        %v9509 = vunpack.c.l.b16 %v8990
        %v9510 = vunpack.c.h.b16 %v8990
        %v9511 = vunpack.c.l.b16 %v8991
        %v9512 = vunpack.c.l.b16 %v8992
        %v9513 = vunpack.c.h.b16 %v8992
        %v9514 = vunpack.c.l.b16 %v8993
        %v9515 = vunpack.c.h.b16 %v8993
        %v9516 = vunpack.c.l.b16 %v8994
        %v9517 = vunpack.c.h.b16 %v8994
        %v9518 = vunpack.c.l.b16 %v8995
        %v9519 = vunpack.c.h.b16 %v8995
        %v9520 = vunpack.c.l.b16 %v8996
        %v9521 = vunpack.c.l.b16 %v8997
        %v9522 = vunpack.c.h.b16 %v8997
        %v9523 = vunpack.c.l.b16 %v8998
        %v9524 = vunpack.c.h.b16 %v8998
        %v9525 = vunpack.c.l.b16 %v8999
        %v9526 = vunpack.c.h.b16 %v8999
        %v9527 = vunpack.c.l.b16 %v9000
        %v9528 = vunpack.c.h.b16 %v9000
        %v9529 = vunpack.c.l.b16 %v9001
        %v9530 = vunpack.c.l.b16 %v9002
        %v9531 = vunpack.c.h.b16 %v9002
        %v9532 = vunpack.c.l.b16 %v9003
        %v9533 = vunpack.c.h.b16 %v9003
        %v9534 = vunpack.c.l.b16 %v9004
        %v9535 = vunpack.c.h.b16 %v9004
        %v9536 = vunpack.c.l.b16 %v9005
        %v9537 = vunpack.c.h.b16 %v9005
        %v9538 = vunpack.c.l.b16 %v9006
        %v9539 = vunpack.c.l.b16 %v9007
        %v9540 = vunpack.c.h.b16 %v9007
        %v9541 = vunpack.c.l.b16 %v9008
        %v9542 = vunpack.c.h.b16 %v9008
        %v9543 = vunpack.c.l.b16 %v9009
        %v9544 = vunpack.c.h.b16 %v9009
        %v9545 = vunpack.c.l.b16 %v9010
        %v9546 = vunpack.c.h.b16 %v9010
        %v9547 = vunpack.c.l.b16 %v9011
        %v9548 = vunpack.c.l.b16 %v9012
        %v9549 = vunpack.c.h.b16 %v9012
        %v9550 = vunpack.c.l.b16 %v9013
        %v9551 = vunpack.c.h.b16 %v9013
        %v9552 = vunpack.c.l.b16 %v9014
        %v9553 = vunpack.c.h.b16 %v9014
        %v9554 = vunpack.c.l.b16 %v9015
        %v9555 = vunpack.c.h.b16 %v9015
        %v9556 = vunpack.c.l.b16 %v9016
        %v9557 = vunpack.c.l.b16 %v9017
        %v9558 = vunpack.c.h.b16 %v9017
        %v9559 = vunpack.c.l.b16 %v9018
        %v9560 = vunpack.c.h.b16 %v9018
        %v9561 = vunpack.c.l.b16 %v9019
        %v9562 = vunpack.c.h.b16 %v9019
        %v9563 = vunpack.c.l.b16 %v9020
        %v9564 = vunpack.c.h.b16 %v9020
        %v9565 = vunpack.c.l.b16 %v9021
        %v9566 = vunpack.c.l.b16 %v9022
        %v9567 = vunpack.c.h.b16 %v9022
        %v9568 = vunpack.c.l.b16 %v9023
        %v9569 = vunpack.c.h.b16 %v9023
        %v9570 = vunpack.c.l.b16 %v9024
        %v9571 = vunpack.c.h.b16 %v9024
        %v9572 = vunpack.c.l.b16 %v9025
        %v9573 = vunpack.c.h.b16 %v9025
        %v9574 = vunpack.c.l.b16 %v9026
        %v9575 = vunpack.c.l.b16 %v9027
        %v9576 = vunpack.c.h.b16 %v9027
        %v9577 = vunpack.c.l.b16 %v9028
        %v9578 = vunpack.c.h.b16 %v9028
        %v9579 = vunpack.c.l.b16 %v9029
        %v9580 = vunpack.c.h.b16 %v9029
        %v9581 = vunpack.c.l.b16 %v9030
        %v9582 = vunpack.c.h.b16 %v9030
        %v9583 = vunpack.c.l.b16 %v9031
        %v9584 = vunpack.c.l.b16 %v9032
        %v9585 = vunpack.c.h.b16 %v9032
        %v9586 = vunpack.c.l.b16 %v9033
        %v9587 = vunpack.c.h.b16 %v9033
        %v9588 = vunpack.c.l.b16 %v9034
        %v9589 = vunpack.c.h.b16 %v9034
        %v9590 = vunpack.c.l.b16 %v9035
        %v9591 = vunpack.c.h.b16 %v9035
        %v9592 = vunpack.c.l.b16 %v9036
        %v9593 = vunpack.c.l.b16 %v9037
        %v9594 = vunpack.c.h.b16 %v9037
        %v9595 = vunpack.c.l.b16 %v9038
        %v9596 = vunpack.c.h.b16 %v9038
        %v9597 = vunpack.c.l.b16 %v9039
        %v9598 = vunpack.c.h.b16 %v9039
        %v9599 = vunpack.c.l.b16 %v9040
        %v9600 = vunpack.c.h.b16 %v9040
        %v9601 = vunpack.c.l.b16 %v9041
        %v9602 = vunpack.c.l.b16 %v9042
        %v9603 = vunpack.c.h.b16 %v9042
        %v9604 = vunpack.c.l.b16 %v9043
        %v9605 = vunpack.c.h.b16 %v9043
        %v9606 = vunpack.c.l.b16 %v9044
        %v9607 = vunpack.c.h.b16 %v9044
        %v9608 = vunpack.c.l.b16 %v9045
        %v9609 = vunpack.c.h.b16 %v9045
        %v9610 = vunpack.c.l.b16 %v9046
        %v9611 = vunpack.c.l.b16 %v9047
        %v9612 = vunpack.c.h.b16 %v9047
        %v9613 = vunpack.c.l.b16 %v9048
        %v9614 = vunpack.c.h.b16 %v9048
        %v9615 = vunpack.c.l.b16 %v9049
        %v9616 = vunpack.c.h.b16 %v9049
        %v9617 = vunpack.c.l.b16 %v9050
        %v9618 = vunpack.c.h.b16 %v9050
        %v9619 = vunpack.c.l.b16 %v9051
        %v9620 = vunpack.c.l.b16 %v9052
        %v9621 = vunpack.c.h.b16 %v9052
        %v9622 = vunpack.c.l.b16 %v9053
        %v9623 = vunpack.c.h.b16 %v9053
        %v9624 = vunpack.c.l.b16 %v9054
        %v9625 = vunpack.c.h.b16 %v9054
        %v9626 = vunpack.c.l.b16 %v9055
        %v9627 = vunpack.c.h.b16 %v9055
        %v9628 = vunpack.c.l.b16 %v9056
        %v9629 = vunpack.c.l.b16 %v9057
        %v9630 = vunpack.c.h.b16 %v9057
        %v9631 = vunpack.c.l.b16 %v9058
        %v9632 = vunpack.c.h.b16 %v9058
        %v9633 = vunpack.c.l.b16 %v9059
        %v9634 = vunpack.c.h.b16 %v9059
        %v9635 = vunpack.c.l.b16 %v9060
        %v9636 = vunpack.c.h.b16 %v9060
        %v9637 = vunpack.c.l.b16 %v9061
        %v9638 = vunpack.c.l.b16 %v9062
        %v9639 = vunpack.c.h.b16 %v9062
        %v9640 = vunpack.c.l.b16 %v9063
        %v9641 = vunpack.c.h.b16 %v9063
        %v9642 = vunpack.c.l.b16 %v9064
        %v9643 = vunpack.c.h.b16 %v9064
        %v9644 = vunpack.c.l.b16 %v9065
        %v9645 = vunpack.c.h.b16 %v9065
        %v9646 = vunpack.c.l.b16 %v9066
        %v9647 = vunpack.c.l.b16 %v9067
        %v9648 = vunpack.c.h.b16 %v9067
        %v9649 = vunpack.c.l.b16 %v9068
        %v9650 = vunpack.c.h.b16 %v9068
        %v9651 = vunpack.c.l.b16 %v9069
        %v9652 = vunpack.c.h.b16 %v9069
        %v9653 = vunpack.c.l.b16 %v9070
        %v9654 = vunpack.c.h.b16 %v9070
        %v9655 = vunpack.c.l.b16 %v9071
        %v9656 = vunpack.c.l.b16 %v9072
        %v9657 = vunpack.c.h.b16 %v9072
        %v9658 = vunpack.c.l.b16 %v9073
        %v9659 = vunpack.c.h.b16 %v9073
        %v9660 = vunpack.c.l.b16 %v9074
        %v9661 = vunpack.c.h.b16 %v9074
        %v9662 = vunpack.c.l.b16 %v9075
        %v9663 = vunpack.c.h.b16 %v9075
        %v9664 = vunpack.c.l.b16 %v9076
        %v9665 = vunpack.c.l.b16 %v9077
        %v9666 = vunpack.c.h.b16 %v9077
        %v9667 = vunpack.c.l.b16 %v9078
        %v9668 = vunpack.c.h.b16 %v9078
        %v9669 = vunpack.c.l.b16 %v9079
        %v9670 = vunpack.c.h.b16 %v9079
        %v9671 = vunpack.c.l.b16 %v9080
        %v9672 = vunpack.c.h.b16 %v9080
        %v9673 = vunpack.c.l.b16 %v9081
        %v9674 = vpack.c.b16 %v9395, %v9386
        %v9675 = vpack.c.b16 %v9396, %v9387
        %v9676 = vpack.c.b16 %v9397, %v9388
        %v9677 = vpack.c.b16 %v9398, %v9389
        %v9678 = vpack.c.b16 %v9399, %v9390
        %v9679 = vpack.c.b16 %v9400, %v9391
        %v9680 = vpack.c.b16 %v9401, %v9392
        %v9681 = vpack.c.b16 %v9402, %v9393
        %v9682 = vpack.c.b16 %v9403, %v9394
        %v9683 = vpack.c.b16 %v9413, %v9404
        %v9684 = vpack.c.b16 %v9414, %v9405
        %v9685 = vpack.c.b16 %v9415, %v9406
        %v9686 = vpack.c.b16 %v9416, %v9407
        %v9687 = vpack.c.b16 %v9417, %v9408
        %v9688 = vpack.c.b16 %v9418, %v9409
        %v9689 = vpack.c.b16 %v9419, %v9410
        %v9690 = vpack.c.b16 %v9420, %v9411
        %v9691 = vpack.c.b16 %v9421, %v9412
        %v9692 = vpack.c.b16 %v9431, %v9422
        %v9693 = vpack.c.b16 %v9432, %v9423
        %v9694 = vpack.c.b16 %v9433, %v9424
        %v9695 = vpack.c.b16 %v9434, %v9425
        %v9696 = vpack.c.b16 %v9435, %v9426
        %v9697 = vpack.c.b16 %v9436, %v9427
        %v9698 = vpack.c.b16 %v9437, %v9428
        %v9699 = vpack.c.b16 %v9438, %v9429
        %v9700 = vpack.c.b16 %v9439, %v9430
        %v9701 = vpack.c.b16 %v9449, %v9440
        %v9702 = vpack.c.b16 %v9450, %v9441
        %v9703 = vpack.c.b16 %v9451, %v9442
        %v9704 = vpack.c.b16 %v9452, %v9443
        %v9705 = vpack.c.b16 %v9453, %v9444
        %v9706 = vpack.c.b16 %v9454, %v9445
        %v9707 = vpack.c.b16 %v9455, %v9446
        %v9708 = vpack.c.b16 %v9456, %v9447
        %v9709 = vpack.c.b16 %v9457, %v9448
        %v9710 = vpack.c.b16 %v9467, %v9458
        %v9711 = vpack.c.b16 %v9468, %v9459
        %v9712 = vpack.c.b16 %v9469, %v9460
        %v9713 = vpack.c.b16 %v9470, %v9461
        %v9714 = vpack.c.b16 %v9471, %v9462
        %v9715 = vpack.c.b16 %v9472, %v9463
        %v9716 = vpack.c.b16 %v9473, %v9464
        %v9717 = vpack.c.b16 %v9474, %v9465
        %v9718 = vpack.c.b16 %v9475, %v9466
        %v9719 = vpack.c.b16 %v9485, %v9476
        %v9720 = vpack.c.b16 %v9486, %v9477
        %v9721 = vpack.c.b16 %v9487, %v9478
        %v9722 = vpack.c.b16 %v9488, %v9479
        %v9723 = vpack.c.b16 %v9489, %v9480
        %v9724 = vpack.c.b16 %v9490, %v9481
        %v9725 = vpack.c.b16 %v9491, %v9482
        %v9726 = vpack.c.b16 %v9492, %v9483
        %v9727 = vpack.c.b16 %v9493, %v9484
        %v9728 = vpack.c.b16 %v9503, %v9494
        %v9729 = vpack.c.b16 %v9504, %v9495
        %v9730 = vpack.c.b16 %v9505, %v9496
        %v9731 = vpack.c.b16 %v9506, %v9497
        %v9732 = vpack.c.b16 %v9507, %v9498
        %v9733 = vpack.c.b16 %v9508, %v9499
        %v9734 = vpack.c.b16 %v9509, %v9500
        %v9735 = vpack.c.b16 %v9510, %v9501
        %v9736 = vpack.c.b16 %v9511, %v9502
        %v9737 = vpack.c.b16 %v9521, %v9512
        %v9738 = vpack.c.b16 %v9522, %v9513
        %v9739 = vpack.c.b16 %v9523, %v9514
        %v9740 = vpack.c.b16 %v9524, %v9515
        %v9741 = vpack.c.b16 %v9525, %v9516
        %v9742 = vpack.c.b16 %v9526, %v9517
        %v9743 = vpack.c.b16 %v9527, %v9518
        %v9744 = vpack.c.b16 %v9528, %v9519
        %v9745 = vpack.c.b16 %v9529, %v9520
        %v9746 = vpack.c.b16 %v9539, %v9530
        %v9747 = vpack.c.b16 %v9540, %v9531
        %v9748 = vpack.c.b16 %v9541, %v9532
        %v9749 = vpack.c.b16 %v9542, %v9533
        %v9750 = vpack.c.b16 %v9543, %v9534
        %v9751 = vpack.c.b16 %v9544, %v9535
        %v9752 = vpack.c.b16 %v9545, %v9536
        %v9753 = vpack.c.b16 %v9546, %v9537
        %v9754 = vpack.c.b16 %v9547, %v9538
        %v9755 = vpack.c.b16 %v9557, %v9548
        %v9756 = vpack.c.b16 %v9558, %v9549
        %v9757 = vpack.c.b16 %v9559, %v9550
        %v9758 = vpack.c.b16 %v9560, %v9551
        %v9759 = vpack.c.b16 %v9561, %v9552
        %v9760 = vpack.c.b16 %v9562, %v9553
        %v9761 = vpack.c.b16 %v9563, %v9554
        %v9762 = vpack.c.b16 %v9564, %v9555
        %v9763 = vpack.c.b16 %v9565, %v9556
        %v9764 = vpack.c.b16 %v9575, %v9566
        %v9765 = vpack.c.b16 %v9576, %v9567
        %v9766 = vpack.c.b16 %v9577, %v9568
        %v9767 = vpack.c.b16 %v9578, %v9569
        %v9768 = vpack.c.b16 %v9579, %v9570
        %v9769 = vpack.c.b16 %v9580, %v9571
        %v9770 = vpack.c.b16 %v9581, %v9572
        %v9771 = vpack.c.b16 %v9582, %v9573
        %v9772 = vpack.c.b16 %v9583, %v9574
        %v9773 = vpack.c.b16 %v9593, %v9584
        %v9774 = vpack.c.b16 %v9594, %v9585
        %v9775 = vpack.c.b16 %v9595, %v9586
        %v9776 = vpack.c.b16 %v9596, %v9587
        %v9777 = vpack.c.b16 %v9597, %v9588
        %v9778 = vpack.c.b16 %v9598, %v9589
        %v9779 = vpack.c.b16 %v9599, %v9590
        %v9780 = vpack.c.b16 %v9600, %v9591
        %v9781 = vpack.c.b16 %v9601, %v9592
        %v9782 = vpack.c.b16 %v9611, %v9602
        %v9783 = vpack.c.b16 %v9612, %v9603
        %v9784 = vpack.c.b16 %v9613, %v9604
        %v9785 = vpack.c.b16 %v9614, %v9605
        %v9786 = vpack.c.b16 %v9615, %v9606
        %v9787 = vpack.c.b16 %v9616, %v9607
        %v9788 = vpack.c.b16 %v9617, %v9608
        %v9789 = vpack.c.b16 %v9618, %v9609
        %v9790 = vpack.c.b16 %v9619, %v9610
        %v9791 = vpack.c.b16 %v9629, %v9620
        %v9792 = vpack.c.b16 %v9630, %v9621
        %v9793 = vpack.c.b16 %v9631, %v9622
        %v9794 = vpack.c.b16 %v9632, %v9623
        %v9795 = vpack.c.b16 %v9633, %v9624
        %v9796 = vpack.c.b16 %v9634, %v9625
        %v9797 = vpack.c.b16 %v9635, %v9626
        %v9798 = vpack.c.b16 %v9636, %v9627
        %v9799 = vpack.c.b16 %v9637, %v9628
        %v9800 = vpack.c.b16 %v9647, %v9638
        %v9801 = vpack.c.b16 %v9648, %v9639
        %v9802 = vpack.c.b16 %v9649, %v9640
        %v9803 = vpack.c.b16 %v9650, %v9641
        %v9804 = vpack.c.b16 %v9651, %v9642
        %v9805 = vpack.c.b16 %v9652, %v9643
        %v9806 = vpack.c.b16 %v9653, %v9644
        %v9807 = vpack.c.b16 %v9654, %v9645
        %v9808 = vpack.c.b16 %v9655, %v9646
        %v9809 = vpack.c.b16 %v9665, %v9656
        %v9810 = vpack.c.b16 %v9666, %v9657
        %v9811 = vpack.c.b16 %v9667, %v9658
        %v9812 = vpack.c.b16 %v9668, %v9659
        %v9813 = vpack.c.b16 %v9669, %v9660
        %v9814 = vpack.c.b16 %v9670, %v9661
        %v9815 = vpack.c.b16 %v9671, %v9662
        %v9816 = vpack.c.b16 %v9672, %v9663
        %v9817 = vpack.c.b16 %v9673, %v9664
        %v10106 = vunpack.c.l.b16 %v9082
        %v10107 = vunpack.c.l.b16 %v9083
        %v10108 = vunpack.c.l.b16 %v9084
        %v10109 = vunpack.c.l.b16 %v9085
        %v10110 = vunpack.c.l.b16 %v9086
        %v10111 = vunpack.c.l.b16 %v9087
        %v10112 = vunpack.c.l.b16 %v9088
        %v10113 = vunpack.c.l.b16 %v9089
        %v10114 = vunpack.c.l.b16 %v9090
        %v10115 = vunpack.c.l.b16 %v9091
        %v10116 = vunpack.c.l.b16 %v9092
        %v10117 = vunpack.c.l.b16 %v9093
        %v10118 = vunpack.c.l.b16 %v9094
        %v10119 = vunpack.c.l.b16 %v9095
        %v10120 = vunpack.c.l.b16 %v9096
        %v10121 = vunpack.c.l.b16 %v9097
        %v10122 = vunpack.c.l.b16 %v9098
        %v10123 = vunpack.c.l.b16 %v9099
        %v10124 = vunpack.c.l.b16 %v9100
        %v10125 = vunpack.c.l.b16 %v9101
        %v10126 = vunpack.c.l.b16 %v9102
        %v10127 = vunpack.c.l.b16 %v9103
        %v10128 = vunpack.c.l.b16 %v9104
        %v10129 = vunpack.c.l.b16 %v9105
        %v10130 = vunpack.c.l.b16 %v9106
        %v10131 = vunpack.c.l.b16 %v9107
        %v10132 = vunpack.c.l.b16 %v9108
        %v10133 = vunpack.c.l.b16 %v9109
        %v10134 = vunpack.c.l.b16 %v9110
        %v10135 = vunpack.c.l.b16 %v9111
        %v10136 = vunpack.c.l.b16 %v9112
        %v10137 = vunpack.c.l.b16 %v9113
        %v10138 = vunpack.c.l.b16 %v9114
        %v10139 = vunpack.c.l.b16 %v9115
        %v10140 = vunpack.c.l.b16 %v9116
        %v10141 = vunpack.c.l.b16 %v9117
        %v10142 = vunpack.c.l.b16 %v9118
        %v10143 = vunpack.c.l.b16 %v9119
        %v10144 = vunpack.c.l.b16 %v9120
        %v10145 = vunpack.c.l.b16 %v9121
        %v10146 = vunpack.c.l.b16 %v9122
        %v10147 = vunpack.c.l.b16 %v9123
        %v10148 = vunpack.c.l.b16 %v9124
        %v10149 = vunpack.c.l.b16 %v9125
        %v10150 = vunpack.c.l.b16 %v9126
        %v10151 = vunpack.c.l.b16 %v9127
        %v10152 = vunpack.c.l.b16 %v9128
        %v10153 = vunpack.c.l.b16 %v9129
        %v10154 = vunpack.c.l.b16 %v9130
        %v10155 = vunpack.c.l.b16 %v9131
        %v10156 = vunpack.c.l.b16 %v9132
        %v10157 = vunpack.c.l.b16 %v9133
        %v10158 = vunpack.c.l.b16 %v9134
        %v10159 = vunpack.c.l.b16 %v9135
        %v10160 = vunpack.c.l.b16 %v9136
        %v10161 = vunpack.c.l.b16 %v9137
        %v10162 = vunpack.c.l.b16 %v9138
        %v10163 = vunpack.c.l.b16 %v9139
        %v10164 = vunpack.c.l.b16 %v9140
        %v10165 = vunpack.c.l.b16 %v9141
        %v10166 = vunpack.c.l.b16 %v9142
        %v10167 = vunpack.c.l.b16 %v9143
        %v10168 = vunpack.c.l.b16 %v9144
        %v10169 = vunpack.c.l.b16 %v9145
        %v10170 = vunpack.c.l.b16 %v9146
        %v10171 = vunpack.c.l.b16 %v9147
        %v10172 = vunpack.c.l.b16 %v9148
        %v10173 = vunpack.c.l.b16 %v9149
        %v10174 = vunpack.c.l.b16 %v9150
        %v10175 = vunpack.c.l.b16 %v9151
        %v10176 = vunpack.c.l.b16 %v9152
        %v10177 = vunpack.c.l.b16 %v9153
        %v10178 = vunpack.c.l.b16 %v9154
        %v10179 = vunpack.c.l.b16 %v9155
        %v10180 = vunpack.c.l.b16 %v9156
        %v10181 = vunpack.c.l.b16 %v9157
        %v10182 = vunpack.c.l.b16 %v9158
        %v10183 = vunpack.c.l.b16 %v9159
        %v10184 = vunpack.c.l.b16 %v9160
        %v10185 = vunpack.c.l.b16 %v9161
        %v10186 = vunpack.c.l.b16 %v9162
        %v10187 = vunpack.c.l.b16 %v9163
        %v10188 = vunpack.c.l.b16 %v9164
        %v10189 = vunpack.c.l.b16 %v9165
        %v10190 = vunpack.c.l.b16 %v9166
        %v10191 = vunpack.c.l.b16 %v9167
        %v10192 = vunpack.c.l.b16 %v9168
        %v10193 = vunpack.c.l.b16 %v9169
        %v10194 = vunpack.c.l.b16 %v9170
        %v10195 = vunpack.c.l.b16 %v9171
        %v10196 = vunpack.c.l.b16 %v9172
        %v10197 = vunpack.c.l.b16 %v9173
        %v10198 = vunpack.c.l.b16 %v9174
        %v10199 = vunpack.c.l.b16 %v9175
        %v10200 = vunpack.c.l.b16 %v9176
        %v10201 = vunpack.c.l.b16 %v9177
        %v10202 = vunpack.c.l.b16 %v9178
        %v10203 = vunpack.c.l.b16 %v9179
        %v10204 = vunpack.c.l.b16 %v9180
        %v10205 = vunpack.c.l.b16 %v9181
        %v10206 = vunpack.c.l.b16 %v9182
        %v10207 = vunpack.c.l.b16 %v9183
        %v10208 = vunpack.c.l.b16 %v9184
        %v10209 = vunpack.c.l.b16 %v9185
        %v10210 = vunpack.c.l.b16 %v9186
        %v10211 = vunpack.c.l.b16 %v9187
        %v10212 = vunpack.c.l.b16 %v9188
        %v10213 = vunpack.c.l.b16 %v9189
        %v10214 = vunpack.c.l.b16 %v9190
        %v10215 = vunpack.c.l.b16 %v9191
        %v10216 = vunpack.c.l.b16 %v9192
        %v10217 = vunpack.c.l.b16 %v9193
        %v10218 = vunpack.c.l.b16 %v9194
        %v10219 = vunpack.c.l.b16 %v9195
        %v10220 = vunpack.c.l.b16 %v9196
        %v10221 = vunpack.c.l.b16 %v9197
        %v10222 = vunpack.c.l.b16 %v9198
        %v10223 = vunpack.c.l.b16 %v9199
        %v10224 = vunpack.c.l.b16 %v9200
        %v10225 = vunpack.c.l.b16 %v9201
        %v10226 = vunpack.c.l.b16 %v9202
        %v10227 = vunpack.c.l.b16 %v9203
        %v10228 = vunpack.c.l.b16 %v9204
        %v10229 = vunpack.c.l.b16 %v9205
        %v10230 = vunpack.c.l.b16 %v9206
        %v10231 = vunpack.c.l.b16 %v9207
        %v10232 = vunpack.c.l.b16 %v9208
        %v10233 = vunpack.c.l.b16 %v9209
        %v10234 = vunpack.c.l.b16 %v9210
        %v10235 = vunpack.c.l.b16 %v9211
        %v10236 = vunpack.c.l.b16 %v9212
        %v10237 = vunpack.c.l.b16 %v9213
        %v10238 = vunpack.c.l.b16 %v9214
        %v10239 = vunpack.c.l.b16 %v9215
        %v10240 = vunpack.c.l.b16 %v9216
        %v10241 = vunpack.c.l.b16 %v9217
        %v10242 = vunpack.c.l.b16 %v9218
        %v10243 = vunpack.c.l.b16 %v9219
        %v10244 = vunpack.c.l.b16 %v9220
        %v10245 = vunpack.c.l.b16 %v9221
        %v10246 = vunpack.c.l.b16 %v9222
        %v10247 = vunpack.c.l.b16 %v9223
        %v10248 = vunpack.c.l.b16 %v9224
        %v10249 = vunpack.c.l.b16 %v9225
        %v10250 = vpack.c.b16 %v10107, %v10106
        %v10251 = vpack.c.b16 %v10109, %v10108
        %v10252 = vpack.c.b16 %v10111, %v10110
        %v10253 = vpack.c.b16 %v10113, %v10112
        %v10254 = vpack.c.b16 %v10115, %v10114
        %v10255 = vpack.c.b16 %v10117, %v10116
        %v10256 = vpack.c.b16 %v10119, %v10118
        %v10257 = vpack.c.b16 %v10121, %v10120
        %v10258 = vpack.c.b16 %v10123, %v10122
        %v10259 = vpack.c.b16 %v10125, %v10124
        %v10260 = vpack.c.b16 %v10127, %v10126
        %v10261 = vpack.c.b16 %v10129, %v10128
        %v10262 = vpack.c.b16 %v10131, %v10130
        %v10263 = vpack.c.b16 %v10133, %v10132
        %v10264 = vpack.c.b16 %v10135, %v10134
        %v10265 = vpack.c.b16 %v10137, %v10136
        %v10266 = vpack.c.b16 %v10139, %v10138
        %v10267 = vpack.c.b16 %v10141, %v10140
        %v10268 = vpack.c.b16 %v10143, %v10142
        %v10269 = vpack.c.b16 %v10145, %v10144
        %v10270 = vpack.c.b16 %v10147, %v10146
        %v10271 = vpack.c.b16 %v10149, %v10148
        %v10272 = vpack.c.b16 %v10151, %v10150
        %v10273 = vpack.c.b16 %v10153, %v10152
        %v10274 = vpack.c.b16 %v10155, %v10154
        %v10275 = vpack.c.b16 %v10157, %v10156
        %v10276 = vpack.c.b16 %v10159, %v10158
        %v10277 = vpack.c.b16 %v10161, %v10160
        %v10278 = vpack.c.b16 %v10163, %v10162
        %v10279 = vpack.c.b16 %v10165, %v10164
        %v10280 = vpack.c.b16 %v10167, %v10166
        %v10281 = vpack.c.b16 %v10169, %v10168
        %v10282 = vpack.c.b16 %v10171, %v10170
        %v10283 = vpack.c.b16 %v10173, %v10172
        %v10284 = vpack.c.b16 %v10175, %v10174
        %v10285 = vpack.c.b16 %v10177, %v10176
        %v10286 = vpack.c.b16 %v10179, %v10178
        %v10287 = vpack.c.b16 %v10181, %v10180
        %v10288 = vpack.c.b16 %v10183, %v10182
        %v10289 = vpack.c.b16 %v10185, %v10184
        %v10290 = vpack.c.b16 %v10187, %v10186
        %v10291 = vpack.c.b16 %v10189, %v10188
        %v10292 = vpack.c.b16 %v10191, %v10190
        %v10293 = vpack.c.b16 %v10193, %v10192
        %v10294 = vpack.c.b16 %v10195, %v10194
        %v10295 = vpack.c.b16 %v10197, %v10196
        %v10296 = vpack.c.b16 %v10199, %v10198
        %v10297 = vpack.c.b16 %v10201, %v10200
        %v10298 = vpack.c.b16 %v10203, %v10202
        %v10299 = vpack.c.b16 %v10205, %v10204
        %v10300 = vpack.c.b16 %v10207, %v10206
        %v10301 = vpack.c.b16 %v10209, %v10208
        %v10302 = vpack.c.b16 %v10211, %v10210
        %v10303 = vpack.c.b16 %v10213, %v10212
        %v10304 = vpack.c.b16 %v10215, %v10214
        %v10305 = vpack.c.b16 %v10217, %v10216
        %v10306 = vpack.c.b16 %v10219, %v10218
        %v10307 = vpack.c.b16 %v10221, %v10220
        %v10308 = vpack.c.b16 %v10223, %v10222
        %v10309 = vpack.c.b16 %v10225, %v10224
        %v10310 = vpack.c.b16 %v10227, %v10226
        %v10311 = vpack.c.b16 %v10229, %v10228
        %v10312 = vpack.c.b16 %v10231, %v10230
        %v10313 = vpack.c.b16 %v10233, %v10232
        %v10314 = vpack.c.b16 %v10235, %v10234
        %v10315 = vpack.c.b16 %v10237, %v10236
        %v10316 = vpack.c.b16 %v10239, %v10238
        %v10317 = vpack.c.b16 %v10241, %v10240
        %v10318 = vpack.c.b16 %v10243, %v10242
        %v10319 = vpack.c.b16 %v10245, %v10244
        %v10320 = vpack.c.b16 %v10247, %v10246
        %v10321 = vpack.c.b16 %v10249, %v10248
        %10394 = vmatpush.bf16.msra.mxu0 %v10257
        %10395 = vmatpush.bf16.msra.mxu0 %v10256
        %10396 = vmatpush.bf16.msra.mxu0 %v10255
        %10397 = vmatpush.bf16.msra.mxu0 %v10254
        %10398 = vmatpush.bf16.msra.mxu0 %v10253
        %10399 = vmatpush.bf16.msra.mxu0 %v10252
        %10400 = vmatpush.bf16.msra.mxu0 %v10251
        %10401 = vmatpush.bf16.msra.mxu0 %v10250
        %10402 = vmatmul.bf16.gmra.mxu0 %v9674
        %v10403 = vpop.f32.mrf.mxu0
        %v10404 = vadd.f32 %v473, %v10403
        %v10405 = vpop.f32.mrf.mxu0
        %v10406 = vadd.f32 %v474, %v10405
        %10407 = vmatmul.bf16.gmra.mxu0 %v9683
        %v10408 = vpop.f32.mrf.mxu0
        %v10409 = vadd.f32 %v475, %v10408
        %v10410 = vpop.f32.mrf.mxu0
        %v10411 = vadd.f32 %v476, %v10410
        %10412 = vmatmul.bf16.gmra.mxu0 %v9692
        %v10413 = vpop.f32.mrf.mxu0
        %v10414 = vadd.f32 %v477, %v10413
        %v10415 = vpop.f32.mrf.mxu0
        %v10416 = vadd.f32 %v478, %v10415
        %10417 = vmatmul.bf16.gmra.mxu0 %v9701
        %v10418 = vpop.f32.mrf.mxu0
        %v10419 = vadd.f32 %v479, %v10418
        %v10420 = vpop.f32.mrf.mxu0
        %v10421 = vadd.f32 %v480, %v10420
        %10422 = vmatmul.bf16.gmra.mxu0 %v9710
        %v10423 = vpop.f32.mrf.mxu0
        %v10424 = vadd.f32 %v481, %v10423
        %v10425 = vpop.f32.mrf.mxu0
        %v10426 = vadd.f32 %v482, %v10425
        %10427 = vmatmul.bf16.gmra.mxu0 %v9719
        %v10428 = vpop.f32.mrf.mxu0
        %v10429 = vadd.f32 %v483, %v10428
        %v10430 = vpop.f32.mrf.mxu0
        %v10431 = vadd.f32 %v484, %v10430
        %10432 = vmatmul.bf16.gmra.mxu0 %v9728
        %v10433 = vpop.f32.mrf.mxu0
        %v10434 = vadd.f32 %v485, %v10433
        %v10435 = vpop.f32.mrf.mxu0
        %v10436 = vadd.f32 %v486, %v10435
        %10437 = vmatmul.bf16.gmra.mxu0 %v9737
        %v10438 = vpop.f32.mrf.mxu0
        %v10439 = vadd.f32 %v487, %v10438
        %v10440 = vpop.f32.mrf.mxu0
        %v10441 = vadd.f32 %v488, %v10440
        %10442 = vmatmul.bf16.gmra.mxu0 %v9746
        %v10443 = vpop.f32.mrf.mxu0
        %v10444 = vadd.f32 %v489, %v10443
        %v10445 = vpop.f32.mrf.mxu0
        %v10446 = vadd.f32 %v490, %v10445
        %10447 = vmatmul.bf16.gmra.mxu0 %v9755
        %v10448 = vpop.f32.mrf.mxu0
        %v10449 = vadd.f32 %v491, %v10448
        %v10450 = vpop.f32.mrf.mxu0
        %v10451 = vadd.f32 %v492, %v10450
        %10452 = vmatmul.bf16.gmra.mxu0 %v9764
        %v10453 = vpop.f32.mrf.mxu0
        %v10454 = vadd.f32 %v493, %v10453
        %v10455 = vpop.f32.mrf.mxu0
        %v10456 = vadd.f32 %v494, %v10455
        %10457 = vmatmul.bf16.gmra.mxu0 %v9773
        %v10458 = vpop.f32.mrf.mxu0
        %v10459 = vadd.f32 %v495, %v10458
        %v10460 = vpop.f32.mrf.mxu0
        %v10461 = vadd.f32 %v496, %v10460
        %10462 = vmatmul.bf16.gmra.mxu0 %v9782
        %v10463 = vpop.f32.mrf.mxu0
        %v10464 = vadd.f32 %v497, %v10463
        %v10465 = vpop.f32.mrf.mxu0
        %v10466 = vadd.f32 %v498, %v10465
        %10467 = vmatmul.bf16.gmra.mxu0 %v9791
        %v10468 = vpop.f32.mrf.mxu0
        %v10469 = vadd.f32 %v499, %v10468
        %v10470 = vpop.f32.mrf.mxu0
        %v10471 = vadd.f32 %v500, %v10470
        %10472 = vmatmul.bf16.gmra.mxu0 %v9800
        %v10473 = vpop.f32.mrf.mxu0
        %v10474 = vadd.f32 %v501, %v10473
        %v10475 = vpop.f32.mrf.mxu0
        %v10476 = vadd.f32 %v502, %v10475
        %10477 = vmatmul.bf16.gmra.mxu0 %v9809
        %v10478 = vpop.f32.mrf.mxu0
        %v10479 = vadd.f32 %v503, %v10478
        %v10480 = vpop.f32.mrf.mxu0
        %v10481 = vadd.f32 %v504, %v10480
        %10482 = vdwg.mxu0
        %10483 = vmatpush.bf16.msra.mxu0 %v10265
        %10484 = vmatpush.bf16.msra.mxu0 %v10264
        %10485 = vmatpush.bf16.msra.mxu0 %v10263
        %10486 = vmatpush.bf16.msra.mxu0 %v10262
        %10487 = vmatpush.bf16.msra.mxu0 %v10261
        %10488 = vmatpush.bf16.msra.mxu0 %v10260
        %10489 = vmatpush.bf16.msra.mxu0 %v10259
        %10490 = vmatpush.bf16.msra.mxu0 %v10258
        %10491 = vmatmul.bf16.gmra.mxu0 %v9675
        %v10492 = vpop.f32.mrf.mxu0
        %v10493 = vadd.f32 %v10404, %v10492
        %v10494 = vpop.f32.mrf.mxu0
        %v10495 = vadd.f32 %v10406, %v10494
        %10496 = vmatmul.bf16.gmra.mxu0 %v9684
        %v10497 = vpop.f32.mrf.mxu0
        %v10498 = vadd.f32 %v10409, %v10497
        %v10499 = vpop.f32.mrf.mxu0
        %v10500 = vadd.f32 %v10411, %v10499
        %10501 = vmatmul.bf16.gmra.mxu0 %v9693
        %v10502 = vpop.f32.mrf.mxu0
        %v10503 = vadd.f32 %v10414, %v10502
        %v10504 = vpop.f32.mrf.mxu0
        %v10505 = vadd.f32 %v10416, %v10504
        %10506 = vmatmul.bf16.gmra.mxu0 %v9702
        %v10507 = vpop.f32.mrf.mxu0
        %v10508 = vadd.f32 %v10419, %v10507
        %v10509 = vpop.f32.mrf.mxu0
        %v10510 = vadd.f32 %v10421, %v10509
        %10511 = vmatmul.bf16.gmra.mxu0 %v9711
        %v10512 = vpop.f32.mrf.mxu0
        %v10513 = vadd.f32 %v10424, %v10512
        %v10514 = vpop.f32.mrf.mxu0
        %v10515 = vadd.f32 %v10426, %v10514
        %10516 = vmatmul.bf16.gmra.mxu0 %v9720
        %v10517 = vpop.f32.mrf.mxu0
        %v10518 = vadd.f32 %v10429, %v10517
        %v10519 = vpop.f32.mrf.mxu0
        %v10520 = vadd.f32 %v10431, %v10519
        %10521 = vmatmul.bf16.gmra.mxu0 %v9729
        %v10522 = vpop.f32.mrf.mxu0
        %v10523 = vadd.f32 %v10434, %v10522
        %v10524 = vpop.f32.mrf.mxu0
        %v10525 = vadd.f32 %v10436, %v10524
        %10526 = vmatmul.bf16.gmra.mxu0 %v9738
        %v10527 = vpop.f32.mrf.mxu0
        %v10528 = vadd.f32 %v10439, %v10527
        %v10529 = vpop.f32.mrf.mxu0
        %v10530 = vadd.f32 %v10441, %v10529
        %10531 = vmatmul.bf16.gmra.mxu0 %v9747
        %v10532 = vpop.f32.mrf.mxu0
        %v10533 = vadd.f32 %v10444, %v10532
        %v10534 = vpop.f32.mrf.mxu0
        %v10535 = vadd.f32 %v10446, %v10534
        %10536 = vmatmul.bf16.gmra.mxu0 %v9756
        %v10537 = vpop.f32.mrf.mxu0
        %v10538 = vadd.f32 %v10449, %v10537
        %v10539 = vpop.f32.mrf.mxu0
        %v10540 = vadd.f32 %v10451, %v10539
        %10541 = vmatmul.bf16.gmra.mxu0 %v9765
        %v10542 = vpop.f32.mrf.mxu0
        %v10543 = vadd.f32 %v10454, %v10542
        %v10544 = vpop.f32.mrf.mxu0
        %v10545 = vadd.f32 %v10456, %v10544
        %10546 = vmatmul.bf16.gmra.mxu0 %v9774
        %v10547 = vpop.f32.mrf.mxu0
        %v10548 = vadd.f32 %v10459, %v10547
        %v10549 = vpop.f32.mrf.mxu0
        %v10550 = vadd.f32 %v10461, %v10549
        %10551 = vmatmul.bf16.gmra.mxu0 %v9783
        %v10552 = vpop.f32.mrf.mxu0
        %v10553 = vadd.f32 %v10464, %v10552
        %v10554 = vpop.f32.mrf.mxu0
        %v10555 = vadd.f32 %v10466, %v10554
        %10556 = vmatmul.bf16.gmra.mxu0 %v9792
        %v10557 = vpop.f32.mrf.mxu0
        %v10558 = vadd.f32 %v10469, %v10557
        %v10559 = vpop.f32.mrf.mxu0
        %v10560 = vadd.f32 %v10471, %v10559
        %10561 = vmatmul.bf16.gmra.mxu0 %v9801
        %v10562 = vpop.f32.mrf.mxu0
        %v10563 = vadd.f32 %v10474, %v10562
        %v10564 = vpop.f32.mrf.mxu0
        %v10565 = vadd.f32 %v10476, %v10564
        %10566 = vmatmul.bf16.gmra.mxu0 %v9810
        %v10567 = vpop.f32.mrf.mxu0
        %v10568 = vadd.f32 %v10479, %v10567
        %v10569 = vpop.f32.mrf.mxu0
        %v10570 = vadd.f32 %v10481, %v10569
        %10571 = vdwg.mxu0
        %10572 = vmatpush.bf16.msra.mxu0 %v10273
        %10573 = vmatpush.bf16.msra.mxu0 %v10272
        %10574 = vmatpush.bf16.msra.mxu0 %v10271
        %10575 = vmatpush.bf16.msra.mxu0 %v10270
        %10576 = vmatpush.bf16.msra.mxu0 %v10269
        %10577 = vmatpush.bf16.msra.mxu0 %v10268
        %10578 = vmatpush.bf16.msra.mxu0 %v10267
        %10579 = vmatpush.bf16.msra.mxu0 %v10266
        %10580 = vmatmul.bf16.gmra.mxu0 %v9676
        %v10581 = vpop.f32.mrf.mxu0
        %v10582 = vadd.f32 %v10493, %v10581
        %v10583 = vpop.f32.mrf.mxu0
        %v10584 = vadd.f32 %v10495, %v10583
        %10585 = vmatmul.bf16.gmra.mxu0 %v9685
        %v10586 = vpop.f32.mrf.mxu0
        %v10587 = vadd.f32 %v10498, %v10586
        %v10588 = vpop.f32.mrf.mxu0
        %v10589 = vadd.f32 %v10500, %v10588
        %10590 = vmatmul.bf16.gmra.mxu0 %v9694
        %v10591 = vpop.f32.mrf.mxu0
        %v10592 = vadd.f32 %v10503, %v10591
        %v10593 = vpop.f32.mrf.mxu0
        %v10594 = vadd.f32 %v10505, %v10593
        %10595 = vmatmul.bf16.gmra.mxu0 %v9703
        %v10596 = vpop.f32.mrf.mxu0
        %v10597 = vadd.f32 %v10508, %v10596
        %v10598 = vpop.f32.mrf.mxu0
        %v10599 = vadd.f32 %v10510, %v10598
        %10600 = vmatmul.bf16.gmra.mxu0 %v9712
        %v10601 = vpop.f32.mrf.mxu0
        %v10602 = vadd.f32 %v10513, %v10601
        %v10603 = vpop.f32.mrf.mxu0
        %v10604 = vadd.f32 %v10515, %v10603
        %10605 = vmatmul.bf16.gmra.mxu0 %v9721
        %v10606 = vpop.f32.mrf.mxu0
        %v10607 = vadd.f32 %v10518, %v10606
        %v10608 = vpop.f32.mrf.mxu0
        %v10609 = vadd.f32 %v10520, %v10608
        %10610 = vmatmul.bf16.gmra.mxu0 %v9730
        %v10611 = vpop.f32.mrf.mxu0
        %v10612 = vadd.f32 %v10523, %v10611
        %v10613 = vpop.f32.mrf.mxu0
        %v10614 = vadd.f32 %v10525, %v10613
        %10615 = vmatmul.bf16.gmra.mxu0 %v9739
        %v10616 = vpop.f32.mrf.mxu0
        %v10617 = vadd.f32 %v10528, %v10616
        %v10618 = vpop.f32.mrf.mxu0
        %v10619 = vadd.f32 %v10530, %v10618
        %10620 = vmatmul.bf16.gmra.mxu0 %v9748
        %v10621 = vpop.f32.mrf.mxu0
        %v10622 = vadd.f32 %v10533, %v10621
        %v10623 = vpop.f32.mrf.mxu0
        %v10624 = vadd.f32 %v10535, %v10623
        %10625 = vmatmul.bf16.gmra.mxu0 %v9757
        %v10626 = vpop.f32.mrf.mxu0
        %v10627 = vadd.f32 %v10538, %v10626
        %v10628 = vpop.f32.mrf.mxu0
        %v10629 = vadd.f32 %v10540, %v10628
        %10630 = vmatmul.bf16.gmra.mxu0 %v9766
        %v10631 = vpop.f32.mrf.mxu0
        %v10632 = vadd.f32 %v10543, %v10631
        %v10633 = vpop.f32.mrf.mxu0
        %v10634 = vadd.f32 %v10545, %v10633
        %10635 = vmatmul.bf16.gmra.mxu0 %v9775
        %v10636 = vpop.f32.mrf.mxu0
        %v10637 = vadd.f32 %v10548, %v10636
        %v10638 = vpop.f32.mrf.mxu0
        %v10639 = vadd.f32 %v10550, %v10638
        %10640 = vmatmul.bf16.gmra.mxu0 %v9784
        %v10641 = vpop.f32.mrf.mxu0
        %v10642 = vadd.f32 %v10553, %v10641
        %v10643 = vpop.f32.mrf.mxu0
        %v10644 = vadd.f32 %v10555, %v10643
        %10645 = vmatmul.bf16.gmra.mxu0 %v9793
        %v10646 = vpop.f32.mrf.mxu0
        %v10647 = vadd.f32 %v10558, %v10646
        %v10648 = vpop.f32.mrf.mxu0
        %v10649 = vadd.f32 %v10560, %v10648
        %10650 = vmatmul.bf16.gmra.mxu0 %v9802
        %v10651 = vpop.f32.mrf.mxu0
        %v10652 = vadd.f32 %v10563, %v10651
        %v10653 = vpop.f32.mrf.mxu0
        %v10654 = vadd.f32 %v10565, %v10653
        %10655 = vmatmul.bf16.gmra.mxu0 %v9811
        %v10656 = vpop.f32.mrf.mxu0
        %v10657 = vadd.f32 %v10568, %v10656
        %v10658 = vpop.f32.mrf.mxu0
        %v10659 = vadd.f32 %v10570, %v10658
        %10660 = vdwg.mxu0
        %10661 = vmatpush.bf16.msra.mxu0 %v10281
        %10662 = vmatpush.bf16.msra.mxu0 %v10280
        %10663 = vmatpush.bf16.msra.mxu0 %v10279
        %10664 = vmatpush.bf16.msra.mxu0 %v10278
        %10665 = vmatpush.bf16.msra.mxu0 %v10277
        %10666 = vmatpush.bf16.msra.mxu0 %v10276
        %10667 = vmatpush.bf16.msra.mxu0 %v10275
        %10668 = vmatpush.bf16.msra.mxu0 %v10274
        %10669 = vmatmul.bf16.gmra.mxu0 %v9677
        %v10670 = vpop.f32.mrf.mxu0
        %v10671 = vadd.f32 %v10582, %v10670
        %v10672 = vpop.f32.mrf.mxu0
        %v10673 = vadd.f32 %v10584, %v10672
        %10674 = vmatmul.bf16.gmra.mxu0 %v9686
        %v10675 = vpop.f32.mrf.mxu0
        %v10676 = vadd.f32 %v10587, %v10675
        %v10677 = vpop.f32.mrf.mxu0
        %v10678 = vadd.f32 %v10589, %v10677
        %10679 = vmatmul.bf16.gmra.mxu0 %v9695
        %v10680 = vpop.f32.mrf.mxu0
        %v10681 = vadd.f32 %v10592, %v10680
        %v10682 = vpop.f32.mrf.mxu0
        %v10683 = vadd.f32 %v10594, %v10682
        %10684 = vmatmul.bf16.gmra.mxu0 %v9704
        %v10685 = vpop.f32.mrf.mxu0
        %v10686 = vadd.f32 %v10597, %v10685
        %v10687 = vpop.f32.mrf.mxu0
        %v10688 = vadd.f32 %v10599, %v10687
        %10689 = vmatmul.bf16.gmra.mxu0 %v9713
        %v10690 = vpop.f32.mrf.mxu0
        %v10691 = vadd.f32 %v10602, %v10690
        %v10692 = vpop.f32.mrf.mxu0
        %v10693 = vadd.f32 %v10604, %v10692
        %10694 = vmatmul.bf16.gmra.mxu0 %v9722
        %v10695 = vpop.f32.mrf.mxu0
        %v10696 = vadd.f32 %v10607, %v10695
        %v10697 = vpop.f32.mrf.mxu0
        %v10698 = vadd.f32 %v10609, %v10697
        %10699 = vmatmul.bf16.gmra.mxu0 %v9731
        %v10700 = vpop.f32.mrf.mxu0
        %v10701 = vadd.f32 %v10612, %v10700
        %v10702 = vpop.f32.mrf.mxu0
        %v10703 = vadd.f32 %v10614, %v10702
        %10704 = vmatmul.bf16.gmra.mxu0 %v9740
        %v10705 = vpop.f32.mrf.mxu0
        %v10706 = vadd.f32 %v10617, %v10705
        %v10707 = vpop.f32.mrf.mxu0
        %v10708 = vadd.f32 %v10619, %v10707
        %10709 = vmatmul.bf16.gmra.mxu0 %v9749
        %v10710 = vpop.f32.mrf.mxu0
        %v10711 = vadd.f32 %v10622, %v10710
        %v10712 = vpop.f32.mrf.mxu0
        %v10713 = vadd.f32 %v10624, %v10712
        %10714 = vmatmul.bf16.gmra.mxu0 %v9758
        %v10715 = vpop.f32.mrf.mxu0
        %v10716 = vadd.f32 %v10627, %v10715
        %v10717 = vpop.f32.mrf.mxu0
        %v10718 = vadd.f32 %v10629, %v10717
        %10719 = vmatmul.bf16.gmra.mxu0 %v9767
        %v10720 = vpop.f32.mrf.mxu0
        %v10721 = vadd.f32 %v10632, %v10720
        %v10722 = vpop.f32.mrf.mxu0
        %v10723 = vadd.f32 %v10634, %v10722
        %10724 = vmatmul.bf16.gmra.mxu0 %v9776
        %v10725 = vpop.f32.mrf.mxu0
        %v10726 = vadd.f32 %v10637, %v10725
        %v10727 = vpop.f32.mrf.mxu0
        %v10728 = vadd.f32 %v10639, %v10727
        %10729 = vmatmul.bf16.gmra.mxu0 %v9785
        %v10730 = vpop.f32.mrf.mxu0
        %v10731 = vadd.f32 %v10642, %v10730
        %v10732 = vpop.f32.mrf.mxu0
        %v10733 = vadd.f32 %v10644, %v10732
        %10734 = vmatmul.bf16.gmra.mxu0 %v9794
        %v10735 = vpop.f32.mrf.mxu0
        %v10736 = vadd.f32 %v10647, %v10735
        %v10737 = vpop.f32.mrf.mxu0
        %v10738 = vadd.f32 %v10649, %v10737
        %10739 = vmatmul.bf16.gmra.mxu0 %v9803
        %v10740 = vpop.f32.mrf.mxu0
        %v10741 = vadd.f32 %v10652, %v10740
        %v10742 = vpop.f32.mrf.mxu0
        %v10743 = vadd.f32 %v10654, %v10742
        %10744 = vmatmul.bf16.gmra.mxu0 %v9812
        %v10745 = vpop.f32.mrf.mxu0
        %v10746 = vadd.f32 %v10657, %v10745
        %v10747 = vpop.f32.mrf.mxu0
        %v10748 = vadd.f32 %v10659, %v10747
        %10749 = vdwg.mxu0
        %10750 = vmatpush.bf16.msra.mxu0 %v10289
        %10751 = vmatpush.bf16.msra.mxu0 %v10288
        %10752 = vmatpush.bf16.msra.mxu0 %v10287
        %10753 = vmatpush.bf16.msra.mxu0 %v10286
        %10754 = vmatpush.bf16.msra.mxu0 %v10285
        %10755 = vmatpush.bf16.msra.mxu0 %v10284
        %10756 = vmatpush.bf16.msra.mxu0 %v10283
        %10757 = vmatpush.bf16.msra.mxu0 %v10282
        %10758 = vmatmul.bf16.gmra.mxu0 %v9678
        %v10759 = vpop.f32.mrf.mxu0
        %v10760 = vadd.f32 %v10671, %v10759
        %v10761 = vpop.f32.mrf.mxu0
        %v10762 = vadd.f32 %v10673, %v10761
        %10763 = vmatmul.bf16.gmra.mxu0 %v9687
        %v10764 = vpop.f32.mrf.mxu0
        %v10765 = vadd.f32 %v10676, %v10764
        %v10766 = vpop.f32.mrf.mxu0
        %v10767 = vadd.f32 %v10678, %v10766
        %10768 = vmatmul.bf16.gmra.mxu0 %v9696
        %v10769 = vpop.f32.mrf.mxu0
        %v10770 = vadd.f32 %v10681, %v10769
        %v10771 = vpop.f32.mrf.mxu0
        %v10772 = vadd.f32 %v10683, %v10771
        %10773 = vmatmul.bf16.gmra.mxu0 %v9705
        %v10774 = vpop.f32.mrf.mxu0
        %v10775 = vadd.f32 %v10686, %v10774
        %v10776 = vpop.f32.mrf.mxu0
        %v10777 = vadd.f32 %v10688, %v10776
        %10778 = vmatmul.bf16.gmra.mxu0 %v9714
        %v10779 = vpop.f32.mrf.mxu0
        %v10780 = vadd.f32 %v10691, %v10779
        %v10781 = vpop.f32.mrf.mxu0
        %v10782 = vadd.f32 %v10693, %v10781
        %10783 = vmatmul.bf16.gmra.mxu0 %v9723
        %v10784 = vpop.f32.mrf.mxu0
        %v10785 = vadd.f32 %v10696, %v10784
        %v10786 = vpop.f32.mrf.mxu0
        %v10787 = vadd.f32 %v10698, %v10786
        %10788 = vmatmul.bf16.gmra.mxu0 %v9732
        %v10789 = vpop.f32.mrf.mxu0
        %v10790 = vadd.f32 %v10701, %v10789
        %v10791 = vpop.f32.mrf.mxu0
        %v10792 = vadd.f32 %v10703, %v10791
        %10793 = vmatmul.bf16.gmra.mxu0 %v9741
        %v10794 = vpop.f32.mrf.mxu0
        %v10795 = vadd.f32 %v10706, %v10794
        %v10796 = vpop.f32.mrf.mxu0
        %v10797 = vadd.f32 %v10708, %v10796
        %10798 = vmatmul.bf16.gmra.mxu0 %v9750
        %v10799 = vpop.f32.mrf.mxu0
        %v10800 = vadd.f32 %v10711, %v10799
        %v10801 = vpop.f32.mrf.mxu0
        %v10802 = vadd.f32 %v10713, %v10801
        %10803 = vmatmul.bf16.gmra.mxu0 %v9759
        %v10804 = vpop.f32.mrf.mxu0
        %v10805 = vadd.f32 %v10716, %v10804
        %v10806 = vpop.f32.mrf.mxu0
        %v10807 = vadd.f32 %v10718, %v10806
        %10808 = vmatmul.bf16.gmra.mxu0 %v9768
        %v10809 = vpop.f32.mrf.mxu0
        %v10810 = vadd.f32 %v10721, %v10809
        %v10811 = vpop.f32.mrf.mxu0
        %v10812 = vadd.f32 %v10723, %v10811
        %10813 = vmatmul.bf16.gmra.mxu0 %v9777
        %v10814 = vpop.f32.mrf.mxu0
        %v10815 = vadd.f32 %v10726, %v10814
        %v10816 = vpop.f32.mrf.mxu0
        %v10817 = vadd.f32 %v10728, %v10816
        %10818 = vmatmul.bf16.gmra.mxu0 %v9786
        %v10819 = vpop.f32.mrf.mxu0
        %v10820 = vadd.f32 %v10731, %v10819
        %v10821 = vpop.f32.mrf.mxu0
        %v10822 = vadd.f32 %v10733, %v10821
        %10823 = vmatmul.bf16.gmra.mxu0 %v9795
        %v10824 = vpop.f32.mrf.mxu0
        %v10825 = vadd.f32 %v10736, %v10824
        %v10826 = vpop.f32.mrf.mxu0
        %v10827 = vadd.f32 %v10738, %v10826
        %10828 = vmatmul.bf16.gmra.mxu0 %v9804
        %v10829 = vpop.f32.mrf.mxu0
        %v10830 = vadd.f32 %v10741, %v10829
        %v10831 = vpop.f32.mrf.mxu0
        %v10832 = vadd.f32 %v10743, %v10831
        %10833 = vmatmul.bf16.gmra.mxu0 %v9813
        %v10834 = vpop.f32.mrf.mxu0
        %v10835 = vadd.f32 %v10746, %v10834
        %v10836 = vpop.f32.mrf.mxu0
        %v10837 = vadd.f32 %v10748, %v10836
        %10838 = vdwg.mxu0
        %10839 = vmatpush.bf16.msra.mxu0 %v10297
        %10840 = vmatpush.bf16.msra.mxu0 %v10296
        %10841 = vmatpush.bf16.msra.mxu0 %v10295
        %10842 = vmatpush.bf16.msra.mxu0 %v10294
        %10843 = vmatpush.bf16.msra.mxu0 %v10293
        %10844 = vmatpush.bf16.msra.mxu0 %v10292
        %10845 = vmatpush.bf16.msra.mxu0 %v10291
        %10846 = vmatpush.bf16.msra.mxu0 %v10290
        %10847 = vmatmul.bf16.gmra.mxu0 %v9679
        %v10848 = vpop.f32.mrf.mxu0
        %v10849 = vadd.f32 %v10760, %v10848
        %v10850 = vpop.f32.mrf.mxu0
        %v10851 = vadd.f32 %v10762, %v10850
        %10852 = vmatmul.bf16.gmra.mxu0 %v9688
        %v10853 = vpop.f32.mrf.mxu0
        %v10854 = vadd.f32 %v10765, %v10853
        %v10855 = vpop.f32.mrf.mxu0
        %v10856 = vadd.f32 %v10767, %v10855
        %10857 = vmatmul.bf16.gmra.mxu0 %v9697
        %v10858 = vpop.f32.mrf.mxu0
        %v10859 = vadd.f32 %v10770, %v10858
        %v10860 = vpop.f32.mrf.mxu0
        %v10861 = vadd.f32 %v10772, %v10860
        %10862 = vmatmul.bf16.gmra.mxu0 %v9706
        %v10863 = vpop.f32.mrf.mxu0
        %v10864 = vadd.f32 %v10775, %v10863
        %v10865 = vpop.f32.mrf.mxu0
        %v10866 = vadd.f32 %v10777, %v10865
        %10867 = vmatmul.bf16.gmra.mxu0 %v9715
        %v10868 = vpop.f32.mrf.mxu0
        %v10869 = vadd.f32 %v10780, %v10868
        %v10870 = vpop.f32.mrf.mxu0
        %v10871 = vadd.f32 %v10782, %v10870
        %10872 = vmatmul.bf16.gmra.mxu0 %v9724
        %v10873 = vpop.f32.mrf.mxu0
        %v10874 = vadd.f32 %v10785, %v10873
        %v10875 = vpop.f32.mrf.mxu0
        %v10876 = vadd.f32 %v10787, %v10875
        %10877 = vmatmul.bf16.gmra.mxu0 %v9733
        %v10878 = vpop.f32.mrf.mxu0
        %v10879 = vadd.f32 %v10790, %v10878
        %v10880 = vpop.f32.mrf.mxu0
        %v10881 = vadd.f32 %v10792, %v10880
        %10882 = vmatmul.bf16.gmra.mxu0 %v9742
        %v10883 = vpop.f32.mrf.mxu0
        %v10884 = vadd.f32 %v10795, %v10883
        %v10885 = vpop.f32.mrf.mxu0
        %v10886 = vadd.f32 %v10797, %v10885
        %10887 = vmatmul.bf16.gmra.mxu0 %v9751
        %v10888 = vpop.f32.mrf.mxu0
        %v10889 = vadd.f32 %v10800, %v10888
        %v10890 = vpop.f32.mrf.mxu0
        %v10891 = vadd.f32 %v10802, %v10890
        %10892 = vmatmul.bf16.gmra.mxu0 %v9760
        %v10893 = vpop.f32.mrf.mxu0
        %v10894 = vadd.f32 %v10805, %v10893
        %v10895 = vpop.f32.mrf.mxu0
        %v10896 = vadd.f32 %v10807, %v10895
        %10897 = vmatmul.bf16.gmra.mxu0 %v9769
        %v10898 = vpop.f32.mrf.mxu0
        %v10899 = vadd.f32 %v10810, %v10898
        %v10900 = vpop.f32.mrf.mxu0
        %v10901 = vadd.f32 %v10812, %v10900
        %10902 = vmatmul.bf16.gmra.mxu0 %v9778
        %v10903 = vpop.f32.mrf.mxu0
        %v10904 = vadd.f32 %v10815, %v10903
        %v10905 = vpop.f32.mrf.mxu0
        %v10906 = vadd.f32 %v10817, %v10905
        %10907 = vmatmul.bf16.gmra.mxu0 %v9787
        %v10908 = vpop.f32.mrf.mxu0
        %v10909 = vadd.f32 %v10820, %v10908
        %v10910 = vpop.f32.mrf.mxu0
        %v10911 = vadd.f32 %v10822, %v10910
        %10912 = vmatmul.bf16.gmra.mxu0 %v9796
        %v10913 = vpop.f32.mrf.mxu0
        %v10914 = vadd.f32 %v10825, %v10913
        %v10915 = vpop.f32.mrf.mxu0
        %v10916 = vadd.f32 %v10827, %v10915
        %10917 = vmatmul.bf16.gmra.mxu0 %v9805
        %v10918 = vpop.f32.mrf.mxu0
        %v10919 = vadd.f32 %v10830, %v10918
        %v10920 = vpop.f32.mrf.mxu0
        %v10921 = vadd.f32 %v10832, %v10920
        %10922 = vmatmul.bf16.gmra.mxu0 %v9814
        %v10923 = vpop.f32.mrf.mxu0
        %v10924 = vadd.f32 %v10835, %v10923
        %v10925 = vpop.f32.mrf.mxu0
        %v10926 = vadd.f32 %v10837, %v10925
        %10927 = vdwg.mxu0
        %10928 = vmatpush.bf16.msra.mxu0 %v10305
        %10929 = vmatpush.bf16.msra.mxu0 %v10304
        %10930 = vmatpush.bf16.msra.mxu0 %v10303
        %10931 = vmatpush.bf16.msra.mxu0 %v10302
        %10932 = vmatpush.bf16.msra.mxu0 %v10301
        %10933 = vmatpush.bf16.msra.mxu0 %v10300
        %10934 = vmatpush.bf16.msra.mxu0 %v10299
        %10935 = vmatpush.bf16.msra.mxu0 %v10298
        %10936 = vmatmul.bf16.gmra.mxu0 %v9680
        %v10937 = vpop.f32.mrf.mxu0
        %v10938 = vadd.f32 %v10849, %v10937
        %v10939 = vpop.f32.mrf.mxu0
        %v10940 = vadd.f32 %v10851, %v10939
        %10941 = vmatmul.bf16.gmra.mxu0 %v9689
        %v10942 = vpop.f32.mrf.mxu0
        %v10943 = vadd.f32 %v10854, %v10942
        %v10944 = vpop.f32.mrf.mxu0
        %v10945 = vadd.f32 %v10856, %v10944
        %10946 = vmatmul.bf16.gmra.mxu0 %v9698
        %v10947 = vpop.f32.mrf.mxu0
        %v10948 = vadd.f32 %v10859, %v10947
        %v10949 = vpop.f32.mrf.mxu0
        %v10950 = vadd.f32 %v10861, %v10949
        %10951 = vmatmul.bf16.gmra.mxu0 %v9707
        %v10952 = vpop.f32.mrf.mxu0
        %v10953 = vadd.f32 %v10864, %v10952
        %v10954 = vpop.f32.mrf.mxu0
        %v10955 = vadd.f32 %v10866, %v10954
        %10956 = vmatmul.bf16.gmra.mxu0 %v9716
        %v10957 = vpop.f32.mrf.mxu0
        %v10958 = vadd.f32 %v10869, %v10957
        %v10959 = vpop.f32.mrf.mxu0
        %v10960 = vadd.f32 %v10871, %v10959
        %10961 = vmatmul.bf16.gmra.mxu0 %v9725
        %v10962 = vpop.f32.mrf.mxu0
        %v10963 = vadd.f32 %v10874, %v10962
        %v10964 = vpop.f32.mrf.mxu0
        %v10965 = vadd.f32 %v10876, %v10964
        %10966 = vmatmul.bf16.gmra.mxu0 %v9734
        %v10967 = vpop.f32.mrf.mxu0
        %v10968 = vadd.f32 %v10879, %v10967
        %v10969 = vpop.f32.mrf.mxu0
        %v10970 = vadd.f32 %v10881, %v10969
        %10971 = vmatmul.bf16.gmra.mxu0 %v9743
        %v10972 = vpop.f32.mrf.mxu0
        %v10973 = vadd.f32 %v10884, %v10972
        %v10974 = vpop.f32.mrf.mxu0
        %v10975 = vadd.f32 %v10886, %v10974
        %10976 = vmatmul.bf16.gmra.mxu0 %v9752
        %v10977 = vpop.f32.mrf.mxu0
        %v10978 = vadd.f32 %v10889, %v10977
        %v10979 = vpop.f32.mrf.mxu0
        %v10980 = vadd.f32 %v10891, %v10979
        %10981 = vmatmul.bf16.gmra.mxu0 %v9761
        %v10982 = vpop.f32.mrf.mxu0
        %v10983 = vadd.f32 %v10894, %v10982
        %v10984 = vpop.f32.mrf.mxu0
        %v10985 = vadd.f32 %v10896, %v10984
        %10986 = vmatmul.bf16.gmra.mxu0 %v9770
        %v10987 = vpop.f32.mrf.mxu0
        %v10988 = vadd.f32 %v10899, %v10987
        %v10989 = vpop.f32.mrf.mxu0
        %v10990 = vadd.f32 %v10901, %v10989
        %10991 = vmatmul.bf16.gmra.mxu0 %v9779
        %v10992 = vpop.f32.mrf.mxu0
        %v10993 = vadd.f32 %v10904, %v10992
        %v10994 = vpop.f32.mrf.mxu0
        %v10995 = vadd.f32 %v10906, %v10994
        %10996 = vmatmul.bf16.gmra.mxu0 %v9788
        %v10997 = vpop.f32.mrf.mxu0
        %v10998 = vadd.f32 %v10909, %v10997
        %v10999 = vpop.f32.mrf.mxu0
        %v11000 = vadd.f32 %v10911, %v10999
        %11001 = vmatmul.bf16.gmra.mxu0 %v9797
        %v11002 = vpop.f32.mrf.mxu0
        %v11003 = vadd.f32 %v10914, %v11002
        %v11004 = vpop.f32.mrf.mxu0
        %v11005 = vadd.f32 %v10916, %v11004
        %11006 = vmatmul.bf16.gmra.mxu0 %v9806
        %v11007 = vpop.f32.mrf.mxu0
        %v11008 = vadd.f32 %v10919, %v11007
        %v11009 = vpop.f32.mrf.mxu0
        %v11010 = vadd.f32 %v10921, %v11009
        %11011 = vmatmul.bf16.gmra.mxu0 %v9815
        %v11012 = vpop.f32.mrf.mxu0
        %v11013 = vadd.f32 %v10924, %v11012
        %v11014 = vpop.f32.mrf.mxu0
        %v11015 = vadd.f32 %v10926, %v11014
        %11016 = vdwg.mxu0
        %11017 = vmatpush.bf16.msra.mxu0 %v10313
        %11018 = vmatpush.bf16.msra.mxu0 %v10312
        %11019 = vmatpush.bf16.msra.mxu0 %v10311
        %11020 = vmatpush.bf16.msra.mxu0 %v10310
        %11021 = vmatpush.bf16.msra.mxu0 %v10309
        %11022 = vmatpush.bf16.msra.mxu0 %v10308
        %11023 = vmatpush.bf16.msra.mxu0 %v10307
        %11024 = vmatpush.bf16.msra.mxu0 %v10306
        %11025 = vmatmul.bf16.gmra.mxu0 %v9681
        %v11026 = vpop.f32.mrf.mxu0
        %v11027 = vadd.f32 %v10938, %v11026
        %v11028 = vpop.f32.mrf.mxu0
        %v11029 = vadd.f32 %v10940, %v11028
        %11030 = vmatmul.bf16.gmra.mxu0 %v9690
        %v11031 = vpop.f32.mrf.mxu0
        %v11032 = vadd.f32 %v10943, %v11031
        %v11033 = vpop.f32.mrf.mxu0
        %v11034 = vadd.f32 %v10945, %v11033
        %11035 = vmatmul.bf16.gmra.mxu0 %v9699
        %v11036 = vpop.f32.mrf.mxu0
        %v11037 = vadd.f32 %v10948, %v11036
        %v11038 = vpop.f32.mrf.mxu0
        %v11039 = vadd.f32 %v10950, %v11038
        %11040 = vmatmul.bf16.gmra.mxu0 %v9708
        %v11041 = vpop.f32.mrf.mxu0
        %v11042 = vadd.f32 %v10953, %v11041
        %v11043 = vpop.f32.mrf.mxu0
        %v11044 = vadd.f32 %v10955, %v11043
        %11045 = vmatmul.bf16.gmra.mxu0 %v9717
        %v11046 = vpop.f32.mrf.mxu0
        %v11047 = vadd.f32 %v10958, %v11046
        %v11048 = vpop.f32.mrf.mxu0
        %v11049 = vadd.f32 %v10960, %v11048
        %11050 = vmatmul.bf16.gmra.mxu0 %v9726
        %v11051 = vpop.f32.mrf.mxu0
        %v11052 = vadd.f32 %v10963, %v11051
        %v11053 = vpop.f32.mrf.mxu0
        %v11054 = vadd.f32 %v10965, %v11053
        %11055 = vmatmul.bf16.gmra.mxu0 %v9735
        %v11056 = vpop.f32.mrf.mxu0
        %v11057 = vadd.f32 %v10968, %v11056
        %v11058 = vpop.f32.mrf.mxu0
        %v11059 = vadd.f32 %v10970, %v11058
        %11060 = vmatmul.bf16.gmra.mxu0 %v9744
        %v11061 = vpop.f32.mrf.mxu0
        %v11062 = vadd.f32 %v10973, %v11061
        %v11063 = vpop.f32.mrf.mxu0
        %v11064 = vadd.f32 %v10975, %v11063
        %11065 = vmatmul.bf16.gmra.mxu0 %v9753
        %v11066 = vpop.f32.mrf.mxu0
        %v11067 = vadd.f32 %v10978, %v11066
        %v11068 = vpop.f32.mrf.mxu0
        %v11069 = vadd.f32 %v10980, %v11068
        %11070 = vmatmul.bf16.gmra.mxu0 %v9762
        %v11071 = vpop.f32.mrf.mxu0
        %v11072 = vadd.f32 %v10983, %v11071
        %v11073 = vpop.f32.mrf.mxu0
        %v11074 = vadd.f32 %v10985, %v11073
        %11075 = vmatmul.bf16.gmra.mxu0 %v9771
        %v11076 = vpop.f32.mrf.mxu0
        %v11077 = vadd.f32 %v10988, %v11076
        %v11078 = vpop.f32.mrf.mxu0
        %v11079 = vadd.f32 %v10990, %v11078
        %11080 = vmatmul.bf16.gmra.mxu0 %v9780
        %v11081 = vpop.f32.mrf.mxu0
        %v11082 = vadd.f32 %v10993, %v11081
        %v11083 = vpop.f32.mrf.mxu0
        %v11084 = vadd.f32 %v10995, %v11083
        %11085 = vmatmul.bf16.gmra.mxu0 %v9789
        %v11086 = vpop.f32.mrf.mxu0
        %v11087 = vadd.f32 %v10998, %v11086
        %v11088 = vpop.f32.mrf.mxu0
        %v11089 = vadd.f32 %v11000, %v11088
        %11090 = vmatmul.bf16.gmra.mxu0 %v9798
        %v11091 = vpop.f32.mrf.mxu0
        %v11092 = vadd.f32 %v11003, %v11091
        %v11093 = vpop.f32.mrf.mxu0
        %v11094 = vadd.f32 %v11005, %v11093
        %11095 = vmatmul.bf16.gmra.mxu0 %v9807
        %v11096 = vpop.f32.mrf.mxu0
        %v11097 = vadd.f32 %v11008, %v11096
        %v11098 = vpop.f32.mrf.mxu0
        %v11099 = vadd.f32 %v11010, %v11098
        %11100 = vmatmul.bf16.gmra.mxu0 %v9816
        %v11101 = vpop.f32.mrf.mxu0
        %v11102 = vadd.f32 %v11013, %v11101
        %v11103 = vpop.f32.mrf.mxu0
        %v11104 = vadd.f32 %v11015, %v11103
        %11105 = vdwg.mxu0
        %11106 = vmatpush.bf16.msra.mxu0 %v10321
        %11107 = vmatpush.bf16.msra.mxu0 %v10320
        %11108 = vmatpush.bf16.msra.mxu0 %v10319
        %11109 = vmatpush.bf16.msra.mxu0 %v10318
        %11110 = vmatpush.bf16.msra.mxu0 %v10317
        %11111 = vmatpush.bf16.msra.mxu0 %v10316
        %11112 = vmatpush.bf16.msra.mxu0 %v10315
        %11113 = vmatpush.bf16.msra.mxu0 %v10314
        %11114 = vmatmul.bf16.gmra.mxu0 %v9682
        %v11115 = vpop.f32.mrf.mxu0
        %v11116 = vadd.f32 %v11027, %v11115
        %v11117 = vpop.f32.mrf.mxu0
        %v11118 = vadd.f32 %v11029, %v11117
        %11119 = vmatmul.bf16.gmra.mxu0 %v9691
        %v11120 = vpop.f32.mrf.mxu0
        %v11121 = vadd.f32 %v11032, %v11120
        %v11122 = vpop.f32.mrf.mxu0
        %v11123 = vadd.f32 %v11034, %v11122
        %11124 = vmatmul.bf16.gmra.mxu0 %v9700
        %v11125 = vpop.f32.mrf.mxu0
        %v11126 = vadd.f32 %v11037, %v11125
        %v11127 = vpop.f32.mrf.mxu0
        %v11128 = vadd.f32 %v11039, %v11127
        %11129 = vmatmul.bf16.gmra.mxu0 %v9709
        %v11130 = vpop.f32.mrf.mxu0
        %v11131 = vadd.f32 %v11042, %v11130
        %v11132 = vpop.f32.mrf.mxu0
        %v11133 = vadd.f32 %v11044, %v11132
        %11134 = vmatmul.bf16.gmra.mxu0 %v9718
        %v11135 = vpop.f32.mrf.mxu0
        %v11136 = vadd.f32 %v11047, %v11135
        %v11137 = vpop.f32.mrf.mxu0
        %v11138 = vadd.f32 %v11049, %v11137
        %11139 = vmatmul.bf16.gmra.mxu0 %v9727
        %v11140 = vpop.f32.mrf.mxu0
        %v11141 = vadd.f32 %v11052, %v11140
        %v11142 = vpop.f32.mrf.mxu0
        %v11143 = vadd.f32 %v11054, %v11142
        %11144 = vmatmul.bf16.gmra.mxu0 %v9736
        %v11145 = vpop.f32.mrf.mxu0
        %v11146 = vadd.f32 %v11057, %v11145
        %v11147 = vpop.f32.mrf.mxu0
        %v11148 = vadd.f32 %v11059, %v11147
        %11149 = vmatmul.bf16.gmra.mxu0 %v9745
        %v11150 = vpop.f32.mrf.mxu0
        %v11151 = vadd.f32 %v11062, %v11150
        %v11152 = vpop.f32.mrf.mxu0
        %v11153 = vadd.f32 %v11064, %v11152
        %11154 = vmatmul.bf16.gmra.mxu0 %v9754
        %v11155 = vpop.f32.mrf.mxu0
        %v11156 = vadd.f32 %v11067, %v11155
        %v11157 = vpop.f32.mrf.mxu0
        %v11158 = vadd.f32 %v11069, %v11157
        %11159 = vmatmul.bf16.gmra.mxu0 %v9763
        %v11160 = vpop.f32.mrf.mxu0
        %v11161 = vadd.f32 %v11072, %v11160
        %v11162 = vpop.f32.mrf.mxu0
        %v11163 = vadd.f32 %v11074, %v11162
        %11164 = vmatmul.bf16.gmra.mxu0 %v9772
        %v11165 = vpop.f32.mrf.mxu0
        %v11166 = vadd.f32 %v11077, %v11165
        %v11167 = vpop.f32.mrf.mxu0
        %v11168 = vadd.f32 %v11079, %v11167
        %11169 = vmatmul.bf16.gmra.mxu0 %v9781
        %v11170 = vpop.f32.mrf.mxu0
        %v11171 = vadd.f32 %v11082, %v11170
        %v11172 = vpop.f32.mrf.mxu0
        %v11173 = vadd.f32 %v11084, %v11172
        %11174 = vmatmul.bf16.gmra.mxu0 %v9790
        %v11175 = vpop.f32.mrf.mxu0
        %v11176 = vadd.f32 %v11087, %v11175
        %v11177 = vpop.f32.mrf.mxu0
        %v11178 = vadd.f32 %v11089, %v11177
        %11179 = vmatmul.bf16.gmra.mxu0 %v9799
        %v11180 = vpop.f32.mrf.mxu0
        %v11181 = vadd.f32 %v11092, %v11180
        %v11182 = vpop.f32.mrf.mxu0
        %v11183 = vadd.f32 %v11094, %v11182
        %11184 = vmatmul.bf16.gmra.mxu0 %v9808
        %v11185 = vpop.f32.mrf.mxu0
        %v11186 = vadd.f32 %v11097, %v11185
        %v11187 = vpop.f32.mrf.mxu0
        %v11188 = vadd.f32 %v11099, %v11187
        %11189 = vmatmul.bf16.gmra.mxu0 %v9817
        %v11190 = vpop.f32.mrf.mxu0
        %v11191 = vadd.f32 %v11102, %v11190
        %v11192 = vpop.f32.mrf.mxu0
        %v11193 = vadd.f32 %v11104, %v11192
        %11194 = vdwg.mxu0
        %11195 = vst [vmem:[%s346] sm:$0xff] %v11116
        %11196 = vst [vmem:[%s346 + $0x8] sm:$0xff] %v11118
        %11197 = vst [vmem:[%s346 + $0x10] sm:$0xff] %v11121
        %11198 = vst [vmem:[%s346 + $0x18] sm:$0xff] %v11123
        %11199 = vst [vmem:[%s346 + $0x20] sm:$0xff] %v11126
        %11200 = vst [vmem:[%s346 + $0x28] sm:$0xff] %v11128
        %11201 = vst [vmem:[%s346 + $0x30] sm:$0xff] %v11131
        %11202 = vst [vmem:[%s346 + $0x38] sm:$0xff] %v11133
        %11203 = vst [vmem:[%s346 + $0x40] sm:$0xff] %v11136
        %11204 = vst [vmem:[%s346 + $0x48] sm:$0xff] %v11138
        %11205 = vst [vmem:[%s346 + $0x50] sm:$0xff] %v11141
        %11206 = vst [vmem:[%s346 + $0x58] sm:$0xff] %v11143
        %11207 = vst [vmem:[%s346 + $0x60] sm:$0xff] %v11146
        %11208 = vst [vmem:[%s346 + $0x68] sm:$0xff] %v11148
        %11209 = vst [vmem:[%s346 + $0x70] sm:$0xff] %v11151
        %11210 = vst [vmem:[%s346 + $0x78] sm:$0xff] %v11153
        %11211 = vst [vmem:[%s346 + $0x80] sm:$0xff] %v11156
        %11212 = vst [vmem:[%s346 + $0x88] sm:$0xff] %v11158
        %11213 = vst [vmem:[%s346 + $0x90] sm:$0xff] %v11161
        %11214 = vst [vmem:[%s346 + $0x98] sm:$0xff] %v11163
        %11215 = vst [vmem:[%s346 + $0xa0] sm:$0xff] %v11166
        %11216 = vst [vmem:[%s346 + $0xa8] sm:$0xff] %v11168
        %11217 = vst [vmem:[%s346 + $0xb0] sm:$0xff] %v11171
        %11218 = vst [vmem:[%s346 + $0xb8] sm:$0xff] %v11173
        %11219 = vst [vmem:[%s346 + $0xc0] sm:$0xff] %v11176
        %11220 = vst [vmem:[%s346 + $0xc8] sm:$0xff] %v11178
        %11221 = vst [vmem:[%s346 + $0xd0] sm:$0xff] %v11181
        %11222 = vst [vmem:[%s346 + $0xd8] sm:$0xff] %v11183
        %11223 = vst [vmem:[%s346 + $0xe0] sm:$0xff] %v11186
        %11224 = vst [vmem:[%s346 + $0xe8] sm:$0xff] %v11188
        %11225 = vst [vmem:[%s346 + $0xf0] sm:$0xff] %v11191
        %11226 = vst [vmem:[%s346 + $0xf8] sm:$0xff] %v11193
        %s11227 = sand.u32 %s186, 1
        %s11228 = scalar_lea.sflag [#allocation8], %s11227
        %s11229 = sand.u32 %s186, 1
        %s11230 = smul.addr %s11229, 256
        %s11231 = scalar_lea.vmem [#allocation14], %s11230
        // Predicated region
        $region65: #{tpu_custom_call.1} parent=47 // pred_check
          %p11232 = pneg %p196
        $region66: #{tpu_custom_call.1} parent=47 // pred_check_branch
          %11234 = sbr.rel (%p11232) target = $region68
        $region67: #{tpu_custom_call.1} parent=47 // pred_region
          %s11235 = smul.u32 32, %s26
          %11237 = vsyncadd %s11228, 0
          %s11238 = smul.addr %s11235, 8
          %s11239 = scalar_lea.hbm %s7, %s11238
          %s11240 = sshll.u32 %s11231, 4
          %s11241 = int_to_ptr.vmem [resolvable:$true] %s11240
          %s11242 = sshll.u32 %s11239, 4
          %s11243 = int_to_ptr.hbm [resolvable:$true] %s11242
          %11248 = dma.vmem_to_hbm [thread:$0]  %s11241, 4096, %s11243, %s11228, 128, 128, 8
        $region68: #{tpu_custom_call.1} parent=47 // pred_fallthru
          _
      $region48: #{tpu_custom_call.1} parent=5 // pred_fallthru
        _
      %p11249 = scmp.le.s32.totalorder 2, %s21
      // Predicated region
      $region69: #{tpu_custom_call.1} parent=5 // pred_check
        %p11250 = pneg %p11249
      $region70: #{tpu_custom_call.1} parent=5 // pred_check_branch
        %11252 = sbr.rel (%p11250) target = $region72
      $region71: #{tpu_custom_call.1} parent=5 // pred_region
        %s11253 = ssub.s32 %s21, 2
        // Predicated region
        $region73: #{tpu_custom_call.1} parent=71 // pred_check
          %p11254 = pneg %p202
        $region74: #{tpu_custom_call.1} parent=71 // pred_check_branch
          %11256 = sbr.rel (%p11254) target = $region76
        $region75: #{tpu_custom_call.1} parent=71 // pred_region
          %s11257 = sand.u32 %s187, 1
          %s11258 = scalar_lea.sflag [#allocation8], %s11257
          %s11259 = sand.u32 %s187, 1
          %s11260 = smul.addr %s11259, 256
          %s11261 = scalar_lea.vmem [#allocation14], %s11260
          %11263 = dma.done %s11258, 4096
        $region76: #{tpu_custom_call.1} parent=71 // pred_fallthru
          _
      $region72: #{tpu_custom_call.1} parent=5 // pred_fallthru
        _
    $region6: #{tpu_custom_call.1} parent=1 // loop_footer
      %s25 = sadd.s32 1, %s21
    $region7: #{tpu_custom_call.1} parent=1 // loop_footer_branch
      %20 = sbr.rel target = $region3
    $region8: #{tpu_custom_call.1} parent=1 // loop_exit
      _
    %11264 = vsyncpa [#allocation7], 1
    %s11265 = scalar_lea.sflag [#allocation7], 1
    %11266 = vsyncpa %s11265, 1
    %11267 = vsyncpa [#allocation10], 1
    %11268 = vsyncpa [#allocation13], 1
    %11269 = vsyncpa [#allocation8], 1
    %s11270 = scalar_lea.sflag [#allocation8], 1
    %11271 = vsyncpa %s11270, 1

</llo_original>
